<compile_context>
chip_gen: v7x
topology: tpu7x:2x2x1
jax: 0.10.0
libtpu: 0.0.40
codegen_flags: <defaults>
</compile_context>

<pallas_src>
import functools

import jax
import jax.numpy as jnp
from jax import lax
from jax.experimental import pallas as pl
from jax.experimental.pallas import tpu as pltpu

F32 = jnp.float32
BF16 = jnp.bfloat16
EPS = 1e-5
VMEM_LIMIT = 32 * 1024 * 1024


# ----------------------------------------------------------------------------
# Kernel 1: M-tiled matmul + bias  (bf16 inputs, f32 accumulation)
#   out = x @ w + b
# Used for the fused q|k|v projection and the theta2 (k2) projection.
# ----------------------------------------------------------------------------
def _matmul_bias_kernel(x_ref, w_ref, b_ref, o_ref, *, relu):
    acc = jnp.dot(x_ref[...], w_ref[...], preferred_element_type=jnp.float32)
    out = acc + b_ref[...]
    if relu:
        out = jnp.maximum(out, 0.0)
    o_ref[...] = out.astype(o_ref.dtype)


def _pick_tm(m, cap=256):
    """Largest row-tile <= cap that divides m (prefer multiples of 16)."""
    if m <= cap:
        return m
    for t in range(cap, 15, -16):
        if m % t == 0:
            return t
    for t in range(cap, 7, -8):
        if m % t == 0:
            return t
    return m


def matmul_bias(x, w, b, *, relu=False, out_dtype=F32, tm_cap=256):
    M, K = x.shape
    K2, N = w.shape
    assert K == K2
    tm = _pick_tm(M, tm_cap)
    kern = functools.partial(_matmul_bias_kernel, relu=relu)
    return pl.pallas_call(
        kern,
        out_shape=jax.ShapeDtypeStruct((M, N), out_dtype),
        grid=(M // tm,),
        in_specs=[
            pl.BlockSpec((tm, K), lambda i: (i, 0)),
            pl.BlockSpec((K, N), lambda i: (0, 0)),
            pl.BlockSpec((1, N), lambda i: (0, 0)),
        ],
        out_specs=pl.BlockSpec((tm, N), lambda i: (i, 0)),
        compiler_params=pltpu.CompilerParams(
            dimension_semantics=("parallel",),
            vmem_limit_bytes=VMEM_LIMIT),
    )(x.astype(BF16), w.astype(BF16), b.reshape(1, N).astype(F32))


# ----------------------------------------------------------------------------
# Kernel 2: non-local attention core + W-branch (1x1 conv + folded BN)
#           + residual add, fused, gridded over batch.
# ----------------------------------------------------------------------------
def _softmax_last(x):
    m = jnp.max(x, axis=-1, keepdims=True)
    e = jnp.exp(x - m)
    return e * pl.reciprocal(jnp.sum(e, axis=-1, keepdims=True), approx=True)


def _nonlocal_fused_kernel(qkv_ref, k2t_ref, xres_ref, cw_ref, cb_ref,
                           ww_ref, ws_ref, wb_ref, o_ref, *, ic):
    # fused projections: lane-aligned slices of the (HW3, 3*IC) block
    q1 = qkv_ref[0, :, 0:ic]              # (HW3, IC) bf16
    k1 = qkv_ref[0, :, ic:2 * ic]         # (HW3, IC) bf16
    v1 = qkv_ref[0, :, 2 * ic:3 * ic]     # (HW3, IC) bf16  (natural layout)
    k2t = k2t_ref[0]                      # (IC, HW4) bf16

    # k_attn = softmax(k1 @ k2, dim=-1); torch chunk/cat/permute == transpose,
    # and the 400->IC 1x1 conv on that transpose is just  ka @ cw + cb.
    ka = _softmax_last(jnp.dot(k1, k2t, preferred_element_type=jnp.float32))
    m = jnp.dot(ka.astype(BF16), cw_ref[...],
                preferred_element_type=jnp.float32) + cb_ref[...]   # (HW3, IC)

    dn = (((1,), (1,)), ((), ()))         # contract last dims (A @ B^T)
    attn1 = _softmax_last(
        lax.dot_general(q1, k1, dn, preferred_element_type=jnp.float32))
    attn2 = _softmax_last(
        lax.dot_general(q1, m.astype(BF16), dn,
                        preferred_element_type=jnp.float32))

    # y3 = (attn1 + attn2) @ v1  -- v1 kept (HW3, IC) so this is MXU-native.
    y3 = jnp.dot((attn1 + attn2).astype(BF16), v1,
                 preferred_element_type=jnp.float32)                # (HW3, IC)

    # W branch (1x1 conv 128->256 with folded BN) + residual, in the epilogue.
    wx = jnp.dot(y3.astype(BF16), ww_ref[...],
                 preferred_element_type=jnp.float32)                # (HW3, C3)
    o_ref[0] = wx * ws_ref[...] + wb_ref[...] + xres_ref[0]


def nonlocal_block_fused(qkv, k2t, xres, cw, cb, ww, ws, wb):
    B, HW3, IC3 = qkv.shape
    ic = IC3 // 3
    HW4 = k2t.shape[2]
    C = xres.shape[2]
    kern = functools.partial(_nonlocal_fused_kernel, ic=ic)
    return pl.pallas_call(
        kern,
        out_shape=jax.ShapeDtypeStruct((B, HW3, C), F32),
        grid=(B,),
        in_specs=[
            pl.BlockSpec((1, HW3, IC3), lambda b: (b, 0, 0)),
            pl.BlockSpec((1, ic, HW4), lambda b: (b, 0, 0)),
            pl.BlockSpec((1, HW3, C), lambda b: (b, 0, 0)),
            pl.BlockSpec((HW4, ic), lambda b: (0, 0)),
            pl.BlockSpec((1, ic), lambda b: (0, 0)),
            pl.BlockSpec((ic, C), lambda b: (0, 0)),
            pl.BlockSpec((1, C), lambda b: (0, 0)),
            pl.BlockSpec((1, C), lambda b: (0, 0)),
        ],
        out_specs=pl.BlockSpec((1, HW3, C), lambda b: (b, 0, 0)),
        compiler_params=pltpu.CompilerParams(
            dimension_semantics=("parallel",),
            vmem_limit_bytes=VMEM_LIMIT),
    )(qkv, k2t, xres, cw, cb, ww, ws, wb)


# ----------------------------------------------------------------------------
# Kernel 3: fused conv1(3x3)+bn1+relu -> conv2(3x3)+bn2+relu, per batch.
# The padded activation is read once; the 3x3 "im2col" happens in VMEM as 9
# tap matmuls over row-shifted slabs of the flattened padded image; the
# 64-wide conv1 output stays in a VMEM scratch (never hits HBM).
# ----------------------------------------------------------------------------
def _fused_conv_block_kernel(src_ref, w1_ref, s1_ref, b1_ref,
                             w2_ref, s2_ref, b2_ref,
                             y_ref, acc_ref, h1p_ref, *, H, W):
    Wp = W + 2
    n_rows = H * Wp   # rows of each row-shifted slab

    def conv_stage(read_slab, w_ref_, s_ref_, b_ref_, write_row):
        acc_ref[...] = jnp.zeros_like(acc_ref)
        # acc[dj][h*Wp + w'] = sum_di  xpad[h+di, w'] @ W[di, dj]
        for di in range(3):
            slab = read_slab(di)                       # (H*Wp, Cin) bf16
            for dj in range(3):
                t = di * 3 + dj
                acc_ref[dj] = acc_ref[dj] + jnp.dot(
                    slab, w_ref_[t], preferred_element_type=jnp.float32)
        scale = s_ref_[...]
        shift = b_ref_[...]
        # out[h, w] = sum_dj acc[dj][h*Wp + w + dj]   (w + dj stays inside the
        # padded row, so no cross-row contamination)
        for h in range(H):
            base = h * Wp
            r = (acc_ref[0, base + 0: base + 0 + W, :]
                 + acc_ref[1, base + 1: base + 1 + W, :]
                 + acc_ref[2, base + 2: base + 2 + W, :])
            r = jnp.maximum(r * scale + shift, 0.0)
            write_row(h, r)

    # ---- conv1 + bn1 + relu -> zero-padded VMEM scratch ----
    h1p_ref[...] = jnp.zeros_like(h1p_ref)

    def read_slab1(di):
        return src_ref[0, di * Wp: di * Wp + n_rows, :].astype(BF16)

    def write_row1(h, r):
        start = (h + 1) * Wp + 1
        h1p_ref[start: start + W, :] = r.astype(h1p_ref.dtype)

    conv_stage(read_slab1, w1_ref, s1_ref, b1_ref, write_row1)

    # ---- conv2 + bn2 + relu -> output ----
    def read_slab2(di):
        return h1p_ref[di * Wp: di * Wp + n_rows, :].astype(BF16)

    def write_row2(h, r):
        y_ref[0, h * W: (h + 1) * W, :] = r.astype(y_ref.dtype)

    conv_stage(read_slab2, w2_ref, s2_ref, b2_ref, write_row2)


def fused_conv_block(x_pad_flat, w1, s1, b1, w2, s2, b2, H, W):
    B, HPWP, Cin = x_pad_flat.shape
    assert HPWP == (H + 2) * (W + 2)
    OC = w1.shape[2]
    kern = functools.partial(_fused_conv_block_kernel, H=H, W=W)
    return pl.pallas_call(
        kern,
        out_shape=jax.ShapeDtypeStruct((B, H * W, OC), F32),
        grid=(B,),
        in_specs=[
            pl.BlockSpec((1, HPWP, Cin), lambda b: (b, 0, 0)),
            pl.BlockSpec(w1.shape, lambda b: (0, 0, 0)),
            pl.BlockSpec((1, OC), lambda b: (0, 0)),
            pl.BlockSpec((1, OC), lambda b: (0, 0)),
            pl.BlockSpec(w2.shape, lambda b: (0, 0, 0)),
            pl.BlockSpec((1, OC), lambda b: (0, 0)),
            pl.BlockSpec((1, OC), lambda b: (0, 0)),
        ],
        out_specs=pl.BlockSpec((1, H * W, OC), lambda b: (b, 0, 0)),
        scratch_shapes=[
            pltpu.VMEM((3, H * (W + 2), OC), jnp.float32),   # per-dj accumulators
            pltpu.VMEM(((H + 2) * (W + 2), OC), jnp.float32),  # padded conv1 output
        ],
        compiler_params=pltpu.CompilerParams(
            dimension_semantics=("parallel",),
            vmem_limit_bytes=VMEM_LIMIT),
    )(x_pad_flat, w1.astype(BF16), s1.reshape(1, OC).astype(F32),
      b1.reshape(1, OC).astype(F32), w2.astype(BF16),
      s2.reshape(1, OC).astype(F32), b2.reshape(1, OC).astype(F32))


# ----------------------------------------------------------------------------
# Glue
# ----------------------------------------------------------------------------
def bn_affine(gamma, beta, mean, var, conv_bias):
    """Fold conv bias + inference-mode BatchNorm into (scale, shift)."""
    scale = gamma / jnp.sqrt(var + EPS)
    shift = (conv_bias - mean) * scale + beta
    return scale, shift


def init_params(key, in_channels=256, out_channels=64):
    ic = 256                 # _NonLocalBlockND4 in_channels (hard-coded in module)
    inter = ic // 2          # 128
    ks = jax.random.split(key, 16)

    def rnd(k, shape, s=0.05):
        return (s * jax.random.normal(k, shape)).astype(F32)

    p = {}
    # 1x1 convs stored as (Cin, Cout); biases (Cout,)
    p['g1_w'], p['g1_b'] = rnd(ks[0], (ic, inter)), rnd(ks[1], (inter,))
    p['theta1_w'], p['theta1_b'] = rnd(ks[2], (ic, inter)), rnd(ks[3], (inter,))
    p['phi1_w'], p['phi1_b'] = rnd(ks[4], (ic, inter)), rnd(ks[5], (inter,))
    p['theta2_w'], p['theta2_b'] = rnd(ks[6], (2 * ic, inter)), rnd(ks[7], (inter,))
    # (g2 / phi2 exist in the torch module but their outputs are unused -> omitted)
    p['conv400_w'], p['conv400_b'] = rnd(ks[8], (400, inter)), rnd(ks[9], (inter,))
    p['W_w'], p['W_b'] = rnd(ks[10], (inter, ic)), rnd(ks[11], (ic,))
    p['W_bn_gamma'] = jnp.zeros((ic,), F32)   # nn.init.constant_(W[1].weight, 0)
    p['W_bn_beta'] = jnp.zeros((ic,), F32)    # nn.init.constant_(W[1].bias, 0)
    p['W_bn_mean'] = jnp.zeros((ic,), F32)
    p['W_bn_var'] = jnp.ones((ic,), F32)
    # 3x3 convs stored as (9, Cin, Cout), tap index = kh*3 + kw
    p['conv1_w'] = rnd(ks[12], (9, in_channels, out_channels))
    p['conv1_b'] = rnd(ks[13], (out_channels,))
    p['bn1_gamma'] = jnp.ones((out_channels,), F32)
    p['bn1_beta'] = jnp.zeros((out_channels,), F32)
    p['bn1_mean'] = jnp.zeros((out_channels,), F32)
    p['bn1_var'] = jnp.ones((out_channels,), F32)
    p['conv2_w'] = rnd(ks[14], (9, out_channels, out_channels))
    p['conv2_b'] = rnd(ks[15], (out_channels,))
    p['bn2_gamma'] = jnp.ones((out_channels,), F32)
    p['bn2_beta'] = jnp.zeros((out_channels,), F32)
    p['bn2_mean'] = jnp.zeros((out_channels,), F32)
    p['bn2_var'] = jnp.ones((out_channels,), F32)
    return p


def downsample_block_fuse(x, y, p):
    """x: (B, 256, H3, W3) NCHW; y: (B, 512, H4, W4) NCHW with H4*W4 == 400."""
    B, C3, H3, W3 = x.shape
    _, C4, H4, W4 = y.shape
    HW3, HW4 = H3 * W3, H4 * W4
    assert HW4 == 400, "torch.chunk(k_attn, 400, 2) requires H4*W4 == 400"
    IC = p['theta2_w'].shape[1]                        # 128

    x_nhwc = jnp.transpose(x, (0, 2, 3, 1)).astype(F32)
    y_nhwc = jnp.transpose(y, (0, 2, 3, 1)).astype(F32)
    x_flat = x_nhwc.reshape(B * HW3, C3)
    y_flat = y_nhwc.reshape(B * HW4, C4)

    # --- fused q1|k1|v1 projection (one N=384 matmul) + k2 projection ---
    qkv_w = jnp.concatenate([p['g1_w'], p['theta1_w'], p['phi1_w']], axis=1)
    qkv_b = jnp.concatenate([p['g1_b'], p['theta1_b'], p['phi1_b']], axis=0)
    qkv = matmul_bias(x_flat, qkv_w, qkv_b, out_dtype=BF16)      # (B*HW3, 3*IC)
    k2 = matmul_bias(y_flat, p['theta2_w'], p['theta2_b'], out_dtype=BF16)  # (B*HW4, IC)

    qkv = qkv.reshape(B, HW3, 3 * IC)
    k2t = jnp.transpose(k2.reshape(B, HW4, IC), (0, 2, 1))       # (B, IC, HW4)

    # --- non-local attention + W-branch (Conv1x1 + BN(gamma=0)) + residual ---
    w_scale, w_shift = bn_affine(p['W_bn_gamma'], p['W_bn_beta'],
                                 p['W_bn_mean'], p['W_bn_var'], p['W_b'])
    x_new = nonlocal_block_fused(
        qkv, k2t, x_nhwc.reshape(B, HW3, C3),
        p['conv400_w'].astype(BF16), p['conv400_b'].reshape(1, IC).astype(F32),
        p['W_w'].astype(BF16),
        w_scale.reshape(1, C3).astype(F32), w_shift.reshape(1, C3).astype(F32))

    # --- conv1+bn1+relu -> conv2+bn2+relu (fused, im2col done in VMEM) ---
    s1, b1 = bn_affine(p['bn1_gamma'], p['bn1_beta'], p['bn1_mean'],
                       p['bn1_var'], p['conv1_b'])
    s2, b2 = bn_affine(p['bn2_gamma'], p['bn2_beta'], p['bn2_mean'],
                       p['bn2_var'], p['conv2_b'])
    xpad = jnp.pad(x_new.reshape(B, H3, W3, C3), ((0, 0), (1, 1), (1, 1), (0, 0)))
    xpad_flat = xpad.reshape(B, (H3 + 2) * (W3 + 2), C3)
    OC = p['conv1_w'].shape[2]
    y_new_flat = fused_conv_block(xpad_flat,
                                  p['conv1_w'], s1, b1,
                                  p['conv2_w'], s2, b2, H3, W3)   # (B, HW3, OC)
    y_new_nhwc = y_new_flat.reshape(B, H3, W3, OC)

    # MaxPool2d(2, 2): tiny tensor -> plain reshape-max in the wrapper.
    pooled = y_new_nhwc.reshape(B, H3 // 2, 2, W3 // 2, 2, OC).max(axis=(2, 4))

    x_out = jnp.transpose(pooled, (0, 3, 1, 2))      # back to NCHW
    y_out = jnp.transpose(y_new_nhwc, (0, 3, 1, 2))
    return x_out, y_out


if __name__ == "__main__":
    key = jax.random.PRNGKey(0)
    kx, ky, kp = jax.random.split(key, 3)
    B, OC = 2, 64
    # x -> "y3": 256 channels (fixed by _NonLocalBlockND4(256)); small 8x8 spatial.
    # y -> "y4": 512 channels; 20x20 so that H4*W4 == 400 (required by chunk(...,400)).
    x = jax.random.normal(kx, (B, 256, 8, 8), F32)
    y = jax.random.normal(ky, (B, 512, 20, 20), F32)
    params = init_params(kp, in_channels=256, out_channels=OC)

    fwd = jax.jit(functools.partial(downsample_block_fuse, p=params))
    x_new, y_new = fwd(x, y)
    jax.block_until_ready((x_new, y_new))

    assert x_new.shape == (B, OC, 4, 4), x_new.shape
    assert y_new.shape == (B, OC, 8, 8), y_new.shape
    assert bool(jnp.all(jnp.isfinite(x_new))) and bool(jnp.all(jnp.isfinite(y_new)))
    print("KERNEL_OK")
</pallas_src>

<mosaic_0001>
module attributes {stable_mosaic.version = 11 : i64} {
  func.func @_matmul_bias_kernel(%arg0: i32, %arg1: memref<160x512xbf16, #tpu.memory_space<vmem>>, %arg2: memref<512x128xbf16, #tpu.memory_space<vmem>>, %arg3: memref<1x128xf32, #tpu.memory_space<vmem>>, %arg4: memref<160x128xbf16, #tpu.memory_space<vmem>>) attributes {dimension_semantics = [#tpu.dimension_semantics<parallel>], iteration_bounds = array<i64: 5>, scalar_prefetch = 0 : i64, scratch_operands = 0 : i64, tpu.core_type = #tpu.core_type<tc>, window_params = [{transform_indices = @transform_0, window_bounds = array<i64: 160, 512>}, {pipeline_mode = #tpu.pipeline_mode<synchronous>, transform_indices = @transform_1, window_bounds = array<i64: 512, 128>}, {pipeline_mode = #tpu.pipeline_mode<synchronous>, transform_indices = @transform_2, window_bounds = array<i64: 1, 128>}, {transform_indices = @transform_3, window_bounds = array<i64: 160, 128>}]} {
    %c0 = arith.constant 0 : index
    %c0_0 = arith.constant 0 : index
    %0 = vector.load %arg1[%c0, %c0_0] : memref<160x512xbf16, #tpu.memory_space<vmem>>, vector<160x512xbf16>
    %c0_1 = arith.constant 0 : index
    %c0_2 = arith.constant 0 : index
    %1 = vector.load %arg2[%c0_1, %c0_2] : memref<512x128xbf16, #tpu.memory_space<vmem>>, vector<512x128xbf16>
    %cst = arith.constant dense<0.000000e+00> : vector<160x128xf32>
    %2 = tpu.matmul %0, %1, %cst {dimension_numbers = #tpu.dot_dimension_numbers<[1], [0], [0], [1], [0, 0, 1, 1], [], []>} : vector<160x512xbf16>, vector<512x128xbf16>, vector<160x128xf32> -> vector<160x128xf32>
    %c0_3 = arith.constant 0 : index
    %c0_4 = arith.constant 0 : index
    %3 = vector.load %arg3[%c0_3, %c0_4] : memref<1x128xf32, #tpu.memory_space<vmem>>, vector<1x128xf32>
    %4 = vector.broadcast %3 : vector<1x128xf32> to vector<160x128xf32>
    %5 = arith.addf %2, %4 : vector<160x128xf32>
    %6 = arith.truncf %5 : vector<160x128xf32> to vector<160x128xbf16>
    %c0_5 = arith.constant 0 : index
    %c0_6 = arith.constant 0 : index
    %7 = vector.load %arg4[%c0_5, %c0_6] : memref<160x128xbf16, #tpu.memory_space<vmem>>, vector<160x128xbf16>
    tpu.vector_store %arg4[%c0_5, %c0_6], %6 {strides = array<i32>} : memref<160x128xbf16, #tpu.memory_space<vmem>>, vector<160x128xbf16>,
    return
  }
  func.func @transform_0(%arg0: i32) -> (i32, i32) {
    %c0_i32 = arith.constant 0 : i32
    %c0_i32_0 = arith.constant 0 : i32
    return %arg0, %c0_i32 : i32, i32
  }
  func.func @transform_1(%arg0: i32) -> (i32, i32) {
    %c0_i32 = arith.constant 0 : i32
    %c0_i32_0 = arith.constant 0 : i32
    %c0_i32_1 = arith.constant 0 : i32
    return %c0_i32, %c0_i32_0 : i32, i32
  }
  func.func @transform_2(%arg0: i32) -> (i32, i32) {
    %c0_i32 = arith.constant 0 : i32
    %c0_i32_0 = arith.constant 0 : i32
    %c0_i32_1 = arith.constant 0 : i32
    return %c0_i32, %c0_i32_0 : i32, i32
  }
  func.func @transform_3(%arg0: i32) -> (i32, i32) {
    %c0_i32 = arith.constant 0 : i32
    %c0_i32_0 = arith.constant 0 : i32
    return %arg0, %c0_i32 : i32, i32
  }
}

module attributes {stable_mosaic.version = 11 : i64} {
  func.func @_matmul_bias_kernel(%arg0: i32, %arg1: memref<128x256xbf16, #tpu.memory_space<vmem>>, %arg2: memref<256x384xbf16, #tpu.memory_space<vmem>>, %arg3: memref<1x384xf32, #tpu.memory_space<vmem>>, %arg4: memref<128x384xbf16, #tpu.memory_space<vmem>>) attributes {dimension_semantics = [#tpu.dimension_semantics<parallel>], iteration_bounds = array<i64: 1>, scalar_prefetch = 0 : i64, scratch_operands = 0 : i64, tpu.core_type = #tpu.core_type<tc>, window_params = [{transform_indices = @transform_0, window_bounds = array<i64: 128, 256>}, {pipeline_mode = #tpu.pipeline_mode<synchronous>, transform_indices = @transform_1, window_bounds = array<i64: 256, 384>}, {pipeline_mode = #tpu.pipeline_mode<synchronous>, transform_indices = @transform_2, window_bounds = array<i64: 1, 384>}, {transform_indices = @transform_3, window_bounds = array<i64: 128, 384>}]} {
    %c0 = arith.constant 0 : index
    %c0_0 = arith.constant 0 : index
    %0 = vector.load %arg1[%c0, %c0_0] : memref<128x256xbf16, #tpu.memory_space<vmem>>, vector<128x256xbf16>
    %c0_1 = arith.constant 0 : index
    %c0_2 = arith.constant 0 : index
    %1 = vector.load %arg2[%c0_1, %c0_2] : memref<256x384xbf16, #tpu.memory_space<vmem>>, vector<256x384xbf16>
    %cst = arith.constant dense<0.000000e+00> : vector<128x384xf32>
    %2 = tpu.matmul %0, %1, %cst {dimension_numbers = #tpu.dot_dimension_numbers<[1], [0], [0], [1], [0, 0, 1, 1], [], []>} : vector<128x256xbf16>, vector<256x384xbf16>, vector<128x384xf32> -> vector<128x384xf32>
    %c0_3 = arith.constant 0 : index
    %c0_4 = arith.constant 0 : index
    %3 = vector.load %arg3[%c0_3, %c0_4] : memref<1x384xf32, #tpu.memory_space<vmem>>, vector<1x384xf32>
    %4 = vector.broadcast %3 : vector<1x384xf32> to vector<128x384xf32>
    %5 = arith.addf %2, %4 : vector<128x384xf32>
    %6 = arith.truncf %5 : vector<128x384xf32> to vector<128x384xbf16>
    %c0_5 = arith.constant 0 : index
    %c0_6 = arith.constant 0 : index
    %7 = vector.load %arg4[%c0_5, %c0_6] : memref<128x384xbf16, #tpu.memory_space<vmem>>, vector<128x384xbf16>
    tpu.vector_store %arg4[%c0_5, %c0_6], %6 {strides = array<i32>} : memref<128x384xbf16, #tpu.memory_space<vmem>>, vector<128x384xbf16>,
    return
  }
  func.func @transform_0(%arg0: i32) -> (i32, i32) {
    %c0_i32 = arith.constant 0 : i32
    %c0_i32_0 = arith.constant 0 : i32
    return %arg0, %c0_i32 : i32, i32
  }
  func.func @transform_1(%arg0: i32) -> (i32, i32) {
    %c0_i32 = arith.constant 0 : i32
    %c0_i32_0 = arith.constant 0 : i32
    %c0_i32_1 = arith.constant 0 : i32
    return %c0_i32, %c0_i32_0 : i32, i32
  }
  func.func @transform_2(%arg0: i32) -> (i32, i32) {
    %c0_i32 = arith.constant 0 : i32
    %c0_i32_0 = arith.constant 0 : i32
    %c0_i32_1 = arith.constant 0 : i32
    return %c0_i32, %c0_i32_0 : i32, i32
  }
  func.func @transform_3(%arg0: i32) -> (i32, i32) {
    %c0_i32 = arith.constant 0 : i32
    %c0_i32_0 = arith.constant 0 : i32
    return %arg0, %c0_i32 : i32, i32
  }
}

module attributes {stable_mosaic.version = 11 : i64} {
  func.func @_nonlocal_fused_kernel(%arg0: i32, %arg1: memref<1x64x384xbf16, #tpu.memory_space<vmem>>, %arg2: memref<1x128x400xbf16, #tpu.memory_space<vmem>>, %arg3: memref<1x64x256xf32, #tpu.memory_space<vmem>>, %arg4: memref<400x128xbf16, #tpu.memory_space<vmem>>, %arg5: memref<1x128xf32, #tpu.memory_space<vmem>>, %arg6: memref<128x256xbf16, #tpu.memory_space<vmem>>, %arg7: memref<1x256xf32, #tpu.memory_space<vmem>>, %arg8: memref<1x256xf32, #tpu.memory_space<vmem>>, %arg9: memref<1x64x256xf32, #tpu.memory_space<vmem>>) attributes {dimension_semantics = [#tpu.dimension_semantics<parallel>], iteration_bounds = array<i64: 2>, scalar_prefetch = 0 : i64, scratch_operands = 0 : i64, tpu.core_type = #tpu.core_type<tc>, window_params = [{transform_indices = @transform_0, window_bounds = array<i64: 1, 64, 384>}, {transform_indices = @transform_1, window_bounds = array<i64: 1, 128, 400>}, {transform_indices = @transform_2, window_bounds = array<i64: 1, 64, 256>}, {pipeline_mode = #tpu.pipeline_mode<synchronous>, transform_indices = @transform_3, window_bounds = array<i64: 400, 128>}, {pipeline_mode = #tpu.pipeline_mode<synchronous>, transform_indices = @transform_4, window_bounds = array<i64: 1, 128>}, {pipeline_mode = #tpu.pipeline_mode<synchronous>, transform_indices = @transform_5, window_bounds = array<i64: 128, 256>}, {pipeline_mode = #tpu.pipeline_mode<synchronous>, transform_indices = @transform_6, window_bounds = array<i64: 1, 256>}, {pipeline_mode = #tpu.pipeline_mode<synchronous>, transform_indices = @transform_7, window_bounds = array<i64: 1, 256>}, {transform_indices = @transform_8, window_bounds = array<i64: 1, 64, 256>}]} {
    %c0 = arith.constant 0 : index
    %c0_0 = arith.constant 0 : index
    %c0_1 = arith.constant 0 : index
    %0 = vector.load %arg1[%c0, %c0_0, %c0_1] : memref<1x64x384xbf16, #tpu.memory_space<vmem>>, vector<1x64x128xbf16>
    %1 = vector.shape_cast %0 : vector<1x64x128xbf16> to vector<64x128xbf16>
    %c0_2 = arith.constant 0 : index
    %c0_3 = arith.constant 0 : index
    %c128 = arith.constant 128 : index
    %2 = vector.load %arg1[%c0_2, %c0_3, %c128] : memref<1x64x384xbf16, #tpu.memory_space<vmem>>, vector<1x64x128xbf16>
    %3 = vector.shape_cast %2 : vector<1x64x128xbf16> to vector<64x128xbf16>
    %c0_4 = arith.constant 0 : index
    %c0_5 = arith.constant 0 : index
    %c256 = arith.constant 256 : index
    %4 = vector.load %arg1[%c0_4, %c0_5, %c256] : memref<1x64x384xbf16, #tpu.memory_space<vmem>>, vector<1x64x128xbf16>
    %5 = vector.shape_cast %4 : vector<1x64x128xbf16> to vector<64x128xbf16>
    %c0_6 = arith.constant 0 : index
    %c0_7 = arith.constant 0 : index
    %c0_8 = arith.constant 0 : index
    %6 = vector.load %arg2[%c0_6, %c0_7, %c0_8] : memref<1x128x400xbf16, #tpu.memory_space<vmem>>, vector<1x128x400xbf16>
    %7 = vector.shape_cast %6 : vector<1x128x400xbf16> to vector<128x400xbf16>
    %cst = arith.constant dense<0.000000e+00> : vector<64x400xf32>
    %8 = tpu.matmul %3, %7, %cst {dimension_numbers = #tpu.dot_dimension_numbers<[1], [0], [0], [1], [0, 0, 1, 1], [], []>} : vector<64x128xbf16>, vector<128x400xbf16>, vector<64x400xf32> -> vector<64x400xf32>
    %cst_9 = arith.constant dense<0xFF800000> : vector<64xf32>
    %9 = vector.multi_reduction <maximumf>, %8, %cst_9 [1] : vector<64x400xf32> to vector<64xf32>
    %10 = vector.shape_cast %9 : vector<64xf32> to vector<64x1xf32>
    %11 = vector.broadcast %10 : vector<64x1xf32> to vector<64x400xf32>
    %12 = arith.subf %8, %11 : vector<64x400xf32>
    %13 = math.exp %12 : vector<64x400xf32>
    %cst_10 = arith.constant dense<0.000000e+00> : vector<64xf32>
    %14 = vector.multi_reduction <add>, %13, %cst_10 [1] : vector<64x400xf32> to vector<64xf32>
    %15 = vector.shape_cast %14 : vector<64xf32> to vector<64x1xf32>
    %16 = tpu.reciprocal %15 {approx = true} : vector<64x1xf32> -> vector<64x1xf32>
    %17 = vector.broadcast %16 : vector<64x1xf32> to vector<64x400xf32>
    %18 = arith.mulf %13, %17 : vector<64x400xf32>
    %19 = arith.truncf %18 : vector<64x400xf32> to vector<64x400xbf16>
    %c0_11 = arith.constant 0 : index
    %c0_12 = arith.constant 0 : index
    %20 = vector.load %arg4[%c0_11, %c0_12] : memref<400x128xbf16, #tpu.memory_space<vmem>>, vector<400x128xbf16>
    %cst_13 = arith.constant dense<0.000000e+00> : vector<64x128xf32>
    %21 = tpu.matmul %19, %20, %cst_13 {dimension_numbers = #tpu.dot_dimension_numbers<[1], [0], [0], [1], [0, 0, 1, 1], [], []>} : vector<64x400xbf16>, vector<400x128xbf16>, vector<64x128xf32> -> vector<64x128xf32>
    %c0_14 = arith.constant 0 : index
    %c0_15 = arith.constant 0 : index
    %22 = vector.load %arg5[%c0_14, %c0_15] : memref<1x128xf32, #tpu.memory_space<vmem>>, vector<1x128xf32>
    %23 = vector.broadcast %22 : vector<1x128xf32> to vector<64x128xf32>
    %24 = arith.addf %21, %23 : vector<64x128xf32>
    %cst_16 = arith.constant dense<0.000000e+00> : vector<64x64xf32>
    %25 = tpu.matmul %1, %3, %cst_16 {dimension_numbers = #tpu.dot_dimension_numbers<[1], [1], [0], [0], [0, 0, 1, 0], [], []>} : vector<64x128xbf16>, vector<64x128xbf16>, vector<64x64xf32> -> vector<64x64xf32>
    %cst_17 = arith.constant dense<0xFF800000> : vector<64xf32>
    %26 = vector.multi_reduction <maximumf>, %25, %cst_17 [1] : vector<64x64xf32> to vector<64xf32>
    %27 = vector.shape_cast %26 : vector<64xf32> to vector<64x1xf32>
    %28 = vector.broadcast %27 : vector<64x1xf32> to vector<64x64xf32>
    %29 = arith.subf %25, %28 : vector<64x64xf32>
    %30 = math.exp %29 : vector<64x64xf32>
    %cst_18 = arith.constant dense<0.000000e+00> : vector<64xf32>
    %31 = vector.multi_reduction <add>, %30, %cst_18 [1] : vector<64x64xf32> to vector<64xf32>
    %32 = vector.shape_cast %31 : vector<64xf32> to vector<64x1xf32>
    %33 = tpu.reciprocal %32 {approx = true} : vector<64x1xf32> -> vector<64x1xf32>
    %34 = vector.broadcast %33 : vector<64x1xf32> to vector<64x64xf32>
    %35 = arith.mulf %30, %34 : vector<64x64xf32>
    %36 = arith.truncf %24 : vector<64x128xf32> to vector<64x128xbf16>
    %cst_19 = arith.constant dense<0.000000e+00> : vector<64x64xf32>
    %37 = tpu.matmul %1, %36, %cst_19 {dimension_numbers = #tpu.dot_dimension_numbers<[1], [1], [0], [0], [0, 0, 1, 0], [], []>} : vector<64x128xbf16>, vector<64x128xbf16>, vector<64x64xf32> -> vector<64x64xf32>
    %cst_20 = arith.constant dense<0xFF800000> : vector<64xf32>
    %38 = vector.multi_reduction <maximumf>, %37, %cst_20 [1] : vector<64x64xf32> to vector<64xf32>
    %39 = vector.shape_cast %38 : vector<64xf32> to vector<64x1xf32>
    %40 = vector.broadcast %39 : vector<64x1xf32> to vector<64x64xf32>
    %41 = arith.subf %37, %40 : vector<64x64xf32>
    %42 = math.exp %41 : vector<64x64xf32>
    %cst_21 = arith.constant dense<0.000000e+00> : vector<64xf32>
    %43 = vector.multi_reduction <add>, %42, %cst_21 [1] : vector<64x64xf32> to vector<64xf32>
    %44 = vector.shape_cast %43 : vector<64xf32> to vector<64x1xf32>
    %45 = tpu.reciprocal %44 {approx = true} : vector<64x1xf32> -> vector<64x1xf32>
    %46 = vector.broadcast %45 : vector<64x1xf32> to vector<64x64xf32>
    %47 = arith.mulf %42, %46 : vector<64x64xf32>
    %48 = arith.addf %35, %47 : vector<64x64xf32>
    %49 = arith.truncf %48 : vector<64x64xf32> to vector<64x64xbf16>
    %cst_22 = arith.constant dense<0.000000e+00> : vector<64x128xf32>
    %50 = tpu.matmul %49, %5, %cst_22 {dimension_numbers = #tpu.dot_dimension_numbers<[1], [0], [0], [1], [0, 0, 1, 1], [], []>} : vector<64x64xbf16>, vector<64x128xbf16>, vector<64x128xf32> -> vector<64x128xf32>
    %51 = arith.truncf %50 : vector<64x128xf32> to vector<64x128xbf16>
    %c0_23 = arith.constant 0 : index
    %c0_24 = arith.constant 0 : index
    %52 = vector.load %arg6[%c0_23, %c0_24] : memref<128x256xbf16, #tpu.memory_space<vmem>>, vector<128x256xbf16>
    %cst_25 = arith.constant dense<0.000000e+00> : vector<64x256xf32>
    %53 = tpu.matmul %51, %52, %cst_25 {dimension_numbers = #tpu.dot_dimension_numbers<[1], [0], [0], [1], [0, 0, 1, 1], [], []>} : vector<64x128xbf16>, vector<128x256xbf16>, vector<64x256xf32> -> vector<64x256xf32>
    %c0_26 = arith.constant 0 : index
    %c0_27 = arith.constant 0 : index
    %54 = vector.load %arg7[%c0_26, %c0_27] : memref<1x256xf32, #tpu.memory_space<vmem>>, vector<1x256xf32>
    %55 = vector.broadcast %54 : vector<1x256xf32> to vector<64x256xf32>
    %56 = arith.mulf %53, %55 : vector<64x256xf32>
    %c0_28 = arith.constant 0 : index
    %c0_29 = arith.constant 0 : index
    %57 = vector.load %arg8[%c0_28, %c0_29] : memref<1x256xf32, #tpu.memory_space<vmem>>, vector<1x256xf32>
    %58 = vector.broadcast %57 : vector<1x256xf32> to vector<64x256xf32>
    %59 = arith.addf %56, %58 : vector<64x256xf32>
    %c0_30 = arith.constant 0 : index
    %c0_31 = arith.constant 0 : index
    %c0_32 = arith.constant 0 : index
    %60 = vector.load %arg3[%c0_30, %c0_31, %c0_32] : memref<1x64x256xf32, #tpu.memory_space<vmem>>, vector<1x64x256xf32>
    %61 = vector.shape_cast %60 : vector<1x64x256xf32> to vector<64x256xf32>
    %62 = arith.addf %59, %61 : vector<64x256xf32>
    %c0_33 = arith.constant 0 : index
    %c0_34 = arith.constant 0 : index
    %c0_35 = arith.constant 0 : index
    %63 = vector.load %arg9[%c0_33, %c0_34, %c0_35] : memref<1x64x256xf32, #tpu.memory_space<vmem>>, vector<1x64x256xf32>
    %64 = vector.shape_cast %63 : vector<1x64x256xf32> to vector<64x256xf32>
    %65 = vector.shape_cast %62 : vector<64x256xf32> to vector<1x64x256xf32>
    tpu.vector_store %arg9[%c0_33, %c0_34, %c0_35], %65 {strides = array<i32>} : memref<1x64x256xf32, #tpu.memory_space<vmem>>, vector<1x64x256xf32>,
    return
  }
  func.func @transform_0(%arg0: i32) -> (i32, i32, i32) {
    %c0_i32 = arith.constant 0 : i32
    %c0_i32_0 = arith.constant 0 : i32
    %c0_i32_1 = arith.constant 0 : i32
    return %arg0, %c0_i32, %c0_i32_0 : i32, i32, i32
  }
  func.func @transform_1(%arg0: i32) -> (i32, i32, i32) {
    %c0_i32 = arith.constant 0 : i32
    %c0_i32_0 = arith.constant 0 : i32
    %c0_i32_1 = arith.constant 0 : i32
    return %arg0, %c0_i32, %c0_i32_0 : i32, i32, i32
  }
  func.func @transform_2(%arg0: i32) -> (i32, i32, i32) {
    %c0_i32 = arith.constant 0 : i32
    %c0_i32_0 = arith.constant 0 : i32
    %c0_i32_1 = arith.constant 0 : i32
    return %arg0, %c0_i32, %c0_i32_0 : i32, i32, i32
  }
  func.func @transform_3(%arg0: i32) -> (i32, i32) {
    %c0_i32 = arith.constant 0 : i32
    %c0_i32_0 = arith.constant 0 : i32
    %c0_i32_1 = arith.constant 0 : i32
    return %c0_i32, %c0_i32_0 : i32, i32
  }
  func.func @transform_4(%arg0: i32) -> (i32, i32) {
    %c0_i32 = arith.constant 0 : i32
    %c0_i32_0 = arith.constant 0 : i32
    %c0_i32_1 = arith.constant 0 : i32
    return %c0_i32, %c0_i32_0 : i32, i32
  }
  func.func @transform_5(%arg0: i32) -> (i32, i32) {
    %c0_i32 = arith.constant 0 : i32
    %c0_i32_0 = arith.constant 0 : i32
    %c0_i32_1 = arith.constant 0 : i32
    return %c0_i32, %c0_i32_0 : i32, i32
  }
  func.func @transform_6(%arg0: i32) -> (i32, i32) {
    %c0_i32 = arith.constant 0 : i32
    %c0_i32_0 = arith.constant 0 : i32
    %c0_i32_1 = arith.constant 0 : i32
    return %c0_i32, %c0_i32_0 : i32, i32
  }
  func.func @transform_7(%arg0: i32) -> (i32, i32) {
    %c0_i32 = arith.constant 0 : i32
    %c0_i32_0 = arith.constant 0 : i32
    %c0_i32_1 = arith.constant 0 : i32
    return %c0_i32, %c0_i32_0 : i32, i32
  }
  func.func @transform_8(%arg0: i32) -> (i32, i32, i32) {
    %c0_i32 = arith.constant 0 : i32
    %c0_i32_0 = arith.constant 0 : i32
    %c0_i32_1 = arith.constant 0 : i32
    return %arg0, %c0_i32, %c0_i32_0 : i32, i32, i32
  }
}

module attributes {stable_mosaic.version = 11 : i64} {
  func.func @_fused_conv_block_kernel(%arg0: i32, %arg1: memref<1x100x256xf32, #tpu.memory_space<vmem>>, %arg2: memref<9x256x64xbf16, #tpu.memory_space<vmem>>, %arg3: memref<1x64xf32, #tpu.memory_space<vmem>>, %arg4: memref<1x64xf32, #tpu.memory_space<vmem>>, %arg5: memref<9x64x64xbf16, #tpu.memory_space<vmem>>, %arg6: memref<1x64xf32, #tpu.memory_space<vmem>>, %arg7: memref<1x64xf32, #tpu.memory_space<vmem>>, %arg8: memref<1x64x64xf32, #tpu.memory_space<vmem>>, %arg9: memref<3x80x64xf32, #tpu.memory_space<vmem>>, %arg10: memref<100x64xf32, #tpu.memory_space<vmem>>) attributes {dimension_semantics = [#tpu.dimension_semantics<parallel>], iteration_bounds = array<i64: 2>, scalar_prefetch = 0 : i64, scratch_operands = 2 : i64, tpu.core_type = #tpu.core_type<tc>, window_params = [{transform_indices = @transform_0, window_bounds = array<i64: 1, 100, 256>}, {pipeline_mode = #tpu.pipeline_mode<synchronous>, transform_indices = @transform_1, window_bounds = array<i64: 9, 256, 64>}, {pipeline_mode = #tpu.pipeline_mode<synchronous>, transform_indices = @transform_2, window_bounds = array<i64: 1, 64>}, {pipeline_mode = #tpu.pipeline_mode<synchronous>, transform_indices = @transform_3, window_bounds = array<i64: 1, 64>}, {pipeline_mode = #tpu.pipeline_mode<synchronous>, transform_indices = @transform_4, window_bounds = array<i64: 9, 64, 64>}, {pipeline_mode = #tpu.pipeline_mode<synchronous>, transform_indices = @transform_5, window_bounds = array<i64: 1, 64>}, {pipeline_mode = #tpu.pipeline_mode<synchronous>, transform_indices = @transform_6, window_bounds = array<i64: 1, 64>}, {transform_indices = @transform_7, window_bounds = array<i64: 1, 64, 64>}]} {
    %cst = arith.constant 0.000000e+00 : f32
    %0 = vector.broadcast %cst : f32 to vector<100x64xf32>
    %c0 = arith.constant 0 : index
    %c0_0 = arith.constant 0 : index
    %1 = vector.load %arg10[%c0, %c0_0] : memref<100x64xf32, #tpu.memory_space<vmem>>, vector<100x64xf32>
    tpu.vector_store %arg10[%c0, %c0_0], %0 {strides = array<i32>} : memref<100x64xf32, #tpu.memory_space<vmem>>, vector<100x64xf32>,
    %cst_1 = arith.constant 0.000000e+00 : f32
    %2 = vector.broadcast %cst_1 : f32 to vector<3x80x64xf32>
    %c0_2 = arith.constant 0 : index
    %c0_3 = arith.constant 0 : index
    %c0_4 = arith.constant 0 : index
    %3 = vector.load %arg9[%c0_2, %c0_3, %c0_4] : memref<3x80x64xf32, #tpu.memory_space<vmem>>, vector<3x80x64xf32>
    tpu.vector_store %arg9[%c0_2, %c0_3, %c0_4], %2 {strides = array<i32>} : memref<3x80x64xf32, #tpu.memory_space<vmem>>, vector<3x80x64xf32>,
    %c0_5 = arith.constant 0 : index
    %c0_6 = arith.constant 0 : index
    %c0_7 = arith.constant 0 : index
    %4 = vector.load %arg1[%c0_5, %c0_6, %c0_7] : memref<1x100x256xf32, #tpu.memory_space<vmem>>, vector<1x80x256xf32>
    %5 = vector.shape_cast %4 : vector<1x80x256xf32> to vector<80x256xf32>
    %6 = arith.truncf %5 : vector<80x256xf32> to vector<80x256xbf16>
    %c0_8 = arith.constant 0 : index
    %c0_9 = arith.constant 0 : index
    %c0_10 = arith.constant 0 : index
    %7 = vector.load %arg9[%c0_8, %c0_9, %c0_10] : memref<3x80x64xf32, #tpu.memory_space<vmem>>, vector<1x80x64xf32>
    %8 = vector.shape_cast %7 : vector<1x80x64xf32> to vector<80x64xf32>
    %c0_11 = arith.constant 0 : index
    %c0_12 = arith.constant 0 : index
    %c0_13 = arith.constant 0 : index
    %9 = vector.load %arg2[%c0_11, %c0_12, %c0_13] : memref<9x256x64xbf16, #tpu.memory_space<vmem>>, vector<1x256x64xbf16>
    %10 = vector.shape_cast %9 : vector<1x256x64xbf16> to vector<256x64xbf16>
    %cst_14 = arith.constant dense<0.000000e+00> : vector<80x64xf32>
    %11 = tpu.matmul %6, %10, %cst_14 {dimension_numbers = #tpu.dot_dimension_numbers<[1], [0], [0], [1], [0, 0, 1, 1], [], []>} : vector<80x256xbf16>, vector<256x64xbf16>, vector<80x64xf32> -> vector<80x64xf32>
    %12 = arith.addf %8, %11 : vector<80x64xf32>
    %c0_15 = arith.constant 0 : index
    %c0_16 = arith.constant 0 : index
    %c0_17 = arith.constant 0 : index
    %13 = vector.load %arg9[%c0_15, %c0_16, %c0_17] : memref<3x80x64xf32, #tpu.memory_space<vmem>>, vector<1x80x64xf32>
    %14 = vector.shape_cast %13 : vector<1x80x64xf32> to vector<80x64xf32>
    %15 = vector.shape_cast %12 : vector<80x64xf32> to vector<1x80x64xf32>
    tpu.vector_store %arg9[%c0_15, %c0_16, %c0_17], %15 {strides = array<i32>} : memref<3x80x64xf32, #tpu.memory_space<vmem>>, vector<1x80x64xf32>,
    %c1 = arith.constant 1 : index
    %c0_18 = arith.constant 0 : index
    %c0_19 = arith.constant 0 : index
    %16 = vector.load %arg9[%c1, %c0_18, %c0_19] : memref<3x80x64xf32, #tpu.memory_space<vmem>>, vector<1x80x64xf32>
    %17 = vector.shape_cast %16 : vector<1x80x64xf32> to vector<80x64xf32>
    %c1_20 = arith.constant 1 : index
    %c0_21 = arith.constant 0 : index
    %c0_22 = arith.constant 0 : index
    %18 = vector.load %arg2[%c1_20, %c0_21, %c0_22] : memref<9x256x64xbf16, #tpu.memory_space<vmem>>, vector<1x256x64xbf16>
    %19 = vector.shape_cast %18 : vector<1x256x64xbf16> to vector<256x64xbf16>
    %cst_23 = arith.constant dense<0.000000e+00> : vector<80x64xf32>
    %20 = tpu.matmul %6, %19, %cst_23 {dimension_numbers = #tpu.dot_dimension_numbers<[1], [0], [0], [1], [0, 0, 1, 1], [], []>} : vector<80x256xbf16>, vector<256x64xbf16>, vector<80x64xf32> -> vector<80x64xf32>
    %21 = arith.addf %17, %20 : vector<80x64xf32>
    %c1_24 = arith.constant 1 : index
    %c0_25 = arith.constant 0 : index
    %c0_26 = arith.constant 0 : index
    %22 = vector.load %arg9[%c1_24, %c0_25, %c0_26] : memref<3x80x64xf32, #tpu.memory_space<vmem>>, vector<1x80x64xf32>
    %23 = vector.shape_cast %22 : vector<1x80x64xf32> to vector<80x64xf32>
    %24 = vector.shape_cast %21 : vector<80x64xf32> to vector<1x80x64xf32>
    tpu.vector_store %arg9[%c1_24, %c0_25, %c0_26], %24 {strides = array<i32>} : memref<3x80x64xf32, #tpu.memory_space<vmem>>, vector<1x80x64xf32>,
    %c2 = arith.constant 2 : index
    %c0_27 = arith.constant 0 : index
    %c0_28 = arith.constant 0 : index
    %25 = vector.load %arg9[%c2, %c0_27, %c0_28] : memref<3x80x64xf32, #tpu.memory_space<vmem>>, vector<1x80x64xf32>
    %26 = vector.shape_cast %25 : vector<1x80x64xf32> to vector<80x64xf32>
    %c2_29 = arith.constant 2 : index
    %c0_30 = arith.constant 0 : index
    %c0_31 = arith.constant 0 : index
    %27 = vector.load %arg2[%c2_29, %c0_30, %c0_31] : memref<9x256x64xbf16, #tpu.memory_space<vmem>>, vector<1x256x64xbf16>
    %28 = vector.shape_cast %27 : vector<1x256x64xbf16> to vector<256x64xbf16>
    %cst_32 = arith.constant dense<0.000000e+00> : vector<80x64xf32>
    %29 = tpu.matmul %6, %28, %cst_32 {dimension_numbers = #tpu.dot_dimension_numbers<[1], [0], [0], [1], [0, 0, 1, 1], [], []>} : vector<80x256xbf16>, vector<256x64xbf16>, vector<80x64xf32> -> vector<80x64xf32>
    %30 = arith.addf %26, %29 : vector<80x64xf32>
    %c2_33 = arith.constant 2 : index
    %c0_34 = arith.constant 0 : index
    %c0_35 = arith.constant 0 : index
    %31 = vector.load %arg9[%c2_33, %c0_34, %c0_35] : memref<3x80x64xf32, #tpu.memory_space<vmem>>, vector<1x80x64xf32>
    %32 = vector.shape_cast %31 : vector<1x80x64xf32> to vector<80x64xf32>
    %33 = vector.shape_cast %30 : vector<80x64xf32> to vector<1x80x64xf32>
    tpu.vector_store %arg9[%c2_33, %c0_34, %c0_35], %33 {strides = array<i32>} : memref<3x80x64xf32, #tpu.memory_space<vmem>>, vector<1x80x64xf32>,
    %c0_36 = arith.constant 0 : index
    %c10 = arith.constant 10 : index
    %c0_37 = arith.constant 0 : index
    %34 = vector.load %arg1[%c0_36, %c10, %c0_37] : memref<1x100x256xf32, #tpu.memory_space<vmem>>, vector<1x80x256xf32>
    %35 = vector.shape_cast %34 : vector<1x80x256xf32> to vector<80x256xf32>
    %36 = arith.truncf %35 : vector<80x256xf32> to vector<80x256xbf16>
    %c0_38 = arith.constant 0 : index
    %c0_39 = arith.constant 0 : index
    %c0_40 = arith.constant 0 : index
    %37 = vector.load %arg9[%c0_38, %c0_39, %c0_40] : memref<3x80x64xf32, #tpu.memory_space<vmem>>, vector<1x80x64xf32>
    %38 = vector.shape_cast %37 : vector<1x80x64xf32> to vector<80x64xf32>
    %c3 = arith.constant 3 : index
    %c0_41 = arith.constant 0 : index
    %c0_42 = arith.constant 0 : index
    %39 = vector.load %arg2[%c3, %c0_41, %c0_42] : memref<9x256x64xbf16, #tpu.memory_space<vmem>>, vector<1x256x64xbf16>
    %40 = vector.shape_cast %39 : vector<1x256x64xbf16> to vector<256x64xbf16>
    %cst_43 = arith.constant dense<0.000000e+00> : vector<80x64xf32>
    %41 = tpu.matmul %36, %40, %cst_43 {dimension_numbers = #tpu.dot_dimension_numbers<[1], [0], [0], [1], [0, 0, 1, 1], [], []>} : vector<80x256xbf16>, vector<256x64xbf16>, vector<80x64xf32> -> vector<80x64xf32>
    %42 = arith.addf %38, %41 : vector<80x64xf32>
    %c0_44 = arith.constant 0 : index
    %c0_45 = arith.constant 0 : index
    %c0_46 = arith.constant 0 : index
    %43 = vector.load %arg9[%c0_44, %c0_45, %c0_46] : memref<3x80x64xf32, #tpu.memory_space<vmem>>, vector<1x80x64xf32>
    %44 = vector.shape_cast %43 : vector<1x80x64xf32> to vector<80x64xf32>
    %45 = vector.shape_cast %42 : vector<80x64xf32> to vector<1x80x64xf32>
    tpu.vector_store %arg9[%c0_44, %c0_45, %c0_46], %45 {strides = array<i32>} : memref<3x80x64xf32, #tpu.memory_space<vmem>>, vector<1x80x64xf32>,
    %c1_47 = arith.constant 1 : index
    %c0_48 = arith.constant 0 : index
    %c0_49 = arith.constant 0 : index
    %46 = vector.load %arg9[%c1_47, %c0_48, %c0_49] : memref<3x80x64xf32, #tpu.memory_space<vmem>>, vector<1x80x64xf32>
    %47 = vector.shape_cast %46 : vector<1x80x64xf32> to vector<80x64xf32>
    %c4 = arith.constant 4 : index
    %c0_50 = arith.constant 0 : index
    %c0_51 = arith.constant 0 : index
    %48 = vector.load %arg2[%c4, %c0_50, %c0_51] : memref<9x256x64xbf16, #tpu.memory_space<vmem>>, vector<1x256x64xbf16>
    %49 = vector.shape_cast %48 : vector<1x256x64xbf16> to vector<256x64xbf16>
    %cst_52 = arith.constant dense<0.000000e+00> : vector<80x64xf32>
    %50 = tpu.matmul %36, %49, %cst_52 {dimension_numbers = #tpu.dot_dimension_numbers<[1], [0], [0], [1], [0, 0, 1, 1], [], []>} : vector<80x256xbf16>, vector<256x64xbf16>, vector<80x64xf32> -> vector<80x64xf32>
    %51 = arith.addf %47, %50 : vector<80x64xf32>
    %c1_53 = arith.constant 1 : index
    %c0_54 = arith.constant 0 : index
    %c0_55 = arith.constant 0 : index
    %52 = vector.load %arg9[%c1_53, %c0_54, %c0_55] : memref<3x80x64xf32, #tpu.memory_space<vmem>>, vector<1x80x64xf32>
    %53 = vector.shape_cast %52 : vector<1x80x64xf32> to vector<80x64xf32>
    %54 = vector.shape_cast %51 : vector<80x64xf32> to vector<1x80x64xf32>
    tpu.vector_store %arg9[%c1_53, %c0_54, %c0_55], %54 {strides = array<i32>} : memref<3x80x64xf32, #tpu.memory_space<vmem>>, vector<1x80x64xf32>,
    %c2_56 = arith.constant 2 : index
    %c0_57 = arith.constant 0 : index
    %c0_58 = arith.constant 0 : index
    %55 = vector.load %arg9[%c2_56, %c0_57, %c0_58] : memref<3x80x64xf32, #tpu.memory_space<vmem>>, vector<1x80x64xf32>
    %56 = vector.shape_cast %55 : vector<1x80x64xf32> to vector<80x64xf32>
    %c5 = arith.constant 5 : index
    %c0_59 = arith.constant 0 : index
    %c0_60 = arith.constant 0 : index
    %57 = vector.load %arg2[%c5, %c0_59, %c0_60] : memref<9x256x64xbf16, #tpu.memory_space<vmem>>, vector<1x256x64xbf16>
    %58 = vector.shape_cast %57 : vector<1x256x64xbf16> to vector<256x64xbf16>
    %cst_61 = arith.constant dense<0.000000e+00> : vector<80x64xf32>
    %59 = tpu.matmul %36, %58, %cst_61 {dimension_numbers = #tpu.dot_dimension_numbers<[1], [0], [0], [1], [0, 0, 1, 1], [], []>} : vector<80x256xbf16>, vector<256x64xbf16>, vector<80x64xf32> -> vector<80x64xf32>
    %60 = arith.addf %56, %59 : vector<80x64xf32>
    %c2_62 = arith.constant 2 : index
    %c0_63 = arith.constant 0 : index
    %c0_64 = arith.constant 0 : index
    %61 = vector.load %arg9[%c2_62, %c0_63, %c0_64] : memref<3x80x64xf32, #tpu.memory_space<vmem>>, vector<1x80x64xf32>
    %62 = vector.shape_cast %61 : vector<1x80x64xf32> to vector<80x64xf32>
    %63 = vector.shape_cast %60 : vector<80x64xf32> to vector<1x80x64xf32>
    tpu.vector_store %arg9[%c2_62, %c0_63, %c0_64], %63 {strides = array<i32>} : memref<3x80x64xf32, #tpu.memory_space<vmem>>, vector<1x80x64xf32>,
    %c0_65 = arith.constant 0 : index
    %c20 = arith.constant 20 : index
    %c0_66 = arith.constant 0 : index
    %64 = vector.load %arg1[%c0_65, %c20, %c0_66] : memref<1x100x256xf32, #tpu.memory_space<vmem>>, vector<1x80x256xf32>
    %65 = vector.shape_cast %64 : vector<1x80x256xf32> to vector<80x256xf32>
    %66 = arith.truncf %65 : vector<80x256xf32> to vector<80x256xbf16>
    %c0_67 = arith.constant 0 : index
    %c0_68 = arith.constant 0 : index
    %c0_69 = arith.constant 0 : index
    %67 = vector.load %arg9[%c0_67, %c0_68, %c0_69] : memref<3x80x64xf32, #tpu.memory_space<vmem>>, vector<1x80x64xf32>
    %68 = vector.shape_cast %67 : vector<1x80x64xf32> to vector<80x64xf32>
    %c6 = arith.constant 6 : index
    %c0_70 = arith.constant 0 : index
    %c0_71 = arith.constant 0 : index
    %69 = vector.load %arg2[%c6, %c0_70, %c0_71] : memref<9x256x64xbf16, #tpu.memory_space<vmem>>, vector<1x256x64xbf16>
    %70 = vector.shape_cast %69 : vector<1x256x64xbf16> to vector<256x64xbf16>
    %cst_72 = arith.constant dense<0.000000e+00> : vector<80x64xf32>
    %71 = tpu.matmul %66, %70, %cst_72 {dimension_numbers = #tpu.dot_dimension_numbers<[1], [0], [0], [1], [0, 0, 1, 1], [], []>} : vector<80x256xbf16>, vector<256x64xbf16>, vector<80x64xf32> -> vector<80x64xf32>
    %72 = arith.addf %68, %71 : vector<80x64xf32>
    %c0_73 = arith.constant 0 : index
    %c0_74 = arith.constant 0 : index
    %c0_75 = arith.constant 0 : index
    %73 = vector.load %arg9[%c0_73, %c0_74, %c0_75] : memref<3x80x64xf32, #tpu.memory_space<vmem>>, vector<1x80x64xf32>
    %74 = vector.shape_cast %73 : vector<1x80x64xf32> to vector<80x64xf32>
    %75 = vector.shape_cast %72 : vector<80x64xf32> to vector<1x80x64xf32>
    tpu.vector_store %arg9[%c0_73, %c0_74, %c0_75], %75 {strides = array<i32>} : memref<3x80x64xf32, #tpu.memory_space<vmem>>, vector<1x80x64xf32>,
    %c1_76 = arith.constant 1 : index
    %c0_77 = arith.constant 0 : index
    %c0_78 = arith.constant 0 : index
    %76 = vector.load %arg9[%c1_76, %c0_77, %c0_78] : memref<3x80x64xf32, #tpu.memory_space<vmem>>, vector<1x80x64xf32>
    %77 = vector.shape_cast %76 : vector<1x80x64xf32> to vector<80x64xf32>
    %c7 = arith.constant 7 : index
    %c0_79 = arith.constant 0 : index
    %c0_80 = arith.constant 0 : index
    %78 = vector.load %arg2[%c7, %c0_79, %c0_80] : memref<9x256x64xbf16, #tpu.memory_space<vmem>>, vector<1x256x64xbf16>
    %79 = vector.shape_cast %78 : vector<1x256x64xbf16> to vector<256x64xbf16>
    %cst_81 = arith.constant dense<0.000000e+00> : vector<80x64xf32>
    %80 = tpu.matmul %66, %79, %cst_81 {dimension_numbers = #tpu.dot_dimension_numbers<[1], [0], [0], [1], [0, 0, 1, 1], [], []>} : vector<80x256xbf16>, vector<256x64xbf16>, vector<80x64xf32> -> vector<80x64xf32>
    %81 = arith.addf %77, %80 : vector<80x64xf32>
    %c1_82 = arith.constant 1 : index
    %c0_83 = arith.constant 0 : index
    %c0_84 = arith.constant 0 : index
    %82 = vector.load %arg9[%c1_82, %c0_83, %c0_84] : memref<3x80x64xf32, #tpu.memory_space<vmem>>, vector<1x80x64xf32>
    %83 = vector.shape_cast %82 : vector<1x80x64xf32> to vector<80x64xf32>
    %84 = vector.shape_cast %81 : vector<80x64xf32> to vector<1x80x64xf32>
    tpu.vector_store %arg9[%c1_82, %c0_83, %c0_84], %84 {strides = array<i32>} : memref<3x80x64xf32, #tpu.memory_space<vmem>>, vector<1x80x64xf32>,
    %c2_85 = arith.constant 2 : index
    %c0_86 = arith.constant 0 : index
    %c0_87 = arith.constant 0 : index
    %85 = vector.load %arg9[%c2_85, %c0_86, %c0_87] : memref<3x80x64xf32, #tpu.memory_space<vmem>>, vector<1x80x64xf32>
    %86 = vector.shape_cast %85 : vector<1x80x64xf32> to vector<80x64xf32>
    %c8 = arith.constant 8 : index
    %c0_88 = arith.constant 0 : index
    %c0_89 = arith.constant 0 : index
    %87 = vector.load %arg2[%c8, %c0_88, %c0_89] : memref<9x256x64xbf16, #tpu.memory_space<vmem>>, vector<1x256x64xbf16>
    %88 = vector.shape_cast %87 : vector<1x256x64xbf16> to vector<256x64xbf16>
    %cst_90 = arith.constant dense<0.000000e+00> : vector<80x64xf32>
    %89 = tpu.matmul %66, %88, %cst_90 {dimension_numbers = #tpu.dot_dimension_numbers<[1], [0], [0], [1], [0, 0, 1, 1], [], []>} : vector<80x256xbf16>, vector<256x64xbf16>, vector<80x64xf32> -> vector<80x64xf32>
    %90 = arith.addf %86, %89 : vector<80x64xf32>
    %c2_91 = arith.constant 2 : index
    %c0_92 = arith.constant 0 : index
    %c0_93 = arith.constant 0 : index
    %91 = vector.load %arg9[%c2_91, %c0_92, %c0_93] : memref<3x80x64xf32, #tpu.memory_space<vmem>>, vector<1x80x64xf32>
    %92 = vector.shape_cast %91 : vector<1x80x64xf32> to vector<80x64xf32>
    %93 = vector.shape_cast %90 : vector<80x64xf32> to vector<1x80x64xf32>
    tpu.vector_store %arg9[%c2_91, %c0_92, %c0_93], %93 {strides = array<i32>} : memref<3x80x64xf32, #tpu.memory_space<vmem>>, vector<1x80x64xf32>,
    %c0_94 = arith.constant 0 : index
    %c0_95 = arith.constant 0 : index
    %94 = vector.load %arg3[%c0_94, %c0_95] : memref<1x64xf32, #tpu.memory_space<vmem>>, vector<1x64xf32>
    %c0_96 = arith.constant 0 : index
    %c0_97 = arith.constant 0 : index
    %95 = vector.load %arg4[%c0_96, %c0_97] : memref<1x64xf32, #tpu.memory_space<vmem>>, vector<1x64xf32>
    %c0_98 = arith.constant 0 : index
    %c0_99 = arith.constant 0 : index
    %c0_100 = arith.constant 0 : index
    %96 = vector.load %arg9[%c0_98, %c0_99, %c0_100] : memref<3x80x64xf32, #tpu.memory_space<vmem>>, vector<1x8x64xf32>
    %97 = vector.shape_cast %96 : vector<1x8x64xf32> to vector<8x64xf32>
    %c1_101 = arith.constant 1 : index
    %c1_102 = arith.constant 1 : index
    %c0_103 = arith.constant 0 : index
    %98 = vector.load %arg9[%c1_101, %c1_102, %c0_103] : memref<3x80x64xf32, #tpu.memory_space<vmem>>, vector<1x8x64xf32>
    %99 = vector.shape_cast %98 : vector<1x8x64xf32> to vector<8x64xf32>
    %100 = arith.addf %97, %99 : vector<8x64xf32>
    %c2_104 = arith.constant 2 : index
    %c2_105 = arith.constant 2 : index
    %c0_106 = arith.constant 0 : index
    %101 = vector.load %arg9[%c2_104, %c2_105, %c0_106] : memref<3x80x64xf32, #tpu.memory_space<vmem>>, vector<1x8x64xf32>
    %102 = vector.shape_cast %101 : vector<1x8x64xf32> to vector<8x64xf32>
    %103 = arith.addf %100, %102 : vector<8x64xf32>
    %104 = vector.broadcast %94 : vector<1x64xf32> to vector<8x64xf32>
    %105 = arith.mulf %103, %104 : vector<8x64xf32>
    %106 = vector.broadcast %95 : vector<1x64xf32> to vector<8x64xf32>
    %107 = arith.addf %105, %106 : vector<8x64xf32>
    %cst_107 = arith.constant 0.000000e+00 : f32
    %108 = vector.broadcast %cst_107 : f32 to vector<8x64xf32>
    %109 = arith.maximumf %107, %108 : vector<8x64xf32>
    %c11 = arith.constant 11 : index
    %c0_108 = arith.constant 0 : index
    %110 = vector.load %arg10[%c11, %c0_108] : memref<100x64xf32, #tpu.memory_space<vmem>>, vector<8x64xf32>
    tpu.vector_store %arg10[%c11, %c0_108], %109 {strides = array<i32>} : memref<100x64xf32, #tpu.memory_space<vmem>>, vector<8x64xf32>,
    %c0_109 = arith.constant 0 : index
    %c10_110 = arith.constant 10 : index
    %c0_111 = arith.constant 0 : index
    %111 = vector.load %arg9[%c0_109, %c10_110, %c0_111] : memref<3x80x64xf32, #tpu.memory_space<vmem>>, vector<1x8x64xf32>
    %112 = vector.shape_cast %111 : vector<1x8x64xf32> to vector<8x64xf32>
    %c1_112 = arith.constant 1 : index
    %c11_113 = arith.constant 11 : index
    %c0_114 = arith.constant 0 : index
    %113 = vector.load %arg9[%c1_112, %c11_113, %c0_114] : memref<3x80x64xf32, #tpu.memory_space<vmem>>, vector<1x8x64xf32>
    %114 = vector.shape_cast %113 : vector<1x8x64xf32> to vector<8x64xf32>
    %115 = arith.addf %112, %114 : vector<8x64xf32>
    %c2_115 = arith.constant 2 : index
    %c12 = arith.constant 12 : index
    %c0_116 = arith.constant 0 : index
    %116 = vector.load %arg9[%c2_115, %c12, %c0_116] : memref<3x80x64xf32, #tpu.memory_space<vmem>>, vector<1x8x64xf32>
    %117 = vector.shape_cast %116 : vector<1x8x64xf32> to vector<8x64xf32>
    %118 = arith.addf %115, %117 : vector<8x64xf32>
    %119 = vector.broadcast %94 : vector<1x64xf32> to vector<8x64xf32>
    %120 = arith.mulf %118, %119 : vector<8x64xf32>
    %121 = vector.broadcast %95 : vector<1x64xf32> to vector<8x64xf32>
    %122 = arith.addf %120, %121 : vector<8x64xf32>
    %cst_117 = arith.constant 0.000000e+00 : f32
    %123 = vector.broadcast %cst_117 : f32 to vector<8x64xf32>
    %124 = arith.maximumf %122, %123 : vector<8x64xf32>
    %c21 = arith.constant 21 : index
    %c0_118 = arith.constant 0 : index
    %125 = vector.load %arg10[%c21, %c0_118] : memref<100x64xf32, #tpu.memory_space<vmem>>, vector<8x64xf32>
    tpu.vector_store %arg10[%c21, %c0_118], %124 {strides = array<i32>} : memref<100x64xf32, #tpu.memory_space<vmem>>, vector<8x64xf32>,
    %c0_119 = arith.constant 0 : index
    %c20_120 = arith.constant 20 : index
    %c0_121 = arith.constant 0 : index
    %126 = vector.load %arg9[%c0_119, %c20_120, %c0_121] : memref<3x80x64xf32, #tpu.memory_space<vmem>>, vector<1x8x64xf32>
    %127 = vector.shape_cast %126 : vector<1x8x64xf32> to vector<8x64xf32>
    %c1_122 = arith.constant 1 : index
    %c21_123 = arith.constant 21 : index
    %c0_124 = arith.constant 0 : index
    %128 = vector.load %arg9[%c1_122, %c21_123, %c0_124] : memref<3x80x64xf32, #tpu.memory_space<vmem>>, vector<1x8x64xf32>
    %129 = vector.shape_cast %128 : vector<1x8x64xf32> to vector<8x64xf32>
    %130 = arith.addf %127, %129 : vector<8x64xf32>
    %c2_125 = arith.constant 2 : index
    %c22 = arith.constant 22 : index
    %c0_126 = arith.constant 0 : index
    %131 = vector.load %arg9[%c2_125, %c22, %c0_126] : memref<3x80x64xf32, #tpu.memory_space<vmem>>, vector<1x8x64xf32>
    %132 = vector.shape_cast %131 : vector<1x8x64xf32> to vector<8x64xf32>
    %133 = arith.addf %130, %132 : vector<8x64xf32>
    %134 = vector.broadcast %94 : vector<1x64xf32> to vector<8x64xf32>
    %135 = arith.mulf %133, %134 : vector<8x64xf32>
    %136 = vector.broadcast %95 : vector<1x64xf32> to vector<8x64xf32>
    %137 = arith.addf %135, %136 : vector<8x64xf32>
    %cst_127 = arith.constant 0.000000e+00 : f32
    %138 = vector.broadcast %cst_127 : f32 to vector<8x64xf32>
    %139 = arith.maximumf %137, %138 : vector<8x64xf32>
    %c31 = arith.constant 31 : index
    %c0_128 = arith.constant 0 : index
    %140 = vector.load %arg10[%c31, %c0_128] : memref<100x64xf32, #tpu.memory_space<vmem>>, vector<8x64xf32>
    tpu.vector_store %arg10[%c31, %c0_128], %139 {strides = array<i32>} : memref<100x64xf32, #tpu.memory_space<vmem>>, vector<8x64xf32>,
    %c0_129 = arith.constant 0 : index
    %c30 = arith.constant 30 : index
    %c0_130 = arith.constant 0 : index
    %141 = vector.load %arg9[%c0_129, %c30, %c0_130] : memref<3x80x64xf32, #tpu.memory_space<vmem>>, vector<1x8x64xf32>
    %142 = vector.shape_cast %141 : vector<1x8x64xf32> to vector<8x64xf32>
    %c1_131 = arith.constant 1 : index
    %c31_132 = arith.constant 31 : index
    %c0_133 = arith.constant 0 : index
    %143 = vector.load %arg9[%c1_131, %c31_132, %c0_133] : memref<3x80x64xf32, #tpu.memory_space<vmem>>, vector<1x8x64xf32>
    %144 = vector.shape_cast %143 : vector<1x8x64xf32> to vector<8x64xf32>
    %145 = arith.addf %142, %144 : vector<8x64xf32>
    %c2_134 = arith.constant 2 : index
    %c32 = arith.constant 32 : index
    %c0_135 = arith.constant 0 : index
    %146 = vector.load %arg9[%c2_134, %c32, %c0_135] : memref<3x80x64xf32, #tpu.memory_space<vmem>>, vector<1x8x64xf32>
    %147 = vector.shape_cast %146 : vector<1x8x64xf32> to vector<8x64xf32>
    %148 = arith.addf %145, %147 : vector<8x64xf32>
    %149 = vector.broadcast %94 : vector<1x64xf32> to vector<8x64xf32>
    %150 = arith.mulf %148, %149 : vector<8x64xf32>
    %151 = vector.broadcast %95 : vector<1x64xf32> to vector<8x64xf32>
    %152 = arith.addf %150, %151 : vector<8x64xf32>
    %cst_136 = arith.constant 0.000000e+00 : f32
    %153 = vector.broadcast %cst_136 : f32 to vector<8x64xf32>
    %154 = arith.maximumf %152, %153 : vector<8x64xf32>
    %c41 = arith.constant 41 : index
    %c0_137 = arith.constant 0 : index
    %155 = vector.load %arg10[%c41, %c0_137] : memref<100x64xf32, #tpu.memory_space<vmem>>, vector<8x64xf32>
    tpu.vector_store %arg10[%c41, %c0_137], %154 {strides = array<i32>} : memref<100x64xf32, #tpu.memory_space<vmem>>, vector<8x64xf32>,
    %c0_138 = arith.constant 0 : index
    %c40 = arith.constant 40 : index
    %c0_139 = arith.constant 0 : index
    %156 = vector.load %arg9[%c0_138, %c40, %c0_139] : memref<3x80x64xf32, #tpu.memory_space<vmem>>, vector<1x8x64xf32>
    %157 = vector.shape_cast %156 : vector<1x8x64xf32> to vector<8x64xf32>
    %c1_140 = arith.constant 1 : index
    %c41_141 = arith.constant 41 : index
    %c0_142 = arith.constant 0 : index
    %158 = vector.load %arg9[%c1_140, %c41_141, %c0_142] : memref<3x80x64xf32, #tpu.memory_space<vmem>>, vector<1x8x64xf32>
    %159 = vector.shape_cast %158 : vector<1x8x64xf32> to vector<8x64xf32>
    %160 = arith.addf %157, %159 : vector<8x64xf32>
    %c2_143 = arith.constant 2 : index
    %c42 = arith.constant 42 : index
    %c0_144 = arith.constant 0 : index
    %161 = vector.load %arg9[%c2_143, %c42, %c0_144] : memref<3x80x64xf32, #tpu.memory_space<vmem>>, vector<1x8x64xf32>
    %162 = vector.shape_cast %161 : vector<1x8x64xf32> to vector<8x64xf32>
    %163 = arith.addf %160, %162 : vector<8x64xf32>
    %164 = vector.broadcast %94 : vector<1x64xf32> to vector<8x64xf32>
    %165 = arith.mulf %163, %164 : vector<8x64xf32>
    %166 = vector.broadcast %95 : vector<1x64xf32> to vector<8x64xf32>
    %167 = arith.addf %165, %166 : vector<8x64xf32>
    %cst_145 = arith.constant 0.000000e+00 : f32
    %168 = vector.broadcast %cst_145 : f32 to vector<8x64xf32>
    %169 = arith.maximumf %167, %168 : vector<8x64xf32>
    %c51 = arith.constant 51 : index
    %c0_146 = arith.constant 0 : index
    %170 = vector.load %arg10[%c51, %c0_146] : memref<100x64xf32, #tpu.memory_space<vmem>>, vector<8x64xf32>
    tpu.vector_store %arg10[%c51, %c0_146], %169 {strides = array<i32>} : memref<100x64xf32, #tpu.memory_space<vmem>>, vector<8x64xf32>,
    %c0_147 = arith.constant 0 : index
    %c50 = arith.constant 50 : index
    %c0_148 = arith.constant 0 : index
    %171 = vector.load %arg9[%c0_147, %c50, %c0_148] : memref<3x80x64xf32, #tpu.memory_space<vmem>>, vector<1x8x64xf32>
    %172 = vector.shape_cast %171 : vector<1x8x64xf32> to vector<8x64xf32>
    %c1_149 = arith.constant 1 : index
    %c51_150 = arith.constant 51 : index
    %c0_151 = arith.constant 0 : index
    %173 = vector.load %arg9[%c1_149, %c51_150, %c0_151] : memref<3x80x64xf32, #tpu.memory_space<vmem>>, vector<1x8x64xf32>
    %174 = vector.shape_cast %173 : vector<1x8x64xf32> to vector<8x64xf32>
    %175 = arith.addf %172, %174 : vector<8x64xf32>
    %c2_152 = arith.constant 2 : index
    %c52 = arith.constant 52 : index
    %c0_153 = arith.constant 0 : index
    %176 = vector.load %arg9[%c2_152, %c52, %c0_153] : memref<3x80x64xf32, #tpu.memory_space<vmem>>, vector<1x8x64xf32>
    %177 = vector.shape_cast %176 : vector<1x8x64xf32> to vector<8x64xf32>
    %178 = arith.addf %175, %177 : vector<8x64xf32>
    %179 = vector.broadcast %94 : vector<1x64xf32> to vector<8x64xf32>
    %180 = arith.mulf %178, %179 : vector<8x64xf32>
    %181 = vector.broadcast %95 : vector<1x64xf32> to vector<8x64xf32>
    %182 = arith.addf %180, %181 : vector<8x64xf32>
    %cst_154 = arith.constant 0.000000e+00 : f32
    %183 = vector.broadcast %cst_154 : f32 to vector<8x64xf32>
    %184 = arith.maximumf %182, %183 : vector<8x64xf32>
    %c61 = arith.constant 61 : index
    %c0_155 = arith.constant 0 : index
    %185 = vector.load %arg10[%c61, %c0_155] : memref<100x64xf32, #tpu.memory_space<vmem>>, vector<8x64xf32>
    tpu.vector_store %arg10[%c61, %c0_155], %184 {strides = array<i32>} : memref<100x64xf32, #tpu.memory_space<vmem>>, vector<8x64xf32>,
    %c0_156 = arith.constant 0 : index
    %c60 = arith.constant 60 : index
    %c0_157 = arith.constant 0 : index
    %186 = vector.load %arg9[%c0_156, %c60, %c0_157] : memref<3x80x64xf32, #tpu.memory_space<vmem>>, vector<1x8x64xf32>
    %187 = vector.shape_cast %186 : vector<1x8x64xf32> to vector<8x64xf32>
    %c1_158 = arith.constant 1 : index
    %c61_159 = arith.constant 61 : index
    %c0_160 = arith.constant 0 : index
    %188 = vector.load %arg9[%c1_158, %c61_159, %c0_160] : memref<3x80x64xf32, #tpu.memory_space<vmem>>, vector<1x8x64xf32>
    %189 = vector.shape_cast %188 : vector<1x8x64xf32> to vector<8x64xf32>
    %190 = arith.addf %187, %189 : vector<8x64xf32>
    %c2_161 = arith.constant 2 : index
    %c62 = arith.constant 62 : index
    %c0_162 = arith.constant 0 : index
    %191 = vector.load %arg9[%c2_161, %c62, %c0_162] : memref<3x80x64xf32, #tpu.memory_space<vmem>>, vector<1x8x64xf32>
    %192 = vector.shape_cast %191 : vector<1x8x64xf32> to vector<8x64xf32>
    %193 = arith.addf %190, %192 : vector<8x64xf32>
    %194 = vector.broadcast %94 : vector<1x64xf32> to vector<8x64xf32>
    %195 = arith.mulf %193, %194 : vector<8x64xf32>
    %196 = vector.broadcast %95 : vector<1x64xf32> to vector<8x64xf32>
    %197 = arith.addf %195, %196 : vector<8x64xf32>
    %cst_163 = arith.constant 0.000000e+00 : f32
    %198 = vector.broadcast %cst_163 : f32 to vector<8x64xf32>
    %199 = arith.maximumf %197, %198 : vector<8x64xf32>
    %c71 = arith.constant 71 : index
    %c0_164 = arith.constant 0 : index
    %200 = vector.load %arg10[%c71, %c0_164] : memref<100x64xf32, #tpu.memory_space<vmem>>, vector<8x64xf32>
    tpu.vector_store %arg10[%c71, %c0_164], %199 {strides = array<i32>} : memref<100x64xf32, #tpu.memory_space<vmem>>, vector<8x64xf32>,
    %c0_165 = arith.constant 0 : index
    %c70 = arith.constant 70 : index
    %c0_166 = arith.constant 0 : index
    %201 = vector.load %arg9[%c0_165, %c70, %c0_166] : memref<3x80x64xf32, #tpu.memory_space<vmem>>, vector<1x8x64xf32>
    %202 = vector.shape_cast %201 : vector<1x8x64xf32> to vector<8x64xf32>
    %c1_167 = arith.constant 1 : index
    %c71_168 = arith.constant 71 : index
    %c0_169 = arith.constant 0 : index
    %203 = vector.load %arg9[%c1_167, %c71_168, %c0_169] : memref<3x80x64xf32, #tpu.memory_space<vmem>>, vector<1x8x64xf32>
    %204 = vector.shape_cast %203 : vector<1x8x64xf32> to vector<8x64xf32>
    %205 = arith.addf %202, %204 : vector<8x64xf32>
    %c2_170 = arith.constant 2 : index
    %c72 = arith.constant 72 : index
    %c0_171 = arith.constant 0 : index
    %206 = vector.load %arg9[%c2_170, %c72, %c0_171] : memref<3x80x64xf32, #tpu.memory_space<vmem>>, vector<1x8x64xf32>
    %207 = vector.shape_cast %206 : vector<1x8x64xf32> to vector<8x64xf32>
    %208 = arith.addf %205, %207 : vector<8x64xf32>
    %209 = vector.broadcast %94 : vector<1x64xf32> to vector<8x64xf32>
    %210 = arith.mulf %208, %209 : vector<8x64xf32>
    %211 = vector.broadcast %95 : vector<1x64xf32> to vector<8x64xf32>
    %212 = arith.addf %210, %211 : vector<8x64xf32>
    %cst_172 = arith.constant 0.000000e+00 : f32
    %213 = vector.broadcast %cst_172 : f32 to vector<8x64xf32>
    %214 = arith.maximumf %212, %213 : vector<8x64xf32>
    %c81 = arith.constant 81 : index
    %c0_173 = arith.constant 0 : index
    %215 = vector.load %arg10[%c81, %c0_173] : memref<100x64xf32, #tpu.memory_space<vmem>>, vector<8x64xf32>
    tpu.vector_store %arg10[%c81, %c0_173], %214 {strides = array<i32>} : memref<100x64xf32, #tpu.memory_space<vmem>>, vector<8x64xf32>,
    %cst_174 = arith.constant 0.000000e+00 : f32
    %216 = vector.broadcast %cst_174 : f32 to vector<3x80x64xf32>
    %c0_175 = arith.constant 0 : index
    %c0_176 = arith.constant 0 : index
    %c0_177 = arith.constant 0 : index
    %217 = vector.load %arg9[%c0_175, %c0_176, %c0_177] : memref<3x80x64xf32, #tpu.memory_space<vmem>>, vector<3x80x64xf32>
    tpu.vector_store %arg9[%c0_175, %c0_176, %c0_177], %216 {strides = array<i32>} : memref<3x80x64xf32, #tpu.memory_space<vmem>>, vector<3x80x64xf32>,
    %c0_178 = arith.constant 0 : index
    %c0_179 = arith.constant 0 : index
    %218 = vector.load %arg10[%c0_178, %c0_179] : memref<100x64xf32, #tpu.memory_space<vmem>>, vector<80x64xf32>
    %219 = arith.truncf %218 : vector<80x64xf32> to vector<80x64xbf16>
    %c0_180 = arith.constant 0 : index
    %c0_181 = arith.constant 0 : index
    %c0_182 = arith.constant 0 : index
    %220 = vector.load %arg9[%c0_180, %c0_181, %c0_182] : memref<3x80x64xf32, #tpu.memory_space<vmem>>, vector<1x80x64xf32>
    %221 = vector.shape_cast %220 : vector<1x80x64xf32> to vector<80x64xf32>
    %c0_183 = arith.constant 0 : index
    %c0_184 = arith.constant 0 : index
    %c0_185 = arith.constant 0 : index
    %222 = vector.load %arg5[%c0_183, %c0_184, %c0_185] : memref<9x64x64xbf16, #tpu.memory_space<vmem>>, vector<1x64x64xbf16>
    %223 = vector.shape_cast %222 : vector<1x64x64xbf16> to vector<64x64xbf16>
    %cst_186 = arith.constant dense<0.000000e+00> : vector<80x64xf32>
    %224 = tpu.matmul %219, %223, %cst_186 {dimension_numbers = #tpu.dot_dimension_numbers<[1], [0], [0], [1], [0, 0, 1, 1], [], []>} : vector<80x64xbf16>, vector<64x64xbf16>, vector<80x64xf32> -> vector<80x64xf32>
    %225 = arith.addf %221, %224 : vector<80x64xf32>
    %c0_187 = arith.constant 0 : index
    %c0_188 = arith.constant 0 : index
    %c0_189 = arith.constant 0 : index
    %226 = vector.load %arg9[%c0_187, %c0_188, %c0_189] : memref<3x80x64xf32, #tpu.memory_space<vmem>>, vector<1x80x64xf32>
    %227 = vector.shape_cast %226 : vector<1x80x64xf32> to vector<80x64xf32>
    %228 = vector.shape_cast %225 : vector<80x64xf32> to vector<1x80x64xf32>
    tpu.vector_store %arg9[%c0_187, %c0_188, %c0_189], %228 {strides = array<i32>} : memref<3x80x64xf32, #tpu.memory_space<vmem>>, vector<1x80x64xf32>,
    %c1_190 = arith.constant 1 : index
    %c0_191 = arith.constant 0 : index
    %c0_192 = arith.constant 0 : index
    %229 = vector.load %arg9[%c1_190, %c0_191, %c0_192] : memref<3x80x64xf32, #tpu.memory_space<vmem>>, vector<1x80x64xf32>
    %230 = vector.shape_cast %229 : vector<1x80x64xf32> to vector<80x64xf32>
    %c1_193 = arith.constant 1 : index
    %c0_194 = arith.constant 0 : index
    %c0_195 = arith.constant 0 : index
    %231 = vector.load %arg5[%c1_193, %c0_194, %c0_195] : memref<9x64x64xbf16, #tpu.memory_space<vmem>>, vector<1x64x64xbf16>
    %232 = vector.shape_cast %231 : vector<1x64x64xbf16> to vector<64x64xbf16>
    %cst_196 = arith.constant dense<0.000000e+00> : vector<80x64xf32>
    %233 = tpu.matmul %219, %232, %cst_196 {dimension_numbers = #tpu.dot_dimension_numbers<[1], [0], [0], [1], [0, 0, 1, 1], [], []>} : vector<80x64xbf16>, vector<64x64xbf16>, vector<80x64xf32> -> vector<80x64xf32>
    %234 = arith.addf %230, %233 : vector<80x64xf32>
    %c1_197 = arith.constant 1 : index
    %c0_198 = arith.constant 0 : index
    %c0_199 = arith.constant 0 : index
    %235 = vector.load %arg9[%c1_197, %c0_198, %c0_199] : memref<3x80x64xf32, #tpu.memory_space<vmem>>, vector<1x80x64xf32>
    %236 = vector.shape_cast %235 : vector<1x80x64xf32> to vector<80x64xf32>
    %237 = vector.shape_cast %234 : vector<80x64xf32> to vector<1x80x64xf32>
    tpu.vector_store %arg9[%c1_197, %c0_198, %c0_199], %237 {strides = array<i32>} : memref<3x80x64xf32, #tpu.memory_space<vmem>>, vector<1x80x64xf32>,
    %c2_200 = arith.constant 2 : index
    %c0_201 = arith.constant 0 : index
    %c0_202 = arith.constant 0 : index
    %238 = vector.load %arg9[%c2_200, %c0_201, %c0_202] : memref<3x80x64xf32, #tpu.memory_space<vmem>>, vector<1x80x64xf32>
    %239 = vector.shape_cast %238 : vector<1x80x64xf32> to vector<80x64xf32>
    %c2_203 = arith.constant 2 : index
    %c0_204 = arith.constant 0 : index
    %c0_205 = arith.constant 0 : index
    %240 = vector.load %arg5[%c2_203, %c0_204, %c0_205] : memref<9x64x64xbf16, #tpu.memory_space<vmem>>, vector<1x64x64xbf16>
    %241 = vector.shape_cast %240 : vector<1x64x64xbf16> to vector<64x64xbf16>
    %cst_206 = arith.constant dense<0.000000e+00> : vector<80x64xf32>
    %242 = tpu.matmul %219, %241, %cst_206 {dimension_numbers = #tpu.dot_dimension_numbers<[1], [0], [0], [1], [0, 0, 1, 1], [], []>} : vector<80x64xbf16>, vector<64x64xbf16>, vector<80x64xf32> -> vector<80x64xf32>
    %243 = arith.addf %239, %242 : vector<80x64xf32>
    %c2_207 = arith.constant 2 : index
    %c0_208 = arith.constant 0 : index
    %c0_209 = arith.constant 0 : index
    %244 = vector.load %arg9[%c2_207, %c0_208, %c0_209] : memref<3x80x64xf32, #tpu.memory_space<vmem>>, vector<1x80x64xf32>
    %245 = vector.shape_cast %244 : vector<1x80x64xf32> to vector<80x64xf32>
    %246 = vector.shape_cast %243 : vector<80x64xf32> to vector<1x80x64xf32>
    tpu.vector_store %arg9[%c2_207, %c0_208, %c0_209], %246 {strides = array<i32>} : memref<3x80x64xf32, #tpu.memory_space<vmem>>, vector<1x80x64xf32>,
    %c10_210 = arith.constant 10 : index
    %c0_211 = arith.constant 0 : index
    %247 = vector.load %arg10[%c10_210, %c0_211] : memref<100x64xf32, #tpu.memory_space<vmem>>, vector<80x64xf32>
    %248 = arith.truncf %247 : vector<80x64xf32> to vector<80x64xbf16>
    %c0_212 = arith.constant 0 : index
    %c0_213 = arith.constant 0 : index
    %c0_214 = arith.constant 0 : index
    %249 = vector.load %arg9[%c0_212, %c0_213, %c0_214] : memref<3x80x64xf32, #tpu.memory_space<vmem>>, vector<1x80x64xf32>
    %250 = vector.shape_cast %249 : vector<1x80x64xf32> to vector<80x64xf32>
    %c3_215 = arith.constant 3 : index
    %c0_216 = arith.constant 0 : index
    %c0_217 = arith.constant 0 : index
    %251 = vector.load %arg5[%c3_215, %c0_216, %c0_217] : memref<9x64x64xbf16, #tpu.memory_space<vmem>>, vector<1x64x64xbf16>
    %252 = vector.shape_cast %251 : vector<1x64x64xbf16> to vector<64x64xbf16>
    %cst_218 = arith.constant dense<0.000000e+00> : vector<80x64xf32>
    %253 = tpu.matmul %248, %252, %cst_218 {dimension_numbers = #tpu.dot_dimension_numbers<[1], [0], [0], [1], [0, 0, 1, 1], [], []>} : vector<80x64xbf16>, vector<64x64xbf16>, vector<80x64xf32> -> vector<80x64xf32>
    %254 = arith.addf %250, %253 : vector<80x64xf32>
    %c0_219 = arith.constant 0 : index
    %c0_220 = arith.constant 0 : index
    %c0_221 = arith.constant 0 : index
    %255 = vector.load %arg9[%c0_219, %c0_220, %c0_221] : memref<3x80x64xf32, #tpu.memory_space<vmem>>, vector<1x80x64xf32>
    %256 = vector.shape_cast %255 : vector<1x80x64xf32> to vector<80x64xf32>
    %257 = vector.shape_cast %254 : vector<80x64xf32> to vector<1x80x64xf32>
    tpu.vector_store %arg9[%c0_219, %c0_220, %c0_221], %257 {strides = array<i32>} : memref<3x80x64xf32, #tpu.memory_space<vmem>>, vector<1x80x64xf32>,
    %c1_222 = arith.constant 1 : index
    %c0_223 = arith.constant 0 : index
    %c0_224 = arith.constant 0 : index
    %258 = vector.load %arg9[%c1_222, %c0_223, %c0_224] : memref<3x80x64xf32, #tpu.memory_space<vmem>>, vector<1x80x64xf32>
    %259 = vector.shape_cast %258 : vector<1x80x64xf32> to vector<80x64xf32>
    %c4_225 = arith.constant 4 : index
    %c0_226 = arith.constant 0 : index
    %c0_227 = arith.constant 0 : index
    %260 = vector.load %arg5[%c4_225, %c0_226, %c0_227] : memref<9x64x64xbf16, #tpu.memory_space<vmem>>, vector<1x64x64xbf16>
    %261 = vector.shape_cast %260 : vector<1x64x64xbf16> to vector<64x64xbf16>
    %cst_228 = arith.constant dense<0.000000e+00> : vector<80x64xf32>
    %262 = tpu.matmul %248, %261, %cst_228 {dimension_numbers = #tpu.dot_dimension_numbers<[1], [0], [0], [1], [0, 0, 1, 1], [], []>} : vector<80x64xbf16>, vector<64x64xbf16>, vector<80x64xf32> -> vector<80x64xf32>
    %263 = arith.addf %259, %262 : vector<80x64xf32>
    %c1_229 = arith.constant 1 : index
    %c0_230 = arith.constant 0 : index
    %c0_231 = arith.constant 0 : index
    %264 = vector.load %arg9[%c1_229, %c0_230, %c0_231] : memref<3x80x64xf32, #tpu.memory_space<vmem>>, vector<1x80x64xf32>
    %265 = vector.shape_cast %264 : vector<1x80x64xf32> to vector<80x64xf32>
    %266 = vector.shape_cast %263 : vector<80x64xf32> to vector<1x80x64xf32>
    tpu.vector_store %arg9[%c1_229, %c0_230, %c0_231], %266 {strides = array<i32>} : memref<3x80x64xf32, #tpu.memory_space<vmem>>, vector<1x80x64xf32>,
    %c2_232 = arith.constant 2 : index
    %c0_233 = arith.constant 0 : index
    %c0_234 = arith.constant 0 : index
    %267 = vector.load %arg9[%c2_232, %c0_233, %c0_234] : memref<3x80x64xf32, #tpu.memory_space<vmem>>, vector<1x80x64xf32>
    %268 = vector.shape_cast %267 : vector<1x80x64xf32> to vector<80x64xf32>
    %c5_235 = arith.constant 5 : index
    %c0_236 = arith.constant 0 : index
    %c0_237 = arith.constant 0 : index
    %269 = vector.load %arg5[%c5_235, %c0_236, %c0_237] : memref<9x64x64xbf16, #tpu.memory_space<vmem>>, vector<1x64x64xbf16>
    %270 = vector.shape_cast %269 : vector<1x64x64xbf16> to vector<64x64xbf16>
    %cst_238 = arith.constant dense<0.000000e+00> : vector<80x64xf32>
    %271 = tpu.matmul %248, %270, %cst_238 {dimension_numbers = #tpu.dot_dimension_numbers<[1], [0], [0], [1], [0, 0, 1, 1], [], []>} : vector<80x64xbf16>, vector<64x64xbf16>, vector<80x64xf32> -> vector<80x64xf32>
    %272 = arith.addf %268, %271 : vector<80x64xf32>
    %c2_239 = arith.constant 2 : index
    %c0_240 = arith.constant 0 : index
    %c0_241 = arith.constant 0 : index
    %273 = vector.load %arg9[%c2_239, %c0_240, %c0_241] : memref<3x80x64xf32, #tpu.memory_space<vmem>>, vector<1x80x64xf32>
    %274 = vector.shape_cast %273 : vector<1x80x64xf32> to vector<80x64xf32>
    %275 = vector.shape_cast %272 : vector<80x64xf32> to vector<1x80x64xf32>
    tpu.vector_store %arg9[%c2_239, %c0_240, %c0_241], %275 {strides = array<i32>} : memref<3x80x64xf32, #tpu.memory_space<vmem>>, vector<1x80x64xf32>,
    %c20_242 = arith.constant 20 : index
    %c0_243 = arith.constant 0 : index
    %276 = vector.load %arg10[%c20_242, %c0_243] : memref<100x64xf32, #tpu.memory_space<vmem>>, vector<80x64xf32>
    %277 = arith.truncf %276 : vector<80x64xf32> to vector<80x64xbf16>
    %c0_244 = arith.constant 0 : index
    %c0_245 = arith.constant 0 : index
    %c0_246 = arith.constant 0 : index
    %278 = vector.load %arg9[%c0_244, %c0_245, %c0_246] : memref<3x80x64xf32, #tpu.memory_space<vmem>>, vector<1x80x64xf32>
    %279 = vector.shape_cast %278 : vector<1x80x64xf32> to vector<80x64xf32>
    %c6_247 = arith.constant 6 : index
    %c0_248 = arith.constant 0 : index
    %c0_249 = arith.constant 0 : index
    %280 = vector.load %arg5[%c6_247, %c0_248, %c0_249] : memref<9x64x64xbf16, #tpu.memory_space<vmem>>, vector<1x64x64xbf16>
    %281 = vector.shape_cast %280 : vector<1x64x64xbf16> to vector<64x64xbf16>
    %cst_250 = arith.constant dense<0.000000e+00> : vector<80x64xf32>
    %282 = tpu.matmul %277, %281, %cst_250 {dimension_numbers = #tpu.dot_dimension_numbers<[1], [0], [0], [1], [0, 0, 1, 1], [], []>} : vector<80x64xbf16>, vector<64x64xbf16>, vector<80x64xf32> -> vector<80x64xf32>
    %283 = arith.addf %279, %282 : vector<80x64xf32>
    %c0_251 = arith.constant 0 : index
    %c0_252 = arith.constant 0 : index
    %c0_253 = arith.constant 0 : index
    %284 = vector.load %arg9[%c0_251, %c0_252, %c0_253] : memref<3x80x64xf32, #tpu.memory_space<vmem>>, vector<1x80x64xf32>
    %285 = vector.shape_cast %284 : vector<1x80x64xf32> to vector<80x64xf32>
    %286 = vector.shape_cast %283 : vector<80x64xf32> to vector<1x80x64xf32>
    tpu.vector_store %arg9[%c0_251, %c0_252, %c0_253], %286 {strides = array<i32>} : memref<3x80x64xf32, #tpu.memory_space<vmem>>, vector<1x80x64xf32>,
    %c1_254 = arith.constant 1 : index
    %c0_255 = arith.constant 0 : index
    %c0_256 = arith.constant 0 : index
    %287 = vector.load %arg9[%c1_254, %c0_255, %c0_256] : memref<3x80x64xf32, #tpu.memory_space<vmem>>, vector<1x80x64xf32>
    %288 = vector.shape_cast %287 : vector<1x80x64xf32> to vector<80x64xf32>
    %c7_257 = arith.constant 7 : index
    %c0_258 = arith.constant 0 : index
    %c0_259 = arith.constant 0 : index
    %289 = vector.load %arg5[%c7_257, %c0_258, %c0_259] : memref<9x64x64xbf16, #tpu.memory_space<vmem>>, vector<1x64x64xbf16>
    %290 = vector.shape_cast %289 : vector<1x64x64xbf16> to vector<64x64xbf16>
    %cst_260 = arith.constant dense<0.000000e+00> : vector<80x64xf32>
    %291 = tpu.matmul %277, %290, %cst_260 {dimension_numbers = #tpu.dot_dimension_numbers<[1], [0], [0], [1], [0, 0, 1, 1], [], []>} : vector<80x64xbf16>, vector<64x64xbf16>, vector<80x64xf32> -> vector<80x64xf32>
    %292 = arith.addf %288, %291 : vector<80x64xf32>
    %c1_261 = arith.constant 1 : index
    %c0_262 = arith.constant 0 : index
    %c0_263 = arith.constant 0 : index
    %293 = vector.load %arg9[%c1_261, %c0_262, %c0_263] : memref<3x80x64xf32, #tpu.memory_space<vmem>>, vector<1x80x64xf32>
    %294 = vector.shape_cast %293 : vector<1x80x64xf32> to vector<80x64xf32>
    %295 = vector.shape_cast %292 : vector<80x64xf32> to vector<1x80x64xf32>
    tpu.vector_store %arg9[%c1_261, %c0_262, %c0_263], %295 {strides = array<i32>} : memref<3x80x64xf32, #tpu.memory_space<vmem>>, vector<1x80x64xf32>,
    %c2_264 = arith.constant 2 : index
    %c0_265 = arith.constant 0 : index
    %c0_266 = arith.constant 0 : index
    %296 = vector.load %arg9[%c2_264, %c0_265, %c0_266] : memref<3x80x64xf32, #tpu.memory_space<vmem>>, vector<1x80x64xf32>
    %297 = vector.shape_cast %296 : vector<1x80x64xf32> to vector<80x64xf32>
    %c8_267 = arith.constant 8 : index
    %c0_268 = arith.constant 0 : index
    %c0_269 = arith.constant 0 : index
    %298 = vector.load %arg5[%c8_267, %c0_268, %c0_269] : memref<9x64x64xbf16, #tpu.memory_space<vmem>>, vector<1x64x64xbf16>
    %299 = vector.shape_cast %298 : vector<1x64x64xbf16> to vector<64x64xbf16>
    %cst_270 = arith.constant dense<0.000000e+00> : vector<80x64xf32>
    %300 = tpu.matmul %277, %299, %cst_270 {dimension_numbers = #tpu.dot_dimension_numbers<[1], [0], [0], [1], [0, 0, 1, 1], [], []>} : vector<80x64xbf16>, vector<64x64xbf16>, vector<80x64xf32> -> vector<80x64xf32>
    %301 = arith.addf %297, %300 : vector<80x64xf32>
    %c2_271 = arith.constant 2 : index
    %c0_272 = arith.constant 0 : index
    %c0_273 = arith.constant 0 : index
    %302 = vector.load %arg9[%c2_271, %c0_272, %c0_273] : memref<3x80x64xf32, #tpu.memory_space<vmem>>, vector<1x80x64xf32>
    %303 = vector.shape_cast %302 : vector<1x80x64xf32> to vector<80x64xf32>
    %304 = vector.shape_cast %301 : vector<80x64xf32> to vector<1x80x64xf32>
    tpu.vector_store %arg9[%c2_271, %c0_272, %c0_273], %304 {strides = array<i32>} : memref<3x80x64xf32, #tpu.memory_space<vmem>>, vector<1x80x64xf32>,
    %c0_274 = arith.constant 0 : index
    %c0_275 = arith.constant 0 : index
    %305 = vector.load %arg6[%c0_274, %c0_275] : memref<1x64xf32, #tpu.memory_space<vmem>>, vector<1x64xf32>
    %c0_276 = arith.constant 0 : index
    %c0_277 = arith.constant 0 : index
    %306 = vector.load %arg7[%c0_276, %c0_277] : memref<1x64xf32, #tpu.memory_space<vmem>>, vector<1x64xf32>
    %c0_278 = arith.constant 0 : index
    %c0_279 = arith.constant 0 : index
    %c0_280 = arith.constant 0 : index
    %307 = vector.load %arg9[%c0_278, %c0_279, %c0_280] : memref<3x80x64xf32, #tpu.memory_space<vmem>>, vector<1x8x64xf32>
    %308 = vector.shape_cast %307 : vector<1x8x64xf32> to vector<8x64xf32>
    %c1_281 = arith.constant 1 : index
    %c1_282 = arith.constant 1 : index
    %c0_283 = arith.constant 0 : index
    %309 = vector.load %arg9[%c1_281, %c1_282, %c0_283] : memref<3x80x64xf32, #tpu.memory_space<vmem>>, vector<1x8x64xf32>
    %310 = vector.shape_cast %309 : vector<1x8x64xf32> to vector<8x64xf32>
    %311 = arith.addf %308, %310 : vector<8x64xf32>
    %c2_284 = arith.constant 2 : index
    %c2_285 = arith.constant 2 : index
    %c0_286 = arith.constant 0 : index
    %312 = vector.load %arg9[%c2_284, %c2_285, %c0_286] : memref<3x80x64xf32, #tpu.memory_space<vmem>>, vector<1x8x64xf32>
    %313 = vector.shape_cast %312 : vector<1x8x64xf32> to vector<8x64xf32>
    %314 = arith.addf %311, %313 : vector<8x64xf32>
    %315 = vector.broadcast %305 : vector<1x64xf32> to vector<8x64xf32>
    %316 = arith.mulf %314, %315 : vector<8x64xf32>
    %317 = vector.broadcast %306 : vector<1x64xf32> to vector<8x64xf32>
    %318 = arith.addf %316, %317 : vector<8x64xf32>
    %cst_287 = arith.constant 0.000000e+00 : f32
    %319 = vector.broadcast %cst_287 : f32 to vector<8x64xf32>
    %320 = arith.maximumf %318, %319 : vector<8x64xf32>
    %c0_288 = arith.constant 0 : index
    %c0_289 = arith.constant 0 : index
    %c0_290 = arith.constant 0 : index
    %321 = vector.load %arg8[%c0_288, %c0_289, %c0_290] : memref<1x64x64xf32, #tpu.memory_space<vmem>>, vector<1x8x64xf32>
    %322 = vector.shape_cast %321 : vector<1x8x64xf32> to vector<8x64xf32>
    %323 = vector.shape_cast %320 : vector<8x64xf32> to vector<1x8x64xf32>
    tpu.vector_store %arg8[%c0_288, %c0_289, %c0_290], %323 {strides = array<i32>} : memref<1x64x64xf32, #tpu.memory_space<vmem>>, vector<1x8x64xf32>,
    %c0_291 = arith.constant 0 : index
    %c10_292 = arith.constant 10 : index
    %c0_293 = arith.constant 0 : index
    %324 = vector.load %arg9[%c0_291, %c10_292, %c0_293] : memref<3x80x64xf32, #tpu.memory_space<vmem>>, vector<1x8x64xf32>
    %325 = vector.shape_cast %324 : vector<1x8x64xf32> to vector<8x64xf32>
    %c1_294 = arith.constant 1 : index
    %c11_295 = arith.constant 11 : index
    %c0_296 = arith.constant 0 : index
    %326 = vector.load %arg9[%c1_294, %c11_295, %c0_296] : memref<3x80x64xf32, #tpu.memory_space<vmem>>, vector<1x8x64xf32>
    %327 = vector.shape_cast %326 : vector<1x8x64xf32> to vector<8x64xf32>
    %328 = arith.addf %325, %327 : vector<8x64xf32>
    %c2_297 = arith.constant 2 : index
    %c12_298 = arith.constant 12 : index
    %c0_299 = arith.constant 0 : index
    %329 = vector.load %arg9[%c2_297, %c12_298, %c0_299] : memref<3x80x64xf32, #tpu.memory_space<vmem>>, vector<1x8x64xf32>
    %330 = vector.shape_cast %329 : vector<1x8x64xf32> to vector<8x64xf32>
    %331 = arith.addf %328, %330 : vector<8x64xf32>
    %332 = vector.broadcast %305 : vector<1x64xf32> to vector<8x64xf32>
    %333 = arith.mulf %331, %332 : vector<8x64xf32>
    %334 = vector.broadcast %306 : vector<1x64xf32> to vector<8x64xf32>
    %335 = arith.addf %333, %334 : vector<8x64xf32>
    %cst_300 = arith.constant 0.000000e+00 : f32
    %336 = vector.broadcast %cst_300 : f32 to vector<8x64xf32>
    %337 = arith.maximumf %335, %336 : vector<8x64xf32>
    %c0_301 = arith.constant 0 : index
    %c8_302 = arith.constant 8 : index
    %c0_303 = arith.constant 0 : index
    %338 = vector.load %arg8[%c0_301, %c8_302, %c0_303] : memref<1x64x64xf32, #tpu.memory_space<vmem>>, vector<1x8x64xf32>
    %339 = vector.shape_cast %338 : vector<1x8x64xf32> to vector<8x64xf32>
    %340 = vector.shape_cast %337 : vector<8x64xf32> to vector<1x8x64xf32>
    tpu.vector_store %arg8[%c0_301, %c8_302, %c0_303], %340 {strides = array<i32>} : memref<1x64x64xf32, #tpu.memory_space<vmem>>, vector<1x8x64xf32>,
    %c0_304 = arith.constant 0 : index
    %c20_305 = arith.constant 20 : index
    %c0_306 = arith.constant 0 : index
    %341 = vector.load %arg9[%c0_304, %c20_305, %c0_306] : memref<3x80x64xf32, #tpu.memory_space<vmem>>, vector<1x8x64xf32>
    %342 = vector.shape_cast %341 : vector<1x8x64xf32> to vector<8x64xf32>
    %c1_307 = arith.constant 1 : index
    %c21_308 = arith.constant 21 : index
    %c0_309 = arith.constant 0 : index
    %343 = vector.load %arg9[%c1_307, %c21_308, %c0_309] : memref<3x80x64xf32, #tpu.memory_space<vmem>>, vector<1x8x64xf32>
    %344 = vector.shape_cast %343 : vector<1x8x64xf32> to vector<8x64xf32>
    %345 = arith.addf %342, %344 : vector<8x64xf32>
    %c2_310 = arith.constant 2 : index
    %c22_311 = arith.constant 22 : index
    %c0_312 = arith.constant 0 : index
    %346 = vector.load %arg9[%c2_310, %c22_311, %c0_312] : memref<3x80x64xf32, #tpu.memory_space<vmem>>, vector<1x8x64xf32>
    %347 = vector.shape_cast %346 : vector<1x8x64xf32> to vector<8x64xf32>
    %348 = arith.addf %345, %347 : vector<8x64xf32>
    %349 = vector.broadcast %305 : vector<1x64xf32> to vector<8x64xf32>
    %350 = arith.mulf %348, %349 : vector<8x64xf32>
    %351 = vector.broadcast %306 : vector<1x64xf32> to vector<8x64xf32>
    %352 = arith.addf %350, %351 : vector<8x64xf32>
    %cst_313 = arith.constant 0.000000e+00 : f32
    %353 = vector.broadcast %cst_313 : f32 to vector<8x64xf32>
    %354 = arith.maximumf %352, %353 : vector<8x64xf32>
    %c0_314 = arith.constant 0 : index
    %c16 = arith.constant 16 : index
    %c0_315 = arith.constant 0 : index
    %355 = vector.load %arg8[%c0_314, %c16, %c0_315] : memref<1x64x64xf32, #tpu.memory_space<vmem>>, vector<1x8x64xf32>
    %356 = vector.shape_cast %355 : vector<1x8x64xf32> to vector<8x64xf32>
    %357 = vector.shape_cast %354 : vector<8x64xf32> to vector<1x8x64xf32>
    tpu.vector_store %arg8[%c0_314, %c16, %c0_315], %357 {strides = array<i32>} : memref<1x64x64xf32, #tpu.memory_space<vmem>>, vector<1x8x64xf32>,
    %c0_316 = arith.constant 0 : index
    %c30_317 = arith.constant 30 : index
    %c0_318 = arith.constant 0 : index
    %358 = vector.load %arg9[%c0_316, %c30_317, %c0_318] : memref<3x80x64xf32, #tpu.memory_space<vmem>>, vector<1x8x64xf32>
    %359 = vector.shape_cast %358 : vector<1x8x64xf32> to vector<8x64xf32>
    %c1_319 = arith.constant 1 : index
    %c31_320 = arith.constant 31 : index
    %c0_321 = arith.constant 0 : index
    %360 = vector.load %arg9[%c1_319, %c31_320, %c0_321] : memref<3x80x64xf32, #tpu.memory_space<vmem>>, vector<1x8x64xf32>
    %361 = vector.shape_cast %360 : vector<1x8x64xf32> to vector<8x64xf32>
    %362 = arith.addf %359, %361 : vector<8x64xf32>
    %c2_322 = arith.constant 2 : index
    %c32_323 = arith.constant 32 : index
    %c0_324 = arith.constant 0 : index
    %363 = vector.load %arg9[%c2_322, %c32_323, %c0_324] : memref<3x80x64xf32, #tpu.memory_space<vmem>>, vector<1x8x64xf32>
    %364 = vector.shape_cast %363 : vector<1x8x64xf32> to vector<8x64xf32>
    %365 = arith.addf %362, %364 : vector<8x64xf32>
    %366 = vector.broadcast %305 : vector<1x64xf32> to vector<8x64xf32>
    %367 = arith.mulf %365, %366 : vector<8x64xf32>
    %368 = vector.broadcast %306 : vector<1x64xf32> to vector<8x64xf32>
    %369 = arith.addf %367, %368 : vector<8x64xf32>
    %cst_325 = arith.constant 0.000000e+00 : f32
    %370 = vector.broadcast %cst_325 : f32 to vector<8x64xf32>
    %371 = arith.maximumf %369, %370 : vector<8x64xf32>
    %c0_326 = arith.constant 0 : index
    %c24 = arith.constant 24 : index
    %c0_327 = arith.constant 0 : index
    %372 = vector.load %arg8[%c0_326, %c24, %c0_327] : memref<1x64x64xf32, #tpu.memory_space<vmem>>, vector<1x8x64xf32>
    %373 = vector.shape_cast %372 : vector<1x8x64xf32> to vector<8x64xf32>
    %374 = vector.shape_cast %371 : vector<8x64xf32> to vector<1x8x64xf32>
    tpu.vector_store %arg8[%c0_326, %c24, %c0_327], %374 {strides = array<i32>} : memref<1x64x64xf32, #tpu.memory_space<vmem>>, vector<1x8x64xf32>,
    %c0_328 = arith.constant 0 : index
    %c40_329 = arith.constant 40 : index
    %c0_330 = arith.constant 0 : index
    %375 = vector.load %arg9[%c0_328, %c40_329, %c0_330] : memref<3x80x64xf32, #tpu.memory_space<vmem>>, vector<1x8x64xf32>
    %376 = vector.shape_cast %375 : vector<1x8x64xf32> to vector<8x64xf32>
    %c1_331 = arith.constant 1 : index
    %c41_332 = arith.constant 41 : index
    %c0_333 = arith.constant 0 : index
    %377 = vector.load %arg9[%c1_331, %c41_332, %c0_333] : memref<3x80x64xf32, #tpu.memory_space<vmem>>, vector<1x8x64xf32>
    %378 = vector.shape_cast %377 : vector<1x8x64xf32> to vector<8x64xf32>
    %379 = arith.addf %376, %378 : vector<8x64xf32>
    %c2_334 = arith.constant 2 : index
    %c42_335 = arith.constant 42 : index
    %c0_336 = arith.constant 0 : index
    %380 = vector.load %arg9[%c2_334, %c42_335, %c0_336] : memref<3x80x64xf32, #tpu.memory_space<vmem>>, vector<1x8x64xf32>
    %381 = vector.shape_cast %380 : vector<1x8x64xf32> to vector<8x64xf32>
    %382 = arith.addf %379, %381 : vector<8x64xf32>
    %383 = vector.broadcast %305 : vector<1x64xf32> to vector<8x64xf32>
    %384 = arith.mulf %382, %383 : vector<8x64xf32>
    %385 = vector.broadcast %306 : vector<1x64xf32> to vector<8x64xf32>
    %386 = arith.addf %384, %385 : vector<8x64xf32>
    %cst_337 = arith.constant 0.000000e+00 : f32
    %387 = vector.broadcast %cst_337 : f32 to vector<8x64xf32>
    %388 = arith.maximumf %386, %387 : vector<8x64xf32>
    %c0_338 = arith.constant 0 : index
    %c32_339 = arith.constant 32 : index
    %c0_340 = arith.constant 0 : index
    %389 = vector.load %arg8[%c0_338, %c32_339, %c0_340] : memref<1x64x64xf32, #tpu.memory_space<vmem>>, vector<1x8x64xf32>
    %390 = vector.shape_cast %389 : vector<1x8x64xf32> to vector<8x64xf32>
    %391 = vector.shape_cast %388 : vector<8x64xf32> to vector<1x8x64xf32>
    tpu.vector_store %arg8[%c0_338, %c32_339, %c0_340], %391 {strides = array<i32>} : memref<1x64x64xf32, #tpu.memory_space<vmem>>, vector<1x8x64xf32>,
    %c0_341 = arith.constant 0 : index
    %c50_342 = arith.constant 50 : index
    %c0_343 = arith.constant 0 : index
    %392 = vector.load %arg9[%c0_341, %c50_342, %c0_343] : memref<3x80x64xf32, #tpu.memory_space<vmem>>, vector<1x8x64xf32>
    %393 = vector.shape_cast %392 : vector<1x8x64xf32> to vector<8x64xf32>
    %c1_344 = arith.constant 1 : index
    %c51_345 = arith.constant 51 : index
    %c0_346 = arith.constant 0 : index
    %394 = vector.load %arg9[%c1_344, %c51_345, %c0_346] : memref<3x80x64xf32, #tpu.memory_space<vmem>>, vector<1x8x64xf32>
    %395 = vector.shape_cast %394 : vector<1x8x64xf32> to vector<8x64xf32>
    %396 = arith.addf %393, %395 : vector<8x64xf32>
    %c2_347 = arith.constant 2 : index
    %c52_348 = arith.constant 52 : index
    %c0_349 = arith.constant 0 : index
    %397 = vector.load %arg9[%c2_347, %c52_348, %c0_349] : memref<3x80x64xf32, #tpu.memory_space<vmem>>, vector<1x8x64xf32>
    %398 = vector.shape_cast %397 : vector<1x8x64xf32> to vector<8x64xf32>
    %399 = arith.addf %396, %398 : vector<8x64xf32>
    %400 = vector.broadcast %305 : vector<1x64xf32> to vector<8x64xf32>
    %401 = arith.mulf %399, %400 : vector<8x64xf32>
    %402 = vector.broadcast %306 : vector<1x64xf32> to vector<8x64xf32>
    %403 = arith.addf %401, %402 : vector<8x64xf32>
    %cst_350 = arith.constant 0.000000e+00 : f32
    %404 = vector.broadcast %cst_350 : f32 to vector<8x64xf32>
    %405 = arith.maximumf %403, %404 : vector<8x64xf32>
    %c0_351 = arith.constant 0 : index
    %c40_352 = arith.constant 40 : index
    %c0_353 = arith.constant 0 : index
    %406 = vector.load %arg8[%c0_351, %c40_352, %c0_353] : memref<1x64x64xf32, #tpu.memory_space<vmem>>, vector<1x8x64xf32>
    %407 = vector.shape_cast %406 : vector<1x8x64xf32> to vector<8x64xf32>
    %408 = vector.shape_cast %405 : vector<8x64xf32> to vector<1x8x64xf32>
    tpu.vector_store %arg8[%c0_351, %c40_352, %c0_353], %408 {strides = array<i32>} : memref<1x64x64xf32, #tpu.memory_space<vmem>>, vector<1x8x64xf32>,
    %c0_354 = arith.constant 0 : index
    %c60_355 = arith.constant 60 : index
    %c0_356 = arith.constant 0 : index
    %409 = vector.load %arg9[%c0_354, %c60_355, %c0_356] : memref<3x80x64xf32, #tpu.memory_space<vmem>>, vector<1x8x64xf32>
    %410 = vector.shape_cast %409 : vector<1x8x64xf32> to vector<8x64xf32>
    %c1_357 = arith.constant 1 : index
    %c61_358 = arith.constant 61 : index
    %c0_359 = arith.constant 0 : index
    %411 = vector.load %arg9[%c1_357, %c61_358, %c0_359] : memref<3x80x64xf32, #tpu.memory_space<vmem>>, vector<1x8x64xf32>
    %412 = vector.shape_cast %411 : vector<1x8x64xf32> to vector<8x64xf32>
    %413 = arith.addf %410, %412 : vector<8x64xf32>
    %c2_360 = arith.constant 2 : index
    %c62_361 = arith.constant 62 : index
    %c0_362 = arith.constant 0 : index
    %414 = vector.load %arg9[%c2_360, %c62_361, %c0_362] : memref<3x80x64xf32, #tpu.memory_space<vmem>>, vector<1x8x64xf32>
    %415 = vector.shape_cast %414 : vector<1x8x64xf32> to vector<8x64xf32>
    %416 = arith.addf %413, %415 : vector<8x64xf32>
    %417 = vector.broadcast %305 : vector<1x64xf32> to vector<8x64xf32>
    %418 = arith.mulf %416, %417 : vector<8x64xf32>
    %419 = vector.broadcast %306 : vector<1x64xf32> to vector<8x64xf32>
    %420 = arith.addf %418, %419 : vector<8x64xf32>
    %cst_363 = arith.constant 0.000000e+00 : f32
    %421 = vector.broadcast %cst_363 : f32 to vector<8x64xf32>
    %422 = arith.maximumf %420, %421 : vector<8x64xf32>
    %c0_364 = arith.constant 0 : index
    %c48 = arith.constant 48 : index
    %c0_365 = arith.constant 0 : index
    %423 = vector.load %arg8[%c0_364, %c48, %c0_365] : memref<1x64x64xf32, #tpu.memory_space<vmem>>, vector<1x8x64xf32>
    %424 = vector.shape_cast %423 : vector<1x8x64xf32> to vector<8x64xf32>
    %425 = vector.shape_cast %422 : vector<8x64xf32> to vector<1x8x64xf32>
    tpu.vector_store %arg8[%c0_364, %c48, %c0_365], %425 {strides = array<i32>} : memref<1x64x64xf32, #tpu.memory_space<vmem>>, vector<1x8x64xf32>,
    %c0_366 = arith.constant 0 : index
    %c70_367 = arith.constant 70 : index
    %c0_368 = arith.constant 0 : index
    %426 = vector.load %arg9[%c0_366, %c70_367, %c0_368] : memref<3x80x64xf32, #tpu.memory_space<vmem>>, vector<1x8x64xf32>
    %427 = vector.shape_cast %426 : vector<1x8x64xf32> to vector<8x64xf32>
    %c1_369 = arith.constant 1 : index
    %c71_370 = arith.constant 71 : index
    %c0_371 = arith.constant 0 : index
    %428 = vector.load %arg9[%c1_369, %c71_370, %c0_371] : memref<3x80x64xf32, #tpu.memory_space<vmem>>, vector<1x8x64xf32>
    %429 = vector.shape_cast %428 : vector<1x8x64xf32> to vector<8x64xf32>
    %430 = arith.addf %427, %429 : vector<8x64xf32>
    %c2_372 = arith.constant 2 : index
    %c72_373 = arith.constant 72 : index
    %c0_374 = arith.constant 0 : index
    %431 = vector.load %arg9[%c2_372, %c72_373, %c0_374] : memref<3x80x64xf32, #tpu.memory_space<vmem>>, vector<1x8x64xf32>
    %432 = vector.shape_cast %431 : vector<1x8x64xf32> to vector<8x64xf32>
    %433 = arith.addf %430, %432 : vector<8x64xf32>
    %434 = vector.broadcast %305 : vector<1x64xf32> to vector<8x64xf32>
    %435 = arith.mulf %433, %434 : vector<8x64xf32>
    %436 = vector.broadcast %306 : vector<1x64xf32> to vector<8x64xf32>
    %437 = arith.addf %435, %436 : vector<8x64xf32>
    %cst_375 = arith.constant 0.000000e+00 : f32
    %438 = vector.broadcast %cst_375 : f32 to vector<8x64xf32>
    %439 = arith.maximumf %437, %438 : vector<8x64xf32>
    %c0_376 = arith.constant 0 : index
    %c56 = arith.constant 56 : index
    %c0_377 = arith.constant 0 : index
    %440 = vector.load %arg8[%c0_376, %c56, %c0_377] : memref<1x64x64xf32, #tpu.memory_space<vmem>>, vector<1x8x64xf32>
    %441 = vector.shape_cast %440 : vector<1x8x64xf32> to vector<8x64xf32>
    %442 = vector.shape_cast %439 : vector<8x64xf32> to vector<1x8x64xf32>
    tpu.vector_store %arg8[%c0_376, %c56, %c0_377], %442 {strides = array<i32>} : memref<1x64x64xf32, #tpu.memory_space<vmem>>, vector<1x8x64xf32>,
    return
  }
  func.func @transform_0(%arg0: i32) -> (i32, i32, i32) {
    %c0_i32 = arith.constant 0 : i32
    %c0_i32_0 = arith.constant 0 : i32
    %c0_i32_1 = arith.constant 0 : i32
    return %arg0, %c0_i32, %c0_i32_0 : i32, i32, i32
  }
  func.func @transform_1(%arg0: i32) -> (i32, i32, i32) {
    %c0_i32 = arith.constant 0 : i32
    %c0_i32_0 = arith.constant 0 : i32
    %c0_i32_1 = arith.constant 0 : i32
    %c0_i32_2 = arith.constant 0 : i32
    return %c0_i32, %c0_i32_0, %c0_i32_1 : i32, i32, i32
  }
  func.func @transform_2(%arg0: i32) -> (i32, i32) {
    %c0_i32 = arith.constant 0 : i32
    %c0_i32_0 = arith.constant 0 : i32
    %c0_i32_1 = arith.constant 0 : i32
    return %c0_i32, %c0_i32_0 : i32, i32
  }
  func.func @transform_3(%arg0: i32) -> (i32, i32) {
    %c0_i32 = arith.constant 0 : i32
    %c0_i32_0 = arith.constant 0 : i32
    %c0_i32_1 = arith.constant 0 : i32
    return %c0_i32, %c0_i32_0 : i32, i32
  }
  func.func @transform_4(%arg0: i32) -> (i32, i32, i32) {
    %c0_i32 = arith.constant 0 : i32
    %c0_i32_0 = arith.constant 0 : i32
    %c0_i32_1 = arith.constant 0 : i32
    %c0_i32_2 = arith.constant 0 : i32
    return %c0_i32, %c0_i32_0, %c0_i32_1 : i32, i32, i32
  }
  func.func @transform_5(%arg0: i32) -> (i32, i32) {
    %c0_i32 = arith.constant 0 : i32
    %c0_i32_0 = arith.constant 0 : i32
    %c0_i32_1 = arith.constant 0 : i32
    return %c0_i32, %c0_i32_0 : i32, i32
  }
  func.func @transform_6(%arg0: i32) -> (i32, i32) {
    %c0_i32 = arith.constant 0 : i32
    %c0_i32_0 = arith.constant 0 : i32
    %c0_i32_1 = arith.constant 0 : i32
    return %c0_i32, %c0_i32_0 : i32, i32
  }
  func.func @transform_7(%arg0: i32) -> (i32, i32, i32) {
    %c0_i32 = arith.constant 0 : i32
    %c0_i32_0 = arith.constant 0 : i32
    %c0_i32_1 = arith.constant 0 : i32
    return %arg0, %c0_i32, %c0_i32_0 : i32, i32, i32
  }
}

</mosaic_0001>

<llo_original>
// kernel: downsample_block_fuse.5
$region0: #{downsample_block_fuse.5}
  #allocation0 [shape = 'u32[]', space=smem, size = 0x4, offset = 0x4, fixed_abs, tag = 'smem constant byte address 0x4 - core index']
  #allocation1 [shape = 'u32[144,128]{1,0:T(1,128)}', space=vmem, size = 0x12000, scoped, tag = 'internal scratch']
  %s0 = inlined_call_operand.vmem [shape: bf16[800,512], index: 0, kind: input, shape index: {}]
  %s1 = inlined_call_operand.vmem [shape: bf16[512,128], index: 1, kind: input, shape index: {}]
  %s2 = inlined_call_operand.vmem [shape: f32[1,128], index: 2, kind: input, shape index: {}]
  %s3 = inlined_call_operand.vmem [shape: bf16[800,128], index: 3, kind: output, shape index: {}]
  %s4 = sld [smem:[#allocation0]]
  $region45: #{downsample_block_fuse.5} parent=0
    _
  %s6 = ssub.s32 1, %s4
  %s7 = scalar_select 0, %s6, %s4
  loop: start=0, step=1, limit=7
  $region2: #{downsample_block_fuse.5} parent=0 // loop_pre_header
    _
  $region3: #{downsample_block_fuse.5} parent=0 // loop_header
    %s9 = sphi 0, %s13
    %p10 = scmp.ge.s32.totalorder %s9, 7
    %s19 = sphi 0, %s21
    %s22 = sphi 0, %s19
    %s23 = sphi 0, %s22
    %s39 = sphi 0, %s23
    %s43 = sphi 0, %s43
    %s45 = sphi 0, %s43
    %s46 = sphi 0, %s45
    %s60 = sphi 0, %s46
    %s64 = sphi 0, %s64
    %s66 = sphi 0, %s64
    %s67 = sphi 0, %s66
    %s81 = sphi 0, %s67
    %s87 = sphi 0, %s89
    %s90 = sphi 0, %s87
    %s91 = sphi 0, %s90
    %s107 = sphi 0, %s91
  $region4: #{downsample_block_fuse.5} parent=0 // loop_header_branch
    %12 = sbr.rel (%p10) target = $region8
  $region5: #{downsample_block_fuse.5} parent=0 // loop_body
    %s14 = ssub.s32 %s9, 1
    %s15 = ssub.s32 %s9, 2
    %s16 = sadd.s32 %s9, 1
    %s17 = ssub.s32 %s9, %s16
    %p18 = scmp.eq.s32.totalorder %s17, 0
    %s20 = sadd.s32 %s19, 1
    %s21 = scalar_select %p18, %s19, %s20
    %p24 = pneg %p18
    %p25 = scmp.eq.s32.totalorder %s9, 4
    %p26 = por %p24, %p25
    %p27 = scmp.ne.s32.totalorder %s19, %s22
    %p28 = scmp.eq.s32.totalorder %s9, 0
    %p29 = por %p27, %p28
    %p30 = scmp.ne.s32.totalorder %s19, %s22
    %p31 = scmp.eq.s32.totalorder %s14, 4
    %p32 = por %p30, %p31
    %p33 = scmp.ne.s32.totalorder %s22, %s23
    %p34 = scmp.eq.s32.totalorder %s14, 0
    %p35 = por %p33, %p34
    %p36 = scmp.ne.s32.totalorder %s22, %s23
    %p37 = scmp.eq.s32.totalorder %s15, 4
    %p38 = por %p36, %p37
    %p40 = scmp.ne.s32.totalorder %s23, %s39
    %p41 = scmp.eq.s32.totalorder %s15, 0
    %p42 = por %p40, %p41
    %s44 = sadd.s32 %s43, 1
    %p47 = scmp.eq.s32.totalorder %s9, 4
    %p48 = scmp.ne.s32.totalorder %s43, %s45
    %p49 = scmp.eq.s32.totalorder %s9, 0
    %p50 = por %p48, %p49
    %p51 = scmp.ne.s32.totalorder %s43, %s45
    %p52 = scmp.eq.s32.totalorder %s14, 4
    %p53 = por %p51, %p52
    %p54 = scmp.ne.s32.totalorder %s45, %s46
    %p55 = scmp.eq.s32.totalorder %s14, 0
    %p56 = por %p54, %p55
    %p57 = scmp.ne.s32.totalorder %s45, %s46
    %p58 = scmp.eq.s32.totalorder %s15, 4
    %p59 = por %p57, %p58
    %p61 = scmp.ne.s32.totalorder %s46, %s60
    %p62 = scmp.eq.s32.totalorder %s15, 0
    %p63 = por %p61, %p62
    %s65 = sadd.s32 %s64, 1
    %p68 = scmp.eq.s32.totalorder %s9, 4
    %p69 = scmp.ne.s32.totalorder %s64, %s66
    %p70 = scmp.eq.s32.totalorder %s9, 0
    %p71 = por %p69, %p70
    %p72 = scmp.ne.s32.totalorder %s64, %s66
    %p73 = scmp.eq.s32.totalorder %s14, 4
    %p74 = por %p72, %p73
    %p75 = scmp.ne.s32.totalorder %s66, %s67
    %p76 = scmp.eq.s32.totalorder %s14, 0
    %p77 = por %p75, %p76
    %p78 = scmp.ne.s32.totalorder %s66, %s67
    %p79 = scmp.eq.s32.totalorder %s15, 4
    %p80 = por %p78, %p79
    %p82 = scmp.ne.s32.totalorder %s67, %s81
    %p83 = scmp.eq.s32.totalorder %s15, 0
    %p84 = por %p82, %p83
    %s85 = ssub.s32 %s9, %s16
    %p86 = scmp.eq.s32.totalorder %s85, 0
    %s88 = sadd.s32 %s87, 1
    %s89 = scalar_select %p86, %s87, %s88
    %p92 = pneg %p86
    %p93 = scmp.eq.s32.totalorder %s9, 4
    %p94 = por %p92, %p93
    %p95 = scmp.ne.s32.totalorder %s87, %s90
    %p96 = scmp.eq.s32.totalorder %s9, 0
    %p97 = por %p95, %p96
    %p98 = scmp.ne.s32.totalorder %s87, %s90
    %p99 = scmp.eq.s32.totalorder %s14, 4
    %p100 = por %p98, %p99
    %p101 = scmp.ne.s32.totalorder %s90, %s91
    %p102 = scmp.eq.s32.totalorder %s14, 0
    %p103 = por %p101, %p102
    %p104 = scmp.ne.s32.totalorder %s90, %s91
    %p105 = scmp.eq.s32.totalorder %s15, 4
    %p106 = por %p104, %p105
    %p108 = scmp.ne.s32.totalorder %s91, %s107
    %p109 = scmp.eq.s32.totalorder %s15, 0
    %p110 = por %p108, %p109
    %p111 = scmp.le.s32.totalorder 1, %s9
    %p112 = scmp.lt.s32.totalorder %s9, 6
    %p113 = pnand %p111, %p112
    %p114 = pneg %p113
    // Predicated region
    $region9: #{downsample_block_fuse.5} parent=5 // pred_check
      _
    $region10: #{downsample_block_fuse.5} parent=5 // pred_check_branch
      %116 = sbr.rel (%p113) target = $region12
    $region11: #{downsample_block_fuse.5} parent=5 // pred_region
      %s117 = ssub.s32 %s9, 1
      // Predicated region
      $region13: #{downsample_block_fuse.5} parent=11 // pred_check
        %p118 = pneg %p56
      $region14: #{downsample_block_fuse.5} parent=11 // pred_check_branch
        %120 = sbr.rel (%p118) target = $region16
      $region15: #{downsample_block_fuse.5} parent=11 // pred_region
        _
      $region16: #{downsample_block_fuse.5} parent=11 // pred_fallthru
        _
      // Predicated region
      $region17: #{downsample_block_fuse.5} parent=11 // pred_check
        %p121 = pneg %p77
      $region18: #{downsample_block_fuse.5} parent=11 // pred_check_branch
        %123 = sbr.rel (%p121) target = $region20
      $region19: #{downsample_block_fuse.5} parent=11 // pred_region
        _
      $region20: #{downsample_block_fuse.5} parent=11 // pred_fallthru
        _
    $region12: #{downsample_block_fuse.5} parent=5 // pred_fallthru
      _
    %p124 = scmp.lt.s32.totalorder %s9, 5
    // Predicated region
    $region21: #{downsample_block_fuse.5} parent=5 // pred_check
      %p125 = pneg %p124
    $region22: #{downsample_block_fuse.5} parent=5 // pred_check_branch
      %127 = sbr.rel (%p125) target = $region24
    $region23: #{downsample_block_fuse.5} parent=5 // pred_region
      // Predicated region
      $region25: #{downsample_block_fuse.5} parent=23 // pred_check
        %p128 = pneg %p29
      $region26: #{downsample_block_fuse.5} parent=23 // pred_check_branch
        %130 = sbr.rel (%p128) target = $region28
      $region27: #{downsample_block_fuse.5} parent=23 // pred_region
        %s131 = smul.u32 20, %s9
        %p132 = scmp.lt.s32.totalorder %s131, 99
        %s133 = scalar_select %p132, %s131, 99
        %s134 = smul.addr %s133, 4
        %s135 = smul.addr %s134, 4
        %s136 = scalar_lea.vmem %s0, %s135
        %s137 = smul.u32 20, %s9
      $region28: #{downsample_block_fuse.5} parent=23 // pred_fallthru
        _
    $region24: #{downsample_block_fuse.5} parent=5 // pred_fallthru
      _
    %p138 = scmp.le.s32.totalorder 1, %s9
    %p139 = scmp.lt.s32.totalorder %s9, 6
    %p140 = pnand %p138, %p139
    %p141 = pneg %p140
    // Predicated region
    $region29: #{downsample_block_fuse.5} parent=5 // pred_check
      _
    $region30: #{downsample_block_fuse.5} parent=5 // pred_check_branch
      %143 = sbr.rel (%p140) target = $region32
    $region31: #{downsample_block_fuse.5} parent=5 // pred_region
      %s144 = ssub.s32 %s9, 1
      %s145 = smul.u32 20, %s14
      %p146 = scmp.lt.s32.totalorder %s145, 99
      %s147 = scalar_select %p146, %s145, 99
      %s148 = smul.addr %s147, 4
      %s149 = smul.addr %s148, 4
      %s150 = scalar_lea.vmem %s0, %s149
      %p151 = pneg %p35
      %p152 = pneg %p32
      %p153 = pneg %p56
      %p154 = pneg %p53
      %p155 = pneg %p77
      %p156 = pneg %p74
      %p157 = pneg %p103
      %p158 = pneg %p100
      %s159 = smul.u32 20, %s14
      %p160 = scmp.lt.s32.totalorder %s159, 99
      %s161 = scalar_select %p160, %s159, 99
      %s162 = smul.addr %s161, 4
      %s163 = scalar_lea.vmem %s3, %s162
      %s164 = smul.u32 20, %s14
      %p165 = scmp.lt.s32.totalorder %s164, 99
      %s166 = scalar_select %p165, %s164, 99
      %s167 = smul.addr %s166, 4
      %s168 = smul.addr %s167, 4
      %s169 = scalar_lea.vmem %s0, %s168
      %s170 = smul.u32 20, %s14
      %s171 = smul.u32 20, %s14
      %p172 = scmp.lt.s32.totalorder %s171, 99
      %s173 = scalar_select %p172, %s171, 99
      %s174 = smul.addr %s173, 4
      %s175 = scalar_lea.vmem %s3, %s174
      %s176 = smul.u32 20, %s14
      %v178 = vld [vmem:[%s169] sm:$0xff]
      %v179 = vld [vmem:[%s169 + $0x8] sm:$0xff]
      %v180 = vld [vmem:[%s169 + $0x10] sm:$0xff]
      %v181 = vld [vmem:[%s169 + $0x18] sm:$0xff]
      %v182 = vld [vmem:[%s169 + $0x20] sm:$0xff]
      %v183 = vld [vmem:[%s169 + $0x28] sm:$0xff]
      %v184 = vld [vmem:[%s169 + $0x30] sm:$0xff]
      %v185 = vld [vmem:[%s169 + $0x38] sm:$0xff]
      %v186 = vld [vmem:[%s169 + $0x40] sm:$0xff]
      %v187 = vld [vmem:[%s169 + $0x48] sm:$0xff]
      %v188 = vld [vmem:[%s169 + $0x50] sm:$0xff]
      %v189 = vld [vmem:[%s169 + $0x58] sm:$0xff]
      %v190 = vld [vmem:[%s169 + $0x60] sm:$0xff]
      %v191 = vld [vmem:[%s169 + $0x68] sm:$0xff]
      %v192 = vld [vmem:[%s169 + $0x70] sm:$0xff]
      %v193 = vld [vmem:[%s169 + $0x78] sm:$0xff]
      %v194 = vld [vmem:[%s169 + $0x80] sm:$0xff]
      %v195 = vld [vmem:[%s169 + $0x88] sm:$0xff]
      %v196 = vld [vmem:[%s169 + $0x90] sm:$0xff]
      %v197 = vld [vmem:[%s169 + $0x98] sm:$0xff]
      %v198 = vld [vmem:[%s169 + $0xa0] sm:$0xff]
      %v199 = vld [vmem:[%s169 + $0xa8] sm:$0xff]
      %v200 = vld [vmem:[%s169 + $0xb0] sm:$0xff]
      %v201 = vld [vmem:[%s169 + $0xb8] sm:$0xff]
      %v202 = vld [vmem:[%s169 + $0xc0] sm:$0xff]
      %v203 = vld [vmem:[%s169 + $0xc8] sm:$0xff]
      %v204 = vld [vmem:[%s169 + $0xd0] sm:$0xff]
      %v205 = vld [vmem:[%s169 + $0xd8] sm:$0xff]
      %v206 = vld [vmem:[%s169 + $0xe0] sm:$0xff]
      %v207 = vld [vmem:[%s169 + $0xe8] sm:$0xff]
      %v208 = vld [vmem:[%s169 + $0xf0] sm:$0xff]
      %v209 = vld [vmem:[%s169 + $0xf8] sm:$0xff]
      %v210 = vld [vmem:[%s169 + $0x100] sm:$0xff]
      %v211 = vld [vmem:[%s169 + $0x108] sm:$0xff]
      %v212 = vld [vmem:[%s169 + $0x110] sm:$0xff]
      %v213 = vld [vmem:[%s169 + $0x118] sm:$0xff]
      %v214 = vld [vmem:[%s169 + $0x120] sm:$0xff]
      %v215 = vld [vmem:[%s169 + $0x128] sm:$0xff]
      %v216 = vld [vmem:[%s169 + $0x130] sm:$0xff]
      %v217 = vld [vmem:[%s169 + $0x138] sm:$0xff]
      %v218 = vld [vmem:[%s1] sm:$0xf]
      %v219 = vld [vmem:[%s1 + $0x4] sm:$0xf]
      %v220 = vld [vmem:[%s1 + $0x8] sm:$0xf]
      %v221 = vld [vmem:[%s1 + $0xc] sm:$0xf]
      %v222 = vld [vmem:[%s1 + $0x10] sm:$0xf]
      %v223 = vld [vmem:[%s1 + $0x14] sm:$0xf]
      %v224 = vld [vmem:[%s1 + $0x18] sm:$0xf]
      %v225 = vld [vmem:[%s1 + $0x1c] sm:$0xf]
      %v226 = vld [vmem:[%s1 + $0x20] sm:$0xf]
      %v227 = vld [vmem:[%s1 + $0x24] sm:$0xf]
      %v228 = vld [vmem:[%s1 + $0x28] sm:$0xf]
      %v229 = vld [vmem:[%s1 + $0x2c] sm:$0xf]
      %v230 = vld [vmem:[%s1 + $0x30] sm:$0xf]
      %v231 = vld [vmem:[%s1 + $0x34] sm:$0xf]
      %v232 = vld [vmem:[%s1 + $0x38] sm:$0xf]
      %v233 = vld [vmem:[%s1 + $0x3c] sm:$0xf]
      %v234 = vld [vmem:[%s1 + $0x40] sm:$0xf]
      %v235 = vld [vmem:[%s1 + $0x44] sm:$0xf]
      %v236 = vld [vmem:[%s1 + $0x48] sm:$0xf]
      %v237 = vld [vmem:[%s1 + $0x4c] sm:$0xf]
      %v238 = vld [vmem:[%s1 + $0x50] sm:$0xf]
      %v239 = vld [vmem:[%s1 + $0x54] sm:$0xf]
      %v240 = vld [vmem:[%s1 + $0x58] sm:$0xf]
      %v241 = vld [vmem:[%s1 + $0x5c] sm:$0xf]
      %v242 = vld [vmem:[%s1 + $0x60] sm:$0xf]
      %v243 = vld [vmem:[%s1 + $0x64] sm:$0xf]
      %v244 = vld [vmem:[%s1 + $0x68] sm:$0xf]
      %v245 = vld [vmem:[%s1 + $0x6c] sm:$0xf]
      %v246 = vld [vmem:[%s1 + $0x70] sm:$0xf]
      %v247 = vld [vmem:[%s1 + $0x74] sm:$0xf]
      %v248 = vld [vmem:[%s1 + $0x78] sm:$0xf]
      %v249 = vld [vmem:[%s1 + $0x7c] sm:$0xf]
      %v250 = vld [vmem:[%s1 + $0x80] sm:$0xf]
      %v251 = vld [vmem:[%s1 + $0x84] sm:$0xf]
      %v252 = vld [vmem:[%s1 + $0x88] sm:$0xf]
      %v253 = vld [vmem:[%s1 + $0x8c] sm:$0xf]
      %v254 = vld [vmem:[%s1 + $0x90] sm:$0xf]
      %v255 = vld [vmem:[%s1 + $0x94] sm:$0xf]
      %v256 = vld [vmem:[%s1 + $0x98] sm:$0xf]
      %v257 = vld [vmem:[%s1 + $0x9c] sm:$0xf]
      %v258 = vld [vmem:[%s1 + $0xa0] sm:$0xf]
      %v259 = vld [vmem:[%s1 + $0xa4] sm:$0xf]
      %v260 = vld [vmem:[%s1 + $0xa8] sm:$0xf]
      %v261 = vld [vmem:[%s1 + $0xac] sm:$0xf]
      %v262 = vld [vmem:[%s1 + $0xb0] sm:$0xf]
      %v263 = vld [vmem:[%s1 + $0xb4] sm:$0xf]
      %v264 = vld [vmem:[%s1 + $0xb8] sm:$0xf]
      %v265 = vld [vmem:[%s1 + $0xbc] sm:$0xf]
      %v266 = vld [vmem:[%s1 + $0xc0] sm:$0xf]
      %v267 = vld [vmem:[%s1 + $0xc4] sm:$0xf]
      %v268 = vld [vmem:[%s1 + $0xc8] sm:$0xf]
      %v269 = vld [vmem:[%s1 + $0xcc] sm:$0xf]
      %v270 = vld [vmem:[%s1 + $0xd0] sm:$0xf]
      %v271 = vld [vmem:[%s1 + $0xd4] sm:$0xf]
      %v272 = vld [vmem:[%s1 + $0xd8] sm:$0xf]
      %v273 = vld [vmem:[%s1 + $0xdc] sm:$0xf]
      %v274 = vld [vmem:[%s1 + $0xe0] sm:$0xf]
      %v275 = vld [vmem:[%s1 + $0xe4] sm:$0xf]
      %v276 = vld [vmem:[%s1 + $0xe8] sm:$0xf]
      %v277 = vld [vmem:[%s1 + $0xec] sm:$0xf]
      %v278 = vld [vmem:[%s1 + $0xf0] sm:$0xf]
      %v279 = vld [vmem:[%s1 + $0xf4] sm:$0xf]
      %v280 = vld [vmem:[%s1 + $0xf8] sm:$0xf]
      %v281 = vld [vmem:[%s1 + $0xfc] sm:$0xf]
      %v282 = vld [vmem:[%s2] sm:$0x1]
      %v284 = vlaneseq
      %v285 = vshrl.u32 %v284, 7
      %v286 = vsub.s32 0, %v285
      %v287 = vrot.slane %v282, %v286
      %v329 = vunpack.c.l.b16 %v178
      %v330 = vunpack.c.h.b16 %v178
      %v331 = vunpack.c.l.b16 %v179
      %v332 = vunpack.c.h.b16 %v179
      %v333 = vunpack.c.l.b16 %v180
      %v334 = vunpack.c.h.b16 %v180
      %v335 = vunpack.c.l.b16 %v181
      %v336 = vunpack.c.h.b16 %v181
      %v337 = vunpack.c.l.b16 %v182
      %v338 = vunpack.c.h.b16 %v182
      %v339 = vunpack.c.l.b16 %v183
      %v340 = vunpack.c.h.b16 %v183
      %v341 = vunpack.c.l.b16 %v184
      %v342 = vunpack.c.h.b16 %v184
      %v343 = vunpack.c.l.b16 %v185
      %v344 = vunpack.c.h.b16 %v185
      %v345 = vunpack.c.l.b16 %v186
      %v346 = vunpack.c.h.b16 %v186
      %v347 = vunpack.c.l.b16 %v187
      %v348 = vunpack.c.h.b16 %v187
      %v349 = vunpack.c.l.b16 %v188
      %v350 = vunpack.c.h.b16 %v188
      %v351 = vunpack.c.l.b16 %v189
      %v352 = vunpack.c.h.b16 %v189
      %v353 = vunpack.c.l.b16 %v190
      %v354 = vunpack.c.h.b16 %v190
      %v355 = vunpack.c.l.b16 %v191
      %v356 = vunpack.c.h.b16 %v191
      %v357 = vunpack.c.l.b16 %v192
      %v358 = vunpack.c.h.b16 %v192
      %v359 = vunpack.c.l.b16 %v193
      %v360 = vunpack.c.h.b16 %v193
      %v361 = vunpack.c.l.b16 %v194
      %v362 = vunpack.c.h.b16 %v194
      %v363 = vunpack.c.l.b16 %v195
      %v364 = vunpack.c.h.b16 %v195
      %v365 = vunpack.c.l.b16 %v196
      %v366 = vunpack.c.h.b16 %v196
      %v367 = vunpack.c.l.b16 %v197
      %v368 = vunpack.c.h.b16 %v197
      %v369 = vunpack.c.l.b16 %v198
      %v370 = vunpack.c.h.b16 %v198
      %v371 = vunpack.c.l.b16 %v199
      %v372 = vunpack.c.h.b16 %v199
      %v373 = vunpack.c.l.b16 %v200
      %v374 = vunpack.c.h.b16 %v200
      %v375 = vunpack.c.l.b16 %v201
      %v376 = vunpack.c.h.b16 %v201
      %v377 = vunpack.c.l.b16 %v202
      %v378 = vunpack.c.h.b16 %v202
      %v379 = vunpack.c.l.b16 %v203
      %v380 = vunpack.c.h.b16 %v203
      %v381 = vunpack.c.l.b16 %v204
      %v382 = vunpack.c.h.b16 %v204
      %v383 = vunpack.c.l.b16 %v205
      %v384 = vunpack.c.h.b16 %v205
      %v385 = vunpack.c.l.b16 %v206
      %v386 = vunpack.c.h.b16 %v206
      %v387 = vunpack.c.l.b16 %v207
      %v388 = vunpack.c.h.b16 %v207
      %v389 = vunpack.c.l.b16 %v208
      %v390 = vunpack.c.h.b16 %v208
      %v391 = vunpack.c.l.b16 %v209
      %v392 = vunpack.c.h.b16 %v209
      %v393 = vunpack.c.l.b16 %v210
      %v394 = vunpack.c.h.b16 %v210
      %v395 = vunpack.c.l.b16 %v211
      %v396 = vunpack.c.h.b16 %v211
      %v397 = vunpack.c.l.b16 %v212
      %v398 = vunpack.c.h.b16 %v212
      %v399 = vunpack.c.l.b16 %v213
      %v400 = vunpack.c.h.b16 %v213
      %v401 = vunpack.c.l.b16 %v214
      %v402 = vunpack.c.h.b16 %v214
      %v403 = vunpack.c.l.b16 %v215
      %v404 = vunpack.c.h.b16 %v215
      %v405 = vunpack.c.l.b16 %v216
      %v406 = vunpack.c.h.b16 %v216
      %v407 = vunpack.c.l.b16 %v217
      %v408 = vunpack.c.h.b16 %v217
      %v409 = vpack.c.b16 %v333, %v329
      %v410 = vpack.c.b16 %v334, %v330
      %v411 = vpack.c.b16 %v335, %v331
      %v412 = vpack.c.b16 %v336, %v332
      %v413 = vpack.c.b16 %v341, %v337
      %v414 = vpack.c.b16 %v342, %v338
      %v415 = vpack.c.b16 %v343, %v339
      %v416 = vpack.c.b16 %v344, %v340
      %v417 = vpack.c.b16 %v349, %v345
      %v418 = vpack.c.b16 %v350, %v346
      %v419 = vpack.c.b16 %v351, %v347
      %v420 = vpack.c.b16 %v352, %v348
      %v421 = vpack.c.b16 %v357, %v353
      %v422 = vpack.c.b16 %v358, %v354
      %v423 = vpack.c.b16 %v359, %v355
      %v424 = vpack.c.b16 %v360, %v356
      %v425 = vpack.c.b16 %v365, %v361
      %v426 = vpack.c.b16 %v366, %v362
      %v427 = vpack.c.b16 %v367, %v363
      %v428 = vpack.c.b16 %v368, %v364
      %v429 = vpack.c.b16 %v373, %v369
      %v430 = vpack.c.b16 %v374, %v370
      %v431 = vpack.c.b16 %v375, %v371
      %v432 = vpack.c.b16 %v376, %v372
      %v433 = vpack.c.b16 %v381, %v377
      %v434 = vpack.c.b16 %v382, %v378
      %v435 = vpack.c.b16 %v383, %v379
      %v436 = vpack.c.b16 %v384, %v380
      %v437 = vpack.c.b16 %v389, %v385
      %v438 = vpack.c.b16 %v390, %v386
      %v439 = vpack.c.b16 %v391, %v387
      %v440 = vpack.c.b16 %v392, %v388
      %v441 = vpack.c.b16 %v397, %v393
      %v442 = vpack.c.b16 %v398, %v394
      %v443 = vpack.c.b16 %v399, %v395
      %v444 = vpack.c.b16 %v400, %v396
      %v445 = vpack.c.b16 %v405, %v401
      %v446 = vpack.c.b16 %v406, %v402
      %v447 = vpack.c.b16 %v407, %v403
      %v448 = vpack.c.b16 %v408, %v404
      %v553 = vunpack.c.l.b16 %v218
      %v554 = vunpack.c.l.b16 %v219
      %v555 = vunpack.c.l.b16 %v220
      %v556 = vunpack.c.l.b16 %v221
      %v557 = vunpack.c.l.b16 %v222
      %v558 = vunpack.c.l.b16 %v223
      %v559 = vunpack.c.l.b16 %v224
      %v560 = vunpack.c.l.b16 %v225
      %v561 = vunpack.c.l.b16 %v226
      %v562 = vunpack.c.l.b16 %v227
      %v563 = vunpack.c.l.b16 %v228
      %v564 = vunpack.c.l.b16 %v229
      %v565 = vunpack.c.l.b16 %v230
      %v566 = vunpack.c.l.b16 %v231
      %v567 = vunpack.c.l.b16 %v232
      %v568 = vunpack.c.l.b16 %v233
      %v569 = vunpack.c.l.b16 %v234
      %v570 = vunpack.c.l.b16 %v235
      %v571 = vunpack.c.l.b16 %v236
      %v572 = vunpack.c.l.b16 %v237
      %v573 = vunpack.c.l.b16 %v238
      %v574 = vunpack.c.l.b16 %v239
      %v575 = vunpack.c.l.b16 %v240
      %v576 = vunpack.c.l.b16 %v241
      %v577 = vunpack.c.l.b16 %v242
      %v578 = vunpack.c.l.b16 %v243
      %v579 = vunpack.c.l.b16 %v244
      %v580 = vunpack.c.l.b16 %v245
      %v581 = vunpack.c.l.b16 %v246
      %v582 = vunpack.c.l.b16 %v247
      %v583 = vunpack.c.l.b16 %v248
      %v584 = vunpack.c.l.b16 %v249
      %v585 = vunpack.c.l.b16 %v250
      %v586 = vunpack.c.l.b16 %v251
      %v587 = vunpack.c.l.b16 %v252
      %v588 = vunpack.c.l.b16 %v253
      %v589 = vunpack.c.l.b16 %v254
      %v590 = vunpack.c.l.b16 %v255
      %v591 = vunpack.c.l.b16 %v256
      %v592 = vunpack.c.l.b16 %v257
      %v593 = vunpack.c.l.b16 %v258
      %v594 = vunpack.c.l.b16 %v259
      %v595 = vunpack.c.l.b16 %v260
      %v596 = vunpack.c.l.b16 %v261
      %v597 = vunpack.c.l.b16 %v262
      %v598 = vunpack.c.l.b16 %v263
      %v599 = vunpack.c.l.b16 %v264
      %v600 = vunpack.c.l.b16 %v265
      %v601 = vunpack.c.l.b16 %v266
      %v602 = vunpack.c.l.b16 %v267
      %v603 = vunpack.c.l.b16 %v268
      %v604 = vunpack.c.l.b16 %v269
      %v605 = vunpack.c.l.b16 %v270
      %v606 = vunpack.c.l.b16 %v271
      %v607 = vunpack.c.l.b16 %v272
      %v608 = vunpack.c.l.b16 %v273
      %v609 = vunpack.c.l.b16 %v274
      %v610 = vunpack.c.l.b16 %v275
      %v611 = vunpack.c.l.b16 %v276
      %v612 = vunpack.c.l.b16 %v277
      %v613 = vunpack.c.l.b16 %v278
      %v614 = vunpack.c.l.b16 %v279
      %v615 = vunpack.c.l.b16 %v280
      %v616 = vunpack.c.l.b16 %v281
      %v617 = vpack.c.b16 %v554, %v553
      %v618 = vpack.c.b16 %v556, %v555
      %v619 = vpack.c.b16 %v558, %v557
      %v620 = vpack.c.b16 %v560, %v559
      %v621 = vpack.c.b16 %v562, %v561
      %v622 = vpack.c.b16 %v564, %v563
      %v623 = vpack.c.b16 %v566, %v565
      %v624 = vpack.c.b16 %v568, %v567
      %v625 = vpack.c.b16 %v570, %v569
      %v626 = vpack.c.b16 %v572, %v571
      %v627 = vpack.c.b16 %v574, %v573
      %v628 = vpack.c.b16 %v576, %v575
      %v629 = vpack.c.b16 %v578, %v577
      %v630 = vpack.c.b16 %v580, %v579
      %v631 = vpack.c.b16 %v582, %v581
      %v632 = vpack.c.b16 %v584, %v583
      %v633 = vpack.c.b16 %v586, %v585
      %v634 = vpack.c.b16 %v588, %v587
      %v635 = vpack.c.b16 %v590, %v589
      %v636 = vpack.c.b16 %v592, %v591
      %v637 = vpack.c.b16 %v594, %v593
      %v638 = vpack.c.b16 %v596, %v595
      %v639 = vpack.c.b16 %v598, %v597
      %v640 = vpack.c.b16 %v600, %v599
      %v641 = vpack.c.b16 %v602, %v601
      %v642 = vpack.c.b16 %v604, %v603
      %v643 = vpack.c.b16 %v606, %v605
      %v644 = vpack.c.b16 %v608, %v607
      %v645 = vpack.c.b16 %v610, %v609
      %v646 = vpack.c.b16 %v612, %v611
      %v647 = vpack.c.b16 %v614, %v613
      %v648 = vpack.c.b16 %v616, %v615
      %681 = vmatprep.subr.bf16.mxu0 0
      %682 = vmatpush1.bf16.msra.mxu0 %v617
      %683 = vmatprep.subr.bf16.mxu0 0
      %684 = vmatpush1.bf16.msra.mxu0 %v618
      %685 = vmatprep.subr.bf16.mxu0 0
      %686 = vmatpush1.bf16.msra.mxu0 %v619
      %687 = vmatprep.subr.bf16.mxu0 0
      %688 = vmatpush1.bf16.msra.mxu0 %v620
      %689 = vmatprep.subr.bf16.mxu0 0
      %690 = vmatpush1.bf16.msra.mxu0 %v621
      %691 = vmatprep.subr.bf16.mxu0 0
      %692 = vmatpush1.bf16.msra.mxu0 %v622
      %693 = vmatprep.subr.bf16.mxu0 0
      %694 = vmatpush1.bf16.msra.mxu0 %v623
      %695 = vmatprep.subr.bf16.mxu0 0
      %696 = vmatpush1.bf16.msra.mxu0 %v624
      %697 = vmatprep.subr.bf16.mxu0 0
      %698 = vmatpush1.bf16.msra.mxu0 %v625
      %699 = vmatprep.subr.bf16.mxu0 0
      %700 = vmatpush1.bf16.msra.mxu0 %v626
      %701 = vmatprep.subr.bf16.mxu0 0
      %702 = vmatpush1.bf16.msra.mxu0 %v627
      %703 = vmatprep.subr.bf16.mxu0 0
      %704 = vmatpush1.bf16.msra.mxu0 %v628
      %705 = vmatprep.subr.bf16.mxu0 0
      %706 = vmatpush1.bf16.msra.mxu0 %v629
      %707 = vmatprep.subr.bf16.mxu0 0
      %708 = vmatpush1.bf16.msra.mxu0 %v630
      %709 = vmatprep.subr.bf16.mxu0 0
      %710 = vmatpush1.bf16.msra.mxu0 %v631
      %711 = vmatprep.subr.bf16.mxu0 0
      %712 = vmatpush1.bf16.msra.mxu0 %v632
      %713 = vmatprep.mubr.bf16.mxu0 %v410
      %714 = vmatmul.mubr.bf16.gmra.mrb[0].mxu0 %v409
      %v715 = vpop.f32.mrb[0].mxu0
      %v716 = vadd.f32 %v287, %v715
      %v717 = vpop.f32.mrb[0].mxu0
      %v718 = vpop.f32.mrb[0].mxu0
      %v719 = vadd.f32 %v287, %v718
      %v720 = vpop.f32.mrb[0].mxu0
      %721 = vmatprep.mubr.bf16.mxu0 %v414
      %722 = vmatmul.mubr.bf16.gmra.mrb[0].mxu0 %v413
      %v723 = vpop.f32.mrb[0].mxu0
      %v724 = vadd.f32 %v287, %v723
      %v725 = vpop.f32.mrb[0].mxu0
      %v726 = vpop.f32.mrb[0].mxu0
      %v727 = vadd.f32 %v287, %v726
      %v728 = vpop.f32.mrb[0].mxu0
      %729 = vmatprep.mubr.bf16.mxu0 %v418
      %730 = vmatmul.mubr.bf16.gmra.mrb[0].mxu0 %v417
      %v731 = vpop.f32.mrb[0].mxu0
      %v732 = vadd.f32 %v287, %v731
      %v733 = vpop.f32.mrb[0].mxu0
      %v734 = vpop.f32.mrb[0].mxu0
      %v735 = vadd.f32 %v287, %v734
      %v736 = vpop.f32.mrb[0].mxu0
      %737 = vmatprep.mubr.bf16.mxu0 %v422
      %738 = vmatmul.mubr.bf16.gmra.mrb[0].mxu0 %v421
      %v739 = vpop.f32.mrb[0].mxu0
      %v740 = vadd.f32 %v287, %v739
      %v741 = vpop.f32.mrb[0].mxu0
      %v742 = vpop.f32.mrb[0].mxu0
      %v743 = vadd.f32 %v287, %v742
      %v744 = vpop.f32.mrb[0].mxu0
      %745 = vmatprep.mubr.bf16.mxu0 %v426
      %746 = vmatmul.mubr.bf16.gmra.mrb[0].mxu0 %v425
      %v747 = vpop.f32.mrb[0].mxu0
      %v748 = vadd.f32 %v287, %v747
      %v749 = vpop.f32.mrb[0].mxu0
      %v750 = vpop.f32.mrb[0].mxu0
      %v751 = vadd.f32 %v287, %v750
      %v752 = vpop.f32.mrb[0].mxu0
      %753 = vmatprep.mubr.bf16.mxu0 %v430
      %754 = vmatmul.mubr.bf16.gmra.mrb[0].mxu0 %v429
      %v755 = vpop.f32.mrb[0].mxu0
      %v756 = vadd.f32 %v287, %v755
      %v757 = vpop.f32.mrb[0].mxu0
      %v758 = vpop.f32.mrb[0].mxu0
      %v759 = vadd.f32 %v287, %v758
      %v760 = vpop.f32.mrb[0].mxu0
      %761 = vmatprep.mubr.bf16.mxu0 %v434
      %762 = vmatmul.mubr.bf16.gmra.mrb[0].mxu0 %v433
      %v763 = vpop.f32.mrb[0].mxu0
      %v764 = vadd.f32 %v287, %v763
      %v765 = vpop.f32.mrb[0].mxu0
      %v766 = vpop.f32.mrb[0].mxu0
      %v767 = vadd.f32 %v287, %v766
      %v768 = vpop.f32.mrb[0].mxu0
      %769 = vmatprep.mubr.bf16.mxu0 %v438
      %770 = vmatmul.mubr.bf16.gmra.mrb[0].mxu0 %v437
      %v771 = vpop.f32.mrb[0].mxu0
      %v772 = vadd.f32 %v287, %v771
      %v773 = vpop.f32.mrb[0].mxu0
      %v774 = vpop.f32.mrb[0].mxu0
      %v775 = vadd.f32 %v287, %v774
      %v776 = vpop.f32.mrb[0].mxu0
      %777 = vmatprep.mubr.bf16.mxu0 %v442
      %778 = vmatmul.mubr.bf16.gmra.mrb[0].mxu0 %v441
      %v779 = vpop.f32.mrb[0].mxu0
      %v780 = vadd.f32 %v287, %v779
      %v781 = vpop.f32.mrb[0].mxu0
      %v782 = vpop.f32.mrb[0].mxu0
      %v783 = vadd.f32 %v287, %v782
      %v784 = vpop.f32.mrb[0].mxu0
      %785 = vmatprep.mubr.bf16.mxu0 %v446
      %786 = vmatmul.mubr.bf16.gmra.mrb[0].mxu0 %v445
      %v787 = vpop.f32.mrb[0].mxu0
      %v788 = vadd.f32 %v287, %v787
      %v789 = vpop.f32.mrb[0].mxu0
      %v790 = vpop.f32.mrb[0].mxu0
      %v791 = vadd.f32 %v287, %v790
      %v792 = vpop.f32.mrb[0].mxu0
      %793 = vdwg.mxu0
      %794 = vmatprep.subr.bf16.mxu0 0
      %795 = vmatpush1.bf16.msra.mxu0 %v633
      %796 = vmatprep.subr.bf16.mxu0 0
      %797 = vmatpush1.bf16.msra.mxu0 %v634
      %798 = vmatprep.subr.bf16.mxu0 0
      %799 = vmatpush1.bf16.msra.mxu0 %v635
      %800 = vmatprep.subr.bf16.mxu0 0
      %801 = vmatpush1.bf16.msra.mxu0 %v636
      %802 = vmatprep.subr.bf16.mxu0 0
      %803 = vmatpush1.bf16.msra.mxu0 %v637
      %804 = vmatprep.subr.bf16.mxu0 0
      %805 = vmatpush1.bf16.msra.mxu0 %v638
      %806 = vmatprep.subr.bf16.mxu0 0
      %807 = vmatpush1.bf16.msra.mxu0 %v639
      %808 = vmatprep.subr.bf16.mxu0 0
      %809 = vmatpush1.bf16.msra.mxu0 %v640
      %810 = vmatprep.subr.bf16.mxu0 0
      %811 = vmatpush1.bf16.msra.mxu0 %v641
      %812 = vmatprep.subr.bf16.mxu0 0
      %813 = vmatpush1.bf16.msra.mxu0 %v642
      %814 = vmatprep.subr.bf16.mxu0 0
      %815 = vmatpush1.bf16.msra.mxu0 %v643
      %816 = vmatprep.subr.bf16.mxu0 0
      %817 = vmatpush1.bf16.msra.mxu0 %v644
      %818 = vmatprep.subr.bf16.mxu0 0
      %819 = vmatpush1.bf16.msra.mxu0 %v645
      %820 = vmatprep.subr.bf16.mxu0 0
      %821 = vmatpush1.bf16.msra.mxu0 %v646
      %822 = vmatprep.subr.bf16.mxu0 0
      %823 = vmatpush1.bf16.msra.mxu0 %v647
      %824 = vmatprep.subr.bf16.mxu0 0
      %825 = vmatpush1.bf16.msra.mxu0 %v648
      %826 = vmatprep.mubr.bf16.mxu0 %v412
      %827 = vmatmul.mubr.bf16.gmra.mrb[0].mxu0 %v411
      %v828 = vpop.f32.mrb[0].mxu0
      %v829 = vadd.f32 %v716, %v828
      %v830 = vpop.f32.mrb[0].mxu0
      %v831 = vpop.f32.mrb[0].mxu0
      %v832 = vadd.f32 %v719, %v831
      %v833 = vpop.f32.mrb[0].mxu0
      %834 = vmatprep.mubr.bf16.mxu0 %v416
      %835 = vmatmul.mubr.bf16.gmra.mrb[0].mxu0 %v415
      %v836 = vpop.f32.mrb[0].mxu0
      %v837 = vadd.f32 %v724, %v836
      %v838 = vpop.f32.mrb[0].mxu0
      %v839 = vpop.f32.mrb[0].mxu0
      %v840 = vadd.f32 %v727, %v839
      %v841 = vpop.f32.mrb[0].mxu0
      %842 = vmatprep.mubr.bf16.mxu0 %v420
      %843 = vmatmul.mubr.bf16.gmra.mrb[0].mxu0 %v419
      %v844 = vpop.f32.mrb[0].mxu0
      %v845 = vadd.f32 %v732, %v844
      %v846 = vpop.f32.mrb[0].mxu0
      %v847 = vpop.f32.mrb[0].mxu0
      %v848 = vadd.f32 %v735, %v847
      %v849 = vpop.f32.mrb[0].mxu0
      %850 = vmatprep.mubr.bf16.mxu0 %v424
      %851 = vmatmul.mubr.bf16.gmra.mrb[0].mxu0 %v423
      %v852 = vpop.f32.mrb[0].mxu0
      %v853 = vadd.f32 %v740, %v852
      %v854 = vpop.f32.mrb[0].mxu0
      %v855 = vpop.f32.mrb[0].mxu0
      %v856 = vadd.f32 %v743, %v855
      %v857 = vpop.f32.mrb[0].mxu0
      %858 = vmatprep.mubr.bf16.mxu0 %v428
      %859 = vmatmul.mubr.bf16.gmra.mrb[0].mxu0 %v427
      %v860 = vpop.f32.mrb[0].mxu0
      %v861 = vadd.f32 %v748, %v860
      %v862 = vpop.f32.mrb[0].mxu0
      %v863 = vpop.f32.mrb[0].mxu0
      %v864 = vadd.f32 %v751, %v863
      %v865 = vpop.f32.mrb[0].mxu0
      %866 = vmatprep.mubr.bf16.mxu0 %v432
      %867 = vmatmul.mubr.bf16.gmra.mrb[0].mxu0 %v431
      %v868 = vpop.f32.mrb[0].mxu0
      %v869 = vadd.f32 %v756, %v868
      %v870 = vpop.f32.mrb[0].mxu0
      %v871 = vpop.f32.mrb[0].mxu0
      %v872 = vadd.f32 %v759, %v871
      %v873 = vpop.f32.mrb[0].mxu0
      %874 = vmatprep.mubr.bf16.mxu0 %v436
      %875 = vmatmul.mubr.bf16.gmra.mrb[0].mxu0 %v435
      %v876 = vpop.f32.mrb[0].mxu0
      %v877 = vadd.f32 %v764, %v876
      %v878 = vpop.f32.mrb[0].mxu0
      %v879 = vpop.f32.mrb[0].mxu0
      %v880 = vadd.f32 %v767, %v879
      %v881 = vpop.f32.mrb[0].mxu0
      %882 = vmatprep.mubr.bf16.mxu0 %v440
      %883 = vmatmul.mubr.bf16.gmra.mrb[0].mxu0 %v439
      %v884 = vpop.f32.mrb[0].mxu0
      %v885 = vadd.f32 %v772, %v884
      %v886 = vpop.f32.mrb[0].mxu0
      %v887 = vpop.f32.mrb[0].mxu0
      %v888 = vadd.f32 %v775, %v887
      %v889 = vpop.f32.mrb[0].mxu0
      %890 = vmatprep.mubr.bf16.mxu0 %v444
      %891 = vmatmul.mubr.bf16.gmra.mrb[0].mxu0 %v443
      %v892 = vpop.f32.mrb[0].mxu0
      %v893 = vadd.f32 %v780, %v892
      %v894 = vpop.f32.mrb[0].mxu0
      %v895 = vpop.f32.mrb[0].mxu0
      %v896 = vadd.f32 %v783, %v895
      %v897 = vpop.f32.mrb[0].mxu0
      %898 = vmatprep.mubr.bf16.mxu0 %v448
      %899 = vmatmul.mubr.bf16.gmra.mrb[0].mxu0 %v447
      %v900 = vpop.f32.mrb[0].mxu0
      %v901 = vadd.f32 %v788, %v900
      %v902 = vpop.f32.mrb[0].mxu0
      %v903 = vpop.f32.mrb[0].mxu0
      %v904 = vadd.f32 %v791, %v903
      %v905 = vpop.f32.mrb[0].mxu0
      %906 = vdwg.mxu0
      %v907 = vpack.c.bf16 %v832, %v829
      %v908 = vpack.c.bf16 %v840, %v837
      %v909 = vpack.c.bf16 %v848, %v845
      %v910 = vpack.c.bf16 %v856, %v853
      %v911 = vpack.c.bf16 %v864, %v861
      %v912 = vpack.c.bf16 %v872, %v869
      %v913 = vpack.c.bf16 %v880, %v877
      %v914 = vpack.c.bf16 %v888, %v885
      %v915 = vpack.c.bf16 %v896, %v893
      %v916 = vpack.c.bf16 %v904, %v901
      %v927 = vunpack.c.l.b16 %v907
      %v928 = vunpack.c.h.b16 %v907
      %v929 = vunpack.c.l.b16 %v908
      %v930 = vunpack.c.h.b16 %v908
      %v931 = vunpack.c.l.b16 %v909
      %v932 = vunpack.c.h.b16 %v909
      %v933 = vunpack.c.l.b16 %v910
      %v934 = vunpack.c.h.b16 %v910
      %v935 = vunpack.c.l.b16 %v911
      %v936 = vunpack.c.h.b16 %v911
      %v937 = vunpack.c.l.b16 %v912
      %v938 = vunpack.c.h.b16 %v912
      %v939 = vunpack.c.l.b16 %v913
      %v940 = vunpack.c.h.b16 %v913
      %v941 = vunpack.c.l.b16 %v914
      %v942 = vunpack.c.h.b16 %v914
      %v943 = vunpack.c.l.b16 %v915
      %v944 = vunpack.c.h.b16 %v915
      %v945 = vunpack.c.l.b16 %v916
      %v946 = vunpack.c.h.b16 %v916
      %v947 = vpack.c.b16 %v927, %v927
      %v948 = vpack.c.b16 %v928, %v928
      %v949 = vpack.c.b16 %v929, %v929
      %v950 = vpack.c.b16 %v930, %v930
      %v951 = vpack.c.b16 %v931, %v931
      %v952 = vpack.c.b16 %v932, %v932
      %v953 = vpack.c.b16 %v933, %v933
      %v954 = vpack.c.b16 %v934, %v934
      %v955 = vpack.c.b16 %v935, %v935
      %v956 = vpack.c.b16 %v936, %v936
      %v957 = vpack.c.b16 %v937, %v937
      %v958 = vpack.c.b16 %v938, %v938
      %v959 = vpack.c.b16 %v939, %v939
      %v960 = vpack.c.b16 %v940, %v940
      %v961 = vpack.c.b16 %v941, %v941
      %v962 = vpack.c.b16 %v942, %v942
      %v963 = vpack.c.b16 %v943, %v943
      %v964 = vpack.c.b16 %v944, %v944
      %v965 = vpack.c.b16 %v945, %v945
      %v966 = vpack.c.b16 %v946, %v946
      %987 = vst [vmem:[%s175] sm:$0xf] %v947
      %988 = vst [vmem:[%s175 + $0x4] sm:$0xf] %v948
      %989 = vst [vmem:[%s175 + $0x8] sm:$0xf] %v949
      %990 = vst [vmem:[%s175 + $0xc] sm:$0xf] %v950
      %991 = vst [vmem:[%s175 + $0x10] sm:$0xf] %v951
      %992 = vst [vmem:[%s175 + $0x14] sm:$0xf] %v952
      %993 = vst [vmem:[%s175 + $0x18] sm:$0xf] %v953
      %994 = vst [vmem:[%s175 + $0x1c] sm:$0xf] %v954
      %995 = vst [vmem:[%s175 + $0x20] sm:$0xf] %v955
      %996 = vst [vmem:[%s175 + $0x24] sm:$0xf] %v956
      %997 = vst [vmem:[%s175 + $0x28] sm:$0xf] %v957
      %998 = vst [vmem:[%s175 + $0x2c] sm:$0xf] %v958
      %999 = vst [vmem:[%s175 + $0x30] sm:$0xf] %v959
      %1000 = vst [vmem:[%s175 + $0x34] sm:$0xf] %v960
      %1001 = vst [vmem:[%s175 + $0x38] sm:$0xf] %v961
      %1002 = vst [vmem:[%s175 + $0x3c] sm:$0xf] %v962
      %1003 = vst [vmem:[%s175 + $0x40] sm:$0xf] %v963
      %1004 = vst [vmem:[%s175 + $0x44] sm:$0xf] %v964
      %1005 = vst [vmem:[%s175 + $0x48] sm:$0xf] %v965
      %1006 = vst [vmem:[%s175 + $0x4c] sm:$0xf] %v966
      %s1007 = smul.u32 20, %s14
      %p1008 = scmp.lt.s32.totalorder %s1007, 99
      %s1009 = scalar_select %p1008, %s1007, 99
      %s1010 = smul.addr %s1009, 4
      %s1011 = scalar_lea.vmem %s3, %s1010
      // Predicated region
      $region33: #{downsample_block_fuse.5} parent=31 // pred_check
        %p1012 = pneg %p100
      $region34: #{downsample_block_fuse.5} parent=31 // pred_check_branch
        %1014 = sbr.rel (%p1012) target = $region36
      $region35: #{downsample_block_fuse.5} parent=31 // pred_region
        %s1015 = smul.u32 20, %s14
      $region36: #{downsample_block_fuse.5} parent=31 // pred_fallthru
        _
    $region32: #{downsample_block_fuse.5} parent=5 // pred_fallthru
      _
    %p1016 = scmp.le.s32.totalorder 2, %s9
    // Predicated region
    $region37: #{downsample_block_fuse.5} parent=5 // pred_check
      %p1017 = pneg %p1016
    $region38: #{downsample_block_fuse.5} parent=5 // pred_check_branch
      %1019 = sbr.rel (%p1017) target = $region40
    $region39: #{downsample_block_fuse.5} parent=5 // pred_region
      %s1020 = ssub.s32 %s9, 2
      // Predicated region
      $region41: #{downsample_block_fuse.5} parent=39 // pred_check
        %p1021 = pneg %p106
      $region42: #{downsample_block_fuse.5} parent=39 // pred_check_branch
        %1023 = sbr.rel (%p1021) target = $region44
      $region43: #{downsample_block_fuse.5} parent=39 // pred_region
        %s1024 = smul.u32 20, %s15
        %p1025 = scmp.lt.s32.totalorder %s1024, 99
        %s1026 = scalar_select %p1025, %s1024, 99
        %s1027 = smul.addr %s1026, 4
        %s1028 = scalar_lea.vmem %s3, %s1027
      $region44: #{downsample_block_fuse.5} parent=39 // pred_fallthru
        _
    $region40: #{downsample_block_fuse.5} parent=5 // pred_fallthru
      _
  $region6: #{downsample_block_fuse.5} parent=0 // loop_footer
    %s13 = sadd.s32 1, %s9
  $region7: #{downsample_block_fuse.5} parent=0 // loop_footer_branch
    %8 = sbr.rel target = $region3
  $region8: #{downsample_block_fuse.5} parent=0 // loop_exit
    _

// kernel: downsample_block_fuse.4
$region0: #{downsample_block_fuse.4}
  #allocation0 [shape = 'u32[]', space=smem, size = 0x4, offset = 0x4, fixed_abs, tag = 'smem constant byte address 0x4 - core index']
  #allocation1 [shape = 'u32[144,128]{1,0:T(1,128)}', space=vmem, size = 0x12000, scoped, tag = 'internal scratch']
  %s0 = inlined_call_operand.vmem [shape: bf16[128,256], index: 0, kind: input, shape index: {}]
  %s1 = inlined_call_operand.vmem [shape: bf16[256,384], index: 1, kind: input, shape index: {}]
  %s2 = inlined_call_operand.vmem [shape: f32[1,384], index: 2, kind: input, shape index: {}]
  %s3 = inlined_call_operand.vmem [shape: bf16[128,384], index: 3, kind: output, shape index: {}]
  %s4 = sld [smem:[#allocation0]]
  $region22: #{downsample_block_fuse.4} parent=0
    _
  %s6 = ssub.s32 1, %s4
  %s7 = scalar_select 0, %s6, %s4
  // Predicated region
  $region2: #{downsample_block_fuse.4} parent=0 // pred_check
    _
  $region3: #{downsample_block_fuse.4} parent=0 // pred_check_branch
    %9 = sbr.rel (0) target = $region5
  $region4: #{downsample_block_fuse.4} parent=0 // pred_region
    _
  $region5: #{downsample_block_fuse.4} parent=0 // pred_fallthru
    _
  // Predicated region
  $region6: #{downsample_block_fuse.4} parent=0 // pred_check
    _
  $region7: #{downsample_block_fuse.4} parent=0 // pred_check_branch
    %11 = sbr.rel (0) target = $region9
  $region8: #{downsample_block_fuse.4} parent=0 // pred_region
    _
  $region9: #{downsample_block_fuse.4} parent=0 // pred_fallthru
    _
  // Predicated region
  $region10: #{downsample_block_fuse.4} parent=0 // pred_check
    _
  $region11: #{downsample_block_fuse.4} parent=0 // pred_check_branch
    %13 = sbr.rel (0) target = $region13
  $region12: #{downsample_block_fuse.4} parent=0 // pred_region
    _
  $region13: #{downsample_block_fuse.4} parent=0 // pred_fallthru
    _
  %v15 = vld [vmem:[%s0] sm:$0xff]
  %v16 = vld [vmem:[%s0 + $0x8] sm:$0xff]
  %v17 = vld [vmem:[%s0 + $0x10] sm:$0xff]
  %v18 = vld [vmem:[%s0 + $0x18] sm:$0xff]
  %v19 = vld [vmem:[%s0 + $0x20] sm:$0xff]
  %v20 = vld [vmem:[%s0 + $0x28] sm:$0xff]
  %v21 = vld [vmem:[%s0 + $0x30] sm:$0xff]
  %v22 = vld [vmem:[%s0 + $0x38] sm:$0xff]
  %v23 = vld [vmem:[%s0 + $0x40] sm:$0xff]
  %v24 = vld [vmem:[%s0 + $0x48] sm:$0xff]
  %v25 = vld [vmem:[%s0 + $0x50] sm:$0xff]
  %v26 = vld [vmem:[%s0 + $0x58] sm:$0xff]
  %v27 = vld [vmem:[%s0 + $0x60] sm:$0xff]
  %v28 = vld [vmem:[%s0 + $0x68] sm:$0xff]
  %v29 = vld [vmem:[%s0 + $0x70] sm:$0xff]
  %v30 = vld [vmem:[%s0 + $0x78] sm:$0xff]
  %v31 = vld [vmem:[%s1] sm:$0xff]
  %v32 = vld [vmem:[%s1 + $0x8] sm:$0xf]
  %v33 = vld [vmem:[%s1 + $0xc] sm:$0xff]
  %v34 = vld [vmem:[%s1 + $0x14] sm:$0xf]
  %v35 = vld [vmem:[%s1 + $0x18] sm:$0xff]
  %v36 = vld [vmem:[%s1 + $0x20] sm:$0xf]
  %v37 = vld [vmem:[%s1 + $0x24] sm:$0xff]
  %v38 = vld [vmem:[%s1 + $0x2c] sm:$0xf]
  %v39 = vld [vmem:[%s1 + $0x30] sm:$0xff]
  %v40 = vld [vmem:[%s1 + $0x38] sm:$0xf]
  %v41 = vld [vmem:[%s1 + $0x3c] sm:$0xff]
  %v42 = vld [vmem:[%s1 + $0x44] sm:$0xf]
  %v43 = vld [vmem:[%s1 + $0x48] sm:$0xff]
  %v44 = vld [vmem:[%s1 + $0x50] sm:$0xf]
  %v45 = vld [vmem:[%s1 + $0x54] sm:$0xff]
  %v46 = vld [vmem:[%s1 + $0x5c] sm:$0xf]
  %v47 = vld [vmem:[%s1 + $0x60] sm:$0xff]
  %v48 = vld [vmem:[%s1 + $0x68] sm:$0xf]
  %v49 = vld [vmem:[%s1 + $0x6c] sm:$0xff]
  %v50 = vld [vmem:[%s1 + $0x74] sm:$0xf]
  %v51 = vld [vmem:[%s1 + $0x78] sm:$0xff]
  %v52 = vld [vmem:[%s1 + $0x80] sm:$0xf]
  %v53 = vld [vmem:[%s1 + $0x84] sm:$0xff]
  %v54 = vld [vmem:[%s1 + $0x8c] sm:$0xf]
  %v55 = vld [vmem:[%s1 + $0x90] sm:$0xff]
  %v56 = vld [vmem:[%s1 + $0x98] sm:$0xf]
  %v57 = vld [vmem:[%s1 + $0x9c] sm:$0xff]
  %v58 = vld [vmem:[%s1 + $0xa4] sm:$0xf]
  %v59 = vld [vmem:[%s1 + $0xa8] sm:$0xff]
  %v60 = vld [vmem:[%s1 + $0xb0] sm:$0xf]
  %v61 = vld [vmem:[%s1 + $0xb4] sm:$0xff]
  %v62 = vld [vmem:[%s1 + $0xbc] sm:$0xf]
  %v63 = vld [vmem:[%s1 + $0xc0] sm:$0xff]
  %v64 = vld [vmem:[%s1 + $0xc8] sm:$0xf]
  %v65 = vld [vmem:[%s1 + $0xcc] sm:$0xff]
  %v66 = vld [vmem:[%s1 + $0xd4] sm:$0xf]
  %v67 = vld [vmem:[%s1 + $0xd8] sm:$0xff]
  %v68 = vld [vmem:[%s1 + $0xe0] sm:$0xf]
  %v69 = vld [vmem:[%s1 + $0xe4] sm:$0xff]
  %v70 = vld [vmem:[%s1 + $0xec] sm:$0xf]
  %v71 = vld [vmem:[%s1 + $0xf0] sm:$0xff]
  %v72 = vld [vmem:[%s1 + $0xf8] sm:$0xf]
  %v73 = vld [vmem:[%s1 + $0xfc] sm:$0xff]
  %v74 = vld [vmem:[%s1 + $0x104] sm:$0xf]
  %v75 = vld [vmem:[%s1 + $0x108] sm:$0xff]
  %v76 = vld [vmem:[%s1 + $0x110] sm:$0xf]
  %v77 = vld [vmem:[%s1 + $0x114] sm:$0xff]
  %v78 = vld [vmem:[%s1 + $0x11c] sm:$0xf]
  %v79 = vld [vmem:[%s1 + $0x120] sm:$0xff]
  %v80 = vld [vmem:[%s1 + $0x128] sm:$0xf]
  %v81 = vld [vmem:[%s1 + $0x12c] sm:$0xff]
  %v82 = vld [vmem:[%s1 + $0x134] sm:$0xf]
  %v83 = vld [vmem:[%s1 + $0x138] sm:$0xff]
  %v84 = vld [vmem:[%s1 + $0x140] sm:$0xf]
  %v85 = vld [vmem:[%s1 + $0x144] sm:$0xff]
  %v86 = vld [vmem:[%s1 + $0x14c] sm:$0xf]
  %v87 = vld [vmem:[%s1 + $0x150] sm:$0xff]
  %v88 = vld [vmem:[%s1 + $0x158] sm:$0xf]
  %v89 = vld [vmem:[%s1 + $0x15c] sm:$0xff]
  %v90 = vld [vmem:[%s1 + $0x164] sm:$0xf]
  %v91 = vld [vmem:[%s1 + $0x168] sm:$0xff]
  %v92 = vld [vmem:[%s1 + $0x170] sm:$0xf]
  %v93 = vld [vmem:[%s1 + $0x174] sm:$0xff]
  %v94 = vld [vmem:[%s1 + $0x17c] sm:$0xf]
  %v95 = vld [vmem:[%s2] sm:$0x7]
  %v97 = vlaneseq
  %v98 = vshrl.u32 %v97, 7
  %v99 = vsub.s32 0, %v98
  %v100 = vrot.slane %v95, %v99
  %v101 = vlaneseq
  %v102 = vshrl.u32 %v101, 7
  %v103 = vsub.s32 1, %v102
  %v104 = vrot.slane %v95, %v103
  %v105 = vlaneseq
  %v106 = vshrl.u32 %v105, 7
  %v107 = vsub.s32 2, %v106
  %v108 = vrot.slane %v95, %v107
  %v128 = vunpack.c.l.b16 %v15
  %v129 = vunpack.c.h.b16 %v15
  %v130 = vunpack.c.l.b16 %v16
  %v131 = vunpack.c.h.b16 %v16
  %v132 = vunpack.c.l.b16 %v17
  %v133 = vunpack.c.h.b16 %v17
  %v134 = vunpack.c.l.b16 %v18
  %v135 = vunpack.c.h.b16 %v18
  %v136 = vunpack.c.l.b16 %v19
  %v137 = vunpack.c.h.b16 %v19
  %v138 = vunpack.c.l.b16 %v20
  %v139 = vunpack.c.h.b16 %v20
  %v140 = vunpack.c.l.b16 %v21
  %v141 = vunpack.c.h.b16 %v21
  %v142 = vunpack.c.l.b16 %v22
  %v143 = vunpack.c.h.b16 %v22
  %v144 = vunpack.c.l.b16 %v23
  %v145 = vunpack.c.h.b16 %v23
  %v146 = vunpack.c.l.b16 %v24
  %v147 = vunpack.c.h.b16 %v24
  %v148 = vunpack.c.l.b16 %v25
  %v149 = vunpack.c.h.b16 %v25
  %v150 = vunpack.c.l.b16 %v26
  %v151 = vunpack.c.h.b16 %v26
  %v152 = vunpack.c.l.b16 %v27
  %v153 = vunpack.c.h.b16 %v27
  %v154 = vunpack.c.l.b16 %v28
  %v155 = vunpack.c.h.b16 %v28
  %v156 = vunpack.c.l.b16 %v29
  %v157 = vunpack.c.h.b16 %v29
  %v158 = vunpack.c.l.b16 %v30
  %v159 = vunpack.c.h.b16 %v30
  %v160 = vpack.c.b16 %v130, %v128
  %v161 = vpack.c.b16 %v131, %v129
  %v162 = vpack.c.b16 %v134, %v132
  %v163 = vpack.c.b16 %v135, %v133
  %v164 = vpack.c.b16 %v138, %v136
  %v165 = vpack.c.b16 %v139, %v137
  %v166 = vpack.c.b16 %v142, %v140
  %v167 = vpack.c.b16 %v143, %v141
  %v168 = vpack.c.b16 %v146, %v144
  %v169 = vpack.c.b16 %v147, %v145
  %v170 = vpack.c.b16 %v150, %v148
  %v171 = vpack.c.b16 %v151, %v149
  %v172 = vpack.c.b16 %v154, %v152
  %v173 = vpack.c.b16 %v155, %v153
  %v174 = vpack.c.b16 %v158, %v156
  %v175 = vpack.c.b16 %v159, %v157
  %v256 = vunpack.c.l.b16 %v31
  %v257 = vunpack.c.h.b16 %v31
  %v258 = vunpack.c.l.b16 %v32
  %v259 = vunpack.c.l.b16 %v33
  %v260 = vunpack.c.h.b16 %v33
  %v261 = vunpack.c.l.b16 %v34
  %v262 = vunpack.c.l.b16 %v35
  %v263 = vunpack.c.h.b16 %v35
  %v264 = vunpack.c.l.b16 %v36
  %v265 = vunpack.c.l.b16 %v37
  %v266 = vunpack.c.h.b16 %v37
  %v267 = vunpack.c.l.b16 %v38
  %v268 = vunpack.c.l.b16 %v39
  %v269 = vunpack.c.h.b16 %v39
  %v270 = vunpack.c.l.b16 %v40
  %v271 = vunpack.c.l.b16 %v41
  %v272 = vunpack.c.h.b16 %v41
  %v273 = vunpack.c.l.b16 %v42
  %v274 = vunpack.c.l.b16 %v43
  %v275 = vunpack.c.h.b16 %v43
  %v276 = vunpack.c.l.b16 %v44
  %v277 = vunpack.c.l.b16 %v45
  %v278 = vunpack.c.h.b16 %v45
  %v279 = vunpack.c.l.b16 %v46
  %v280 = vunpack.c.l.b16 %v47
  %v281 = vunpack.c.h.b16 %v47
  %v282 = vunpack.c.l.b16 %v48
  %v283 = vunpack.c.l.b16 %v49
  %v284 = vunpack.c.h.b16 %v49
  %v285 = vunpack.c.l.b16 %v50
  %v286 = vunpack.c.l.b16 %v51
  %v287 = vunpack.c.h.b16 %v51
  %v288 = vunpack.c.l.b16 %v52
  %v289 = vunpack.c.l.b16 %v53
  %v290 = vunpack.c.h.b16 %v53
  %v291 = vunpack.c.l.b16 %v54
  %v292 = vunpack.c.l.b16 %v55
  %v293 = vunpack.c.h.b16 %v55
  %v294 = vunpack.c.l.b16 %v56
  %v295 = vunpack.c.l.b16 %v57
  %v296 = vunpack.c.h.b16 %v57
  %v297 = vunpack.c.l.b16 %v58
  %v298 = vunpack.c.l.b16 %v59
  %v299 = vunpack.c.h.b16 %v59
  %v300 = vunpack.c.l.b16 %v60
  %v301 = vunpack.c.l.b16 %v61
  %v302 = vunpack.c.h.b16 %v61
  %v303 = vunpack.c.l.b16 %v62
  %v304 = vunpack.c.l.b16 %v63
  %v305 = vunpack.c.h.b16 %v63
  %v306 = vunpack.c.l.b16 %v64
  %v307 = vunpack.c.l.b16 %v65
  %v308 = vunpack.c.h.b16 %v65
  %v309 = vunpack.c.l.b16 %v66
  %v310 = vunpack.c.l.b16 %v67
  %v311 = vunpack.c.h.b16 %v67
  %v312 = vunpack.c.l.b16 %v68
  %v313 = vunpack.c.l.b16 %v69
  %v314 = vunpack.c.h.b16 %v69
  %v315 = vunpack.c.l.b16 %v70
  %v316 = vunpack.c.l.b16 %v71
  %v317 = vunpack.c.h.b16 %v71
  %v318 = vunpack.c.l.b16 %v72
  %v319 = vunpack.c.l.b16 %v73
  %v320 = vunpack.c.h.b16 %v73
  %v321 = vunpack.c.l.b16 %v74
  %v322 = vunpack.c.l.b16 %v75
  %v323 = vunpack.c.h.b16 %v75
  %v324 = vunpack.c.l.b16 %v76
  %v325 = vunpack.c.l.b16 %v77
  %v326 = vunpack.c.h.b16 %v77
  %v327 = vunpack.c.l.b16 %v78
  %v328 = vunpack.c.l.b16 %v79
  %v329 = vunpack.c.h.b16 %v79
  %v330 = vunpack.c.l.b16 %v80
  %v331 = vunpack.c.l.b16 %v81
  %v332 = vunpack.c.h.b16 %v81
  %v333 = vunpack.c.l.b16 %v82
  %v334 = vunpack.c.l.b16 %v83
  %v335 = vunpack.c.h.b16 %v83
  %v336 = vunpack.c.l.b16 %v84
  %v337 = vunpack.c.l.b16 %v85
  %v338 = vunpack.c.h.b16 %v85
  %v339 = vunpack.c.l.b16 %v86
  %v340 = vunpack.c.l.b16 %v87
  %v341 = vunpack.c.h.b16 %v87
  %v342 = vunpack.c.l.b16 %v88
  %v343 = vunpack.c.l.b16 %v89
  %v344 = vunpack.c.h.b16 %v89
  %v345 = vunpack.c.l.b16 %v90
  %v346 = vunpack.c.l.b16 %v91
  %v347 = vunpack.c.h.b16 %v91
  %v348 = vunpack.c.l.b16 %v92
  %v349 = vunpack.c.l.b16 %v93
  %v350 = vunpack.c.h.b16 %v93
  %v351 = vunpack.c.l.b16 %v94
  %v352 = vpack.c.b16 %v259, %v256
  %v353 = vpack.c.b16 %v260, %v257
  %v354 = vpack.c.b16 %v261, %v258
  %v355 = vpack.c.b16 %v265, %v262
  %v356 = vpack.c.b16 %v266, %v263
  %v357 = vpack.c.b16 %v267, %v264
  %v358 = vpack.c.b16 %v271, %v268
  %v359 = vpack.c.b16 %v272, %v269
  %v360 = vpack.c.b16 %v273, %v270
  %v361 = vpack.c.b16 %v277, %v274
  %v362 = vpack.c.b16 %v278, %v275
  %v363 = vpack.c.b16 %v279, %v276
  %v364 = vpack.c.b16 %v283, %v280
  %v365 = vpack.c.b16 %v284, %v281
  %v366 = vpack.c.b16 %v285, %v282
  %v367 = vpack.c.b16 %v289, %v286
  %v368 = vpack.c.b16 %v290, %v287
  %v369 = vpack.c.b16 %v291, %v288
  %v370 = vpack.c.b16 %v295, %v292
  %v371 = vpack.c.b16 %v296, %v293
  %v372 = vpack.c.b16 %v297, %v294
  %v373 = vpack.c.b16 %v301, %v298
  %v374 = vpack.c.b16 %v302, %v299
  %v375 = vpack.c.b16 %v303, %v300
  %v376 = vpack.c.b16 %v307, %v304
  %v377 = vpack.c.b16 %v308, %v305
  %v378 = vpack.c.b16 %v309, %v306
  %v379 = vpack.c.b16 %v313, %v310
  %v380 = vpack.c.b16 %v314, %v311
  %v381 = vpack.c.b16 %v315, %v312
  %v382 = vpack.c.b16 %v319, %v316
  %v383 = vpack.c.b16 %v320, %v317
  %v384 = vpack.c.b16 %v321, %v318
  %v385 = vpack.c.b16 %v325, %v322
  %v386 = vpack.c.b16 %v326, %v323
  %v387 = vpack.c.b16 %v327, %v324
  %v388 = vpack.c.b16 %v331, %v328
  %v389 = vpack.c.b16 %v332, %v329
  %v390 = vpack.c.b16 %v333, %v330
  %v391 = vpack.c.b16 %v337, %v334
  %v392 = vpack.c.b16 %v338, %v335
  %v393 = vpack.c.b16 %v339, %v336
  %v394 = vpack.c.b16 %v343, %v340
  %v395 = vpack.c.b16 %v344, %v341
  %v396 = vpack.c.b16 %v345, %v342
  %v397 = vpack.c.b16 %v349, %v346
  %v398 = vpack.c.b16 %v350, %v347
  %v399 = vpack.c.b16 %v351, %v348
  %448 = vmatprep.subr.bf16.mxu0 %v353
  %449 = vmatpush1.bf16.msra.mxu0 %v352
  %450 = vmatprep.subr.bf16.mxu0 %v356
  %451 = vmatpush1.bf16.msra.mxu0 %v355
  %452 = vmatprep.subr.bf16.mxu0 %v359
  %453 = vmatpush1.bf16.msra.mxu0 %v358
  %454 = vmatprep.subr.bf16.mxu0 %v362
  %455 = vmatpush1.bf16.msra.mxu0 %v361
  %456 = vmatprep.subr.bf16.mxu0 %v365
  %457 = vmatpush1.bf16.msra.mxu0 %v364
  %458 = vmatprep.subr.bf16.mxu0 %v368
  %459 = vmatpush1.bf16.msra.mxu0 %v367
  %460 = vmatprep.subr.bf16.mxu0 %v371
  %461 = vmatpush1.bf16.msra.mxu0 %v370
  %462 = vmatprep.subr.bf16.mxu0 %v374
  %463 = vmatpush1.bf16.msra.mxu0 %v373
  %464 = vmatprep.subr.bf16.mxu0 %v377
  %465 = vmatpush1.bf16.msra.mxu0 %v376
  %466 = vmatprep.subr.bf16.mxu0 %v380
  %467 = vmatpush1.bf16.msra.mxu0 %v379
  %468 = vmatprep.subr.bf16.mxu0 %v383
  %469 = vmatpush1.bf16.msra.mxu0 %v382
  %470 = vmatprep.subr.bf16.mxu0 %v386
  %471 = vmatpush1.bf16.msra.mxu0 %v385
  %472 = vmatprep.subr.bf16.mxu0 %v389
  %473 = vmatpush1.bf16.msra.mxu0 %v388
  %474 = vmatprep.subr.bf16.mxu0 %v392
  %475 = vmatpush1.bf16.msra.mxu0 %v391
  %476 = vmatprep.subr.bf16.mxu0 %v395
  %477 = vmatpush1.bf16.msra.mxu0 %v394
  %478 = vmatprep.subr.bf16.mxu0 %v398
  %479 = vmatpush1.bf16.msra.mxu0 %v397
  %480 = vmatprep.mubr.bf16.mxu0 %v161
  %481 = vmatmul.mubr.bf16.gmra.mrb[0].mxu0 %v160
  %v482 = vpop.f32.mrb[0].mxu0
  %v483 = vadd.f32 %v100, %v482
  %v484 = vpop.f32.mrb[0].mxu0
  %v485 = vadd.f32 %v104, %v484
  %v486 = vpop.f32.mrb[0].mxu0
  %v487 = vadd.f32 %v100, %v486
  %v488 = vpop.f32.mrb[0].mxu0
  %v489 = vadd.f32 %v104, %v488
  %490 = vmatprep.mubr.bf16.mxu0 %v163
  %491 = vmatmul.mubr.bf16.gmra.mrb[0].mxu0 %v162
  %v492 = vpop.f32.mrb[0].mxu0
  %v493 = vadd.f32 %v100, %v492
  %v494 = vpop.f32.mrb[0].mxu0
  %v495 = vadd.f32 %v104, %v494
  %v496 = vpop.f32.mrb[0].mxu0
  %v497 = vadd.f32 %v100, %v496
  %v498 = vpop.f32.mrb[0].mxu0
  %v499 = vadd.f32 %v104, %v498
  %500 = vmatprep.mubr.bf16.mxu0 %v165
  %501 = vmatmul.mubr.bf16.gmra.mrb[0].mxu0 %v164
  %v502 = vpop.f32.mrb[0].mxu0
  %v503 = vadd.f32 %v100, %v502
  %v504 = vpop.f32.mrb[0].mxu0
  %v505 = vadd.f32 %v104, %v504
  %v506 = vpop.f32.mrb[0].mxu0
  %v507 = vadd.f32 %v100, %v506
  %v508 = vpop.f32.mrb[0].mxu0
  %v509 = vadd.f32 %v104, %v508
  %510 = vmatprep.mubr.bf16.mxu0 %v167
  %511 = vmatmul.mubr.bf16.gmra.mrb[0].mxu0 %v166
  %v512 = vpop.f32.mrb[0].mxu0
  %v513 = vadd.f32 %v100, %v512
  %v514 = vpop.f32.mrb[0].mxu0
  %v515 = vadd.f32 %v104, %v514
  %v516 = vpop.f32.mrb[0].mxu0
  %v517 = vadd.f32 %v100, %v516
  %v518 = vpop.f32.mrb[0].mxu0
  %v519 = vadd.f32 %v104, %v518
  %520 = vmatprep.mubr.bf16.mxu0 %v169
  %521 = vmatmul.mubr.bf16.gmra.mrb[0].mxu0 %v168
  %v522 = vpop.f32.mrb[0].mxu0
  %v523 = vadd.f32 %v100, %v522
  %v524 = vpop.f32.mrb[0].mxu0
  %v525 = vadd.f32 %v104, %v524
  %v526 = vpop.f32.mrb[0].mxu0
  %v527 = vadd.f32 %v100, %v526
  %v528 = vpop.f32.mrb[0].mxu0
  %v529 = vadd.f32 %v104, %v528
  %530 = vmatprep.mubr.bf16.mxu0 %v171
  %531 = vmatmul.mubr.bf16.gmra.mrb[0].mxu0 %v170
  %v532 = vpop.f32.mrb[0].mxu0
  %v533 = vadd.f32 %v100, %v532
  %v534 = vpop.f32.mrb[0].mxu0
  %v535 = vadd.f32 %v104, %v534
  %v536 = vpop.f32.mrb[0].mxu0
  %v537 = vadd.f32 %v100, %v536
  %v538 = vpop.f32.mrb[0].mxu0
  %v539 = vadd.f32 %v104, %v538
  %540 = vmatprep.mubr.bf16.mxu0 %v173
  %541 = vmatmul.mubr.bf16.gmra.mrb[0].mxu0 %v172
  %v542 = vpop.f32.mrb[0].mxu0
  %v543 = vadd.f32 %v100, %v542
  %v544 = vpop.f32.mrb[0].mxu0
  %v545 = vadd.f32 %v104, %v544
  %v546 = vpop.f32.mrb[0].mxu0
  %v547 = vadd.f32 %v100, %v546
  %v548 = vpop.f32.mrb[0].mxu0
  %v549 = vadd.f32 %v104, %v548
  %550 = vmatprep.mubr.bf16.mxu0 %v175
  %551 = vmatmul.mubr.bf16.gmra.mrb[0].mxu0 %v174
  %v552 = vpop.f32.mrb[0].mxu0
  %v553 = vadd.f32 %v100, %v552
  %v554 = vpop.f32.mrb[0].mxu0
  %v555 = vadd.f32 %v104, %v554
  %v556 = vpop.f32.mrb[0].mxu0
  %v557 = vadd.f32 %v100, %v556
  %v558 = vpop.f32.mrb[0].mxu0
  %v559 = vadd.f32 %v104, %v558
  %560 = vdwg.mxu0
  %561 = vmatprep.subr.bf16.mxu0 0
  %562 = vmatpush1.bf16.msra.mxu0 %v354
  %563 = vmatprep.subr.bf16.mxu0 0
  %564 = vmatpush1.bf16.msra.mxu0 %v357
  %565 = vmatprep.subr.bf16.mxu0 0
  %566 = vmatpush1.bf16.msra.mxu0 %v360
  %567 = vmatprep.subr.bf16.mxu0 0
  %568 = vmatpush1.bf16.msra.mxu0 %v363
  %569 = vmatprep.subr.bf16.mxu0 0
  %570 = vmatpush1.bf16.msra.mxu0 %v366
  %571 = vmatprep.subr.bf16.mxu0 0
  %572 = vmatpush1.bf16.msra.mxu0 %v369
  %573 = vmatprep.subr.bf16.mxu0 0
  %574 = vmatpush1.bf16.msra.mxu0 %v372
  %575 = vmatprep.subr.bf16.mxu0 0
  %576 = vmatpush1.bf16.msra.mxu0 %v375
  %577 = vmatprep.subr.bf16.mxu0 0
  %578 = vmatpush1.bf16.msra.mxu0 %v378
  %579 = vmatprep.subr.bf16.mxu0 0
  %580 = vmatpush1.bf16.msra.mxu0 %v381
  %581 = vmatprep.subr.bf16.mxu0 0
  %582 = vmatpush1.bf16.msra.mxu0 %v384
  %583 = vmatprep.subr.bf16.mxu0 0
  %584 = vmatpush1.bf16.msra.mxu0 %v387
  %585 = vmatprep.subr.bf16.mxu0 0
  %586 = vmatpush1.bf16.msra.mxu0 %v390
  %587 = vmatprep.subr.bf16.mxu0 0
  %588 = vmatpush1.bf16.msra.mxu0 %v393
  %589 = vmatprep.subr.bf16.mxu0 0
  %590 = vmatpush1.bf16.msra.mxu0 %v396
  %591 = vmatprep.subr.bf16.mxu0 0
  %592 = vmatpush1.bf16.msra.mxu0 %v399
  %593 = vmatprep.mubr.bf16.mxu0 %v161
  %594 = vmatmul.mubr.bf16.gmra.mrb[0].mxu0 %v160
  %v595 = vpop.f32.mrb[0].mxu0
  %v596 = vadd.f32 %v108, %v595
  %v597 = vpop.f32.mrb[0].mxu0
  %v598 = vpop.f32.mrb[0].mxu0
  %v599 = vadd.f32 %v108, %v598
  %v600 = vpop.f32.mrb[0].mxu0
  %601 = vmatprep.mubr.bf16.mxu0 %v163
  %602 = vmatmul.mubr.bf16.gmra.mrb[0].mxu0 %v162
  %v603 = vpop.f32.mrb[0].mxu0
  %v604 = vadd.f32 %v108, %v603
  %v605 = vpop.f32.mrb[0].mxu0
  %v606 = vpop.f32.mrb[0].mxu0
  %v607 = vadd.f32 %v108, %v606
  %v608 = vpop.f32.mrb[0].mxu0
  %609 = vmatprep.mubr.bf16.mxu0 %v165
  %610 = vmatmul.mubr.bf16.gmra.mrb[0].mxu0 %v164
  %v611 = vpop.f32.mrb[0].mxu0
  %v612 = vadd.f32 %v108, %v611
  %v613 = vpop.f32.mrb[0].mxu0
  %v614 = vpop.f32.mrb[0].mxu0
  %v615 = vadd.f32 %v108, %v614
  %v616 = vpop.f32.mrb[0].mxu0
  %617 = vmatprep.mubr.bf16.mxu0 %v167
  %618 = vmatmul.mubr.bf16.gmra.mrb[0].mxu0 %v166
  %v619 = vpop.f32.mrb[0].mxu0
  %v620 = vadd.f32 %v108, %v619
  %v621 = vpop.f32.mrb[0].mxu0
  %v622 = vpop.f32.mrb[0].mxu0
  %v623 = vadd.f32 %v108, %v622
  %v624 = vpop.f32.mrb[0].mxu0
  %625 = vmatprep.mubr.bf16.mxu0 %v169
  %626 = vmatmul.mubr.bf16.gmra.mrb[0].mxu0 %v168
  %v627 = vpop.f32.mrb[0].mxu0
  %v628 = vadd.f32 %v108, %v627
  %v629 = vpop.f32.mrb[0].mxu0
  %v630 = vpop.f32.mrb[0].mxu0
  %v631 = vadd.f32 %v108, %v630
  %v632 = vpop.f32.mrb[0].mxu0
  %633 = vmatprep.mubr.bf16.mxu0 %v171
  %634 = vmatmul.mubr.bf16.gmra.mrb[0].mxu0 %v170
  %v635 = vpop.f32.mrb[0].mxu0
  %v636 = vadd.f32 %v108, %v635
  %v637 = vpop.f32.mrb[0].mxu0
  %v638 = vpop.f32.mrb[0].mxu0
  %v639 = vadd.f32 %v108, %v638
  %v640 = vpop.f32.mrb[0].mxu0
  %641 = vmatprep.mubr.bf16.mxu0 %v173
  %642 = vmatmul.mubr.bf16.gmra.mrb[0].mxu0 %v172
  %v643 = vpop.f32.mrb[0].mxu0
  %v644 = vadd.f32 %v108, %v643
  %v645 = vpop.f32.mrb[0].mxu0
  %v646 = vpop.f32.mrb[0].mxu0
  %v647 = vadd.f32 %v108, %v646
  %v648 = vpop.f32.mrb[0].mxu0
  %649 = vmatprep.mubr.bf16.mxu0 %v175
  %650 = vmatmul.mubr.bf16.gmra.mrb[0].mxu0 %v174
  %v651 = vpop.f32.mrb[0].mxu0
  %v652 = vadd.f32 %v108, %v651
  %v653 = vpop.f32.mrb[0].mxu0
  %v654 = vpop.f32.mrb[0].mxu0
  %v655 = vadd.f32 %v108, %v654
  %v656 = vpop.f32.mrb[0].mxu0
  %657 = vdwg.mxu0
  %v658 = vpack.c.bf16 %v487, %v483
  %v659 = vpack.c.bf16 %v489, %v485
  %v660 = vpack.c.bf16 %v599, %v596
  %v661 = vpack.c.bf16 %v497, %v493
  %v662 = vpack.c.bf16 %v499, %v495
  %v663 = vpack.c.bf16 %v607, %v604
  %v664 = vpack.c.bf16 %v507, %v503
  %v665 = vpack.c.bf16 %v509, %v505
  %v666 = vpack.c.bf16 %v615, %v612
  %v667 = vpack.c.bf16 %v517, %v513
  %v668 = vpack.c.bf16 %v519, %v515
  %v669 = vpack.c.bf16 %v623, %v620
  %v670 = vpack.c.bf16 %v527, %v523
  %v671 = vpack.c.bf16 %v529, %v525
  %v672 = vpack.c.bf16 %v631, %v628
  %v673 = vpack.c.bf16 %v537, %v533
  %v674 = vpack.c.bf16 %v539, %v535
  %v675 = vpack.c.bf16 %v639, %v636
  %v676 = vpack.c.bf16 %v547, %v543
  %v677 = vpack.c.bf16 %v549, %v545
  %v678 = vpack.c.bf16 %v647, %v644
  %v679 = vpack.c.bf16 %v557, %v553
  %v680 = vpack.c.bf16 %v559, %v555
  %v681 = vpack.c.bf16 %v655, %v652
  %v706 = vunpack.c.l.b16 %v658
  %v707 = vunpack.c.l.b16 %v659
  %v708 = vunpack.c.l.b16 %v660
  %v709 = vunpack.c.h.b16 %v658
  %v710 = vunpack.c.h.b16 %v659
  %v711 = vunpack.c.h.b16 %v660
  %v712 = vunpack.c.l.b16 %v661
  %v713 = vunpack.c.l.b16 %v662
  %v714 = vunpack.c.l.b16 %v663
  %v715 = vunpack.c.h.b16 %v661
  %v716 = vunpack.c.h.b16 %v662
  %v717 = vunpack.c.h.b16 %v663
  %v718 = vunpack.c.l.b16 %v664
  %v719 = vunpack.c.l.b16 %v665
  %v720 = vunpack.c.l.b16 %v666
  %v721 = vunpack.c.h.b16 %v664
  %v722 = vunpack.c.h.b16 %v665
  %v723 = vunpack.c.h.b16 %v666
  %v724 = vunpack.c.l.b16 %v667
  %v725 = vunpack.c.l.b16 %v668
  %v726 = vunpack.c.l.b16 %v669
  %v727 = vunpack.c.h.b16 %v667
  %v728 = vunpack.c.h.b16 %v668
  %v729 = vunpack.c.h.b16 %v669
  %v730 = vunpack.c.l.b16 %v670
  %v731 = vunpack.c.l.b16 %v671
  %v732 = vunpack.c.l.b16 %v672
  %v733 = vunpack.c.h.b16 %v670
  %v734 = vunpack.c.h.b16 %v671
  %v735 = vunpack.c.h.b16 %v672
  %v736 = vunpack.c.l.b16 %v673
  %v737 = vunpack.c.l.b16 %v674
  %v738 = vunpack.c.l.b16 %v675
  %v739 = vunpack.c.h.b16 %v673
  %v740 = vunpack.c.h.b16 %v674
  %v741 = vunpack.c.h.b16 %v675
  %v742 = vunpack.c.l.b16 %v676
  %v743 = vunpack.c.l.b16 %v677
  %v744 = vunpack.c.l.b16 %v678
  %v745 = vunpack.c.h.b16 %v676
  %v746 = vunpack.c.h.b16 %v677
  %v747 = vunpack.c.h.b16 %v678
  %v748 = vunpack.c.l.b16 %v679
  %v749 = vunpack.c.l.b16 %v680
  %v750 = vunpack.c.l.b16 %v681
  %v751 = vunpack.c.h.b16 %v679
  %v752 = vunpack.c.h.b16 %v680
  %v753 = vunpack.c.h.b16 %v681
  %v754 = vpack.c.b16 %v707, %v706
  %v755 = vpack.c.b16 %v708, %v708
  %v756 = vpack.c.b16 %v710, %v709
  %v757 = vpack.c.b16 %v711, %v711
  %v758 = vpack.c.b16 %v713, %v712
  %v759 = vpack.c.b16 %v714, %v714
  %v760 = vpack.c.b16 %v716, %v715
  %v761 = vpack.c.b16 %v717, %v717
  %v762 = vpack.c.b16 %v719, %v718
  %v763 = vpack.c.b16 %v720, %v720
  %v764 = vpack.c.b16 %v722, %v721
  %v765 = vpack.c.b16 %v723, %v723
  %v766 = vpack.c.b16 %v725, %v724
  %v767 = vpack.c.b16 %v726, %v726
  %v768 = vpack.c.b16 %v728, %v727
  %v769 = vpack.c.b16 %v729, %v729
  %v770 = vpack.c.b16 %v731, %v730
  %v771 = vpack.c.b16 %v732, %v732
  %v772 = vpack.c.b16 %v734, %v733
  %v773 = vpack.c.b16 %v735, %v735
  %v774 = vpack.c.b16 %v737, %v736
  %v775 = vpack.c.b16 %v738, %v738
  %v776 = vpack.c.b16 %v740, %v739
  %v777 = vpack.c.b16 %v741, %v741
  %v778 = vpack.c.b16 %v743, %v742
  %v779 = vpack.c.b16 %v744, %v744
  %v780 = vpack.c.b16 %v746, %v745
  %v781 = vpack.c.b16 %v747, %v747
  %v782 = vpack.c.b16 %v749, %v748
  %v783 = vpack.c.b16 %v750, %v750
  %v784 = vpack.c.b16 %v752, %v751
  %v785 = vpack.c.b16 %v753, %v753
  %818 = vst [vmem:[%s3] sm:$0xff] %v754
  %819 = vst [vmem:[%s3 + $0x8] sm:$0xf] %v755
  %820 = vst [vmem:[%s3 + $0xc] sm:$0xff] %v756
  %821 = vst [vmem:[%s3 + $0x14] sm:$0xf] %v757
  %822 = vst [vmem:[%s3 + $0x18] sm:$0xff] %v758
  %823 = vst [vmem:[%s3 + $0x20] sm:$0xf] %v759
  %824 = vst [vmem:[%s3 + $0x24] sm:$0xff] %v760
  %825 = vst [vmem:[%s3 + $0x2c] sm:$0xf] %v761
  %826 = vst [vmem:[%s3 + $0x30] sm:$0xff] %v762
  %827 = vst [vmem:[%s3 + $0x38] sm:$0xf] %v763
  %828 = vst [vmem:[%s3 + $0x3c] sm:$0xff] %v764
  %829 = vst [vmem:[%s3 + $0x44] sm:$0xf] %v765
  %830 = vst [vmem:[%s3 + $0x48] sm:$0xff] %v766
  %831 = vst [vmem:[%s3 + $0x50] sm:$0xf] %v767
  %832 = vst [vmem:[%s3 + $0x54] sm:$0xff] %v768
  %833 = vst [vmem:[%s3 + $0x5c] sm:$0xf] %v769
  %834 = vst [vmem:[%s3 + $0x60] sm:$0xff] %v770
  %835 = vst [vmem:[%s3 + $0x68] sm:$0xf] %v771
  %836 = vst [vmem:[%s3 + $0x6c] sm:$0xff] %v772
  %837 = vst [vmem:[%s3 + $0x74] sm:$0xf] %v773
  %838 = vst [vmem:[%s3 + $0x78] sm:$0xff] %v774
  %839 = vst [vmem:[%s3 + $0x80] sm:$0xf] %v775
  %840 = vst [vmem:[%s3 + $0x84] sm:$0xff] %v776
  %841 = vst [vmem:[%s3 + $0x8c] sm:$0xf] %v777
  %842 = vst [vmem:[%s3 + $0x90] sm:$0xff] %v778
  %843 = vst [vmem:[%s3 + $0x98] sm:$0xf] %v779
  %844 = vst [vmem:[%s3 + $0x9c] sm:$0xff] %v780
  %845 = vst [vmem:[%s3 + $0xa4] sm:$0xf] %v781
  %846 = vst [vmem:[%s3 + $0xa8] sm:$0xff] %v782
  %847 = vst [vmem:[%s3 + $0xb0] sm:$0xf] %v783
  %848 = vst [vmem:[%s3 + $0xb4] sm:$0xff] %v784
  %849 = vst [vmem:[%s3 + $0xbc] sm:$0xf] %v785
  // Predicated region
  $region14: #{downsample_block_fuse.4} parent=0 // pred_check
    _
  $region15: #{downsample_block_fuse.4} parent=0 // pred_check_branch
    %851 = sbr.rel (0) target = $region17
  $region16: #{downsample_block_fuse.4} parent=0 // pred_region
    _
  $region17: #{downsample_block_fuse.4} parent=0 // pred_fallthru
    _
  // Predicated region
  $region18: #{downsample_block_fuse.4} parent=0 // pred_check
    _
  $region19: #{downsample_block_fuse.4} parent=0 // pred_check_branch
    %853 = sbr.rel (0) target = $region21
  $region20: #{downsample_block_fuse.4} parent=0 // pred_region
    _
  $region21: #{downsample_block_fuse.4} parent=0 // pred_fallthru
    _

// kernel: downsample_block_fuse.6
$region0: #{downsample_block_fuse.6}
  #allocation0 [shape = 'u32[]', space=smem, size = 0x4, offset = 0x4, fixed_abs, tag = 'smem constant byte address 0x4 - core index']
  #allocation1 [shape = 'u32[144,128]{1,0:T(1,128)}', space=vmem, size = 0x12000, scoped, tag = 'internal scratch']
  %s0 = inlined_call_operand.vmem [shape: bf16[2,64,384], index: 0, kind: input, shape index: {}]
  %s1 = inlined_call_operand.vmem [shape: bf16[2,128,400], index: 1, kind: input, shape index: {}]
  %s2 = inlined_call_operand.vmem [shape: f32[2,64,256], index: 2, kind: input, shape index: {}]
  %s3 = inlined_call_operand.vmem [shape: bf16[400,128], index: 3, kind: input, shape index: {}]
  %s4 = inlined_call_operand.vmem [shape: f32[1,128], index: 4, kind: input, shape index: {}]
  %s5 = inlined_call_operand.vmem [shape: bf16[128,256], index: 5, kind: input, shape index: {}]
  %s6 = inlined_call_operand.vmem [shape: f32[1,256], index: 6, kind: input, shape index: {}]
  %s7 = inlined_call_operand.vmem [shape: f32[1,256], index: 7, kind: input, shape index: {}]
  %s8 = inlined_call_operand.vmem [shape: f32[2,64,256], index: 8, kind: output, shape index: {}]
  %s9 = sld [smem:[#allocation0]]
  $region65: #{downsample_block_fuse.6} parent=0
    _
  %s11 = ssub.s32 1, %s9
  %s12 = scalar_select 0, %s11, %s9
  loop: start=0, step=1, limit=4
  $region2: #{downsample_block_fuse.6} parent=0 // loop_pre_header
    _
  $region3: #{downsample_block_fuse.6} parent=0 // loop_header
    %s14 = sphi 0, %s18
    %p15 = scmp.ge.s32.totalorder %s14, 4
    %s24 = sphi 0, %s26
    %s27 = sphi 0, %s24
    %s28 = sphi 0, %s27
    %s44 = sphi 0, %s28
    %s50 = sphi 0, %s52
    %s53 = sphi 0, %s50
    %s54 = sphi 0, %s53
    %s70 = sphi 0, %s54
    %s76 = sphi 0, %s78
    %s79 = sphi 0, %s76
    %s80 = sphi 0, %s79
    %s96 = sphi 0, %s80
    %s100 = sphi 0, %s100
    %s102 = sphi 0, %s100
    %s103 = sphi 0, %s102
    %s117 = sphi 0, %s103
    %s121 = sphi 0, %s121
    %s123 = sphi 0, %s121
    %s124 = sphi 0, %s123
    %s138 = sphi 0, %s124
    %s142 = sphi 0, %s142
    %s144 = sphi 0, %s142
    %s145 = sphi 0, %s144
    %s159 = sphi 0, %s145
    %s163 = sphi 0, %s163
    %s165 = sphi 0, %s163
    %s166 = sphi 0, %s165
    %s180 = sphi 0, %s166
    %s184 = sphi 0, %s184
    %s186 = sphi 0, %s184
    %s187 = sphi 0, %s186
    %s201 = sphi 0, %s187
    %s207 = sphi 0, %s209
    %s210 = sphi 0, %s207
    %s211 = sphi 0, %s210
    %s227 = sphi 0, %s211
  $region4: #{downsample_block_fuse.6} parent=0 // loop_header_branch
    %17 = sbr.rel (%p15) target = $region8
  $region5: #{downsample_block_fuse.6} parent=0 // loop_body
    %s19 = ssub.s32 %s14, 1
    %s20 = ssub.s32 %s14, 2
    %s21 = sadd.s32 %s14, 1
    %s22 = ssub.s32 %s14, %s21
    %p23 = scmp.eq.s32.totalorder %s22, 0
    %s25 = sadd.s32 %s24, 1
    %s26 = scalar_select %p23, %s24, %s25
    %p29 = pneg %p23
    %p30 = scmp.eq.s32.totalorder %s14, 1
    %p31 = por %p29, %p30
    %p32 = scmp.ne.s32.totalorder %s24, %s27
    %p33 = scmp.eq.s32.totalorder %s14, 0
    %p34 = por %p32, %p33
    %p35 = scmp.ne.s32.totalorder %s24, %s27
    %p36 = scmp.eq.s32.totalorder %s19, 1
    %p37 = por %p35, %p36
    %p38 = scmp.ne.s32.totalorder %s27, %s28
    %p39 = scmp.eq.s32.totalorder %s19, 0
    %p40 = por %p38, %p39
    %p41 = scmp.ne.s32.totalorder %s27, %s28
    %p42 = scmp.eq.s32.totalorder %s20, 1
    %p43 = por %p41, %p42
    %p45 = scmp.ne.s32.totalorder %s28, %s44
    %p46 = scmp.eq.s32.totalorder %s20, 0
    %p47 = por %p45, %p46
    %s48 = ssub.s32 %s14, %s21
    %p49 = scmp.eq.s32.totalorder %s48, 0
    %s51 = sadd.s32 %s50, 1
    %s52 = scalar_select %p49, %s50, %s51
    %p55 = pneg %p49
    %p56 = scmp.eq.s32.totalorder %s14, 1
    %p57 = por %p55, %p56
    %p58 = scmp.ne.s32.totalorder %s50, %s53
    %p59 = scmp.eq.s32.totalorder %s14, 0
    %p60 = por %p58, %p59
    %p61 = scmp.ne.s32.totalorder %s50, %s53
    %p62 = scmp.eq.s32.totalorder %s19, 1
    %p63 = por %p61, %p62
    %p64 = scmp.ne.s32.totalorder %s53, %s54
    %p65 = scmp.eq.s32.totalorder %s19, 0
    %p66 = por %p64, %p65
    %p67 = scmp.ne.s32.totalorder %s53, %s54
    %p68 = scmp.eq.s32.totalorder %s20, 1
    %p69 = por %p67, %p68
    %p71 = scmp.ne.s32.totalorder %s54, %s70
    %p72 = scmp.eq.s32.totalorder %s20, 0
    %p73 = por %p71, %p72
    %s74 = ssub.s32 %s14, %s21
    %p75 = scmp.eq.s32.totalorder %s74, 0
    %s77 = sadd.s32 %s76, 1
    %s78 = scalar_select %p75, %s76, %s77
    %p81 = pneg %p75
    %p82 = scmp.eq.s32.totalorder %s14, 1
    %p83 = por %p81, %p82
    %p84 = scmp.ne.s32.totalorder %s76, %s79
    %p85 = scmp.eq.s32.totalorder %s14, 0
    %p86 = por %p84, %p85
    %p87 = scmp.ne.s32.totalorder %s76, %s79
    %p88 = scmp.eq.s32.totalorder %s19, 1
    %p89 = por %p87, %p88
    %p90 = scmp.ne.s32.totalorder %s79, %s80
    %p91 = scmp.eq.s32.totalorder %s19, 0
    %p92 = por %p90, %p91
    %p93 = scmp.ne.s32.totalorder %s79, %s80
    %p94 = scmp.eq.s32.totalorder %s20, 1
    %p95 = por %p93, %p94
    %p97 = scmp.ne.s32.totalorder %s80, %s96
    %p98 = scmp.eq.s32.totalorder %s20, 0
    %p99 = por %p97, %p98
    %s101 = sadd.s32 %s100, 1
    %p104 = scmp.eq.s32.totalorder %s14, 1
    %p105 = scmp.ne.s32.totalorder %s100, %s102
    %p106 = scmp.eq.s32.totalorder %s14, 0
    %p107 = por %p105, %p106
    %p108 = scmp.ne.s32.totalorder %s100, %s102
    %p109 = scmp.eq.s32.totalorder %s19, 1
    %p110 = por %p108, %p109
    %p111 = scmp.ne.s32.totalorder %s102, %s103
    %p112 = scmp.eq.s32.totalorder %s19, 0
    %p113 = por %p111, %p112
    %p114 = scmp.ne.s32.totalorder %s102, %s103
    %p115 = scmp.eq.s32.totalorder %s20, 1
    %p116 = por %p114, %p115
    %p118 = scmp.ne.s32.totalorder %s103, %s117
    %p119 = scmp.eq.s32.totalorder %s20, 0
    %p120 = por %p118, %p119
    %s122 = sadd.s32 %s121, 1
    %p125 = scmp.eq.s32.totalorder %s14, 1
    %p126 = scmp.ne.s32.totalorder %s121, %s123
    %p127 = scmp.eq.s32.totalorder %s14, 0
    %p128 = por %p126, %p127
    %p129 = scmp.ne.s32.totalorder %s121, %s123
    %p130 = scmp.eq.s32.totalorder %s19, 1
    %p131 = por %p129, %p130
    %p132 = scmp.ne.s32.totalorder %s123, %s124
    %p133 = scmp.eq.s32.totalorder %s19, 0
    %p134 = por %p132, %p133
    %p135 = scmp.ne.s32.totalorder %s123, %s124
    %p136 = scmp.eq.s32.totalorder %s20, 1
    %p137 = por %p135, %p136
    %p139 = scmp.ne.s32.totalorder %s124, %s138
    %p140 = scmp.eq.s32.totalorder %s20, 0
    %p141 = por %p139, %p140
    %s143 = sadd.s32 %s142, 1
    %p146 = scmp.eq.s32.totalorder %s14, 1
    %p147 = scmp.ne.s32.totalorder %s142, %s144
    %p148 = scmp.eq.s32.totalorder %s14, 0
    %p149 = por %p147, %p148
    %p150 = scmp.ne.s32.totalorder %s142, %s144
    %p151 = scmp.eq.s32.totalorder %s19, 1
    %p152 = por %p150, %p151
    %p153 = scmp.ne.s32.totalorder %s144, %s145
    %p154 = scmp.eq.s32.totalorder %s19, 0
    %p155 = por %p153, %p154
    %p156 = scmp.ne.s32.totalorder %s144, %s145
    %p157 = scmp.eq.s32.totalorder %s20, 1
    %p158 = por %p156, %p157
    %p160 = scmp.ne.s32.totalorder %s145, %s159
    %p161 = scmp.eq.s32.totalorder %s20, 0
    %p162 = por %p160, %p161
    %s164 = sadd.s32 %s163, 1
    %p167 = scmp.eq.s32.totalorder %s14, 1
    %p168 = scmp.ne.s32.totalorder %s163, %s165
    %p169 = scmp.eq.s32.totalorder %s14, 0
    %p170 = por %p168, %p169
    %p171 = scmp.ne.s32.totalorder %s163, %s165
    %p172 = scmp.eq.s32.totalorder %s19, 1
    %p173 = por %p171, %p172
    %p174 = scmp.ne.s32.totalorder %s165, %s166
    %p175 = scmp.eq.s32.totalorder %s19, 0
    %p176 = por %p174, %p175
    %p177 = scmp.ne.s32.totalorder %s165, %s166
    %p178 = scmp.eq.s32.totalorder %s20, 1
    %p179 = por %p177, %p178
    %p181 = scmp.ne.s32.totalorder %s166, %s180
    %p182 = scmp.eq.s32.totalorder %s20, 0
    %p183 = por %p181, %p182
    %s185 = sadd.s32 %s184, 1
    %p188 = scmp.eq.s32.totalorder %s14, 1
    %p189 = scmp.ne.s32.totalorder %s184, %s186
    %p190 = scmp.eq.s32.totalorder %s14, 0
    %p191 = por %p189, %p190
    %p192 = scmp.ne.s32.totalorder %s184, %s186
    %p193 = scmp.eq.s32.totalorder %s19, 1
    %p194 = por %p192, %p193
    %p195 = scmp.ne.s32.totalorder %s186, %s187
    %p196 = scmp.eq.s32.totalorder %s19, 0
    %p197 = por %p195, %p196
    %p198 = scmp.ne.s32.totalorder %s186, %s187
    %p199 = scmp.eq.s32.totalorder %s20, 1
    %p200 = por %p198, %p199
    %p202 = scmp.ne.s32.totalorder %s187, %s201
    %p203 = scmp.eq.s32.totalorder %s20, 0
    %p204 = por %p202, %p203
    %s205 = ssub.s32 %s14, %s21
    %p206 = scmp.eq.s32.totalorder %s205, 0
    %s208 = sadd.s32 %s207, 1
    %s209 = scalar_select %p206, %s207, %s208
    %p212 = pneg %p206
    %p213 = scmp.eq.s32.totalorder %s14, 1
    %p214 = por %p212, %p213
    %p215 = scmp.ne.s32.totalorder %s207, %s210
    %p216 = scmp.eq.s32.totalorder %s14, 0
    %p217 = por %p215, %p216
    %p218 = scmp.ne.s32.totalorder %s207, %s210
    %p219 = scmp.eq.s32.totalorder %s19, 1
    %p220 = por %p218, %p219
    %p221 = scmp.ne.s32.totalorder %s210, %s211
    %p222 = scmp.eq.s32.totalorder %s19, 0
    %p223 = por %p221, %p222
    %p224 = scmp.ne.s32.totalorder %s210, %s211
    %p225 = scmp.eq.s32.totalorder %s20, 1
    %p226 = por %p224, %p225
    %p228 = scmp.ne.s32.totalorder %s211, %s227
    %p229 = scmp.eq.s32.totalorder %s20, 0
    %p230 = por %p228, %p229
    %p231 = scmp.le.s32.totalorder 1, %s14
    %p232 = scmp.lt.s32.totalorder %s14, 3
    %p233 = pnand %p231, %p232
    %p234 = pneg %p233
    // Predicated region
    $region9: #{downsample_block_fuse.6} parent=5 // pred_check
      _
    $region10: #{downsample_block_fuse.6} parent=5 // pred_check_branch
      %236 = sbr.rel (%p233) target = $region12
    $region11: #{downsample_block_fuse.6} parent=5 // pred_region
      %s237 = ssub.s32 %s14, 1
      // Predicated region
      $region13: #{downsample_block_fuse.6} parent=11 // pred_check
        %p238 = pneg %p113
      $region14: #{downsample_block_fuse.6} parent=11 // pred_check_branch
        %240 = sbr.rel (%p238) target = $region16
      $region15: #{downsample_block_fuse.6} parent=11 // pred_region
        _
      $region16: #{downsample_block_fuse.6} parent=11 // pred_fallthru
        _
      // Predicated region
      $region17: #{downsample_block_fuse.6} parent=11 // pred_check
        %p241 = pneg %p134
      $region18: #{downsample_block_fuse.6} parent=11 // pred_check_branch
        %243 = sbr.rel (%p241) target = $region20
      $region19: #{downsample_block_fuse.6} parent=11 // pred_region
        _
      $region20: #{downsample_block_fuse.6} parent=11 // pred_fallthru
        _
      // Predicated region
      $region21: #{downsample_block_fuse.6} parent=11 // pred_check
        %p244 = pneg %p155
      $region22: #{downsample_block_fuse.6} parent=11 // pred_check_branch
        %246 = sbr.rel (%p244) target = $region24
      $region23: #{downsample_block_fuse.6} parent=11 // pred_region
        _
      $region24: #{downsample_block_fuse.6} parent=11 // pred_fallthru
        _
      // Predicated region
      $region25: #{downsample_block_fuse.6} parent=11 // pred_check
        %p247 = pneg %p176
      $region26: #{downsample_block_fuse.6} parent=11 // pred_check_branch
        %249 = sbr.rel (%p247) target = $region28
      $region27: #{downsample_block_fuse.6} parent=11 // pred_region
        _
      $region28: #{downsample_block_fuse.6} parent=11 // pred_fallthru
        _
      // Predicated region
      $region29: #{downsample_block_fuse.6} parent=11 // pred_check
        %p250 = pneg %p197
      $region30: #{downsample_block_fuse.6} parent=11 // pred_check_branch
        %252 = sbr.rel (%p250) target = $region32
      $region31: #{downsample_block_fuse.6} parent=11 // pred_region
        _
      $region32: #{downsample_block_fuse.6} parent=11 // pred_fallthru
        _
    $region12: #{downsample_block_fuse.6} parent=5 // pred_fallthru
      _
    %p253 = scmp.lt.s32.totalorder %s14, 2
    // Predicated region
    $region33: #{downsample_block_fuse.6} parent=5 // pred_check
      %p254 = pneg %p253
    $region34: #{downsample_block_fuse.6} parent=5 // pred_check_branch
      %256 = sbr.rel (%p254) target = $region36
    $region35: #{downsample_block_fuse.6} parent=5 // pred_region
      // Predicated region
      $region37: #{downsample_block_fuse.6} parent=35 // pred_check
        %p257 = pneg %p34
      $region38: #{downsample_block_fuse.6} parent=35 // pred_check_branch
        %259 = sbr.rel (%p257) target = $region40
      $region39: #{downsample_block_fuse.6} parent=35 // pred_region
        %p260 = scmp.lt.s32.totalorder %s14, 1
        %s261 = scalar_select %p260, %s14, 1
        %s262 = smul.addr %s261, 24
        %s263 = smul.addr %s262, 4
        %s264 = scalar_lea.vmem %s0, %s263
      $region40: #{downsample_block_fuse.6} parent=35 // pred_fallthru
        _
      // Predicated region
      $region41: #{downsample_block_fuse.6} parent=35 // pred_check
        %p265 = pneg %p60
      $region42: #{downsample_block_fuse.6} parent=35 // pred_check_branch
        %267 = sbr.rel (%p265) target = $region44
      $region43: #{downsample_block_fuse.6} parent=35 // pred_region
        %p268 = scmp.lt.s32.totalorder %s14, 1
        %s269 = scalar_select %p268, %s14, 1
        %s270 = smul.addr %s269, 64
        %s271 = smul.addr %s270, 4
        %s272 = scalar_lea.vmem %s1, %s271
      $region44: #{downsample_block_fuse.6} parent=35 // pred_fallthru
        _
      // Predicated region
      $region45: #{downsample_block_fuse.6} parent=35 // pred_check
        %p273 = pneg %p86
      $region46: #{downsample_block_fuse.6} parent=35 // pred_check_branch
        %275 = sbr.rel (%p273) target = $region48
      $region47: #{downsample_block_fuse.6} parent=35 // pred_region
        %p276 = scmp.lt.s32.totalorder %s14, 1
        %s277 = scalar_select %p276, %s14, 1
        %s278 = smul.addr %s277, 16
        %s279 = smul.addr %s278, 8
        %s280 = scalar_lea.vmem %s2, %s279
      $region48: #{downsample_block_fuse.6} parent=35 // pred_fallthru
        _
    $region36: #{downsample_block_fuse.6} parent=5 // pred_fallthru
      _
    %p281 = scmp.le.s32.totalorder 1, %s14
    %p282 = scmp.lt.s32.totalorder %s14, 3
    %p283 = pnand %p281, %p282
    %p284 = pneg %p283
    // Predicated region
    $region49: #{downsample_block_fuse.6} parent=5 // pred_check
      _
    $region50: #{downsample_block_fuse.6} parent=5 // pred_check_branch
      %286 = sbr.rel (%p283) target = $region52
    $region51: #{downsample_block_fuse.6} parent=5 // pred_region
      %s287 = ssub.s32 %s14, 1
      %p288 = scmp.lt.s32.totalorder %s19, 1
      %s289 = scalar_select %p288, %s19, 1
      %s290 = smul.addr %s289, 24
      %s291 = smul.addr %s290, 4
      %s292 = scalar_lea.vmem %s0, %s291
      %p293 = pneg %p40
      %p294 = pneg %p37
      %p295 = scmp.lt.s32.totalorder %s19, 1
      %s296 = scalar_select %p295, %s19, 1
      %s297 = smul.addr %s296, 64
      %s298 = smul.addr %s297, 4
      %s299 = scalar_lea.vmem %s1, %s298
      %p300 = pneg %p66
      %p301 = pneg %p63
      %p302 = scmp.lt.s32.totalorder %s19, 1
      %s303 = scalar_select %p302, %s19, 1
      %s304 = smul.addr %s303, 16
      %s305 = smul.addr %s304, 8
      %s306 = scalar_lea.vmem %s2, %s305
      %p307 = pneg %p92
      %p308 = pneg %p89
      %p309 = pneg %p113
      %p310 = pneg %p110
      %p311 = pneg %p134
      %p312 = pneg %p131
      %p313 = pneg %p155
      %p314 = pneg %p152
      %p315 = pneg %p176
      %p316 = pneg %p173
      %p317 = pneg %p197
      %p318 = pneg %p194
      %p319 = pneg %p223
      %p320 = pneg %p220
      %p321 = scmp.lt.s32.totalorder %s19, 1
      %s322 = scalar_select %p321, %s19, 1
      %s323 = smul.addr %s322, 16
      %s324 = smul.addr %s323, 8
      %s325 = scalar_lea.vmem %s8, %s324
      %p326 = scmp.lt.s32.totalorder %s19, 1
      %s327 = scalar_select %p326, %s19, 1
      %s328 = smul.addr %s327, 24
      %s329 = smul.addr %s328, 4
      %s330 = scalar_lea.vmem %s0, %s329
      %p331 = scmp.lt.s32.totalorder %s19, 1
      %s332 = scalar_select %p331, %s19, 1
      %s333 = smul.addr %s332, 64
      %s334 = smul.addr %s333, 4
      %s335 = scalar_lea.vmem %s1, %s334
      %p336 = scmp.lt.s32.totalorder %s19, 1
      %s337 = scalar_select %p336, %s19, 1
      %s338 = smul.addr %s337, 16
      %s339 = smul.addr %s338, 8
      %s340 = scalar_lea.vmem %s2, %s339
      %p341 = scmp.lt.s32.totalorder %s19, 1
      %s342 = scalar_select %p341, %s19, 1
      %s343 = smul.addr %s342, 16
      %s344 = smul.addr %s343, 8
      %s345 = scalar_lea.vmem %s8, %s344
      %v347 = vld [vmem:[%s330] sm:$0xf]
      %v348 = vld [vmem:[%s330 + $0xc] sm:$0xf]
      %v349 = vld [vmem:[%s330 + $0x18] sm:$0xf]
      %v350 = vld [vmem:[%s330 + $0x24] sm:$0xf]
      %v351 = vld [vmem:[%s330 + $0x30] sm:$0xf]
      %v352 = vld [vmem:[%s330 + $0x3c] sm:$0xf]
      %v353 = vld [vmem:[%s330 + $0x48] sm:$0xf]
      %v354 = vld [vmem:[%s330 + $0x54] sm:$0xf]
      %v355 = vld [vmem:[%s330 + $0x4] sm:$0xf]
      %v356 = vld [vmem:[%s330 + $0x10] sm:$0xf]
      %v357 = vld [vmem:[%s330 + $0x1c] sm:$0xf]
      %v358 = vld [vmem:[%s330 + $0x28] sm:$0xf]
      %v359 = vld [vmem:[%s330 + $0x34] sm:$0xf]
      %v360 = vld [vmem:[%s330 + $0x40] sm:$0xf]
      %v361 = vld [vmem:[%s330 + $0x4c] sm:$0xf]
      %v362 = vld [vmem:[%s330 + $0x58] sm:$0xf]
      %v363 = vld [vmem:[%s330 + $0x8] sm:$0xf]
      %v364 = vld [vmem:[%s330 + $0x14] sm:$0xf]
      %v365 = vld [vmem:[%s330 + $0x20] sm:$0xf]
      %v366 = vld [vmem:[%s330 + $0x2c] sm:$0xf]
      %v367 = vld [vmem:[%s330 + $0x38] sm:$0xf]
      %v368 = vld [vmem:[%s330 + $0x44] sm:$0xf]
      %v369 = vld [vmem:[%s330 + $0x50] sm:$0xf]
      %v370 = vld [vmem:[%s330 + $0x5c] sm:$0xf]
      %v371 = vld [vmem:[%s335] sm:$0xff]
      %v372 = vld [vmem:[%s335 + $0x8] sm:$0xff]
      %v373 = vld [vmem:[%s335 + $0x10] sm:$0xff]
      %v374 = vld [vmem:[%s335 + $0x18] sm:$0xff]
      %v375 = vld [vmem:[%s335 + $0x20] sm:$0xff]
      %v376 = vld [vmem:[%s335 + $0x28] sm:$0xff]
      %v377 = vld [vmem:[%s335 + $0x30] sm:$0xff]
      %v378 = vld [vmem:[%s335 + $0x38] sm:$0xff]
      %v379 = vld [vmem:[%s335 + $0x40] sm:$0xff]
      %v380 = vld [vmem:[%s335 + $0x48] sm:$0xff]
      %v381 = vld [vmem:[%s335 + $0x50] sm:$0xff]
      %v382 = vld [vmem:[%s335 + $0x58] sm:$0xff]
      %v383 = vld [vmem:[%s335 + $0x60] sm:$0xff]
      %v384 = vld [vmem:[%s335 + $0x68] sm:$0xff]
      %v385 = vld [vmem:[%s335 + $0x70] sm:$0xff]
      %v386 = vld [vmem:[%s335 + $0x78] sm:$0xff]
      %v387 = vld [vmem:[%s335 + $0x80] sm:$0xff]
      %v388 = vld [vmem:[%s335 + $0x88] sm:$0xff]
      %v389 = vld [vmem:[%s335 + $0x90] sm:$0xff]
      %v390 = vld [vmem:[%s335 + $0x98] sm:$0xff]
      %v391 = vld [vmem:[%s335 + $0xa0] sm:$0xff]
      %v392 = vld [vmem:[%s335 + $0xa8] sm:$0xff]
      %v393 = vld [vmem:[%s335 + $0xb0] sm:$0xff]
      %v394 = vld [vmem:[%s335 + $0xb8] sm:$0xff]
      %v395 = vld [vmem:[%s335 + $0xc0] sm:$0xff]
      %v396 = vld [vmem:[%s335 + $0xc8] sm:$0xff]
      %v397 = vld [vmem:[%s335 + $0xd0] sm:$0xff]
      %v398 = vld [vmem:[%s335 + $0xd8] sm:$0xff]
      %v399 = vld [vmem:[%s335 + $0xe0] sm:$0xff]
      %v400 = vld [vmem:[%s335 + $0xe8] sm:$0xff]
      %v401 = vld [vmem:[%s335 + $0xf0] sm:$0xff]
      %v402 = vld [vmem:[%s335 + $0xf8] sm:$0xff]
      %v411 = vunpack.c.l.b16 %v355
      %v412 = vunpack.c.l.b16 %v356
      %v413 = vunpack.c.l.b16 %v357
      %v414 = vunpack.c.l.b16 %v358
      %v415 = vunpack.c.l.b16 %v359
      %v416 = vunpack.c.l.b16 %v360
      %v417 = vunpack.c.l.b16 %v361
      %v418 = vunpack.c.l.b16 %v362
      %v419 = vpack.c.b16 %v412, %v411
      %v420 = vpack.c.b16 %v414, %v413
      %v421 = vpack.c.b16 %v416, %v415
      %v422 = vpack.c.b16 %v418, %v417
      %v459 = vunpack.c.l.b16 %v371
      %v460 = vunpack.c.h.b16 %v371
      %v461 = vunpack.c.l.b16 %v372
      %v462 = vunpack.c.h.b16 %v372
      %v463 = vunpack.c.l.b16 %v373
      %v464 = vunpack.c.h.b16 %v373
      %v465 = vunpack.c.l.b16 %v374
      %v466 = vunpack.c.h.b16 %v374
      %v467 = vunpack.c.l.b16 %v375
      %v468 = vunpack.c.h.b16 %v375
      %v469 = vunpack.c.l.b16 %v376
      %v470 = vunpack.c.h.b16 %v376
      %v471 = vunpack.c.l.b16 %v377
      %v472 = vunpack.c.h.b16 %v377
      %v473 = vunpack.c.l.b16 %v378
      %v474 = vunpack.c.h.b16 %v378
      %v475 = vunpack.c.l.b16 %v379
      %v476 = vunpack.c.h.b16 %v379
      %v477 = vunpack.c.l.b16 %v380
      %v478 = vunpack.c.h.b16 %v380
      %v479 = vunpack.c.l.b16 %v381
      %v480 = vunpack.c.h.b16 %v381
      %v481 = vunpack.c.l.b16 %v382
      %v482 = vunpack.c.h.b16 %v382
      %v483 = vunpack.c.l.b16 %v383
      %v484 = vunpack.c.h.b16 %v383
      %v485 = vunpack.c.l.b16 %v384
      %v486 = vunpack.c.h.b16 %v384
      %v487 = vunpack.c.l.b16 %v385
      %v488 = vunpack.c.h.b16 %v385
      %v489 = vunpack.c.l.b16 %v386
      %v490 = vunpack.c.h.b16 %v386
      %v491 = vunpack.c.l.b16 %v387
      %v492 = vunpack.c.h.b16 %v387
      %v493 = vunpack.c.l.b16 %v388
      %v494 = vunpack.c.h.b16 %v388
      %v495 = vunpack.c.l.b16 %v389
      %v496 = vunpack.c.h.b16 %v389
      %v497 = vunpack.c.l.b16 %v390
      %v498 = vunpack.c.h.b16 %v390
      %v499 = vunpack.c.l.b16 %v391
      %v500 = vunpack.c.h.b16 %v391
      %v501 = vunpack.c.l.b16 %v392
      %v502 = vunpack.c.h.b16 %v392
      %v503 = vunpack.c.l.b16 %v393
      %v504 = vunpack.c.h.b16 %v393
      %v505 = vunpack.c.l.b16 %v394
      %v506 = vunpack.c.h.b16 %v394
      %v507 = vunpack.c.l.b16 %v395
      %v508 = vunpack.c.h.b16 %v395
      %v509 = vunpack.c.l.b16 %v396
      %v510 = vunpack.c.h.b16 %v396
      %v511 = vunpack.c.l.b16 %v397
      %v512 = vunpack.c.h.b16 %v397
      %v513 = vunpack.c.l.b16 %v398
      %v514 = vunpack.c.h.b16 %v398
      %v515 = vunpack.c.l.b16 %v399
      %v516 = vunpack.c.h.b16 %v399
      %v517 = vunpack.c.l.b16 %v400
      %v518 = vunpack.c.h.b16 %v400
      %v519 = vunpack.c.l.b16 %v401
      %v520 = vunpack.c.h.b16 %v401
      %v521 = vunpack.c.l.b16 %v402
      %v522 = vunpack.c.h.b16 %v402
      %v523 = vpack.c.b16 %v463, %v459
      %v524 = vpack.c.b16 %v464, %v460
      %v525 = vpack.c.b16 %v465, %v461
      %v526 = vpack.c.b16 %v466, %v462
      %v527 = vpack.c.b16 %v471, %v467
      %v528 = vpack.c.b16 %v472, %v468
      %v529 = vpack.c.b16 %v473, %v469
      %v530 = vpack.c.b16 %v474, %v470
      %v531 = vpack.c.b16 %v479, %v475
      %v532 = vpack.c.b16 %v480, %v476
      %v533 = vpack.c.b16 %v481, %v477
      %v534 = vpack.c.b16 %v482, %v478
      %v535 = vpack.c.b16 %v487, %v483
      %v536 = vpack.c.b16 %v488, %v484
      %v537 = vpack.c.b16 %v489, %v485
      %v538 = vpack.c.b16 %v490, %v486
      %v539 = vpack.c.b16 %v495, %v491
      %v540 = vpack.c.b16 %v496, %v492
      %v541 = vpack.c.b16 %v497, %v493
      %v542 = vpack.c.b16 %v498, %v494
      %v543 = vpack.c.b16 %v503, %v499
      %v544 = vpack.c.b16 %v504, %v500
      %v545 = vpack.c.b16 %v505, %v501
      %v546 = vpack.c.b16 %v506, %v502
      %v547 = vpack.c.b16 %v511, %v507
      %v548 = vpack.c.b16 %v512, %v508
      %v549 = vpack.c.b16 %v513, %v509
      %v550 = vpack.c.b16 %v514, %v510
      %v551 = vpack.c.b16 %v519, %v515
      %v552 = vpack.c.b16 %v520, %v516
      %v553 = vpack.c.b16 %v521, %v517
      %v554 = vpack.c.b16 %v522, %v518
      %587 = vmatprep.subr.bf16.mxu0 %v524
      %588 = vmatpush1.bf16.msra.mxu0 %v523
      %589 = vmatprep.subr.bf16.mxu0 %v528
      %590 = vmatpush1.bf16.msra.mxu0 %v527
      %591 = vmatprep.subr.bf16.mxu0 %v532
      %592 = vmatpush1.bf16.msra.mxu0 %v531
      %593 = vmatprep.subr.bf16.mxu0 %v536
      %594 = vmatpush1.bf16.msra.mxu0 %v535
      %595 = vmatprep.subr.bf16.mxu0 %v540
      %596 = vmatpush1.bf16.msra.mxu0 %v539
      %597 = vmatprep.subr.bf16.mxu0 %v544
      %598 = vmatpush1.bf16.msra.mxu0 %v543
      %599 = vmatprep.subr.bf16.mxu0 %v548
      %600 = vmatpush1.bf16.msra.mxu0 %v547
      %601 = vmatprep.subr.bf16.mxu0 %v552
      %602 = vmatpush1.bf16.msra.mxu0 %v551
      %603 = vmatprep.subr.bf16.mxu0 0
      %604 = vmatpush1.bf16.msra.mxu0 0
      %605 = vmatprep.subr.bf16.mxu0 0
      %606 = vmatpush1.bf16.msra.mxu0 0
      %607 = vmatprep.subr.bf16.mxu0 0
      %608 = vmatpush1.bf16.msra.mxu0 0
      %609 = vmatprep.subr.bf16.mxu0 0
      %610 = vmatpush1.bf16.msra.mxu0 0
      %611 = vmatprep.subr.bf16.mxu0 0
      %612 = vmatpush1.bf16.msra.mxu0 0
      %613 = vmatprep.subr.bf16.mxu0 0
      %614 = vmatpush1.bf16.msra.mxu0 0
      %615 = vmatprep.subr.bf16.mxu0 0
      %616 = vmatpush1.bf16.msra.mxu0 0
      %617 = vmatprep.subr.bf16.mxu0 0
      %618 = vmatpush1.bf16.msra.mxu0 0
      %619 = vmatprep.mubr.bf16.mxu0 0
      %620 = vmatmul.mubr.bf16.gmra.mrb[0].mxu0 %v419
      %v621 = vpop.f32.mrb[0].mxu0
      %v622 = vadd.f32 0.0, %v621
      %v623 = vpop.f32.mrb[0].mxu0
      %v624 = vadd.f32 0.0, %v623
      %v625 = vpop.f32.mrb[0].mxu0
      %v626 = vadd.f32 0.0, %v625
      %v627 = vpop.f32.mrb[0].mxu0
      %v628 = vadd.f32 0.0, %v627
      %629 = vmatprep.mubr.bf16.mxu0 0
      %630 = vmatmul.mubr.bf16.gmra.mrb[0].mxu0 %v420
      %v631 = vpop.f32.mrb[0].mxu0
      %v632 = vadd.f32 0.0, %v631
      %v633 = vpop.f32.mrb[0].mxu0
      %v634 = vadd.f32 0.0, %v633
      %v635 = vpop.f32.mrb[0].mxu0
      %v636 = vadd.f32 0.0, %v635
      %v637 = vpop.f32.mrb[0].mxu0
      %v638 = vadd.f32 0.0, %v637
      %639 = vmatprep.mubr.bf16.mxu0 0
      %640 = vmatmul.mubr.bf16.gmra.mrb[0].mxu0 %v421
      %v641 = vpop.f32.mrb[0].mxu0
      %v642 = vadd.f32 0.0, %v641
      %v643 = vpop.f32.mrb[0].mxu0
      %v644 = vadd.f32 0.0, %v643
      %v645 = vpop.f32.mrb[0].mxu0
      %v646 = vadd.f32 0.0, %v645
      %v647 = vpop.f32.mrb[0].mxu0
      %v648 = vadd.f32 0.0, %v647
      %649 = vmatprep.mubr.bf16.mxu0 0
      %650 = vmatmul.mubr.bf16.gmra.mrb[0].mxu0 %v422
      %v651 = vpop.f32.mrb[0].mxu0
      %v652 = vadd.f32 0.0, %v651
      %v653 = vpop.f32.mrb[0].mxu0
      %v654 = vadd.f32 0.0, %v653
      %v655 = vpop.f32.mrb[0].mxu0
      %v656 = vadd.f32 0.0, %v655
      %v657 = vpop.f32.mrb[0].mxu0
      %v658 = vadd.f32 0.0, %v657
      %659 = vdwg.mxu0
      %660 = vmatprep.subr.bf16.mxu0 %v526
      %661 = vmatpush1.bf16.msra.mxu0 %v525
      %662 = vmatprep.subr.bf16.mxu0 %v530
      %663 = vmatpush1.bf16.msra.mxu0 %v529
      %664 = vmatprep.subr.bf16.mxu0 %v534
      %665 = vmatpush1.bf16.msra.mxu0 %v533
      %666 = vmatprep.subr.bf16.mxu0 %v538
      %667 = vmatpush1.bf16.msra.mxu0 %v537
      %668 = vmatprep.subr.bf16.mxu0 %v542
      %669 = vmatpush1.bf16.msra.mxu0 %v541
      %670 = vmatprep.subr.bf16.mxu0 %v546
      %671 = vmatpush1.bf16.msra.mxu0 %v545
      %672 = vmatprep.subr.bf16.mxu0 %v550
      %673 = vmatpush1.bf16.msra.mxu0 %v549
      %674 = vmatprep.subr.bf16.mxu0 %v554
      %675 = vmatpush1.bf16.msra.mxu0 %v553
      %676 = vmatprep.subr.bf16.mxu0 0
      %677 = vmatpush1.bf16.msra.mxu0 0
      %678 = vmatprep.subr.bf16.mxu0 0
      %679 = vmatpush1.bf16.msra.mxu0 0
      %680 = vmatprep.subr.bf16.mxu0 0
      %681 = vmatpush1.bf16.msra.mxu0 0
      %682 = vmatprep.subr.bf16.mxu0 0
      %683 = vmatpush1.bf16.msra.mxu0 0
      %684 = vmatprep.subr.bf16.mxu0 0
      %685 = vmatpush1.bf16.msra.mxu0 0
      %686 = vmatprep.subr.bf16.mxu0 0
      %687 = vmatpush1.bf16.msra.mxu0 0
      %688 = vmatprep.subr.bf16.mxu0 0
      %689 = vmatpush1.bf16.msra.mxu0 0
      %690 = vmatprep.subr.bf16.mxu0 0
      %691 = vmatpush1.bf16.msra.mxu0 0
      %692 = vmatprep.mubr.bf16.mxu0 0
      %693 = vmatmul.mubr.bf16.gmra.mrb[0].mxu0 %v419
      %v694 = vpop.f32.mrb[0].mxu0
      %v695 = vadd.f32 0.0, %v694
      %v696 = vpop.f32.mrb[0].mxu0
      %v697 = vadd.f32 0.0, %v696
      %v698 = vpop.f32.mrb[0].mxu0
      %v699 = vadd.f32 0.0, %v698
      %v700 = vpop.f32.mrb[0].mxu0
      %v701 = vadd.f32 0.0, %v700
      %702 = vmatprep.mubr.bf16.mxu0 0
      %703 = vmatmul.mubr.bf16.gmra.mrb[0].mxu0 %v420
      %v704 = vpop.f32.mrb[0].mxu0
      %v705 = vadd.f32 0.0, %v704
      %v706 = vpop.f32.mrb[0].mxu0
      %v707 = vadd.f32 0.0, %v706
      %v708 = vpop.f32.mrb[0].mxu0
      %v709 = vadd.f32 0.0, %v708
      %v710 = vpop.f32.mrb[0].mxu0
      %v711 = vadd.f32 0.0, %v710
      %712 = vmatprep.mubr.bf16.mxu0 0
      %713 = vmatmul.mubr.bf16.gmra.mrb[0].mxu0 %v421
      %v714 = vpop.f32.mrb[0].mxu0
      %v715 = vadd.f32 0.0, %v714
      %v716 = vpop.f32.mrb[0].mxu0
      %v717 = vadd.f32 0.0, %v716
      %v718 = vpop.f32.mrb[0].mxu0
      %v719 = vadd.f32 0.0, %v718
      %v720 = vpop.f32.mrb[0].mxu0
      %v721 = vadd.f32 0.0, %v720
      %722 = vmatprep.mubr.bf16.mxu0 0
      %723 = vmatmul.mubr.bf16.gmra.mrb[0].mxu0 %v422
      %v724 = vpop.f32.mrb[0].mxu0
      %v725 = vadd.f32 0.0, %v724
      %v726 = vpop.f32.mrb[0].mxu0
      %v727 = vadd.f32 0.0, %v726
      %v728 = vpop.f32.mrb[0].mxu0
      %v729 = vadd.f32 0.0, %v728
      %v730 = vpop.f32.mrb[0].mxu0
      %v731 = vadd.f32 0.0, %v730
      %732 = vdwg.mxu0
      %v733 = vmax.f32 %v622, %v624
      %v734 = vmax.f32 %v733, %v695
      %vm735 = vcmask 130048
      %v736 = vsel %vm735, %v697, -inf
      %v737 = vmax.f32 %v734, %v736
      %738 = vmax.xlane.f32.xlu0 %v737
      %v739 = vpop.xlane.xlu0 %738
      %v740 = vmax.f32 %v626, %v628
      %v741 = vmax.f32 %v740, %v699
      %v742 = vsel %vm735, %v701, -inf
      %v743 = vmax.f32 %v741, %v742
      %744 = vmax.xlane.f32.xlu0 %v743
      %v745 = vpop.xlane.xlu0 %744
      %v746 = vmax.f32 %v632, %v634
      %v747 = vmax.f32 %v746, %v705
      %v748 = vsel %vm735, %v707, -inf
      %v749 = vmax.f32 %v747, %v748
      %750 = vmax.xlane.f32.xlu0 %v749
      %v751 = vpop.xlane.xlu0 %750
      %v752 = vmax.f32 %v636, %v638
      %v753 = vmax.f32 %v752, %v709
      %v754 = vsel %vm735, %v711, -inf
      %v755 = vmax.f32 %v753, %v754
      %756 = vmax.xlane.f32.xlu0 %v755
      %v757 = vpop.xlane.xlu0 %756
      %v758 = vmax.f32 %v642, %v644
      %v759 = vmax.f32 %v758, %v715
      %v760 = vsel %vm735, %v717, -inf
      %v761 = vmax.f32 %v759, %v760
      %762 = vmax.xlane.f32.xlu0 %v761
      %v763 = vpop.xlane.xlu0 %762
      %v764 = vmax.f32 %v646, %v648
      %v765 = vmax.f32 %v764, %v719
      %v766 = vsel %vm735, %v721, -inf
      %v767 = vmax.f32 %v765, %v766
      %768 = vmax.xlane.f32.xlu0 %v767
      %v769 = vpop.xlane.xlu0 %768
      %v770 = vmax.f32 %v652, %v654
      %v771 = vmax.f32 %v770, %v725
      %v772 = vsel %vm735, %v727, -inf
      %v773 = vmax.f32 %v771, %v772
      %774 = vmax.xlane.f32.xlu0 %v773
      %v775 = vpop.xlane.xlu0 %774
      %v776 = vmax.f32 %v656, %v658
      %v777 = vmax.f32 %v776, %v729
      %v778 = vsel %vm735, %v731, -inf
      %v779 = vmax.f32 %v777, %v778
      %780 = vmax.xlane.f32.xlu0 %v779
      %v781 = vpop.xlane.xlu0 %780
      %v782 = vsub.f32 %v622, %v739
      %v783 = vsub.f32 %v624, %v739
      %v784 = vsub.f32 %v695, %v739
      %v785 = vsub.f32 %v697, %v739
      %v786 = vsub.f32 %v626, %v745
      %v787 = vsub.f32 %v628, %v745
      %v788 = vsub.f32 %v699, %v745
      %v789 = vsub.f32 %v701, %v745
      %v790 = vsub.f32 %v632, %v751
      %v791 = vsub.f32 %v634, %v751
      %v792 = vsub.f32 %v705, %v751
      %v793 = vsub.f32 %v707, %v751
      %v794 = vsub.f32 %v636, %v757
      %v795 = vsub.f32 %v638, %v757
      %v796 = vsub.f32 %v709, %v757
      %v797 = vsub.f32 %v711, %v757
      %v798 = vsub.f32 %v642, %v763
      %v799 = vsub.f32 %v644, %v763
      %v800 = vsub.f32 %v715, %v763
      %v801 = vsub.f32 %v717, %v763
      %v802 = vsub.f32 %v646, %v769
      %v803 = vsub.f32 %v648, %v769
      %v804 = vsub.f32 %v719, %v769
      %v805 = vsub.f32 %v721, %v769
      %v806 = vsub.f32 %v652, %v775
      %v807 = vsub.f32 %v654, %v775
      %v808 = vsub.f32 %v725, %v775
      %v809 = vsub.f32 %v727, %v775
      %v810 = vsub.f32 %v656, %v781
      %v811 = vsub.f32 %v658, %v781
      %v812 = vsub.f32 %v729, %v781
      %v813 = vsub.f32 %v731, %v781
      %v814 = vmul.f32 %v782, 1.442695
      %v815 = vpow.pop %v814
      %v816 = vmul.f32 %v783, 1.442695
      %v817 = vpow.pop %v816
      %v818 = vmul.f32 %v784, 1.442695
      %v819 = vpow.pop %v818
      %v820 = vmul.f32 %v785, 1.442695
      %v821 = vpow.pop %v820
      %v822 = vmul.f32 %v786, 1.442695
      %v823 = vpow.pop %v822
      %v824 = vmul.f32 %v787, 1.442695
      %v825 = vpow.pop %v824
      %v826 = vmul.f32 %v788, 1.442695
      %v827 = vpow.pop %v826
      %v828 = vmul.f32 %v789, 1.442695
      %v829 = vpow.pop %v828
      %v830 = vmul.f32 %v790, 1.442695
      %v831 = vpow.pop %v830
      %v832 = vmul.f32 %v791, 1.442695
      %v833 = vpow.pop %v832
      %v834 = vmul.f32 %v792, 1.442695
      %v835 = vpow.pop %v834
      %v836 = vmul.f32 %v793, 1.442695
      %v837 = vpow.pop %v836
      %v838 = vmul.f32 %v794, 1.442695
      %v839 = vpow.pop %v838
      %v840 = vmul.f32 %v795, 1.442695
      %v841 = vpow.pop %v840
      %v842 = vmul.f32 %v796, 1.442695
      %v843 = vpow.pop %v842
      %v844 = vmul.f32 %v797, 1.442695
      %v845 = vpow.pop %v844
      %v846 = vmul.f32 %v798, 1.442695
      %v847 = vpow.pop %v846
      %v848 = vmul.f32 %v799, 1.442695
      %v849 = vpow.pop %v848
      %v850 = vmul.f32 %v800, 1.442695
      %v851 = vpow.pop %v850
      %v852 = vmul.f32 %v801, 1.442695
      %v853 = vpow.pop %v852
      %v854 = vmul.f32 %v802, 1.442695
      %v855 = vpow.pop %v854
      %v856 = vmul.f32 %v803, 1.442695
      %v857 = vpow.pop %v856
      %v858 = vmul.f32 %v804, 1.442695
      %v859 = vpow.pop %v858
      %v860 = vmul.f32 %v805, 1.442695
      %v861 = vpow.pop %v860
      %v862 = vmul.f32 %v806, 1.442695
      %v863 = vpow.pop %v862
      %v864 = vmul.f32 %v807, 1.442695
      %v865 = vpow.pop %v864
      %v866 = vmul.f32 %v808, 1.442695
      %v867 = vpow.pop %v866
      %v868 = vmul.f32 %v809, 1.442695
      %v869 = vpow.pop %v868
      %v870 = vmul.f32 %v810, 1.442695
      %v871 = vpow.pop %v870
      %v872 = vmul.f32 %v811, 1.442695
      %v873 = vpow.pop %v872
      %v874 = vmul.f32 %v812, 1.442695
      %v875 = vpow.pop %v874
      %v876 = vmul.f32 %v813, 1.442695
      %v877 = vpow.pop %v876
      %v878 = vadd.f32 %v815, %v817
      %v879 = vadd.f32 %v878, %v819
      %v880 = vsel %vm735, %v821, 0.0
      %v881 = vadd.f32 %v879, %v880
      %882 = vadd.xlane.f32.xlu0 %v881
      %v883 = vpop.xlane.xlu0 %882
      %v884 = vadd.f32 %v823, %v825
      %v885 = vadd.f32 %v884, %v827
      %v886 = vsel %vm735, %v829, 0.0
      %v887 = vadd.f32 %v885, %v886
      %888 = vadd.xlane.f32.xlu0 %v887
      %v889 = vpop.xlane.xlu0 %888
      %v890 = vadd.f32 %v831, %v833
      %v891 = vadd.f32 %v890, %v835
      %v892 = vsel %vm735, %v837, 0.0
      %v893 = vadd.f32 %v891, %v892
      %894 = vadd.xlane.f32.xlu0 %v893
      %v895 = vpop.xlane.xlu0 %894
      %v896 = vadd.f32 %v839, %v841
      %v897 = vadd.f32 %v896, %v843
      %v898 = vsel %vm735, %v845, 0.0
      %v899 = vadd.f32 %v897, %v898
      %900 = vadd.xlane.f32.xlu0 %v899
      %v901 = vpop.xlane.xlu0 %900
      %v902 = vadd.f32 %v847, %v849
      %v903 = vadd.f32 %v902, %v851
      %v904 = vsel %vm735, %v853, 0.0
      %v905 = vadd.f32 %v903, %v904
      %906 = vadd.xlane.f32.xlu0 %v905
      %v907 = vpop.xlane.xlu0 %906
      %v908 = vadd.f32 %v855, %v857
      %v909 = vadd.f32 %v908, %v859
      %v910 = vsel %vm735, %v861, 0.0
      %v911 = vadd.f32 %v909, %v910
      %912 = vadd.xlane.f32.xlu0 %v911
      %v913 = vpop.xlane.xlu0 %912
      %v914 = vadd.f32 %v863, %v865
      %v915 = vadd.f32 %v914, %v867
      %v916 = vsel %vm735, %v869, 0.0
      %v917 = vadd.f32 %v915, %v916
      %918 = vadd.xlane.f32.xlu0 %v917
      %v919 = vpop.xlane.xlu0 %918
      %v920 = vadd.f32 %v871, %v873
      %v921 = vadd.f32 %v920, %v875
      %v922 = vsel %vm735, %v877, 0.0
      %v923 = vadd.f32 %v921, %v922
      %924 = vadd.xlane.f32.xlu0 %v923
      %v925 = vpop.xlane.xlu0 %924
      %v926 = vrcp.pop %v883
      %v927 = vrcp.pop %v889
      %v928 = vrcp.pop %v895
      %v929 = vrcp.pop %v901
      %v930 = vrcp.pop %v907
      %v931 = vrcp.pop %v913
      %v932 = vrcp.pop %v919
      %v933 = vrcp.pop %v925
      %v934 = vmul.f32 %v815, %v926
      %v935 = vmul.f32 %v817, %v926
      %v936 = vmul.f32 %v819, %v926
      %v937 = vmul.f32 %v821, %v926
      %v938 = vmul.f32 %v823, %v927
      %v939 = vmul.f32 %v825, %v927
      %v940 = vmul.f32 %v827, %v927
      %v941 = vmul.f32 %v829, %v927
      %v942 = vmul.f32 %v831, %v928
      %v943 = vmul.f32 %v833, %v928
      %v944 = vmul.f32 %v835, %v928
      %v945 = vmul.f32 %v837, %v928
      %v946 = vmul.f32 %v839, %v929
      %v947 = vmul.f32 %v841, %v929
      %v948 = vmul.f32 %v843, %v929
      %v949 = vmul.f32 %v845, %v929
      %v950 = vmul.f32 %v847, %v930
      %v951 = vmul.f32 %v849, %v930
      %v952 = vmul.f32 %v851, %v930
      %v953 = vmul.f32 %v853, %v930
      %v954 = vmul.f32 %v855, %v931
      %v955 = vmul.f32 %v857, %v931
      %v956 = vmul.f32 %v859, %v931
      %v957 = vmul.f32 %v861, %v931
      %v958 = vmul.f32 %v863, %v932
      %v959 = vmul.f32 %v865, %v932
      %v960 = vmul.f32 %v867, %v932
      %v961 = vmul.f32 %v869, %v932
      %v962 = vmul.f32 %v871, %v933
      %v963 = vmul.f32 %v873, %v933
      %v964 = vmul.f32 %v875, %v933
      %v965 = vmul.f32 %v877, %v933
      %v966 = vpack.c.bf16 %v938, %v934
      %v967 = vpack.c.bf16 %v939, %v935
      %v968 = vpack.c.bf16 %v940, %v936
      %v969 = vpack.c.bf16 %v941, %v937
      %v970 = vpack.c.bf16 %v946, %v942
      %v971 = vpack.c.bf16 %v947, %v943
      %v972 = vpack.c.bf16 %v948, %v944
      %v973 = vpack.c.bf16 %v949, %v945
      %v974 = vpack.c.bf16 %v954, %v950
      %v975 = vpack.c.bf16 %v955, %v951
      %v976 = vpack.c.bf16 %v956, %v952
      %v977 = vpack.c.bf16 %v957, %v953
      %v978 = vpack.c.bf16 %v962, %v958
      %v979 = vpack.c.bf16 %v963, %v959
      %v980 = vpack.c.bf16 %v964, %v960
      %v981 = vpack.c.bf16 %v965, %v961
      %v982 = vld [vmem:[%s3] sm:$0xf]
      %v983 = vld [vmem:[%s3 + $0x4] sm:$0xf]
      %v984 = vld [vmem:[%s3 + $0x8] sm:$0xf]
      %v985 = vld [vmem:[%s3 + $0xc] sm:$0xf]
      %v986 = vld [vmem:[%s3 + $0x10] sm:$0xf]
      %v987 = vld [vmem:[%s3 + $0x14] sm:$0xf]
      %v988 = vld [vmem:[%s3 + $0x18] sm:$0xf]
      %v989 = vld [vmem:[%s3 + $0x1c] sm:$0xf]
      %v990 = vld [vmem:[%s3 + $0x20] sm:$0xf]
      %v991 = vld [vmem:[%s3 + $0x24] sm:$0xf]
      %v992 = vld [vmem:[%s3 + $0x28] sm:$0xf]
      %v993 = vld [vmem:[%s3 + $0x2c] sm:$0xf]
      %v994 = vld [vmem:[%s3 + $0x30] sm:$0xf]
      %v995 = vld [vmem:[%s3 + $0x34] sm:$0xf]
      %v996 = vld [vmem:[%s3 + $0x38] sm:$0xf]
      %v997 = vld [vmem:[%s3 + $0x3c] sm:$0xf]
      %v998 = vld [vmem:[%s3 + $0x40] sm:$0xf]
      %v999 = vld [vmem:[%s3 + $0x44] sm:$0xf]
      %v1000 = vld [vmem:[%s3 + $0x48] sm:$0xf]
      %v1001 = vld [vmem:[%s3 + $0x4c] sm:$0xf]
      %v1002 = vld [vmem:[%s3 + $0x50] sm:$0xf]
      %v1003 = vld [vmem:[%s3 + $0x54] sm:$0xf]
      %v1004 = vld [vmem:[%s3 + $0x58] sm:$0xf]
      %v1005 = vld [vmem:[%s3 + $0x5c] sm:$0xf]
      %v1006 = vld [vmem:[%s3 + $0x60] sm:$0xf]
      %v1007 = vld [vmem:[%s3 + $0x64] sm:$0xf]
      %v1008 = vld [vmem:[%s3 + $0x68] sm:$0xf]
      %v1009 = vld [vmem:[%s3 + $0x6c] sm:$0xf]
      %v1010 = vld [vmem:[%s3 + $0x70] sm:$0xf]
      %v1011 = vld [vmem:[%s3 + $0x74] sm:$0xf]
      %v1012 = vld [vmem:[%s3 + $0x78] sm:$0xf]
      %v1013 = vld [vmem:[%s3 + $0x7c] sm:$0xf]
      %v1014 = vld [vmem:[%s3 + $0x80] sm:$0xf]
      %v1015 = vld [vmem:[%s3 + $0x84] sm:$0xf]
      %v1016 = vld [vmem:[%s3 + $0x88] sm:$0xf]
      %v1017 = vld [vmem:[%s3 + $0x8c] sm:$0xf]
      %v1018 = vld [vmem:[%s3 + $0x90] sm:$0xf]
      %v1019 = vld [vmem:[%s3 + $0x94] sm:$0xf]
      %v1020 = vld [vmem:[%s3 + $0x98] sm:$0xf]
      %v1021 = vld [vmem:[%s3 + $0x9c] sm:$0xf]
      %v1022 = vld [vmem:[%s3 + $0xa0] sm:$0xf]
      %v1023 = vld [vmem:[%s3 + $0xa4] sm:$0xf]
      %v1024 = vld [vmem:[%s3 + $0xa8] sm:$0xf]
      %v1025 = vld [vmem:[%s3 + $0xac] sm:$0xf]
      %v1026 = vld [vmem:[%s3 + $0xb0] sm:$0xf]
      %v1027 = vld [vmem:[%s3 + $0xb4] sm:$0xf]
      %v1028 = vld [vmem:[%s3 + $0xb8] sm:$0xf]
      %v1029 = vld [vmem:[%s3 + $0xbc] sm:$0xf]
      %v1030 = vld [vmem:[%s3 + $0xc0] sm:$0xf]
      %v1031 = vld [vmem:[%s3 + $0xc4] sm:$0xf]
      %v1032 = vld [vmem:[%s4] sm:$0x1]
      %v1034 = vlaneseq
      %v1035 = vshrl.u32 %v1034, 7
      %v1036 = vsub.s32 0, %v1035
      %v1037 = vrot.slane %v1032, %v1036
      %v1089 = vunpack.c.l.b16 %v982
      %v1090 = vunpack.c.l.b16 %v983
      %v1091 = vunpack.c.l.b16 %v984
      %v1092 = vunpack.c.l.b16 %v985
      %v1093 = vunpack.c.l.b16 %v986
      %v1094 = vunpack.c.l.b16 %v987
      %v1095 = vunpack.c.l.b16 %v988
      %v1096 = vunpack.c.l.b16 %v989
      %v1097 = vunpack.c.l.b16 %v990
      %v1098 = vunpack.c.l.b16 %v991
      %v1099 = vunpack.c.l.b16 %v992
      %v1100 = vunpack.c.l.b16 %v993
      %v1101 = vunpack.c.l.b16 %v994
      %v1102 = vunpack.c.l.b16 %v995
      %v1103 = vunpack.c.l.b16 %v996
      %v1104 = vunpack.c.l.b16 %v997
      %v1105 = vunpack.c.l.b16 %v998
      %v1106 = vunpack.c.l.b16 %v999
      %v1107 = vunpack.c.l.b16 %v1000
      %v1108 = vunpack.c.l.b16 %v1001
      %v1109 = vunpack.c.l.b16 %v1002
      %v1110 = vunpack.c.l.b16 %v1003
      %v1111 = vunpack.c.l.b16 %v1004
      %v1112 = vunpack.c.l.b16 %v1005
      %v1113 = vunpack.c.l.b16 %v1006
      %v1114 = vunpack.c.l.b16 %v1007
      %v1115 = vunpack.c.l.b16 %v1008
      %v1116 = vunpack.c.l.b16 %v1009
      %v1117 = vunpack.c.l.b16 %v1010
      %v1118 = vunpack.c.l.b16 %v1011
      %v1119 = vunpack.c.l.b16 %v1012
      %v1120 = vunpack.c.l.b16 %v1013
      %v1121 = vunpack.c.l.b16 %v1014
      %v1122 = vunpack.c.l.b16 %v1015
      %v1123 = vunpack.c.l.b16 %v1016
      %v1124 = vunpack.c.l.b16 %v1017
      %v1125 = vunpack.c.l.b16 %v1018
      %v1126 = vunpack.c.l.b16 %v1019
      %v1127 = vunpack.c.l.b16 %v1020
      %v1128 = vunpack.c.l.b16 %v1021
      %v1129 = vunpack.c.l.b16 %v1022
      %v1130 = vunpack.c.l.b16 %v1023
      %v1131 = vunpack.c.l.b16 %v1024
      %v1132 = vunpack.c.l.b16 %v1025
      %v1133 = vunpack.c.l.b16 %v1026
      %v1134 = vunpack.c.l.b16 %v1027
      %v1135 = vunpack.c.l.b16 %v1028
      %v1136 = vunpack.c.l.b16 %v1029
      %v1137 = vunpack.c.l.b16 %v1030
      %v1138 = vunpack.c.l.b16 %v1031
      %v1139 = vpack.c.b16 %v1090, %v1089
      %v1140 = vpack.c.b16 %v1092, %v1091
      %v1141 = vpack.c.b16 %v1094, %v1093
      %v1142 = vpack.c.b16 %v1096, %v1095
      %v1143 = vpack.c.b16 %v1098, %v1097
      %v1144 = vpack.c.b16 %v1100, %v1099
      %v1145 = vpack.c.b16 %v1102, %v1101
      %v1146 = vpack.c.b16 %v1104, %v1103
      %v1147 = vpack.c.b16 %v1106, %v1105
      %v1148 = vpack.c.b16 %v1108, %v1107
      %v1149 = vpack.c.b16 %v1110, %v1109
      %v1150 = vpack.c.b16 %v1112, %v1111
      %v1151 = vpack.c.b16 %v1114, %v1113
      %v1152 = vpack.c.b16 %v1116, %v1115
      %v1153 = vpack.c.b16 %v1118, %v1117
      %v1154 = vpack.c.b16 %v1120, %v1119
      %v1155 = vpack.c.b16 %v1122, %v1121
      %v1156 = vpack.c.b16 %v1124, %v1123
      %v1157 = vpack.c.b16 %v1126, %v1125
      %v1158 = vpack.c.b16 %v1128, %v1127
      %v1159 = vpack.c.b16 %v1130, %v1129
      %v1160 = vpack.c.b16 %v1132, %v1131
      %v1161 = vpack.c.b16 %v1134, %v1133
      %v1162 = vpack.c.b16 %v1136, %v1135
      %v1163 = vpack.c.b16 %v1138, %v1137
      %v1190 = vsel %vm735, %v969, 0
      %v1193 = vsel %vm735, %v973, 0
      %v1196 = vsel %vm735, %v977, 0
      %v1199 = vsel %vm735, %v981, 0
      %1201 = vmatprep.subr.bf16.mxu0 0
      %1202 = vmatpush1.bf16.msra.mxu0 %v1139
      %1203 = vmatprep.subr.bf16.mxu0 0
      %1204 = vmatpush1.bf16.msra.mxu0 %v1140
      %1205 = vmatprep.subr.bf16.mxu0 0
      %1206 = vmatpush1.bf16.msra.mxu0 %v1141
      %1207 = vmatprep.subr.bf16.mxu0 0
      %1208 = vmatpush1.bf16.msra.mxu0 %v1142
      %1209 = vmatprep.subr.bf16.mxu0 0
      %1210 = vmatpush1.bf16.msra.mxu0 %v1143
      %1211 = vmatprep.subr.bf16.mxu0 0
      %1212 = vmatpush1.bf16.msra.mxu0 %v1144
      %1213 = vmatprep.subr.bf16.mxu0 0
      %1214 = vmatpush1.bf16.msra.mxu0 %v1145
      %1215 = vmatprep.subr.bf16.mxu0 0
      %1216 = vmatpush1.bf16.msra.mxu0 %v1146
      %1217 = vmatprep.subr.bf16.mxu0 0
      %1218 = vmatpush1.bf16.msra.mxu0 %v1147
      %1219 = vmatprep.subr.bf16.mxu0 0
      %1220 = vmatpush1.bf16.msra.mxu0 %v1148
      %1221 = vmatprep.subr.bf16.mxu0 0
      %1222 = vmatpush1.bf16.msra.mxu0 %v1149
      %1223 = vmatprep.subr.bf16.mxu0 0
      %1224 = vmatpush1.bf16.msra.mxu0 %v1150
      %1225 = vmatprep.subr.bf16.mxu0 0
      %1226 = vmatpush1.bf16.msra.mxu0 %v1151
      %1227 = vmatprep.subr.bf16.mxu0 0
      %1228 = vmatpush1.bf16.msra.mxu0 %v1152
      %1229 = vmatprep.subr.bf16.mxu0 0
      %1230 = vmatpush1.bf16.msra.mxu0 %v1153
      %1231 = vmatprep.subr.bf16.mxu0 0
      %1232 = vmatpush1.bf16.msra.mxu0 %v1154
      %1233 = vmatprep.mubr.bf16.mxu0 %v967
      %1234 = vmatmul.mubr.bf16.gmra.mrb[0].mxu0 %v966
      %v1235 = vpop.f32.mrb[0].mxu0
      %v1236 = vadd.f32 %v1037, %v1235
      %v1237 = vpop.f32.mrb[0].mxu0
      %v1238 = vpop.f32.mrb[0].mxu0
      %v1239 = vadd.f32 %v1037, %v1238
      %v1240 = vpop.f32.mrb[0].mxu0
      %1241 = vmatprep.mubr.bf16.mxu0 %v971
      %1242 = vmatmul.mubr.bf16.gmra.mrb[0].mxu0 %v970
      %v1243 = vpop.f32.mrb[0].mxu0
      %v1244 = vadd.f32 %v1037, %v1243
      %v1245 = vpop.f32.mrb[0].mxu0
      %v1246 = vpop.f32.mrb[0].mxu0
      %v1247 = vadd.f32 %v1037, %v1246
      %v1248 = vpop.f32.mrb[0].mxu0
      %1249 = vmatprep.mubr.bf16.mxu0 %v975
      %1250 = vmatmul.mubr.bf16.gmra.mrb[0].mxu0 %v974
      %v1251 = vpop.f32.mrb[0].mxu0
      %v1252 = vadd.f32 %v1037, %v1251
      %v1253 = vpop.f32.mrb[0].mxu0
      %v1254 = vpop.f32.mrb[0].mxu0
      %v1255 = vadd.f32 %v1037, %v1254
      %v1256 = vpop.f32.mrb[0].mxu0
      %1257 = vmatprep.mubr.bf16.mxu0 %v979
      %1258 = vmatmul.mubr.bf16.gmra.mrb[0].mxu0 %v978
      %v1259 = vpop.f32.mrb[0].mxu0
      %v1260 = vadd.f32 %v1037, %v1259
      %v1261 = vpop.f32.mrb[0].mxu0
      %v1262 = vpop.f32.mrb[0].mxu0
      %v1263 = vadd.f32 %v1037, %v1262
      %v1264 = vpop.f32.mrb[0].mxu0
      %1265 = vdwg.mxu0
      %1266 = vmatprep.subr.bf16.mxu0 0
      %1267 = vmatpush1.bf16.msra.mxu0 %v1155
      %1268 = vmatprep.subr.bf16.mxu0 0
      %1269 = vmatpush1.bf16.msra.mxu0 %v1156
      %1270 = vmatprep.subr.bf16.mxu0 0
      %1271 = vmatpush1.bf16.msra.mxu0 %v1157
      %1272 = vmatprep.subr.bf16.mxu0 0
      %1273 = vmatpush1.bf16.msra.mxu0 %v1158
      %1274 = vmatprep.subr.bf16.mxu0 0
      %1275 = vmatpush1.bf16.msra.mxu0 %v1159
      %1276 = vmatprep.subr.bf16.mxu0 0
      %1277 = vmatpush1.bf16.msra.mxu0 %v1160
      %1278 = vmatprep.subr.bf16.mxu0 0
      %1279 = vmatpush1.bf16.msra.mxu0 %v1161
      %1280 = vmatprep.subr.bf16.mxu0 0
      %1281 = vmatpush1.bf16.msra.mxu0 %v1162
      %1282 = vmatprep.subr.bf16.mxu0 0
      %1283 = vmatpush1.bf16.msra.mxu0 %v1163
      %1284 = vmatprep.subr.bf16.mxu0 0
      %1285 = vmatpush1.bf16.msra.mxu0 0
      %1286 = vmatprep.subr.bf16.mxu0 0
      %1287 = vmatpush1.bf16.msra.mxu0 0
      %1288 = vmatprep.subr.bf16.mxu0 0
      %1289 = vmatpush1.bf16.msra.mxu0 0
      %1290 = vmatprep.subr.bf16.mxu0 0
      %1291 = vmatpush1.bf16.msra.mxu0 0
      %1292 = vmatprep.subr.bf16.mxu0 0
      %1293 = vmatpush1.bf16.msra.mxu0 0
      %1294 = vmatprep.subr.bf16.mxu0 0
      %1295 = vmatpush1.bf16.msra.mxu0 0
      %1296 = vmatprep.subr.bf16.mxu0 0
      %1297 = vmatpush1.bf16.msra.mxu0 0
      %1298 = vmatprep.mubr.bf16.mxu0 %v1190
      %1299 = vmatmul.mubr.bf16.gmra.mrb[0].mxu0 %v968
      %v1300 = vpop.f32.mrb[0].mxu0
      %v1301 = vadd.f32 %v1236, %v1300
      %v1302 = vpop.f32.mrb[0].mxu0
      %v1303 = vpop.f32.mrb[0].mxu0
      %v1304 = vadd.f32 %v1239, %v1303
      %v1305 = vpop.f32.mrb[0].mxu0
      %1306 = vmatprep.mubr.bf16.mxu0 %v1193
      %1307 = vmatmul.mubr.bf16.gmra.mrb[0].mxu0 %v972
      %v1308 = vpop.f32.mrb[0].mxu0
      %v1309 = vadd.f32 %v1244, %v1308
      %v1310 = vpop.f32.mrb[0].mxu0
      %v1311 = vpop.f32.mrb[0].mxu0
      %v1312 = vadd.f32 %v1247, %v1311
      %v1313 = vpop.f32.mrb[0].mxu0
      %1314 = vmatprep.mubr.bf16.mxu0 %v1196
      %1315 = vmatmul.mubr.bf16.gmra.mrb[0].mxu0 %v976
      %v1316 = vpop.f32.mrb[0].mxu0
      %v1317 = vadd.f32 %v1252, %v1316
      %v1318 = vpop.f32.mrb[0].mxu0
      %v1319 = vpop.f32.mrb[0].mxu0
      %v1320 = vadd.f32 %v1255, %v1319
      %v1321 = vpop.f32.mrb[0].mxu0
      %1322 = vmatprep.mubr.bf16.mxu0 %v1199
      %1323 = vmatmul.mubr.bf16.gmra.mrb[0].mxu0 %v980
      %v1324 = vpop.f32.mrb[0].mxu0
      %v1325 = vadd.f32 %v1260, %v1324
      %v1326 = vpop.f32.mrb[0].mxu0
      %v1327 = vpop.f32.mrb[0].mxu0
      %v1328 = vadd.f32 %v1263, %v1327
      %v1329 = vpop.f32.mrb[0].mxu0
      %1330 = vdwg.mxu0
      %v1339 = vunpack.c.l.b16 %v347
      %v1340 = vunpack.c.l.b16 %v348
      %v1341 = vunpack.c.l.b16 %v349
      %v1342 = vunpack.c.l.b16 %v350
      %v1343 = vunpack.c.l.b16 %v351
      %v1344 = vunpack.c.l.b16 %v352
      %v1345 = vunpack.c.l.b16 %v353
      %v1346 = vunpack.c.l.b16 %v354
      %v1347 = vpack.c.b16 %v1340, %v1339
      %v1348 = vpack.c.b16 %v1342, %v1341
      %v1349 = vpack.c.b16 %v1344, %v1343
      %v1350 = vpack.c.b16 %v1346, %v1345
      %1355 = vmatprep.subr.bf16.mxu0 0
      %1356 = vmatpush1.bf16.xpose.msra.mxu0 %v419
      %1357 = vmatprep.subr.bf16.mxu0 0
      %1358 = vmatpush1.bf16.xpose.msra.mxu0 %v420
      %1359 = vmatprep.subr.bf16.mxu0 0
      %1360 = vmatpush1.bf16.xpose.msra.mxu0 %v421
      %1361 = vmatprep.subr.bf16.mxu0 0
      %1362 = vmatpush1.bf16.xpose.msra.mxu0 %v422
      %1363 = vmatprep.subr.bf16.mxu0 0
      %1364 = vmatpush1.bf16.xpose.msra.mxu0 0
      %1365 = vmatprep.subr.bf16.mxu0 0
      %1366 = vmatpush1.bf16.xpose.msra.mxu0 0
      %1367 = vmatprep.subr.bf16.mxu0 0
      %1368 = vmatpush1.bf16.xpose.msra.mxu0 0
      %1369 = vmatprep.subr.bf16.mxu0 0
      %1370 = vmatpush1.bf16.xpose.msra.mxu0 0
      %1371 = vmatprep.subr.bf16.mxu0 0
      %1372 = vmatpush1.bf16.xpose.msra.mxu0 0
      %1373 = vmatprep.subr.bf16.mxu0 0
      %1374 = vmatpush1.bf16.xpose.msra.mxu0 0
      %1375 = vmatprep.subr.bf16.mxu0 0
      %1376 = vmatpush1.bf16.xpose.msra.mxu0 0
      %1377 = vmatprep.subr.bf16.mxu0 0
      %1378 = vmatpush1.bf16.xpose.msra.mxu0 0
      %1379 = vmatprep.subr.bf16.mxu0 0
      %1380 = vmatpush1.bf16.xpose.msra.mxu0 0
      %1381 = vmatprep.subr.bf16.mxu0 0
      %1382 = vmatpush1.bf16.xpose.msra.mxu0 0
      %1383 = vmatprep.subr.bf16.mxu0 0
      %1384 = vmatpush1.bf16.xpose.msra.mxu0 0
      %1385 = vmatprep.subr.bf16.mxu0 0
      %1386 = vmatpush1.bf16.xpose.msra.mxu0 0
      %1387 = vmatprep.mubr.bf16.mxu0 0
      %1388 = vmatmul.mubr.bf16.gmra.mrb[0].mxu0 %v1347
      %v1389 = vpop.f32.mrb[0].mxu0
      %v1390 = vadd.f32 0.0, %v1389
      %v1391 = vpop.f32.mrb[0].mxu0
      %v1392 = vpop.f32.mrb[0].mxu0
      %v1393 = vadd.f32 0.0, %v1392
      %v1394 = vpop.f32.mrb[0].mxu0
      %1395 = vmatprep.mubr.bf16.mxu0 0
      %1396 = vmatmul.mubr.bf16.gmra.mrb[0].mxu0 %v1348
      %v1397 = vpop.f32.mrb[0].mxu0
      %v1398 = vadd.f32 0.0, %v1397
      %v1399 = vpop.f32.mrb[0].mxu0
      %v1400 = vpop.f32.mrb[0].mxu0
      %v1401 = vadd.f32 0.0, %v1400
      %v1402 = vpop.f32.mrb[0].mxu0
      %1403 = vmatprep.mubr.bf16.mxu0 0
      %1404 = vmatmul.mubr.bf16.gmra.mrb[0].mxu0 %v1349
      %v1405 = vpop.f32.mrb[0].mxu0
      %v1406 = vadd.f32 0.0, %v1405
      %v1407 = vpop.f32.mrb[0].mxu0
      %v1408 = vpop.f32.mrb[0].mxu0
      %v1409 = vadd.f32 0.0, %v1408
      %v1410 = vpop.f32.mrb[0].mxu0
      %1411 = vmatprep.mubr.bf16.mxu0 0
      %1412 = vmatmul.mubr.bf16.gmra.mrb[0].mxu0 %v1350
      %v1413 = vpop.f32.mrb[0].mxu0
      %v1414 = vadd.f32 0.0, %v1413
      %v1415 = vpop.f32.mrb[0].mxu0
      %v1416 = vpop.f32.mrb[0].mxu0
      %v1417 = vadd.f32 0.0, %v1416
      %v1418 = vpop.f32.mrb[0].mxu0
      %1419 = vdwg.mxu0
      %vm1420 = vcmask 523264
      %v1421 = vsel %vm1420, %v1390, -inf
      %1422 = vmax.xlane.f32.xlu0 %v1421
      %v1423 = vpop.xlane.xlu0 %1422
      %v1424 = vsel %vm1420, %v1393, -inf
      %1425 = vmax.xlane.f32.xlu0 %v1424
      %v1426 = vpop.xlane.xlu0 %1425
      %v1427 = vsel %vm1420, %v1398, -inf
      %1428 = vmax.xlane.f32.xlu0 %v1427
      %v1429 = vpop.xlane.xlu0 %1428
      %v1430 = vsel %vm1420, %v1401, -inf
      %1431 = vmax.xlane.f32.xlu0 %v1430
      %v1432 = vpop.xlane.xlu0 %1431
      %v1433 = vsel %vm1420, %v1406, -inf
      %1434 = vmax.xlane.f32.xlu0 %v1433
      %v1435 = vpop.xlane.xlu0 %1434
      %v1436 = vsel %vm1420, %v1409, -inf
      %1437 = vmax.xlane.f32.xlu0 %v1436
      %v1438 = vpop.xlane.xlu0 %1437
      %v1439 = vsel %vm1420, %v1414, -inf
      %1440 = vmax.xlane.f32.xlu0 %v1439
      %v1441 = vpop.xlane.xlu0 %1440
      %v1442 = vsel %vm1420, %v1417, -inf
      %1443 = vmax.xlane.f32.xlu0 %v1442
      %v1444 = vpop.xlane.xlu0 %1443
      %v1445 = vsub.f32 %v1390, %v1423
      %v1446 = vsub.f32 %v1393, %v1426
      %v1447 = vsub.f32 %v1398, %v1429
      %v1448 = vsub.f32 %v1401, %v1432
      %v1449 = vsub.f32 %v1406, %v1435
      %v1450 = vsub.f32 %v1409, %v1438
      %v1451 = vsub.f32 %v1414, %v1441
      %v1452 = vsub.f32 %v1417, %v1444
      %v1453 = vmul.f32 %v1445, 1.442695
      %v1454 = vpow.pop %v1453
      %v1455 = vmul.f32 %v1446, 1.442695
      %v1456 = vpow.pop %v1455
      %v1457 = vmul.f32 %v1447, 1.442695
      %v1458 = vpow.pop %v1457
      %v1459 = vmul.f32 %v1448, 1.442695
      %v1460 = vpow.pop %v1459
      %v1461 = vmul.f32 %v1449, 1.442695
      %v1462 = vpow.pop %v1461
      %v1463 = vmul.f32 %v1450, 1.442695
      %v1464 = vpow.pop %v1463
      %v1465 = vmul.f32 %v1451, 1.442695
      %v1466 = vpow.pop %v1465
      %v1467 = vmul.f32 %v1452, 1.442695
      %v1468 = vpow.pop %v1467
      %v1469 = vsel %vm1420, %v1454, 0.0
      %1470 = vadd.xlane.f32.xlu0 %v1469
      %v1471 = vpop.xlane.xlu0 %1470
      %v1472 = vsel %vm1420, %v1456, 0.0
      %1473 = vadd.xlane.f32.xlu0 %v1472
      %v1474 = vpop.xlane.xlu0 %1473
      %v1475 = vsel %vm1420, %v1458, 0.0
      %1476 = vadd.xlane.f32.xlu0 %v1475
      %v1477 = vpop.xlane.xlu0 %1476
      %v1478 = vsel %vm1420, %v1460, 0.0
      %1479 = vadd.xlane.f32.xlu0 %v1478
      %v1480 = vpop.xlane.xlu0 %1479
      %v1481 = vsel %vm1420, %v1462, 0.0
      %1482 = vadd.xlane.f32.xlu0 %v1481
      %v1483 = vpop.xlane.xlu0 %1482
      %v1484 = vsel %vm1420, %v1464, 0.0
      %1485 = vadd.xlane.f32.xlu0 %v1484
      %v1486 = vpop.xlane.xlu0 %1485
      %v1487 = vsel %vm1420, %v1466, 0.0
      %1488 = vadd.xlane.f32.xlu0 %v1487
      %v1489 = vpop.xlane.xlu0 %1488
      %v1490 = vsel %vm1420, %v1468, 0.0
      %1491 = vadd.xlane.f32.xlu0 %v1490
      %v1492 = vpop.xlane.xlu0 %1491
      %v1493 = vrcp.pop %v1471
      %v1494 = vrcp.pop %v1474
      %v1495 = vrcp.pop %v1477
      %v1496 = vrcp.pop %v1480
      %v1497 = vrcp.pop %v1483
      %v1498 = vrcp.pop %v1486
      %v1499 = vrcp.pop %v1489
      %v1500 = vrcp.pop %v1492
      %v1501 = vmul.f32 %v1454, %v1493
      %v1502 = vmul.f32 %v1456, %v1494
      %v1503 = vmul.f32 %v1458, %v1495
      %v1504 = vmul.f32 %v1460, %v1496
      %v1505 = vmul.f32 %v1462, %v1497
      %v1506 = vmul.f32 %v1464, %v1498
      %v1507 = vmul.f32 %v1466, %v1499
      %v1508 = vmul.f32 %v1468, %v1500
      %v1509 = vpack.c.bf16 %v1304, %v1301
      %v1510 = vpack.c.bf16 %v1312, %v1309
      %v1511 = vpack.c.bf16 %v1320, %v1317
      %v1512 = vpack.c.bf16 %v1328, %v1325
      %1513 = vmatprep.subr.bf16.mxu0 0
      %1514 = vmatpush1.bf16.xpose.msra.mxu0 %v1509
      %1515 = vmatprep.subr.bf16.mxu0 0
      %1516 = vmatpush1.bf16.xpose.msra.mxu0 %v1510
      %1517 = vmatprep.subr.bf16.mxu0 0
      %1518 = vmatpush1.bf16.xpose.msra.mxu0 %v1511
      %1519 = vmatprep.subr.bf16.mxu0 0
      %1520 = vmatpush1.bf16.xpose.msra.mxu0 %v1512
      %1521 = vmatprep.subr.bf16.mxu0 0
      %1522 = vmatpush1.bf16.xpose.msra.mxu0 0
      %1523 = vmatprep.subr.bf16.mxu0 0
      %1524 = vmatpush1.bf16.xpose.msra.mxu0 0
      %1525 = vmatprep.subr.bf16.mxu0 0
      %1526 = vmatpush1.bf16.xpose.msra.mxu0 0
      %1527 = vmatprep.subr.bf16.mxu0 0
      %1528 = vmatpush1.bf16.xpose.msra.mxu0 0
      %1529 = vmatprep.subr.bf16.mxu0 0
      %1530 = vmatpush1.bf16.xpose.msra.mxu0 0
      %1531 = vmatprep.subr.bf16.mxu0 0
      %1532 = vmatpush1.bf16.xpose.msra.mxu0 0
      %1533 = vmatprep.subr.bf16.mxu0 0
      %1534 = vmatpush1.bf16.xpose.msra.mxu0 0
      %1535 = vmatprep.subr.bf16.mxu0 0
      %1536 = vmatpush1.bf16.xpose.msra.mxu0 0
      %1537 = vmatprep.subr.bf16.mxu0 0
      %1538 = vmatpush1.bf16.xpose.msra.mxu0 0
      %1539 = vmatprep.subr.bf16.mxu0 0
      %1540 = vmatpush1.bf16.xpose.msra.mxu0 0
      %1541 = vmatprep.subr.bf16.mxu0 0
      %1542 = vmatpush1.bf16.xpose.msra.mxu0 0
      %1543 = vmatprep.subr.bf16.mxu0 0
      %1544 = vmatpush1.bf16.xpose.msra.mxu0 0
      %1545 = vmatprep.mubr.bf16.mxu0 0
      %1546 = vmatmul.mubr.bf16.gmra.mrb[0].mxu0 %v1347
      %v1547 = vpop.f32.mrb[0].mxu0
      %v1548 = vadd.f32 0.0, %v1547
      %v1549 = vpop.f32.mrb[0].mxu0
      %v1550 = vpop.f32.mrb[0].mxu0
      %v1551 = vadd.f32 0.0, %v1550
      %v1552 = vpop.f32.mrb[0].mxu0
      %1553 = vmatprep.mubr.bf16.mxu0 0
      %1554 = vmatmul.mubr.bf16.gmra.mrb[0].mxu0 %v1348
      %v1555 = vpop.f32.mrb[0].mxu0
      %v1556 = vadd.f32 0.0, %v1555
      %v1557 = vpop.f32.mrb[0].mxu0
      %v1558 = vpop.f32.mrb[0].mxu0
      %v1559 = vadd.f32 0.0, %v1558
      %v1560 = vpop.f32.mrb[0].mxu0
      %1561 = vmatprep.mubr.bf16.mxu0 0
      %1562 = vmatmul.mubr.bf16.gmra.mrb[0].mxu0 %v1349
      %v1563 = vpop.f32.mrb[0].mxu0
      %v1564 = vadd.f32 0.0, %v1563
      %v1565 = vpop.f32.mrb[0].mxu0
      %v1566 = vpop.f32.mrb[0].mxu0
      %v1567 = vadd.f32 0.0, %v1566
      %v1568 = vpop.f32.mrb[0].mxu0
      %1569 = vmatprep.mubr.bf16.mxu0 0
      %1570 = vmatmul.mubr.bf16.gmra.mrb[0].mxu0 %v1350
      %v1571 = vpop.f32.mrb[0].mxu0
      %v1572 = vadd.f32 0.0, %v1571
      %v1573 = vpop.f32.mrb[0].mxu0
      %v1574 = vpop.f32.mrb[0].mxu0
      %v1575 = vadd.f32 0.0, %v1574
      %v1576 = vpop.f32.mrb[0].mxu0
      %1577 = vdwg.mxu0
      %v1578 = vsel %vm1420, %v1548, -inf
      %1579 = vmax.xlane.f32.xlu0 %v1578
      %v1580 = vpop.xlane.xlu0 %1579
      %v1581 = vsel %vm1420, %v1551, -inf
      %1582 = vmax.xlane.f32.xlu0 %v1581
      %v1583 = vpop.xlane.xlu0 %1582
      %v1584 = vsel %vm1420, %v1556, -inf
      %1585 = vmax.xlane.f32.xlu0 %v1584
      %v1586 = vpop.xlane.xlu0 %1585
      %v1587 = vsel %vm1420, %v1559, -inf
      %1588 = vmax.xlane.f32.xlu0 %v1587
      %v1589 = vpop.xlane.xlu0 %1588
      %v1590 = vsel %vm1420, %v1564, -inf
      %1591 = vmax.xlane.f32.xlu0 %v1590
      %v1592 = vpop.xlane.xlu0 %1591
      %v1593 = vsel %vm1420, %v1567, -inf
      %1594 = vmax.xlane.f32.xlu0 %v1593
      %v1595 = vpop.xlane.xlu0 %1594
      %v1596 = vsel %vm1420, %v1572, -inf
      %1597 = vmax.xlane.f32.xlu0 %v1596
      %v1598 = vpop.xlane.xlu0 %1597
      %v1599 = vsel %vm1420, %v1575, -inf
      %1600 = vmax.xlane.f32.xlu0 %v1599
      %v1601 = vpop.xlane.xlu0 %1600
      %v1602 = vsub.f32 %v1548, %v1580
      %v1603 = vsub.f32 %v1551, %v1583
      %v1604 = vsub.f32 %v1556, %v1586
      %v1605 = vsub.f32 %v1559, %v1589
      %v1606 = vsub.f32 %v1564, %v1592
      %v1607 = vsub.f32 %v1567, %v1595
      %v1608 = vsub.f32 %v1572, %v1598
      %v1609 = vsub.f32 %v1575, %v1601
      %v1610 = vmul.f32 %v1602, 1.442695
      %v1611 = vpow.pop %v1610
      %v1612 = vmul.f32 %v1603, 1.442695
      %v1613 = vpow.pop %v1612
      %v1614 = vmul.f32 %v1604, 1.442695
      %v1615 = vpow.pop %v1614
      %v1616 = vmul.f32 %v1605, 1.442695
      %v1617 = vpow.pop %v1616
      %v1618 = vmul.f32 %v1606, 1.442695
      %v1619 = vpow.pop %v1618
      %v1620 = vmul.f32 %v1607, 1.442695
      %v1621 = vpow.pop %v1620
      %v1622 = vmul.f32 %v1608, 1.442695
      %v1623 = vpow.pop %v1622
      %v1624 = vmul.f32 %v1609, 1.442695
      %v1625 = vpow.pop %v1624
      %v1626 = vsel %vm1420, %v1611, 0.0
      %1627 = vadd.xlane.f32.xlu0 %v1626
      %v1628 = vpop.xlane.xlu0 %1627
      %v1629 = vsel %vm1420, %v1613, 0.0
      %1630 = vadd.xlane.f32.xlu0 %v1629
      %v1631 = vpop.xlane.xlu0 %1630
      %v1632 = vsel %vm1420, %v1615, 0.0
      %1633 = vadd.xlane.f32.xlu0 %v1632
      %v1634 = vpop.xlane.xlu0 %1633
      %v1635 = vsel %vm1420, %v1617, 0.0
      %1636 = vadd.xlane.f32.xlu0 %v1635
      %v1637 = vpop.xlane.xlu0 %1636
      %v1638 = vsel %vm1420, %v1619, 0.0
      %1639 = vadd.xlane.f32.xlu0 %v1638
      %v1640 = vpop.xlane.xlu0 %1639
      %v1641 = vsel %vm1420, %v1621, 0.0
      %1642 = vadd.xlane.f32.xlu0 %v1641
      %v1643 = vpop.xlane.xlu0 %1642
      %v1644 = vsel %vm1420, %v1623, 0.0
      %1645 = vadd.xlane.f32.xlu0 %v1644
      %v1646 = vpop.xlane.xlu0 %1645
      %v1647 = vsel %vm1420, %v1625, 0.0
      %1648 = vadd.xlane.f32.xlu0 %v1647
      %v1649 = vpop.xlane.xlu0 %1648
      %v1650 = vrcp.pop %v1628
      %v1651 = vrcp.pop %v1631
      %v1652 = vrcp.pop %v1634
      %v1653 = vrcp.pop %v1637
      %v1654 = vrcp.pop %v1640
      %v1655 = vrcp.pop %v1643
      %v1656 = vrcp.pop %v1646
      %v1657 = vrcp.pop %v1649
      %v1658 = vmul.f32 %v1611, %v1650
      %v1659 = vmul.f32 %v1613, %v1651
      %v1660 = vmul.f32 %v1615, %v1652
      %v1661 = vmul.f32 %v1617, %v1653
      %v1662 = vmul.f32 %v1619, %v1654
      %v1663 = vmul.f32 %v1621, %v1655
      %v1664 = vmul.f32 %v1623, %v1656
      %v1665 = vmul.f32 %v1625, %v1657
      %v1666 = vadd.f32 %v1501, %v1658
      %v1667 = vadd.f32 %v1502, %v1659
      %v1668 = vadd.f32 %v1503, %v1660
      %v1669 = vadd.f32 %v1504, %v1661
      %v1670 = vadd.f32 %v1505, %v1662
      %v1671 = vadd.f32 %v1506, %v1663
      %v1672 = vadd.f32 %v1507, %v1664
      %v1673 = vadd.f32 %v1508, %v1665
      %v1674 = vpack.c.bf16 %v1667, %v1666
      %v1675 = vpack.c.bf16 %v1669, %v1668
      %v1676 = vpack.c.bf16 %v1671, %v1670
      %v1677 = vpack.c.bf16 %v1673, %v1672
      %v1686 = vunpack.c.l.b16 %v363
      %v1687 = vunpack.c.l.b16 %v364
      %v1688 = vunpack.c.l.b16 %v365
      %v1689 = vunpack.c.l.b16 %v366
      %v1690 = vunpack.c.l.b16 %v367
      %v1691 = vunpack.c.l.b16 %v368
      %v1692 = vunpack.c.l.b16 %v369
      %v1693 = vunpack.c.l.b16 %v370
      %v1694 = vpack.c.b16 %v1687, %v1686
      %v1695 = vpack.c.b16 %v1689, %v1688
      %v1696 = vpack.c.b16 %v1691, %v1690
      %v1697 = vpack.c.b16 %v1693, %v1692
      %v1703 = vsel %vm1420, %v1674, 0
      %v1706 = vsel %vm1420, %v1675, 0
      %v1709 = vsel %vm1420, %v1676, 0
      %v1712 = vsel %vm1420, %v1677, 0
      %1714 = vmatprep.subr.bf16.mxu0 0
      %1715 = vmatpush1.bf16.msra.mxu0 %v1694
      %1716 = vmatprep.subr.bf16.mxu0 0
      %1717 = vmatpush1.bf16.msra.mxu0 %v1695
      %1718 = vmatprep.subr.bf16.mxu0 0
      %1719 = vmatpush1.bf16.msra.mxu0 %v1696
      %1720 = vmatprep.subr.bf16.mxu0 0
      %1721 = vmatpush1.bf16.msra.mxu0 %v1697
      %1722 = vmatprep.subr.bf16.mxu0 0
      %1723 = vmatpush1.bf16.msra.mxu0 0
      %1724 = vmatprep.subr.bf16.mxu0 0
      %1725 = vmatpush1.bf16.msra.mxu0 0
      %1726 = vmatprep.subr.bf16.mxu0 0
      %1727 = vmatpush1.bf16.msra.mxu0 0
      %1728 = vmatprep.subr.bf16.mxu0 0
      %1729 = vmatpush1.bf16.msra.mxu0 0
      %1730 = vmatprep.subr.bf16.mxu0 0
      %1731 = vmatpush1.bf16.msra.mxu0 0
      %1732 = vmatprep.subr.bf16.mxu0 0
      %1733 = vmatpush1.bf16.msra.mxu0 0
      %1734 = vmatprep.subr.bf16.mxu0 0
      %1735 = vmatpush1.bf16.msra.mxu0 0
      %1736 = vmatprep.subr.bf16.mxu0 0
      %1737 = vmatpush1.bf16.msra.mxu0 0
      %1738 = vmatprep.subr.bf16.mxu0 0
      %1739 = vmatpush1.bf16.msra.mxu0 0
      %1740 = vmatprep.subr.bf16.mxu0 0
      %1741 = vmatpush1.bf16.msra.mxu0 0
      %1742 = vmatprep.subr.bf16.mxu0 0
      %1743 = vmatpush1.bf16.msra.mxu0 0
      %1744 = vmatprep.subr.bf16.mxu0 0
      %1745 = vmatpush1.bf16.msra.mxu0 0
      %1746 = vmatprep.mubr.bf16.mxu0 0
      %1747 = vmatmul.mubr.bf16.gmra.mrb[0].mxu0 %v1703
      %v1748 = vpop.f32.mrb[0].mxu0
      %v1749 = vadd.f32 0.0, %v1748
      %v1750 = vpop.f32.mrb[0].mxu0
      %v1751 = vpop.f32.mrb[0].mxu0
      %v1752 = vadd.f32 0.0, %v1751
      %v1753 = vpop.f32.mrb[0].mxu0
      %1754 = vmatprep.mubr.bf16.mxu0 0
      %1755 = vmatmul.mubr.bf16.gmra.mrb[0].mxu0 %v1706
      %v1756 = vpop.f32.mrb[0].mxu0
      %v1757 = vadd.f32 0.0, %v1756
      %v1758 = vpop.f32.mrb[0].mxu0
      %v1759 = vpop.f32.mrb[0].mxu0
      %v1760 = vadd.f32 0.0, %v1759
      %v1761 = vpop.f32.mrb[0].mxu0
      %1762 = vmatprep.mubr.bf16.mxu0 0
      %1763 = vmatmul.mubr.bf16.gmra.mrb[0].mxu0 %v1709
      %v1764 = vpop.f32.mrb[0].mxu0
      %v1765 = vadd.f32 0.0, %v1764
      %v1766 = vpop.f32.mrb[0].mxu0
      %v1767 = vpop.f32.mrb[0].mxu0
      %v1768 = vadd.f32 0.0, %v1767
      %v1769 = vpop.f32.mrb[0].mxu0
      %1770 = vmatprep.mubr.bf16.mxu0 0
      %1771 = vmatmul.mubr.bf16.gmra.mrb[0].mxu0 %v1712
      %v1772 = vpop.f32.mrb[0].mxu0
      %v1773 = vadd.f32 0.0, %v1772
      %v1774 = vpop.f32.mrb[0].mxu0
      %v1775 = vpop.f32.mrb[0].mxu0
      %v1776 = vadd.f32 0.0, %v1775
      %v1777 = vpop.f32.mrb[0].mxu0
      %1778 = vdwg.mxu0
      %v1779 = vpack.c.bf16 %v1752, %v1749
      %v1780 = vpack.c.bf16 %v1760, %v1757
      %v1781 = vpack.c.bf16 %v1768, %v1765
      %v1782 = vpack.c.bf16 %v1776, %v1773
      %v1783 = vld [vmem:[%s5] sm:$0xff]
      %v1784 = vld [vmem:[%s5 + $0x8] sm:$0xff]
      %v1785 = vld [vmem:[%s5 + $0x10] sm:$0xff]
      %v1786 = vld [vmem:[%s5 + $0x18] sm:$0xff]
      %v1787 = vld [vmem:[%s5 + $0x20] sm:$0xff]
      %v1788 = vld [vmem:[%s5 + $0x28] sm:$0xff]
      %v1789 = vld [vmem:[%s5 + $0x30] sm:$0xff]
      %v1790 = vld [vmem:[%s5 + $0x38] sm:$0xff]
      %v1791 = vld [vmem:[%s5 + $0x40] sm:$0xff]
      %v1792 = vld [vmem:[%s5 + $0x48] sm:$0xff]
      %v1793 = vld [vmem:[%s5 + $0x50] sm:$0xff]
      %v1794 = vld [vmem:[%s5 + $0x58] sm:$0xff]
      %v1795 = vld [vmem:[%s5 + $0x60] sm:$0xff]
      %v1796 = vld [vmem:[%s5 + $0x68] sm:$0xff]
      %v1797 = vld [vmem:[%s5 + $0x70] sm:$0xff]
      %v1798 = vld [vmem:[%s5 + $0x78] sm:$0xff]
      %v1815 = vunpack.c.l.b16 %v1783
      %v1816 = vunpack.c.h.b16 %v1783
      %v1817 = vunpack.c.l.b16 %v1784
      %v1818 = vunpack.c.h.b16 %v1784
      %v1819 = vunpack.c.l.b16 %v1785
      %v1820 = vunpack.c.h.b16 %v1785
      %v1821 = vunpack.c.l.b16 %v1786
      %v1822 = vunpack.c.h.b16 %v1786
      %v1823 = vunpack.c.l.b16 %v1787
      %v1824 = vunpack.c.h.b16 %v1787
      %v1825 = vunpack.c.l.b16 %v1788
      %v1826 = vunpack.c.h.b16 %v1788
      %v1827 = vunpack.c.l.b16 %v1789
      %v1828 = vunpack.c.h.b16 %v1789
      %v1829 = vunpack.c.l.b16 %v1790
      %v1830 = vunpack.c.h.b16 %v1790
      %v1831 = vunpack.c.l.b16 %v1791
      %v1832 = vunpack.c.h.b16 %v1791
      %v1833 = vunpack.c.l.b16 %v1792
      %v1834 = vunpack.c.h.b16 %v1792
      %v1835 = vunpack.c.l.b16 %v1793
      %v1836 = vunpack.c.h.b16 %v1793
      %v1837 = vunpack.c.l.b16 %v1794
      %v1838 = vunpack.c.h.b16 %v1794
      %v1839 = vunpack.c.l.b16 %v1795
      %v1840 = vunpack.c.h.b16 %v1795
      %v1841 = vunpack.c.l.b16 %v1796
      %v1842 = vunpack.c.h.b16 %v1796
      %v1843 = vunpack.c.l.b16 %v1797
      %v1844 = vunpack.c.h.b16 %v1797
      %v1845 = vunpack.c.l.b16 %v1798
      %v1846 = vunpack.c.h.b16 %v1798
      %v1847 = vpack.c.b16 %v1817, %v1815
      %v1848 = vpack.c.b16 %v1818, %v1816
      %v1849 = vpack.c.b16 %v1821, %v1819
      %v1850 = vpack.c.b16 %v1822, %v1820
      %v1851 = vpack.c.b16 %v1825, %v1823
      %v1852 = vpack.c.b16 %v1826, %v1824
      %v1853 = vpack.c.b16 %v1829, %v1827
      %v1854 = vpack.c.b16 %v1830, %v1828
      %v1855 = vpack.c.b16 %v1833, %v1831
      %v1856 = vpack.c.b16 %v1834, %v1832
      %v1857 = vpack.c.b16 %v1837, %v1835
      %v1858 = vpack.c.b16 %v1838, %v1836
      %v1859 = vpack.c.b16 %v1841, %v1839
      %v1860 = vpack.c.b16 %v1842, %v1840
      %v1861 = vpack.c.b16 %v1845, %v1843
      %v1862 = vpack.c.b16 %v1846, %v1844
      %1879 = vmatprep.subr.bf16.mxu0 %v1848
      %1880 = vmatpush1.bf16.msra.mxu0 %v1847
      %1881 = vmatprep.subr.bf16.mxu0 %v1850
      %1882 = vmatpush1.bf16.msra.mxu0 %v1849
      %1883 = vmatprep.subr.bf16.mxu0 %v1852
      %1884 = vmatpush1.bf16.msra.mxu0 %v1851
      %1885 = vmatprep.subr.bf16.mxu0 %v1854
      %1886 = vmatpush1.bf16.msra.mxu0 %v1853
      %1887 = vmatprep.subr.bf16.mxu0 %v1856
      %1888 = vmatpush1.bf16.msra.mxu0 %v1855
      %1889 = vmatprep.subr.bf16.mxu0 %v1858
      %1890 = vmatpush1.bf16.msra.mxu0 %v1857
      %1891 = vmatprep.subr.bf16.mxu0 %v1860
      %1892 = vmatpush1.bf16.msra.mxu0 %v1859
      %1893 = vmatprep.subr.bf16.mxu0 %v1862
      %1894 = vmatpush1.bf16.msra.mxu0 %v1861
      %1895 = vmatprep.subr.bf16.mxu0 0
      %1896 = vmatpush1.bf16.msra.mxu0 0
      %1897 = vmatprep.subr.bf16.mxu0 0
      %1898 = vmatpush1.bf16.msra.mxu0 0
      %1899 = vmatprep.subr.bf16.mxu0 0
      %1900 = vmatpush1.bf16.msra.mxu0 0
      %1901 = vmatprep.subr.bf16.mxu0 0
      %1902 = vmatpush1.bf16.msra.mxu0 0
      %1903 = vmatprep.subr.bf16.mxu0 0
      %1904 = vmatpush1.bf16.msra.mxu0 0
      %1905 = vmatprep.subr.bf16.mxu0 0
      %1906 = vmatpush1.bf16.msra.mxu0 0
      %1907 = vmatprep.subr.bf16.mxu0 0
      %1908 = vmatpush1.bf16.msra.mxu0 0
      %1909 = vmatprep.subr.bf16.mxu0 0
      %1910 = vmatpush1.bf16.msra.mxu0 0
      %1911 = vmatprep.mubr.bf16.mxu0 0
      %1912 = vmatmul.mubr.bf16.gmra.mrb[0].mxu0 %v1779
      %v1913 = vpop.f32.mrb[0].mxu0
      %v1914 = vadd.f32 0.0, %v1913
      %v1915 = vpop.f32.mrb[0].mxu0
      %v1916 = vadd.f32 0.0, %v1915
      %v1917 = vpop.f32.mrb[0].mxu0
      %v1918 = vadd.f32 0.0, %v1917
      %v1919 = vpop.f32.mrb[0].mxu0
      %v1920 = vadd.f32 0.0, %v1919
      %1921 = vmatprep.mubr.bf16.mxu0 0
      %1922 = vmatmul.mubr.bf16.gmra.mrb[0].mxu0 %v1780
      %v1923 = vpop.f32.mrb[0].mxu0
      %v1924 = vadd.f32 0.0, %v1923
      %v1925 = vpop.f32.mrb[0].mxu0
      %v1926 = vadd.f32 0.0, %v1925
      %v1927 = vpop.f32.mrb[0].mxu0
      %v1928 = vadd.f32 0.0, %v1927
      %v1929 = vpop.f32.mrb[0].mxu0
      %v1930 = vadd.f32 0.0, %v1929
      %1931 = vmatprep.mubr.bf16.mxu0 0
      %1932 = vmatmul.mubr.bf16.gmra.mrb[0].mxu0 %v1781
      %v1933 = vpop.f32.mrb[0].mxu0
      %v1934 = vadd.f32 0.0, %v1933
      %v1935 = vpop.f32.mrb[0].mxu0
      %v1936 = vadd.f32 0.0, %v1935
      %v1937 = vpop.f32.mrb[0].mxu0
      %v1938 = vadd.f32 0.0, %v1937
      %v1939 = vpop.f32.mrb[0].mxu0
      %v1940 = vadd.f32 0.0, %v1939
      %1941 = vmatprep.mubr.bf16.mxu0 0
      %1942 = vmatmul.mubr.bf16.gmra.mrb[0].mxu0 %v1782
      %v1943 = vpop.f32.mrb[0].mxu0
      %v1944 = vadd.f32 0.0, %v1943
      %v1945 = vpop.f32.mrb[0].mxu0
      %v1946 = vadd.f32 0.0, %v1945
      %v1947 = vpop.f32.mrb[0].mxu0
      %v1948 = vadd.f32 0.0, %v1947
      %v1949 = vpop.f32.mrb[0].mxu0
      %v1950 = vadd.f32 0.0, %v1949
      %1951 = vdwg.mxu0
      %v1952 = vld [vmem:[%s6] sm:$0x3]
      %v1954 = vlaneseq
      %v1955 = vshrl.u32 %v1954, 7
      %v1956 = vsub.s32 0, %v1955
      %v1957 = vrot.slane %v1952, %v1956
      %v1958 = vlaneseq
      %v1959 = vshrl.u32 %v1958, 7
      %v1960 = vsub.s32 1, %v1959
      %v1961 = vrot.slane %v1952, %v1960
      %v1964 = vmul.f32 %v1914, %v1957
      %v1965 = vmul.f32 %v1916, %v1961
      %v1966 = vmul.f32 %v1918, %v1957
      %v1967 = vmul.f32 %v1920, %v1961
      %v1968 = vmul.f32 %v1924, %v1957
      %v1969 = vmul.f32 %v1926, %v1961
      %v1970 = vmul.f32 %v1928, %v1957
      %v1971 = vmul.f32 %v1930, %v1961
      %v1972 = vmul.f32 %v1934, %v1957
      %v1973 = vmul.f32 %v1936, %v1961
      %v1974 = vmul.f32 %v1938, %v1957
      %v1975 = vmul.f32 %v1940, %v1961
      %v1976 = vmul.f32 %v1944, %v1957
      %v1977 = vmul.f32 %v1946, %v1961
      %v1978 = vmul.f32 %v1948, %v1957
      %v1979 = vmul.f32 %v1950, %v1961
      %v1980 = vld [vmem:[%s7] sm:$0x3]
      %v1982 = vlaneseq
      %v1983 = vshrl.u32 %v1982, 7
      %v1984 = vsub.s32 0, %v1983
      %v1985 = vrot.slane %v1980, %v1984
      %v1986 = vlaneseq
      %v1987 = vshrl.u32 %v1986, 7
      %v1988 = vsub.s32 1, %v1987
      %v1989 = vrot.slane %v1980, %v1988
      %v1992 = vadd.f32 %v1964, %v1985
      %v1993 = vadd.f32 %v1965, %v1989
      %v1994 = vadd.f32 %v1966, %v1985
      %v1995 = vadd.f32 %v1967, %v1989
      %v1996 = vadd.f32 %v1968, %v1985
      %v1997 = vadd.f32 %v1969, %v1989
      %v1998 = vadd.f32 %v1970, %v1985
      %v1999 = vadd.f32 %v1971, %v1989
      %v2000 = vadd.f32 %v1972, %v1985
      %v2001 = vadd.f32 %v1973, %v1989
      %v2002 = vadd.f32 %v1974, %v1985
      %v2003 = vadd.f32 %v1975, %v1989
      %v2004 = vadd.f32 %v1976, %v1985
      %v2005 = vadd.f32 %v1977, %v1989
      %v2006 = vadd.f32 %v1978, %v1985
      %v2007 = vadd.f32 %v1979, %v1989
      %v2008 = vld [vmem:[%s340] sm:$0xff]
      %v2009 = vld [vmem:[%s340 + $0x8] sm:$0xff]
      %v2010 = vld [vmem:[%s340 + $0x10] sm:$0xff]
      %v2011 = vld [vmem:[%s340 + $0x18] sm:$0xff]
      %v2012 = vld [vmem:[%s340 + $0x20] sm:$0xff]
      %v2013 = vld [vmem:[%s340 + $0x28] sm:$0xff]
      %v2014 = vld [vmem:[%s340 + $0x30] sm:$0xff]
      %v2015 = vld [vmem:[%s340 + $0x38] sm:$0xff]
      %v2016 = vld [vmem:[%s340 + $0x40] sm:$0xff]
      %v2017 = vld [vmem:[%s340 + $0x48] sm:$0xff]
      %v2018 = vld [vmem:[%s340 + $0x50] sm:$0xff]
      %v2019 = vld [vmem:[%s340 + $0x58] sm:$0xff]
      %v2020 = vld [vmem:[%s340 + $0x60] sm:$0xff]
      %v2021 = vld [vmem:[%s340 + $0x68] sm:$0xff]
      %v2022 = vld [vmem:[%s340 + $0x70] sm:$0xff]
      %v2023 = vld [vmem:[%s340 + $0x78] sm:$0xff]
      %v2024 = vadd.f32 %v1992, %v2008
      %v2025 = vadd.f32 %v1993, %v2009
      %v2026 = vadd.f32 %v1994, %v2010
      %v2027 = vadd.f32 %v1995, %v2011
      %v2028 = vadd.f32 %v1996, %v2012
      %v2029 = vadd.f32 %v1997, %v2013
      %v2030 = vadd.f32 %v1998, %v2014
      %v2031 = vadd.f32 %v1999, %v2015
      %v2032 = vadd.f32 %v2000, %v2016
      %v2033 = vadd.f32 %v2001, %v2017
      %v2034 = vadd.f32 %v2002, %v2018
      %v2035 = vadd.f32 %v2003, %v2019
      %v2036 = vadd.f32 %v2004, %v2020
      %v2037 = vadd.f32 %v2005, %v2021
      %v2038 = vadd.f32 %v2006, %v2022
      %v2039 = vadd.f32 %v2007, %v2023
      %2040 = vst [vmem:[%s345] sm:$0xff] %v2024
      %2041 = vst [vmem:[%s345 + $0x8] sm:$0xff] %v2025
      %2042 = vst [vmem:[%s345 + $0x10] sm:$0xff] %v2026
      %2043 = vst [vmem:[%s345 + $0x18] sm:$0xff] %v2027
      %2044 = vst [vmem:[%s345 + $0x20] sm:$0xff] %v2028
      %2045 = vst [vmem:[%s345 + $0x28] sm:$0xff] %v2029
      %2046 = vst [vmem:[%s345 + $0x30] sm:$0xff] %v2030
      %2047 = vst [vmem:[%s345 + $0x38] sm:$0xff] %v2031
      %2048 = vst [vmem:[%s345 + $0x40] sm:$0xff] %v2032
      %2049 = vst [vmem:[%s345 + $0x48] sm:$0xff] %v2033
      %2050 = vst [vmem:[%s345 + $0x50] sm:$0xff] %v2034
      %2051 = vst [vmem:[%s345 + $0x58] sm:$0xff] %v2035
      %2052 = vst [vmem:[%s345 + $0x60] sm:$0xff] %v2036
      %2053 = vst [vmem:[%s345 + $0x68] sm:$0xff] %v2037
      %2054 = vst [vmem:[%s345 + $0x70] sm:$0xff] %v2038
      %2055 = vst [vmem:[%s345 + $0x78] sm:$0xff] %v2039
      %p2056 = scmp.lt.s32.totalorder %s19, 1
      %s2057 = scalar_select %p2056, %s19, 1
      %s2058 = smul.addr %s2057, 16
      %s2059 = smul.addr %s2058, 8
      %s2060 = scalar_lea.vmem %s8, %s2059
      // Predicated region
      $region53: #{downsample_block_fuse.6} parent=51 // pred_check
        %p2061 = pneg %p220
      $region54: #{downsample_block_fuse.6} parent=51 // pred_check_branch
        %2063 = sbr.rel (%p2061) target = $region56
      $region55: #{downsample_block_fuse.6} parent=51 // pred_region
        _
      $region56: #{downsample_block_fuse.6} parent=51 // pred_fallthru
        _
    $region52: #{downsample_block_fuse.6} parent=5 // pred_fallthru
      _
    %p2064 = scmp.le.s32.totalorder 2, %s14
    // Predicated region
    $region57: #{downsample_block_fuse.6} parent=5 // pred_check
      %p2065 = pneg %p2064
    $region58: #{downsample_block_fuse.6} parent=5 // pred_check_branch
      %2067 = sbr.rel (%p2065) target = $region60
    $region59: #{downsample_block_fuse.6} parent=5 // pred_region
      %s2068 = ssub.s32 %s14, 2
      // Predicated region
      $region61: #{downsample_block_fuse.6} parent=59 // pred_check
        %p2069 = pneg %p226
      $region62: #{downsample_block_fuse.6} parent=59 // pred_check_branch
        %2071 = sbr.rel (%p2069) target = $region64
      $region63: #{downsample_block_fuse.6} parent=59 // pred_region
        %p2072 = scmp.lt.s32.totalorder %s20, 1
        %s2073 = scalar_select %p2072, %s20, 1
        %s2074 = smul.addr %s2073, 16
        %s2075 = smul.addr %s2074, 8
        %s2076 = scalar_lea.vmem %s8, %s2075
      $region64: #{downsample_block_fuse.6} parent=59 // pred_fallthru
        _
    $region60: #{downsample_block_fuse.6} parent=5 // pred_fallthru
      _
  $region6: #{downsample_block_fuse.6} parent=0 // loop_footer
    %s18 = sadd.s32 1, %s14
  $region7: #{downsample_block_fuse.6} parent=0 // loop_footer_branch
    %13 = sbr.rel target = $region3
  $region8: #{downsample_block_fuse.6} parent=0 // loop_exit
    _

// kernel: downsample_block_fuse.7
$region0: #{downsample_block_fuse.7}
  #allocation0 [shape = 'u32[]', space=smem, size = 0x4, offset = 0x4, fixed_abs, tag = 'smem constant byte address 0x4 - core index']
  #allocation1 [shape = 'u32[144,128]{1,0:T(1,128)}', space=vmem, size = 0x12000, scoped, tag = 'internal scratch']
  #allocation2 [shape = 'f32[3,80,64]{2,1,0:T(8,128)}', space=vmem, size = 0x1e000, scoped, tag = 'scratch operand']
  #allocation3 [shape = 'f32[100,64]{1,0:T(8,128)}', space=vmem, size = 0xd000, scoped, tag = 'scratch operand']
  %s0 = inlined_call_operand.vmem [shape: f32[2,100,256], index: 0, kind: input, shape index: {}]
  %s1 = inlined_call_operand.vmem [shape: bf16[9,256,64], index: 1, kind: input, shape index: {}]
  %s2 = inlined_call_operand.vmem [shape: f32[1,64], index: 2, kind: input, shape index: {}, may-alias: {2,5}]
  %s3 = inlined_call_operand.vmem [shape: f32[1,64], index: 3, kind: input, shape index: {}]
  %s4 = inlined_call_operand.vmem [shape: bf16[9,64,64], index: 4, kind: input, shape index: {}]
  %s5 = inlined_call_operand.vmem [shape: f32[1,64], index: 5, kind: input, shape index: {}, may-alias: {2,5}]
  %s6 = inlined_call_operand.vmem [shape: f32[1,64], index: 6, kind: input, shape index: {}]
  %s7 = inlined_call_operand.vmem [shape: f32[2,64,64], index: 7, kind: output, shape index: {}]
  %s8 = sld [smem:[#allocation0]]
  $region61: #{downsample_block_fuse.7} parent=0
    _
  %s10 = ssub.s32 1, %s8
  %s11 = scalar_select 0, %s10, %s8
  loop: start=0, step=1, limit=4
  $region2: #{downsample_block_fuse.7} parent=0 // loop_pre_header
    _
  $region3: #{downsample_block_fuse.7} parent=0 // loop_header
    %s13 = sphi 0, %s17
    %p14 = scmp.ge.s32.totalorder %s13, 4
    %s23 = sphi 0, %s25
    %s26 = sphi 0, %s23
    %s27 = sphi 0, %s26
    %s43 = sphi 0, %s27
    %s47 = sphi 0, %s47
    %s49 = sphi 0, %s47
    %s50 = sphi 0, %s49
    %s64 = sphi 0, %s50
    %s68 = sphi 0, %s68
    %s70 = sphi 0, %s68
    %s71 = sphi 0, %s70
    %s85 = sphi 0, %s71
    %s89 = sphi 0, %s89
    %s91 = sphi 0, %s89
    %s92 = sphi 0, %s91
    %s106 = sphi 0, %s92
    %s110 = sphi 0, %s110
    %s112 = sphi 0, %s110
    %s113 = sphi 0, %s112
    %s127 = sphi 0, %s113
    %s131 = sphi 0, %s131
    %s133 = sphi 0, %s131
    %s134 = sphi 0, %s133
    %s148 = sphi 0, %s134
    %s152 = sphi 0, %s152
    %s154 = sphi 0, %s152
    %s155 = sphi 0, %s154
    %s169 = sphi 0, %s155
    %s175 = sphi 0, %s177
    %s178 = sphi 0, %s175
    %s179 = sphi 0, %s178
    %s195 = sphi 0, %s179
  $region4: #{downsample_block_fuse.7} parent=0 // loop_header_branch
    %16 = sbr.rel (%p14) target = $region8
  $region5: #{downsample_block_fuse.7} parent=0 // loop_body
    %s18 = ssub.s32 %s13, 1
    %s19 = ssub.s32 %s13, 2
    %s20 = sadd.s32 %s13, 1
    %s21 = ssub.s32 %s13, %s20
    %p22 = scmp.eq.s32.totalorder %s21, 0
    %s24 = sadd.s32 %s23, 1
    %s25 = scalar_select %p22, %s23, %s24
    %p28 = pneg %p22
    %p29 = scmp.eq.s32.totalorder %s13, 1
    %p30 = por %p28, %p29
    %p31 = scmp.ne.s32.totalorder %s23, %s26
    %p32 = scmp.eq.s32.totalorder %s13, 0
    %p33 = por %p31, %p32
    %p34 = scmp.ne.s32.totalorder %s23, %s26
    %p35 = scmp.eq.s32.totalorder %s18, 1
    %p36 = por %p34, %p35
    %p37 = scmp.ne.s32.totalorder %s26, %s27
    %p38 = scmp.eq.s32.totalorder %s18, 0
    %p39 = por %p37, %p38
    %p40 = scmp.ne.s32.totalorder %s26, %s27
    %p41 = scmp.eq.s32.totalorder %s19, 1
    %p42 = por %p40, %p41
    %p44 = scmp.ne.s32.totalorder %s27, %s43
    %p45 = scmp.eq.s32.totalorder %s19, 0
    %p46 = por %p44, %p45
    %s48 = sadd.s32 %s47, 1
    %p51 = scmp.eq.s32.totalorder %s13, 1
    %p52 = scmp.ne.s32.totalorder %s47, %s49
    %p53 = scmp.eq.s32.totalorder %s13, 0
    %p54 = por %p52, %p53
    %p55 = scmp.ne.s32.totalorder %s47, %s49
    %p56 = scmp.eq.s32.totalorder %s18, 1
    %p57 = por %p55, %p56
    %p58 = scmp.ne.s32.totalorder %s49, %s50
    %p59 = scmp.eq.s32.totalorder %s18, 0
    %p60 = por %p58, %p59
    %p61 = scmp.ne.s32.totalorder %s49, %s50
    %p62 = scmp.eq.s32.totalorder %s19, 1
    %p63 = por %p61, %p62
    %p65 = scmp.ne.s32.totalorder %s50, %s64
    %p66 = scmp.eq.s32.totalorder %s19, 0
    %p67 = por %p65, %p66
    %s69 = sadd.s32 %s68, 1
    %p72 = scmp.eq.s32.totalorder %s13, 1
    %p73 = scmp.ne.s32.totalorder %s68, %s70
    %p74 = scmp.eq.s32.totalorder %s13, 0
    %p75 = por %p73, %p74
    %p76 = scmp.ne.s32.totalorder %s68, %s70
    %p77 = scmp.eq.s32.totalorder %s18, 1
    %p78 = por %p76, %p77
    %p79 = scmp.ne.s32.totalorder %s70, %s71
    %p80 = scmp.eq.s32.totalorder %s18, 0
    %p81 = por %p79, %p80
    %p82 = scmp.ne.s32.totalorder %s70, %s71
    %p83 = scmp.eq.s32.totalorder %s19, 1
    %p84 = por %p82, %p83
    %p86 = scmp.ne.s32.totalorder %s71, %s85
    %p87 = scmp.eq.s32.totalorder %s19, 0
    %p88 = por %p86, %p87
    %s90 = sadd.s32 %s89, 1
    %p93 = scmp.eq.s32.totalorder %s13, 1
    %p94 = scmp.ne.s32.totalorder %s89, %s91
    %p95 = scmp.eq.s32.totalorder %s13, 0
    %p96 = por %p94, %p95
    %p97 = scmp.ne.s32.totalorder %s89, %s91
    %p98 = scmp.eq.s32.totalorder %s18, 1
    %p99 = por %p97, %p98
    %p100 = scmp.ne.s32.totalorder %s91, %s92
    %p101 = scmp.eq.s32.totalorder %s18, 0
    %p102 = por %p100, %p101
    %p103 = scmp.ne.s32.totalorder %s91, %s92
    %p104 = scmp.eq.s32.totalorder %s19, 1
    %p105 = por %p103, %p104
    %p107 = scmp.ne.s32.totalorder %s92, %s106
    %p108 = scmp.eq.s32.totalorder %s19, 0
    %p109 = por %p107, %p108
    %s111 = sadd.s32 %s110, 1
    %p114 = scmp.eq.s32.totalorder %s13, 1
    %p115 = scmp.ne.s32.totalorder %s110, %s112
    %p116 = scmp.eq.s32.totalorder %s13, 0
    %p117 = por %p115, %p116
    %p118 = scmp.ne.s32.totalorder %s110, %s112
    %p119 = scmp.eq.s32.totalorder %s18, 1
    %p120 = por %p118, %p119
    %p121 = scmp.ne.s32.totalorder %s112, %s113
    %p122 = scmp.eq.s32.totalorder %s18, 0
    %p123 = por %p121, %p122
    %p124 = scmp.ne.s32.totalorder %s112, %s113
    %p125 = scmp.eq.s32.totalorder %s19, 1
    %p126 = por %p124, %p125
    %p128 = scmp.ne.s32.totalorder %s113, %s127
    %p129 = scmp.eq.s32.totalorder %s19, 0
    %p130 = por %p128, %p129
    %s132 = sadd.s32 %s131, 1
    %p135 = scmp.eq.s32.totalorder %s13, 1
    %p136 = scmp.ne.s32.totalorder %s131, %s133
    %p137 = scmp.eq.s32.totalorder %s13, 0
    %p138 = por %p136, %p137
    %p139 = scmp.ne.s32.totalorder %s131, %s133
    %p140 = scmp.eq.s32.totalorder %s18, 1
    %p141 = por %p139, %p140
    %p142 = scmp.ne.s32.totalorder %s133, %s134
    %p143 = scmp.eq.s32.totalorder %s18, 0
    %p144 = por %p142, %p143
    %p145 = scmp.ne.s32.totalorder %s133, %s134
    %p146 = scmp.eq.s32.totalorder %s19, 1
    %p147 = por %p145, %p146
    %p149 = scmp.ne.s32.totalorder %s134, %s148
    %p150 = scmp.eq.s32.totalorder %s19, 0
    %p151 = por %p149, %p150
    %s153 = sadd.s32 %s152, 1
    %p156 = scmp.eq.s32.totalorder %s13, 1
    %p157 = scmp.ne.s32.totalorder %s152, %s154
    %p158 = scmp.eq.s32.totalorder %s13, 0
    %p159 = por %p157, %p158
    %p160 = scmp.ne.s32.totalorder %s152, %s154
    %p161 = scmp.eq.s32.totalorder %s18, 1
    %p162 = por %p160, %p161
    %p163 = scmp.ne.s32.totalorder %s154, %s155
    %p164 = scmp.eq.s32.totalorder %s18, 0
    %p165 = por %p163, %p164
    %p166 = scmp.ne.s32.totalorder %s154, %s155
    %p167 = scmp.eq.s32.totalorder %s19, 1
    %p168 = por %p166, %p167
    %p170 = scmp.ne.s32.totalorder %s155, %s169
    %p171 = scmp.eq.s32.totalorder %s19, 0
    %p172 = por %p170, %p171
    %s173 = ssub.s32 %s13, %s20
    %p174 = scmp.eq.s32.totalorder %s173, 0
    %s176 = sadd.s32 %s175, 1
    %s177 = scalar_select %p174, %s175, %s176
    %p180 = pneg %p174
    %p181 = scmp.eq.s32.totalorder %s13, 1
    %p182 = por %p180, %p181
    %p183 = scmp.ne.s32.totalorder %s175, %s178
    %p184 = scmp.eq.s32.totalorder %s13, 0
    %p185 = por %p183, %p184
    %p186 = scmp.ne.s32.totalorder %s175, %s178
    %p187 = scmp.eq.s32.totalorder %s18, 1
    %p188 = por %p186, %p187
    %p189 = scmp.ne.s32.totalorder %s178, %s179
    %p190 = scmp.eq.s32.totalorder %s18, 0
    %p191 = por %p189, %p190
    %p192 = scmp.ne.s32.totalorder %s178, %s179
    %p193 = scmp.eq.s32.totalorder %s19, 1
    %p194 = por %p192, %p193
    %p196 = scmp.ne.s32.totalorder %s179, %s195
    %p197 = scmp.eq.s32.totalorder %s19, 0
    %p198 = por %p196, %p197
    %p199 = scmp.le.s32.totalorder 1, %s13
    %p200 = scmp.lt.s32.totalorder %s13, 3
    %p201 = pnand %p199, %p200
    %p202 = pneg %p201
    // Predicated region
    $region9: #{downsample_block_fuse.7} parent=5 // pred_check
      _
    $region10: #{downsample_block_fuse.7} parent=5 // pred_check_branch
      %204 = sbr.rel (%p201) target = $region12
    $region11: #{downsample_block_fuse.7} parent=5 // pred_region
      %s205 = ssub.s32 %s13, 1
      // Predicated region
      $region13: #{downsample_block_fuse.7} parent=11 // pred_check
        %p206 = pneg %p60
      $region14: #{downsample_block_fuse.7} parent=11 // pred_check_branch
        %208 = sbr.rel (%p206) target = $region16
      $region15: #{downsample_block_fuse.7} parent=11 // pred_region
        _
      $region16: #{downsample_block_fuse.7} parent=11 // pred_fallthru
        _
      // Predicated region
      $region17: #{downsample_block_fuse.7} parent=11 // pred_check
        %p209 = pneg %p81
      $region18: #{downsample_block_fuse.7} parent=11 // pred_check_branch
        %211 = sbr.rel (%p209) target = $region20
      $region19: #{downsample_block_fuse.7} parent=11 // pred_region
        _
      $region20: #{downsample_block_fuse.7} parent=11 // pred_fallthru
        _
      // Predicated region
      $region21: #{downsample_block_fuse.7} parent=11 // pred_check
        %p212 = pneg %p102
      $region22: #{downsample_block_fuse.7} parent=11 // pred_check_branch
        %214 = sbr.rel (%p212) target = $region24
      $region23: #{downsample_block_fuse.7} parent=11 // pred_region
        _
      $region24: #{downsample_block_fuse.7} parent=11 // pred_fallthru
        _
      // Predicated region
      $region25: #{downsample_block_fuse.7} parent=11 // pred_check
        %p215 = pneg %p123
      $region26: #{downsample_block_fuse.7} parent=11 // pred_check_branch
        %217 = sbr.rel (%p215) target = $region28
      $region27: #{downsample_block_fuse.7} parent=11 // pred_region
        _
      $region28: #{downsample_block_fuse.7} parent=11 // pred_fallthru
        _
      // Predicated region
      $region29: #{downsample_block_fuse.7} parent=11 // pred_check
        %p218 = pneg %p144
      $region30: #{downsample_block_fuse.7} parent=11 // pred_check_branch
        %220 = sbr.rel (%p218) target = $region32
      $region31: #{downsample_block_fuse.7} parent=11 // pred_region
        _
      $region32: #{downsample_block_fuse.7} parent=11 // pred_fallthru
        _
      // Predicated region
      $region33: #{downsample_block_fuse.7} parent=11 // pred_check
        %p221 = pneg %p165
      $region34: #{downsample_block_fuse.7} parent=11 // pred_check_branch
        %223 = sbr.rel (%p221) target = $region36
      $region35: #{downsample_block_fuse.7} parent=11 // pred_region
        _
      $region36: #{downsample_block_fuse.7} parent=11 // pred_fallthru
        _
    $region12: #{downsample_block_fuse.7} parent=5 // pred_fallthru
      _
    %p224 = scmp.lt.s32.totalorder %s13, 2
    // Predicated region
    $region37: #{downsample_block_fuse.7} parent=5 // pred_check
      %p225 = pneg %p224
    $region38: #{downsample_block_fuse.7} parent=5 // pred_check_branch
      %227 = sbr.rel (%p225) target = $region40
    $region39: #{downsample_block_fuse.7} parent=5 // pred_region
      // Predicated region
      $region41: #{downsample_block_fuse.7} parent=39 // pred_check
        %p228 = pneg %p33
      $region42: #{downsample_block_fuse.7} parent=39 // pred_check_branch
        %230 = sbr.rel (%p228) target = $region44
      $region43: #{downsample_block_fuse.7} parent=39 // pred_region
        %p231 = scmp.lt.s32.totalorder %s13, 1
        %s232 = scalar_select %p231, %s13, 1
        %s233 = smul.addr %s232, 26
        %s234 = smul.addr %s233, 8
        %s235 = scalar_lea.vmem %s0, %s234
      $region44: #{downsample_block_fuse.7} parent=39 // pred_fallthru
        _
    $region40: #{downsample_block_fuse.7} parent=5 // pred_fallthru
      _
    %p236 = scmp.le.s32.totalorder 1, %s13
    %p237 = scmp.lt.s32.totalorder %s13, 3
    %p238 = pnand %p236, %p237
    %p239 = pneg %p238
    // Predicated region
    $region45: #{downsample_block_fuse.7} parent=5 // pred_check
      _
    $region46: #{downsample_block_fuse.7} parent=5 // pred_check_branch
      %241 = sbr.rel (%p238) target = $region48
    $region47: #{downsample_block_fuse.7} parent=5 // pred_region
      %s242 = ssub.s32 %s13, 1
      %p243 = scmp.lt.s32.totalorder %s18, 1
      %s244 = scalar_select %p243, %s18, 1
      %s245 = smul.addr %s244, 26
      %s246 = smul.addr %s245, 8
      %s247 = scalar_lea.vmem %s0, %s246
      %p248 = pneg %p39
      %p249 = pneg %p36
      %p250 = pneg %p60
      %p251 = pneg %p57
      %p252 = pneg %p81
      %p253 = pneg %p78
      %p254 = pneg %p102
      %p255 = pneg %p99
      %p256 = pneg %p123
      %p257 = pneg %p120
      %p258 = pneg %p144
      %p259 = pneg %p141
      %p260 = pneg %p165
      %p261 = pneg %p162
      %p262 = pneg %p191
      %p263 = pneg %p188
      %p264 = scmp.lt.s32.totalorder %s18, 1
      %s265 = scalar_select %p264, %s18, 1
      %s266 = smul.addr %s265, 8
      %s267 = smul.addr %s266, 8
      %s268 = scalar_lea.vmem %s7, %s267
      %p269 = scmp.lt.s32.totalorder %s18, 1
      %s270 = scalar_select %p269, %s18, 1
      %s271 = smul.addr %s270, 26
      %s272 = smul.addr %s271, 8
      %s273 = scalar_lea.vmem %s0, %s272
      %p274 = scmp.lt.s32.totalorder %s18, 1
      %s275 = scalar_select %p274, %s18, 1
      %s276 = smul.addr %s275, 8
      %s277 = smul.addr %s276, 8
      %s278 = scalar_lea.vmem %s7, %s277
      %vm280 = vcmask 523264
      %281 = vst.msk [vmem:[#allocation3] sm:$0xff] %vm280, 0.0
      %282 = vst.msk [vmem:[#allocation3 + $0x8] sm:$0xff] %vm280, 0.0
      %283 = vst.msk [vmem:[#allocation3 + $0x10] sm:$0xff] %vm280, 0.0
      %284 = vst.msk [vmem:[#allocation3 + $0x18] sm:$0xff] %vm280, 0.0
      %285 = vst.msk [vmem:[#allocation3 + $0x20] sm:$0xff] %vm280, 0.0
      %286 = vst.msk [vmem:[#allocation3 + $0x28] sm:$0xff] %vm280, 0.0
      %287 = vst.msk [vmem:[#allocation3 + $0x30] sm:$0xff] %vm280, 0.0
      %288 = vst.msk [vmem:[#allocation3 + $0x38] sm:$0xff] %vm280, 0.0
      %289 = vst.msk [vmem:[#allocation3 + $0x40] sm:$0xff] %vm280, 0.0
      %290 = vst.msk [vmem:[#allocation3 + $0x48] sm:$0xff] %vm280, 0.0
      %291 = vst.msk [vmem:[#allocation3 + $0x50] sm:$0xff] %vm280, 0.0
      %292 = vst.msk [vmem:[#allocation3 + $0x58] sm:$0xff] %vm280, 0.0
      %vm293 = vcmask 519168
      %294 = vst.msk [vmem:[#allocation3 + $0x60] sm:$0xf] %vm293, 0.0
      %295 = vst.msk [vmem:[#allocation2] sm:$0xff] %vm280, 0.0
      %296 = vst.msk [vmem:[#allocation2 + $0x8] sm:$0xff] %vm280, 0.0
      %297 = vst.msk [vmem:[#allocation2 + $0x10] sm:$0xff] %vm280, 0.0
      %298 = vst.msk [vmem:[#allocation2 + $0x18] sm:$0xff] %vm280, 0.0
      %299 = vst.msk [vmem:[#allocation2 + $0x20] sm:$0xff] %vm280, 0.0
      %300 = vst.msk [vmem:[#allocation2 + $0x28] sm:$0xff] %vm280, 0.0
      %301 = vst.msk [vmem:[#allocation2 + $0x30] sm:$0xff] %vm280, 0.0
      %302 = vst.msk [vmem:[#allocation2 + $0x38] sm:$0xff] %vm280, 0.0
      %303 = vst.msk [vmem:[#allocation2 + $0x40] sm:$0xff] %vm280, 0.0
      %304 = vst.msk [vmem:[#allocation2 + $0x48] sm:$0xff] %vm280, 0.0
      %305 = vst.msk [vmem:[#allocation2 + $0x50] sm:$0xff] %vm280, 0.0
      %306 = vst.msk [vmem:[#allocation2 + $0x58] sm:$0xff] %vm280, 0.0
      %307 = vst.msk [vmem:[#allocation2 + $0x60] sm:$0xff] %vm280, 0.0
      %308 = vst.msk [vmem:[#allocation2 + $0x68] sm:$0xff] %vm280, 0.0
      %309 = vst.msk [vmem:[#allocation2 + $0x70] sm:$0xff] %vm280, 0.0
      %310 = vst.msk [vmem:[#allocation2 + $0x78] sm:$0xff] %vm280, 0.0
      %311 = vst.msk [vmem:[#allocation2 + $0x80] sm:$0xff] %vm280, 0.0
      %312 = vst.msk [vmem:[#allocation2 + $0x88] sm:$0xff] %vm280, 0.0
      %313 = vst.msk [vmem:[#allocation2 + $0x90] sm:$0xff] %vm280, 0.0
      %314 = vst.msk [vmem:[#allocation2 + $0x98] sm:$0xff] %vm280, 0.0
      %315 = vst.msk [vmem:[#allocation2 + $0xa0] sm:$0xff] %vm280, 0.0
      %316 = vst.msk [vmem:[#allocation2 + $0xa8] sm:$0xff] %vm280, 0.0
      %317 = vst.msk [vmem:[#allocation2 + $0xb0] sm:$0xff] %vm280, 0.0
      %318 = vst.msk [vmem:[#allocation2 + $0xb8] sm:$0xff] %vm280, 0.0
      %319 = vst.msk [vmem:[#allocation2 + $0xc0] sm:$0xff] %vm280, 0.0
      %320 = vst.msk [vmem:[#allocation2 + $0xc8] sm:$0xff] %vm280, 0.0
      %321 = vst.msk [vmem:[#allocation2 + $0xd0] sm:$0xff] %vm280, 0.0
      %322 = vst.msk [vmem:[#allocation2 + $0xd8] sm:$0xff] %vm280, 0.0
      %323 = vst.msk [vmem:[#allocation2 + $0xe0] sm:$0xff] %vm280, 0.0
      %324 = vst.msk [vmem:[#allocation2 + $0xe8] sm:$0xff] %vm280, 0.0
      %v325 = vld [vmem:[%s273] sm:$0xff]
      %v326 = vld [vmem:[%s273 + $0x8] sm:$0xff]
      %v327 = vld [vmem:[%s273 + $0x10] sm:$0xff]
      %v328 = vld [vmem:[%s273 + $0x18] sm:$0xff]
      %v329 = vld [vmem:[%s273 + $0x20] sm:$0xff]
      %v330 = vld [vmem:[%s273 + $0x28] sm:$0xff]
      %v331 = vld [vmem:[%s273 + $0x30] sm:$0xff]
      %v332 = vld [vmem:[%s273 + $0x38] sm:$0xff]
      %v333 = vld [vmem:[%s273 + $0x40] sm:$0xff]
      %v334 = vld [vmem:[%s273 + $0x48] sm:$0xff]
      %v335 = vld [vmem:[%s273 + $0x50] sm:$0xff]
      %v336 = vld [vmem:[%s273 + $0x58] sm:$0xff]
      %v337 = vld [vmem:[%s273 + $0x60] sm:$0xff]
      %v338 = vld [vmem:[%s273 + $0x68] sm:$0xff]
      %v339 = vld [vmem:[%s273 + $0x70] sm:$0xff]
      %v340 = vld [vmem:[%s273 + $0x78] sm:$0xff]
      %v341 = vld [vmem:[%s273 + $0x80] sm:$0xff]
      %v342 = vld [vmem:[%s273 + $0x88] sm:$0xff]
      %v343 = vld [vmem:[%s273 + $0x90] sm:$0xff]
      %v344 = vld [vmem:[%s273 + $0x98] sm:$0xff]
      %v345 = vpack.c.bf16 %v327, %v325
      %v346 = vpack.c.bf16 %v328, %v326
      %v347 = vpack.c.bf16 %v331, %v329
      %v348 = vpack.c.bf16 %v332, %v330
      %v349 = vpack.c.bf16 %v335, %v333
      %v350 = vpack.c.bf16 %v336, %v334
      %v351 = vpack.c.bf16 %v339, %v337
      %v352 = vpack.c.bf16 %v340, %v338
      %v353 = vpack.c.bf16 %v343, %v341
      %v354 = vpack.c.bf16 %v344, %v342
      %v355 = vld [vmem:[#allocation2] sm:$0xff]
      %v356 = vld [vmem:[#allocation2 + $0x8] sm:$0xff]
      %v357 = vld [vmem:[#allocation2 + $0x10] sm:$0xff]
      %v358 = vld [vmem:[#allocation2 + $0x18] sm:$0xff]
      %v359 = vld [vmem:[#allocation2 + $0x20] sm:$0xff]
      %v360 = vld [vmem:[#allocation2 + $0x28] sm:$0xff]
      %v361 = vld [vmem:[#allocation2 + $0x30] sm:$0xff]
      %v362 = vld [vmem:[#allocation2 + $0x38] sm:$0xff]
      %v363 = vld [vmem:[#allocation2 + $0x40] sm:$0xff]
      %v364 = vld [vmem:[#allocation2 + $0x48] sm:$0xff]
      %v365 = vld [vmem:[%s1] sm:$0xf]
      %v366 = vld [vmem:[%s1 + $0x4] sm:$0xf]
      %v367 = vld [vmem:[%s1 + $0x8] sm:$0xf]
      %v368 = vld [vmem:[%s1 + $0xc] sm:$0xf]
      %v369 = vld [vmem:[%s1 + $0x10] sm:$0xf]
      %v370 = vld [vmem:[%s1 + $0x14] sm:$0xf]
      %v371 = vld [vmem:[%s1 + $0x18] sm:$0xf]
      %v372 = vld [vmem:[%s1 + $0x1c] sm:$0xf]
      %v373 = vld [vmem:[%s1 + $0x20] sm:$0xf]
      %v374 = vld [vmem:[%s1 + $0x24] sm:$0xf]
      %v375 = vld [vmem:[%s1 + $0x28] sm:$0xf]
      %v376 = vld [vmem:[%s1 + $0x2c] sm:$0xf]
      %v377 = vld [vmem:[%s1 + $0x30] sm:$0xf]
      %v378 = vld [vmem:[%s1 + $0x34] sm:$0xf]
      %v379 = vld [vmem:[%s1 + $0x38] sm:$0xf]
      %v380 = vld [vmem:[%s1 + $0x3c] sm:$0xf]
      %v381 = vld [vmem:[%s1 + $0x40] sm:$0xf]
      %v382 = vld [vmem:[%s1 + $0x44] sm:$0xf]
      %v383 = vld [vmem:[%s1 + $0x48] sm:$0xf]
      %v384 = vld [vmem:[%s1 + $0x4c] sm:$0xf]
      %v385 = vld [vmem:[%s1 + $0x50] sm:$0xf]
      %v386 = vld [vmem:[%s1 + $0x54] sm:$0xf]
      %v387 = vld [vmem:[%s1 + $0x58] sm:$0xf]
      %v388 = vld [vmem:[%s1 + $0x5c] sm:$0xf]
      %v389 = vld [vmem:[%s1 + $0x60] sm:$0xf]
      %v390 = vld [vmem:[%s1 + $0x64] sm:$0xf]
      %v391 = vld [vmem:[%s1 + $0x68] sm:$0xf]
      %v392 = vld [vmem:[%s1 + $0x6c] sm:$0xf]
      %v393 = vld [vmem:[%s1 + $0x70] sm:$0xf]
      %v394 = vld [vmem:[%s1 + $0x74] sm:$0xf]
      %v395 = vld [vmem:[%s1 + $0x78] sm:$0xf]
      %v396 = vld [vmem:[%s1 + $0x7c] sm:$0xf]
      %v429 = vunpack.c.l.b16 %v365
      %v430 = vunpack.c.l.b16 %v366
      %v431 = vunpack.c.l.b16 %v367
      %v432 = vunpack.c.l.b16 %v368
      %v433 = vunpack.c.l.b16 %v369
      %v434 = vunpack.c.l.b16 %v370
      %v435 = vunpack.c.l.b16 %v371
      %v436 = vunpack.c.l.b16 %v372
      %v437 = vunpack.c.l.b16 %v373
      %v438 = vunpack.c.l.b16 %v374
      %v439 = vunpack.c.l.b16 %v375
      %v440 = vunpack.c.l.b16 %v376
      %v441 = vunpack.c.l.b16 %v377
      %v442 = vunpack.c.l.b16 %v378
      %v443 = vunpack.c.l.b16 %v379
      %v444 = vunpack.c.l.b16 %v380
      %v445 = vunpack.c.l.b16 %v381
      %v446 = vunpack.c.l.b16 %v382
      %v447 = vunpack.c.l.b16 %v383
      %v448 = vunpack.c.l.b16 %v384
      %v449 = vunpack.c.l.b16 %v385
      %v450 = vunpack.c.l.b16 %v386
      %v451 = vunpack.c.l.b16 %v387
      %v452 = vunpack.c.l.b16 %v388
      %v453 = vunpack.c.l.b16 %v389
      %v454 = vunpack.c.l.b16 %v390
      %v455 = vunpack.c.l.b16 %v391
      %v456 = vunpack.c.l.b16 %v392
      %v457 = vunpack.c.l.b16 %v393
      %v458 = vunpack.c.l.b16 %v394
      %v459 = vunpack.c.l.b16 %v395
      %v460 = vunpack.c.l.b16 %v396
      %v461 = vpack.c.b16 %v430, %v429
      %v462 = vpack.c.b16 %v432, %v431
      %v463 = vpack.c.b16 %v434, %v433
      %v464 = vpack.c.b16 %v436, %v435
      %v465 = vpack.c.b16 %v438, %v437
      %v466 = vpack.c.b16 %v440, %v439
      %v467 = vpack.c.b16 %v442, %v441
      %v468 = vpack.c.b16 %v444, %v443
      %v469 = vpack.c.b16 %v446, %v445
      %v470 = vpack.c.b16 %v448, %v447
      %v471 = vpack.c.b16 %v450, %v449
      %v472 = vpack.c.b16 %v452, %v451
      %v473 = vpack.c.b16 %v454, %v453
      %v474 = vpack.c.b16 %v456, %v455
      %v475 = vpack.c.b16 %v458, %v457
      %v476 = vpack.c.b16 %v460, %v459
      %493 = vmatprep.subr.bf16.mxu0 0
      %494 = vmatpush1.bf16.msra.mxu0 %v461
      %495 = vmatprep.subr.bf16.mxu0 0
      %496 = vmatpush1.bf16.msra.mxu0 %v462
      %497 = vmatprep.subr.bf16.mxu0 0
      %498 = vmatpush1.bf16.msra.mxu0 %v463
      %499 = vmatprep.subr.bf16.mxu0 0
      %500 = vmatpush1.bf16.msra.mxu0 %v464
      %501 = vmatprep.subr.bf16.mxu0 0
      %502 = vmatpush1.bf16.msra.mxu0 %v465
      %503 = vmatprep.subr.bf16.mxu0 0
      %504 = vmatpush1.bf16.msra.mxu0 %v466
      %505 = vmatprep.subr.bf16.mxu0 0
      %506 = vmatpush1.bf16.msra.mxu0 %v467
      %507 = vmatprep.subr.bf16.mxu0 0
      %508 = vmatpush1.bf16.msra.mxu0 %v468
      %509 = vmatprep.subr.bf16.mxu0 0
      %510 = vmatpush1.bf16.msra.mxu0 %v469
      %511 = vmatprep.subr.bf16.mxu0 0
      %512 = vmatpush1.bf16.msra.mxu0 %v470
      %513 = vmatprep.subr.bf16.mxu0 0
      %514 = vmatpush1.bf16.msra.mxu0 %v471
      %515 = vmatprep.subr.bf16.mxu0 0
      %516 = vmatpush1.bf16.msra.mxu0 %v472
      %517 = vmatprep.subr.bf16.mxu0 0
      %518 = vmatpush1.bf16.msra.mxu0 %v473
      %519 = vmatprep.subr.bf16.mxu0 0
      %520 = vmatpush1.bf16.msra.mxu0 %v474
      %521 = vmatprep.subr.bf16.mxu0 0
      %522 = vmatpush1.bf16.msra.mxu0 %v475
      %523 = vmatprep.subr.bf16.mxu0 0
      %524 = vmatpush1.bf16.msra.mxu0 %v476
      %525 = vmatprep.mubr.bf16.mxu0 %v346
      %526 = vmatmul.mubr.bf16.gmra.mrb[0].mxu0 %v345
      %v527 = vpop.f32.mrb[0].mxu0
      %v528 = vadd.f32 0.0, %v527
      %v529 = vpop.f32.mrb[0].mxu0
      %v530 = vpop.f32.mrb[0].mxu0
      %v531 = vadd.f32 0.0, %v530
      %v532 = vpop.f32.mrb[0].mxu0
      %533 = vmatprep.mubr.bf16.mxu0 %v348
      %534 = vmatmul.mubr.bf16.gmra.mrb[0].mxu0 %v347
      %v535 = vpop.f32.mrb[0].mxu0
      %v536 = vadd.f32 0.0, %v535
      %v537 = vpop.f32.mrb[0].mxu0
      %v538 = vpop.f32.mrb[0].mxu0
      %v539 = vadd.f32 0.0, %v538
      %v540 = vpop.f32.mrb[0].mxu0
      %541 = vmatprep.mubr.bf16.mxu0 %v350
      %542 = vmatmul.mubr.bf16.gmra.mrb[0].mxu0 %v349
      %v543 = vpop.f32.mrb[0].mxu0
      %v544 = vadd.f32 0.0, %v543
      %v545 = vpop.f32.mrb[0].mxu0
      %v546 = vpop.f32.mrb[0].mxu0
      %v547 = vadd.f32 0.0, %v546
      %v548 = vpop.f32.mrb[0].mxu0
      %549 = vmatprep.mubr.bf16.mxu0 %v352
      %550 = vmatmul.mubr.bf16.gmra.mrb[0].mxu0 %v351
      %v551 = vpop.f32.mrb[0].mxu0
      %v552 = vadd.f32 0.0, %v551
      %v553 = vpop.f32.mrb[0].mxu0
      %v554 = vpop.f32.mrb[0].mxu0
      %v555 = vadd.f32 0.0, %v554
      %v556 = vpop.f32.mrb[0].mxu0
      %557 = vmatprep.mubr.bf16.mxu0 %v354
      %558 = vmatmul.mubr.bf16.gmra.mrb[0].mxu0 %v353
      %v559 = vpop.f32.mrb[0].mxu0
      %v560 = vadd.f32 0.0, %v559
      %v561 = vpop.f32.mrb[0].mxu0
      %v562 = vpop.f32.mrb[0].mxu0
      %v563 = vadd.f32 0.0, %v562
      %v564 = vpop.f32.mrb[0].mxu0
      %565 = vdwg.mxu0
      %v566 = vadd.f32 %v355, %v528
      %v567 = vadd.f32 %v356, %v531
      %v568 = vadd.f32 %v357, %v536
      %v569 = vadd.f32 %v358, %v539
      %v570 = vadd.f32 %v359, %v544
      %v571 = vadd.f32 %v360, %v547
      %v572 = vadd.f32 %v361, %v552
      %v573 = vadd.f32 %v362, %v555
      %v574 = vadd.f32 %v363, %v560
      %v575 = vadd.f32 %v364, %v563
      %576 = vst.msk [vmem:[#allocation2] sm:$0xff] %vm280, %v566
      %577 = vst.msk [vmem:[#allocation2 + $0x8] sm:$0xff] %vm280, %v567
      %578 = vst.msk [vmem:[#allocation2 + $0x10] sm:$0xff] %vm280, %v568
      %579 = vst.msk [vmem:[#allocation2 + $0x18] sm:$0xff] %vm280, %v569
      %580 = vst.msk [vmem:[#allocation2 + $0x20] sm:$0xff] %vm280, %v570
      %581 = vst.msk [vmem:[#allocation2 + $0x28] sm:$0xff] %vm280, %v571
      %582 = vst.msk [vmem:[#allocation2 + $0x30] sm:$0xff] %vm280, %v572
      %583 = vst.msk [vmem:[#allocation2 + $0x38] sm:$0xff] %vm280, %v573
      %584 = vst.msk [vmem:[#allocation2 + $0x40] sm:$0xff] %vm280, %v574
      %585 = vst.msk [vmem:[#allocation2 + $0x48] sm:$0xff] %vm280, %v575
      %s586 = scalar_lea.vmem [#allocation2], 80
      %v587 = vld [vmem:[%s586] sm:$0xff]
      %v588 = vld [vmem:[%s586 + $0x8] sm:$0xff]
      %v589 = vld [vmem:[%s586 + $0x10] sm:$0xff]
      %v590 = vld [vmem:[%s586 + $0x18] sm:$0xff]
      %v591 = vld [vmem:[%s586 + $0x20] sm:$0xff]
      %v592 = vld [vmem:[%s586 + $0x28] sm:$0xff]
      %v593 = vld [vmem:[%s586 + $0x30] sm:$0xff]
      %v594 = vld [vmem:[%s586 + $0x38] sm:$0xff]
      %v595 = vld [vmem:[%s586 + $0x40] sm:$0xff]
      %v596 = vld [vmem:[%s586 + $0x48] sm:$0xff]
      %s597 = scalar_lea.vmem %s1, 128
      %v598 = vld [vmem:[%s597] sm:$0xf]
      %v599 = vld [vmem:[%s597 + $0x4] sm:$0xf]
      %v600 = vld [vmem:[%s597 + $0x8] sm:$0xf]
      %v601 = vld [vmem:[%s597 + $0xc] sm:$0xf]
      %v602 = vld [vmem:[%s597 + $0x10] sm:$0xf]
      %v603 = vld [vmem:[%s597 + $0x14] sm:$0xf]
      %v604 = vld [vmem:[%s597 + $0x18] sm:$0xf]
      %v605 = vld [vmem:[%s597 + $0x1c] sm:$0xf]
      %v606 = vld [vmem:[%s597 + $0x20] sm:$0xf]
      %v607 = vld [vmem:[%s597 + $0x24] sm:$0xf]
      %v608 = vld [vmem:[%s597 + $0x28] sm:$0xf]
      %v609 = vld [vmem:[%s597 + $0x2c] sm:$0xf]
      %v610 = vld [vmem:[%s597 + $0x30] sm:$0xf]
      %v611 = vld [vmem:[%s597 + $0x34] sm:$0xf]
      %v612 = vld [vmem:[%s597 + $0x38] sm:$0xf]
      %v613 = vld [vmem:[%s597 + $0x3c] sm:$0xf]
      %v614 = vld [vmem:[%s597 + $0x40] sm:$0xf]
      %v615 = vld [vmem:[%s597 + $0x44] sm:$0xf]
      %v616 = vld [vmem:[%s597 + $0x48] sm:$0xf]
      %v617 = vld [vmem:[%s597 + $0x4c] sm:$0xf]
      %v618 = vld [vmem:[%s597 + $0x50] sm:$0xf]
      %v619 = vld [vmem:[%s597 + $0x54] sm:$0xf]
      %v620 = vld [vmem:[%s597 + $0x58] sm:$0xf]
      %v621 = vld [vmem:[%s597 + $0x5c] sm:$0xf]
      %v622 = vld [vmem:[%s597 + $0x60] sm:$0xf]
      %v623 = vld [vmem:[%s597 + $0x64] sm:$0xf]
      %v624 = vld [vmem:[%s597 + $0x68] sm:$0xf]
      %v625 = vld [vmem:[%s597 + $0x6c] sm:$0xf]
      %v626 = vld [vmem:[%s597 + $0x70] sm:$0xf]
      %v627 = vld [vmem:[%s597 + $0x74] sm:$0xf]
      %v628 = vld [vmem:[%s597 + $0x78] sm:$0xf]
      %v629 = vld [vmem:[%s597 + $0x7c] sm:$0xf]
      %v662 = vunpack.c.l.b16 %v598
      %v663 = vunpack.c.l.b16 %v599
      %v664 = vunpack.c.l.b16 %v600
      %v665 = vunpack.c.l.b16 %v601
      %v666 = vunpack.c.l.b16 %v602
      %v667 = vunpack.c.l.b16 %v603
      %v668 = vunpack.c.l.b16 %v604
      %v669 = vunpack.c.l.b16 %v605
      %v670 = vunpack.c.l.b16 %v606
      %v671 = vunpack.c.l.b16 %v607
      %v672 = vunpack.c.l.b16 %v608
      %v673 = vunpack.c.l.b16 %v609
      %v674 = vunpack.c.l.b16 %v610
      %v675 = vunpack.c.l.b16 %v611
      %v676 = vunpack.c.l.b16 %v612
      %v677 = vunpack.c.l.b16 %v613
      %v678 = vunpack.c.l.b16 %v614
      %v679 = vunpack.c.l.b16 %v615
      %v680 = vunpack.c.l.b16 %v616
      %v681 = vunpack.c.l.b16 %v617
      %v682 = vunpack.c.l.b16 %v618
      %v683 = vunpack.c.l.b16 %v619
      %v684 = vunpack.c.l.b16 %v620
      %v685 = vunpack.c.l.b16 %v621
      %v686 = vunpack.c.l.b16 %v622
      %v687 = vunpack.c.l.b16 %v623
      %v688 = vunpack.c.l.b16 %v624
      %v689 = vunpack.c.l.b16 %v625
      %v690 = vunpack.c.l.b16 %v626
      %v691 = vunpack.c.l.b16 %v627
      %v692 = vunpack.c.l.b16 %v628
      %v693 = vunpack.c.l.b16 %v629
      %v694 = vpack.c.b16 %v663, %v662
      %v695 = vpack.c.b16 %v665, %v664
      %v696 = vpack.c.b16 %v667, %v666
      %v697 = vpack.c.b16 %v669, %v668
      %v698 = vpack.c.b16 %v671, %v670
      %v699 = vpack.c.b16 %v673, %v672
      %v700 = vpack.c.b16 %v675, %v674
      %v701 = vpack.c.b16 %v677, %v676
      %v702 = vpack.c.b16 %v679, %v678
      %v703 = vpack.c.b16 %v681, %v680
      %v704 = vpack.c.b16 %v683, %v682
      %v705 = vpack.c.b16 %v685, %v684
      %v706 = vpack.c.b16 %v687, %v686
      %v707 = vpack.c.b16 %v689, %v688
      %v708 = vpack.c.b16 %v691, %v690
      %v709 = vpack.c.b16 %v693, %v692
      %726 = vmatprep.subr.bf16.mxu0 0
      %727 = vmatpush1.bf16.msra.mxu0 %v694
      %728 = vmatprep.subr.bf16.mxu0 0
      %729 = vmatpush1.bf16.msra.mxu0 %v695
      %730 = vmatprep.subr.bf16.mxu0 0
      %731 = vmatpush1.bf16.msra.mxu0 %v696
      %732 = vmatprep.subr.bf16.mxu0 0
      %733 = vmatpush1.bf16.msra.mxu0 %v697
      %734 = vmatprep.subr.bf16.mxu0 0
      %735 = vmatpush1.bf16.msra.mxu0 %v698
      %736 = vmatprep.subr.bf16.mxu0 0
      %737 = vmatpush1.bf16.msra.mxu0 %v699
      %738 = vmatprep.subr.bf16.mxu0 0
      %739 = vmatpush1.bf16.msra.mxu0 %v700
      %740 = vmatprep.subr.bf16.mxu0 0
      %741 = vmatpush1.bf16.msra.mxu0 %v701
      %742 = vmatprep.subr.bf16.mxu0 0
      %743 = vmatpush1.bf16.msra.mxu0 %v702
      %744 = vmatprep.subr.bf16.mxu0 0
      %745 = vmatpush1.bf16.msra.mxu0 %v703
      %746 = vmatprep.subr.bf16.mxu0 0
      %747 = vmatpush1.bf16.msra.mxu0 %v704
      %748 = vmatprep.subr.bf16.mxu0 0
      %749 = vmatpush1.bf16.msra.mxu0 %v705
      %750 = vmatprep.subr.bf16.mxu0 0
      %751 = vmatpush1.bf16.msra.mxu0 %v706
      %752 = vmatprep.subr.bf16.mxu0 0
      %753 = vmatpush1.bf16.msra.mxu0 %v707
      %754 = vmatprep.subr.bf16.mxu0 0
      %755 = vmatpush1.bf16.msra.mxu0 %v708
      %756 = vmatprep.subr.bf16.mxu0 0
      %757 = vmatpush1.bf16.msra.mxu0 %v709
      %758 = vmatprep.mubr.bf16.mxu0 %v346
      %759 = vmatmul.mubr.bf16.gmra.mrb[0].mxu0 %v345
      %v760 = vpop.f32.mrb[0].mxu0
      %v761 = vadd.f32 0.0, %v760
      %v762 = vpop.f32.mrb[0].mxu0
      %v763 = vpop.f32.mrb[0].mxu0
      %v764 = vadd.f32 0.0, %v763
      %v765 = vpop.f32.mrb[0].mxu0
      %766 = vmatprep.mubr.bf16.mxu0 %v348
      %767 = vmatmul.mubr.bf16.gmra.mrb[0].mxu0 %v347
      %v768 = vpop.f32.mrb[0].mxu0
      %v769 = vadd.f32 0.0, %v768
      %v770 = vpop.f32.mrb[0].mxu0
      %v771 = vpop.f32.mrb[0].mxu0
      %v772 = vadd.f32 0.0, %v771
      %v773 = vpop.f32.mrb[0].mxu0
      %774 = vmatprep.mubr.bf16.mxu0 %v350
      %775 = vmatmul.mubr.bf16.gmra.mrb[0].mxu0 %v349
      %v776 = vpop.f32.mrb[0].mxu0
      %v777 = vadd.f32 0.0, %v776
      %v778 = vpop.f32.mrb[0].mxu0
      %v779 = vpop.f32.mrb[0].mxu0
      %v780 = vadd.f32 0.0, %v779
      %v781 = vpop.f32.mrb[0].mxu0
      %782 = vmatprep.mubr.bf16.mxu0 %v352
      %783 = vmatmul.mubr.bf16.gmra.mrb[0].mxu0 %v351
      %v784 = vpop.f32.mrb[0].mxu0
      %v785 = vadd.f32 0.0, %v784
      %v786 = vpop.f32.mrb[0].mxu0
      %v787 = vpop.f32.mrb[0].mxu0
      %v788 = vadd.f32 0.0, %v787
      %v789 = vpop.f32.mrb[0].mxu0
      %790 = vmatprep.mubr.bf16.mxu0 %v354
      %791 = vmatmul.mubr.bf16.gmra.mrb[0].mxu0 %v353
      %v792 = vpop.f32.mrb[0].mxu0
      %v793 = vadd.f32 0.0, %v792
      %v794 = vpop.f32.mrb[0].mxu0
      %v795 = vpop.f32.mrb[0].mxu0
      %v796 = vadd.f32 0.0, %v795
      %v797 = vpop.f32.mrb[0].mxu0
      %798 = vdwg.mxu0
      %v799 = vadd.f32 %v587, %v761
      %v800 = vadd.f32 %v588, %v764
      %v801 = vadd.f32 %v589, %v769
      %v802 = vadd.f32 %v590, %v772
      %v803 = vadd.f32 %v591, %v777
      %v804 = vadd.f32 %v592, %v780
      %v805 = vadd.f32 %v593, %v785
      %v806 = vadd.f32 %v594, %v788
      %v807 = vadd.f32 %v595, %v793
      %v808 = vadd.f32 %v596, %v796
      %809 = vst.msk [vmem:[%s586] sm:$0xff] %vm280, %v799
      %810 = vst.msk [vmem:[%s586 + $0x8] sm:$0xff] %vm280, %v800
      %811 = vst.msk [vmem:[%s586 + $0x10] sm:$0xff] %vm280, %v801
      %812 = vst.msk [vmem:[%s586 + $0x18] sm:$0xff] %vm280, %v802
      %813 = vst.msk [vmem:[%s586 + $0x20] sm:$0xff] %vm280, %v803
      %814 = vst.msk [vmem:[%s586 + $0x28] sm:$0xff] %vm280, %v804
      %815 = vst.msk [vmem:[%s586 + $0x30] sm:$0xff] %vm280, %v805
      %816 = vst.msk [vmem:[%s586 + $0x38] sm:$0xff] %vm280, %v806
      %817 = vst.msk [vmem:[%s586 + $0x40] sm:$0xff] %vm280, %v807
      %818 = vst.msk [vmem:[%s586 + $0x48] sm:$0xff] %vm280, %v808
      %s819 = scalar_lea.vmem [#allocation2], 160
      %v820 = vld [vmem:[%s819] sm:$0xff]
      %v821 = vld [vmem:[%s819 + $0x8] sm:$0xff]
      %v822 = vld [vmem:[%s819 + $0x10] sm:$0xff]
      %v823 = vld [vmem:[%s819 + $0x18] sm:$0xff]
      %v824 = vld [vmem:[%s819 + $0x20] sm:$0xff]
      %v825 = vld [vmem:[%s819 + $0x28] sm:$0xff]
      %v826 = vld [vmem:[%s819 + $0x30] sm:$0xff]
      %v827 = vld [vmem:[%s819 + $0x38] sm:$0xff]
      %v828 = vld [vmem:[%s819 + $0x40] sm:$0xff]
      %v829 = vld [vmem:[%s819 + $0x48] sm:$0xff]
      %s830 = scalar_lea.vmem %s1, 256
      %v831 = vld [vmem:[%s830] sm:$0xf]
      %v832 = vld [vmem:[%s830 + $0x4] sm:$0xf]
      %v833 = vld [vmem:[%s830 + $0x8] sm:$0xf]
      %v834 = vld [vmem:[%s830 + $0xc] sm:$0xf]
      %v835 = vld [vmem:[%s830 + $0x10] sm:$0xf]
      %v836 = vld [vmem:[%s830 + $0x14] sm:$0xf]
      %v837 = vld [vmem:[%s830 + $0x18] sm:$0xf]
      %v838 = vld [vmem:[%s830 + $0x1c] sm:$0xf]
      %v839 = vld [vmem:[%s830 + $0x20] sm:$0xf]
      %v840 = vld [vmem:[%s830 + $0x24] sm:$0xf]
      %v841 = vld [vmem:[%s830 + $0x28] sm:$0xf]
      %v842 = vld [vmem:[%s830 + $0x2c] sm:$0xf]
      %v843 = vld [vmem:[%s830 + $0x30] sm:$0xf]
      %v844 = vld [vmem:[%s830 + $0x34] sm:$0xf]
      %v845 = vld [vmem:[%s830 + $0x38] sm:$0xf]
      %v846 = vld [vmem:[%s830 + $0x3c] sm:$0xf]
      %v847 = vld [vmem:[%s830 + $0x40] sm:$0xf]
      %v848 = vld [vmem:[%s830 + $0x44] sm:$0xf]
      %v849 = vld [vmem:[%s830 + $0x48] sm:$0xf]
      %v850 = vld [vmem:[%s830 + $0x4c] sm:$0xf]
      %v851 = vld [vmem:[%s830 + $0x50] sm:$0xf]
      %v852 = vld [vmem:[%s830 + $0x54] sm:$0xf]
      %v853 = vld [vmem:[%s830 + $0x58] sm:$0xf]
      %v854 = vld [vmem:[%s830 + $0x5c] sm:$0xf]
      %v855 = vld [vmem:[%s830 + $0x60] sm:$0xf]
      %v856 = vld [vmem:[%s830 + $0x64] sm:$0xf]
      %v857 = vld [vmem:[%s830 + $0x68] sm:$0xf]
      %v858 = vld [vmem:[%s830 + $0x6c] sm:$0xf]
      %v859 = vld [vmem:[%s830 + $0x70] sm:$0xf]
      %v860 = vld [vmem:[%s830 + $0x74] sm:$0xf]
      %v861 = vld [vmem:[%s830 + $0x78] sm:$0xf]
      %v862 = vld [vmem:[%s830 + $0x7c] sm:$0xf]
      %v895 = vunpack.c.l.b16 %v831
      %v896 = vunpack.c.l.b16 %v832
      %v897 = vunpack.c.l.b16 %v833
      %v898 = vunpack.c.l.b16 %v834
      %v899 = vunpack.c.l.b16 %v835
      %v900 = vunpack.c.l.b16 %v836
      %v901 = vunpack.c.l.b16 %v837
      %v902 = vunpack.c.l.b16 %v838
      %v903 = vunpack.c.l.b16 %v839
      %v904 = vunpack.c.l.b16 %v840
      %v905 = vunpack.c.l.b16 %v841
      %v906 = vunpack.c.l.b16 %v842
      %v907 = vunpack.c.l.b16 %v843
      %v908 = vunpack.c.l.b16 %v844
      %v909 = vunpack.c.l.b16 %v845
      %v910 = vunpack.c.l.b16 %v846
      %v911 = vunpack.c.l.b16 %v847
      %v912 = vunpack.c.l.b16 %v848
      %v913 = vunpack.c.l.b16 %v849
      %v914 = vunpack.c.l.b16 %v850
      %v915 = vunpack.c.l.b16 %v851
      %v916 = vunpack.c.l.b16 %v852
      %v917 = vunpack.c.l.b16 %v853
      %v918 = vunpack.c.l.b16 %v854
      %v919 = vunpack.c.l.b16 %v855
      %v920 = vunpack.c.l.b16 %v856
      %v921 = vunpack.c.l.b16 %v857
      %v922 = vunpack.c.l.b16 %v858
      %v923 = vunpack.c.l.b16 %v859
      %v924 = vunpack.c.l.b16 %v860
      %v925 = vunpack.c.l.b16 %v861
      %v926 = vunpack.c.l.b16 %v862
      %v927 = vpack.c.b16 %v896, %v895
      %v928 = vpack.c.b16 %v898, %v897
      %v929 = vpack.c.b16 %v900, %v899
      %v930 = vpack.c.b16 %v902, %v901
      %v931 = vpack.c.b16 %v904, %v903
      %v932 = vpack.c.b16 %v906, %v905
      %v933 = vpack.c.b16 %v908, %v907
      %v934 = vpack.c.b16 %v910, %v909
      %v935 = vpack.c.b16 %v912, %v911
      %v936 = vpack.c.b16 %v914, %v913
      %v937 = vpack.c.b16 %v916, %v915
      %v938 = vpack.c.b16 %v918, %v917
      %v939 = vpack.c.b16 %v920, %v919
      %v940 = vpack.c.b16 %v922, %v921
      %v941 = vpack.c.b16 %v924, %v923
      %v942 = vpack.c.b16 %v926, %v925
      %959 = vmatprep.subr.bf16.mxu0 0
      %960 = vmatpush1.bf16.msra.mxu0 %v927
      %961 = vmatprep.subr.bf16.mxu0 0
      %962 = vmatpush1.bf16.msra.mxu0 %v928
      %963 = vmatprep.subr.bf16.mxu0 0
      %964 = vmatpush1.bf16.msra.mxu0 %v929
      %965 = vmatprep.subr.bf16.mxu0 0
      %966 = vmatpush1.bf16.msra.mxu0 %v930
      %967 = vmatprep.subr.bf16.mxu0 0
      %968 = vmatpush1.bf16.msra.mxu0 %v931
      %969 = vmatprep.subr.bf16.mxu0 0
      %970 = vmatpush1.bf16.msra.mxu0 %v932
      %971 = vmatprep.subr.bf16.mxu0 0
      %972 = vmatpush1.bf16.msra.mxu0 %v933
      %973 = vmatprep.subr.bf16.mxu0 0
      %974 = vmatpush1.bf16.msra.mxu0 %v934
      %975 = vmatprep.subr.bf16.mxu0 0
      %976 = vmatpush1.bf16.msra.mxu0 %v935
      %977 = vmatprep.subr.bf16.mxu0 0
      %978 = vmatpush1.bf16.msra.mxu0 %v936
      %979 = vmatprep.subr.bf16.mxu0 0
      %980 = vmatpush1.bf16.msra.mxu0 %v937
      %981 = vmatprep.subr.bf16.mxu0 0
      %982 = vmatpush1.bf16.msra.mxu0 %v938
      %983 = vmatprep.subr.bf16.mxu0 0
      %984 = vmatpush1.bf16.msra.mxu0 %v939
      %985 = vmatprep.subr.bf16.mxu0 0
      %986 = vmatpush1.bf16.msra.mxu0 %v940
      %987 = vmatprep.subr.bf16.mxu0 0
      %988 = vmatpush1.bf16.msra.mxu0 %v941
      %989 = vmatprep.subr.bf16.mxu0 0
      %990 = vmatpush1.bf16.msra.mxu0 %v942
      %991 = vmatprep.mubr.bf16.mxu0 %v346
      %992 = vmatmul.mubr.bf16.gmra.mrb[0].mxu0 %v345
      %v993 = vpop.f32.mrb[0].mxu0
      %v994 = vadd.f32 0.0, %v993
      %v995 = vpop.f32.mrb[0].mxu0
      %v996 = vpop.f32.mrb[0].mxu0
      %v997 = vadd.f32 0.0, %v996
      %v998 = vpop.f32.mrb[0].mxu0
      %999 = vmatprep.mubr.bf16.mxu0 %v348
      %1000 = vmatmul.mubr.bf16.gmra.mrb[0].mxu0 %v347
      %v1001 = vpop.f32.mrb[0].mxu0
      %v1002 = vadd.f32 0.0, %v1001
      %v1003 = vpop.f32.mrb[0].mxu0
      %v1004 = vpop.f32.mrb[0].mxu0
      %v1005 = vadd.f32 0.0, %v1004
      %v1006 = vpop.f32.mrb[0].mxu0
      %1007 = vmatprep.mubr.bf16.mxu0 %v350
      %1008 = vmatmul.mubr.bf16.gmra.mrb[0].mxu0 %v349
      %v1009 = vpop.f32.mrb[0].mxu0
      %v1010 = vadd.f32 0.0, %v1009
      %v1011 = vpop.f32.mrb[0].mxu0
      %v1012 = vpop.f32.mrb[0].mxu0
      %v1013 = vadd.f32 0.0, %v1012
      %v1014 = vpop.f32.mrb[0].mxu0
      %1015 = vmatprep.mubr.bf16.mxu0 %v352
      %1016 = vmatmul.mubr.bf16.gmra.mrb[0].mxu0 %v351
      %v1017 = vpop.f32.mrb[0].mxu0
      %v1018 = vadd.f32 0.0, %v1017
      %v1019 = vpop.f32.mrb[0].mxu0
      %v1020 = vpop.f32.mrb[0].mxu0
      %v1021 = vadd.f32 0.0, %v1020
      %v1022 = vpop.f32.mrb[0].mxu0
      %1023 = vmatprep.mubr.bf16.mxu0 %v354
      %1024 = vmatmul.mubr.bf16.gmra.mrb[0].mxu0 %v353
      %v1025 = vpop.f32.mrb[0].mxu0
      %v1026 = vadd.f32 0.0, %v1025
      %v1027 = vpop.f32.mrb[0].mxu0
      %v1028 = vpop.f32.mrb[0].mxu0
      %v1029 = vadd.f32 0.0, %v1028
      %v1030 = vpop.f32.mrb[0].mxu0
      %1031 = vdwg.mxu0
      %v1032 = vadd.f32 %v820, %v994
      %v1033 = vadd.f32 %v821, %v997
      %v1034 = vadd.f32 %v822, %v1002
      %v1035 = vadd.f32 %v823, %v1005
      %v1036 = vadd.f32 %v824, %v1010
      %v1037 = vadd.f32 %v825, %v1013
      %v1038 = vadd.f32 %v826, %v1018
      %v1039 = vadd.f32 %v827, %v1021
      %v1040 = vadd.f32 %v828, %v1026
      %v1041 = vadd.f32 %v829, %v1029
      %1042 = vst.msk [vmem:[%s819] sm:$0xff] %vm280, %v1032
      %1043 = vst.msk [vmem:[%s819 + $0x8] sm:$0xff] %vm280, %v1033
      %1044 = vst.msk [vmem:[%s819 + $0x10] sm:$0xff] %vm280, %v1034
      %1045 = vst.msk [vmem:[%s819 + $0x18] sm:$0xff] %vm280, %v1035
      %1046 = vst.msk [vmem:[%s819 + $0x20] sm:$0xff] %vm280, %v1036
      %1047 = vst.msk [vmem:[%s819 + $0x28] sm:$0xff] %vm280, %v1037
      %1048 = vst.msk [vmem:[%s819 + $0x30] sm:$0xff] %vm280, %v1038
      %1049 = vst.msk [vmem:[%s819 + $0x38] sm:$0xff] %vm280, %v1039
      %1050 = vst.msk [vmem:[%s819 + $0x40] sm:$0xff] %vm280, %v1040
      %1051 = vst.msk [vmem:[%s819 + $0x48] sm:$0xff] %vm280, %v1041
      %v1052 = vld [vmem:[%s273 + $0x10] sm:$0xfc]
      %v1053 = vld [vmem:[%s273 + $0x18] sm:$0xfc]
      %v1054 = vld [vmem:[%s273 + $0x20] sm:$0xff]
      %v1055 = vld [vmem:[%s273 + $0x28] sm:$0xff]
      %v1056 = vld [vmem:[%s273 + $0x30] sm:$0xff]
      %v1057 = vld [vmem:[%s273 + $0x38] sm:$0xff]
      %v1058 = vld [vmem:[%s273 + $0x40] sm:$0xff]
      %v1059 = vld [vmem:[%s273 + $0x48] sm:$0xff]
      %v1060 = vld [vmem:[%s273 + $0x50] sm:$0xff]
      %v1061 = vld [vmem:[%s273 + $0x58] sm:$0xff]
      %v1062 = vld [vmem:[%s273 + $0x60] sm:$0xff]
      %v1063 = vld [vmem:[%s273 + $0x68] sm:$0xff]
      %v1064 = vld [vmem:[%s273 + $0x70] sm:$0xff]
      %v1065 = vld [vmem:[%s273 + $0x78] sm:$0xff]
      %v1066 = vld [vmem:[%s273 + $0x80] sm:$0xff]
      %v1067 = vld [vmem:[%s273 + $0x88] sm:$0xff]
      %v1068 = vld [vmem:[%s273 + $0x90] sm:$0xff]
      %v1069 = vld [vmem:[%s273 + $0x98] sm:$0xff]
      %v1070 = vld [vmem:[%s273 + $0xa0] sm:$0xff]
      %v1071 = vld [vmem:[%s273 + $0xa8] sm:$0xff]
      %v1072 = vld [vmem:[%s273 + $0xb0] sm:$0x3]
      %v1073 = vld [vmem:[%s273 + $0xb8] sm:$0x3]
      %v1074 = vpack.c.bf16 %v1054, %v1052
      %v1075 = vpack.c.bf16 %v1055, %v1053
      %v1076 = vpack.c.bf16 %v1058, %v1056
      %v1077 = vpack.c.bf16 %v1059, %v1057
      %v1078 = vpack.c.bf16 %v1062, %v1060
      %v1079 = vpack.c.bf16 %v1063, %v1061
      %v1080 = vpack.c.bf16 %v1066, %v1064
      %v1081 = vpack.c.bf16 %v1067, %v1065
      %v1082 = vpack.c.bf16 %v1070, %v1068
      %v1083 = vpack.c.bf16 %v1071, %v1069
      %v1084 = vpack.c.bf16 %v1072, %v1072
      %v1085 = vpack.c.bf16 %v1073, %v1073
      %v1086 = vld [vmem:[#allocation2] sm:$0xff]
      %v1087 = vld [vmem:[#allocation2 + $0x8] sm:$0xff]
      %v1088 = vld [vmem:[#allocation2 + $0x10] sm:$0xff]
      %v1089 = vld [vmem:[#allocation2 + $0x18] sm:$0xff]
      %v1090 = vld [vmem:[#allocation2 + $0x20] sm:$0xff]
      %v1091 = vld [vmem:[#allocation2 + $0x28] sm:$0xff]
      %v1092 = vld [vmem:[#allocation2 + $0x30] sm:$0xff]
      %v1093 = vld [vmem:[#allocation2 + $0x38] sm:$0xff]
      %v1094 = vld [vmem:[#allocation2 + $0x40] sm:$0xff]
      %v1095 = vld [vmem:[#allocation2 + $0x48] sm:$0xff]
      %s1096 = scalar_lea.vmem %s1, 384
      %v1097 = vld [vmem:[%s1096] sm:$0xf]
      %v1098 = vld [vmem:[%s1096 + $0x4] sm:$0xf]
      %v1099 = vld [vmem:[%s1096 + $0x8] sm:$0xf]
      %v1100 = vld [vmem:[%s1096 + $0xc] sm:$0xf]
      %v1101 = vld [vmem:[%s1096 + $0x10] sm:$0xf]
      %v1102 = vld [vmem:[%s1096 + $0x14] sm:$0xf]
      %v1103 = vld [vmem:[%s1096 + $0x18] sm:$0xf]
      %v1104 = vld [vmem:[%s1096 + $0x1c] sm:$0xf]
      %v1105 = vld [vmem:[%s1096 + $0x20] sm:$0xf]
      %v1106 = vld [vmem:[%s1096 + $0x24] sm:$0xf]
      %v1107 = vld [vmem:[%s1096 + $0x28] sm:$0xf]
      %v1108 = vld [vmem:[%s1096 + $0x2c] sm:$0xf]
      %v1109 = vld [vmem:[%s1096 + $0x30] sm:$0xf]
      %v1110 = vld [vmem:[%s1096 + $0x34] sm:$0xf]
      %v1111 = vld [vmem:[%s1096 + $0x38] sm:$0xf]
      %v1112 = vld [vmem:[%s1096 + $0x3c] sm:$0xf]
      %v1113 = vld [vmem:[%s1096 + $0x40] sm:$0xf]
      %v1114 = vld [vmem:[%s1096 + $0x44] sm:$0xf]
      %v1115 = vld [vmem:[%s1096 + $0x48] sm:$0xf]
      %v1116 = vld [vmem:[%s1096 + $0x4c] sm:$0xf]
      %v1117 = vld [vmem:[%s1096 + $0x50] sm:$0xf]
      %v1118 = vld [vmem:[%s1096 + $0x54] sm:$0xf]
      %v1119 = vld [vmem:[%s1096 + $0x58] sm:$0xf]
      %v1120 = vld [vmem:[%s1096 + $0x5c] sm:$0xf]
      %v1121 = vld [vmem:[%s1096 + $0x60] sm:$0xf]
      %v1122 = vld [vmem:[%s1096 + $0x64] sm:$0xf]
      %v1123 = vld [vmem:[%s1096 + $0x68] sm:$0xf]
      %v1124 = vld [vmem:[%s1096 + $0x6c] sm:$0xf]
      %v1125 = vld [vmem:[%s1096 + $0x70] sm:$0xf]
      %v1126 = vld [vmem:[%s1096 + $0x74] sm:$0xf]
      %v1127 = vld [vmem:[%s1096 + $0x78] sm:$0xf]
      %v1128 = vld [vmem:[%s1096 + $0x7c] sm:$0xf]
      %vm1141 = vcmask 1046528
      %v1142 = vrot.slane %v1074, 1
      %v1143 = vrot.slane %v1076, 1
      %v1144 = vsel %vm1141, %v1142, %v1143
      %v1145 = vrot.slane %v1075, 1
      %v1146 = vrot.slane %v1077, 1
      %v1147 = vsel %vm1141, %v1145, %v1146
      %v1148 = vrot.slane %v1078, 1
      %v1149 = vsel %vm1141, %v1143, %v1148
      %v1150 = vrot.slane %v1079, 1
      %v1151 = vsel %vm1141, %v1146, %v1150
      %v1152 = vrot.slane %v1080, 1
      %v1153 = vsel %vm1141, %v1148, %v1152
      %v1154 = vrot.slane %v1081, 1
      %v1155 = vsel %vm1141, %v1150, %v1154
      %v1156 = vrot.slane %v1082, 1
      %v1157 = vsel %vm1141, %v1152, %v1156
      %v1158 = vrot.slane %v1083, 1
      %v1159 = vsel %vm1141, %v1154, %v1158
      %v1160 = vrot.slane %v1084, 1
      %v1161 = vsel %vm1141, %v1156, %v1160
      %v1162 = vrot.slane %v1085, 1
      %v1163 = vsel %vm1141, %v1158, %v1162
      %v1206 = vunpack.c.l.b16 %v1097
      %v1207 = vunpack.c.l.b16 %v1098
      %v1208 = vunpack.c.l.b16 %v1099
      %v1209 = vunpack.c.l.b16 %v1100
      %v1210 = vunpack.c.l.b16 %v1101
      %v1211 = vunpack.c.l.b16 %v1102
      %v1212 = vunpack.c.l.b16 %v1103
      %v1213 = vunpack.c.l.b16 %v1104
      %v1214 = vunpack.c.l.b16 %v1105
      %v1215 = vunpack.c.l.b16 %v1106
      %v1216 = vunpack.c.l.b16 %v1107
      %v1217 = vunpack.c.l.b16 %v1108
      %v1218 = vunpack.c.l.b16 %v1109
      %v1219 = vunpack.c.l.b16 %v1110
      %v1220 = vunpack.c.l.b16 %v1111
      %v1221 = vunpack.c.l.b16 %v1112
      %v1222 = vunpack.c.l.b16 %v1113
      %v1223 = vunpack.c.l.b16 %v1114
      %v1224 = vunpack.c.l.b16 %v1115
      %v1225 = vunpack.c.l.b16 %v1116
      %v1226 = vunpack.c.l.b16 %v1117
      %v1227 = vunpack.c.l.b16 %v1118
      %v1228 = vunpack.c.l.b16 %v1119
      %v1229 = vunpack.c.l.b16 %v1120
      %v1230 = vunpack.c.l.b16 %v1121
      %v1231 = vunpack.c.l.b16 %v1122
      %v1232 = vunpack.c.l.b16 %v1123
      %v1233 = vunpack.c.l.b16 %v1124
      %v1234 = vunpack.c.l.b16 %v1125
      %v1235 = vunpack.c.l.b16 %v1126
      %v1236 = vunpack.c.l.b16 %v1127
      %v1237 = vunpack.c.l.b16 %v1128
      %v1238 = vpack.c.b16 %v1207, %v1206
      %v1239 = vpack.c.b16 %v1209, %v1208
      %v1240 = vpack.c.b16 %v1211, %v1210
      %v1241 = vpack.c.b16 %v1213, %v1212
      %v1242 = vpack.c.b16 %v1215, %v1214
      %v1243 = vpack.c.b16 %v1217, %v1216
      %v1244 = vpack.c.b16 %v1219, %v1218
      %v1245 = vpack.c.b16 %v1221, %v1220
      %v1246 = vpack.c.b16 %v1223, %v1222
      %v1247 = vpack.c.b16 %v1225, %v1224
      %v1248 = vpack.c.b16 %v1227, %v1226
      %v1249 = vpack.c.b16 %v1229, %v1228
      %v1250 = vpack.c.b16 %v1231, %v1230
      %v1251 = vpack.c.b16 %v1233, %v1232
      %v1252 = vpack.c.b16 %v1235, %v1234
      %v1253 = vpack.c.b16 %v1237, %v1236
      %1270 = vmatprep.subr.bf16.mxu0 0
      %1271 = vmatpush1.bf16.msra.mxu0 %v1238
      %1272 = vmatprep.subr.bf16.mxu0 0
      %1273 = vmatpush1.bf16.msra.mxu0 %v1239
      %1274 = vmatprep.subr.bf16.mxu0 0
      %1275 = vmatpush1.bf16.msra.mxu0 %v1240
      %1276 = vmatprep.subr.bf16.mxu0 0
      %1277 = vmatpush1.bf16.msra.mxu0 %v1241
      %1278 = vmatprep.subr.bf16.mxu0 0
      %1279 = vmatpush1.bf16.msra.mxu0 %v1242
      %1280 = vmatprep.subr.bf16.mxu0 0
      %1281 = vmatpush1.bf16.msra.mxu0 %v1243
      %1282 = vmatprep.subr.bf16.mxu0 0
      %1283 = vmatpush1.bf16.msra.mxu0 %v1244
      %1284 = vmatprep.subr.bf16.mxu0 0
      %1285 = vmatpush1.bf16.msra.mxu0 %v1245
      %1286 = vmatprep.subr.bf16.mxu0 0
      %1287 = vmatpush1.bf16.msra.mxu0 %v1246
      %1288 = vmatprep.subr.bf16.mxu0 0
      %1289 = vmatpush1.bf16.msra.mxu0 %v1247
      %1290 = vmatprep.subr.bf16.mxu0 0
      %1291 = vmatpush1.bf16.msra.mxu0 %v1248
      %1292 = vmatprep.subr.bf16.mxu0 0
      %1293 = vmatpush1.bf16.msra.mxu0 %v1249
      %1294 = vmatprep.subr.bf16.mxu0 0
      %1295 = vmatpush1.bf16.msra.mxu0 %v1250
      %1296 = vmatprep.subr.bf16.mxu0 0
      %1297 = vmatpush1.bf16.msra.mxu0 %v1251
      %1298 = vmatprep.subr.bf16.mxu0 0
      %1299 = vmatpush1.bf16.msra.mxu0 %v1252
      %1300 = vmatprep.subr.bf16.mxu0 0
      %1301 = vmatpush1.bf16.msra.mxu0 %v1253
      %1302 = vmatprep.mubr.bf16.mxu0 %v1147
      %1303 = vmatmul.mubr.bf16.gmra.mrb[0].mxu0 %v1144
      %v1304 = vpop.f32.mrb[0].mxu0
      %v1305 = vadd.f32 0.0, %v1304
      %v1306 = vpop.f32.mrb[0].mxu0
      %v1307 = vpop.f32.mrb[0].mxu0
      %v1308 = vadd.f32 0.0, %v1307
      %v1309 = vpop.f32.mrb[0].mxu0
      %1310 = vmatprep.mubr.bf16.mxu0 %v1151
      %1311 = vmatmul.mubr.bf16.gmra.mrb[0].mxu0 %v1149
      %v1312 = vpop.f32.mrb[0].mxu0
      %v1313 = vadd.f32 0.0, %v1312
      %v1314 = vpop.f32.mrb[0].mxu0
      %v1315 = vpop.f32.mrb[0].mxu0
      %v1316 = vadd.f32 0.0, %v1315
      %v1317 = vpop.f32.mrb[0].mxu0
      %1318 = vmatprep.mubr.bf16.mxu0 %v1155
      %1319 = vmatmul.mubr.bf16.gmra.mrb[0].mxu0 %v1153
      %v1320 = vpop.f32.mrb[0].mxu0
      %v1321 = vadd.f32 0.0, %v1320
      %v1322 = vpop.f32.mrb[0].mxu0
      %v1323 = vpop.f32.mrb[0].mxu0
      %v1324 = vadd.f32 0.0, %v1323
      %v1325 = vpop.f32.mrb[0].mxu0
      %1326 = vmatprep.mubr.bf16.mxu0 %v1159
      %1327 = vmatmul.mubr.bf16.gmra.mrb[0].mxu0 %v1157
      %v1328 = vpop.f32.mrb[0].mxu0
      %v1329 = vadd.f32 0.0, %v1328
      %v1330 = vpop.f32.mrb[0].mxu0
      %v1331 = vpop.f32.mrb[0].mxu0
      %v1332 = vadd.f32 0.0, %v1331
      %v1333 = vpop.f32.mrb[0].mxu0
      %1334 = vmatprep.mubr.bf16.mxu0 %v1163
      %1335 = vmatmul.mubr.bf16.gmra.mrb[0].mxu0 %v1161
      %v1336 = vpop.f32.mrb[0].mxu0
      %v1337 = vadd.f32 0.0, %v1336
      %v1338 = vpop.f32.mrb[0].mxu0
      %v1339 = vpop.f32.mrb[0].mxu0
      %v1340 = vadd.f32 0.0, %v1339
      %v1341 = vpop.f32.mrb[0].mxu0
      %1342 = vdwg.mxu0
      %v1343 = vadd.f32 %v1086, %v1305
      %v1344 = vadd.f32 %v1087, %v1308
      %v1345 = vadd.f32 %v1088, %v1313
      %v1346 = vadd.f32 %v1089, %v1316
      %v1347 = vadd.f32 %v1090, %v1321
      %v1348 = vadd.f32 %v1091, %v1324
      %v1349 = vadd.f32 %v1092, %v1329
      %v1350 = vadd.f32 %v1093, %v1332
      %v1351 = vadd.f32 %v1094, %v1337
      %v1352 = vadd.f32 %v1095, %v1340
      %1353 = vst.msk [vmem:[#allocation2] sm:$0xff] %vm280, %v1343
      %1354 = vst.msk [vmem:[#allocation2 + $0x8] sm:$0xff] %vm280, %v1344
      %1355 = vst.msk [vmem:[#allocation2 + $0x10] sm:$0xff] %vm280, %v1345
      %1356 = vst.msk [vmem:[#allocation2 + $0x18] sm:$0xff] %vm280, %v1346
      %1357 = vst.msk [vmem:[#allocation2 + $0x20] sm:$0xff] %vm280, %v1347
      %1358 = vst.msk [vmem:[#allocation2 + $0x28] sm:$0xff] %vm280, %v1348
      %1359 = vst.msk [vmem:[#allocation2 + $0x30] sm:$0xff] %vm280, %v1349
      %1360 = vst.msk [vmem:[#allocation2 + $0x38] sm:$0xff] %vm280, %v1350
      %1361 = vst.msk [vmem:[#allocation2 + $0x40] sm:$0xff] %vm280, %v1351
      %1362 = vst.msk [vmem:[#allocation2 + $0x48] sm:$0xff] %vm280, %v1352
      %v1363 = vld [vmem:[%s586] sm:$0xff]
      %v1364 = vld [vmem:[%s586 + $0x8] sm:$0xff]
      %v1365 = vld [vmem:[%s586 + $0x10] sm:$0xff]
      %v1366 = vld [vmem:[%s586 + $0x18] sm:$0xff]
      %v1367 = vld [vmem:[%s586 + $0x20] sm:$0xff]
      %v1368 = vld [vmem:[%s586 + $0x28] sm:$0xff]
      %v1369 = vld [vmem:[%s586 + $0x30] sm:$0xff]
      %v1370 = vld [vmem:[%s586 + $0x38] sm:$0xff]
      %v1371 = vld [vmem:[%s586 + $0x40] sm:$0xff]
      %v1372 = vld [vmem:[%s586 + $0x48] sm:$0xff]
      %s1373 = scalar_lea.vmem %s1, 512
      %v1374 = vld [vmem:[%s1373] sm:$0xf]
      %v1375 = vld [vmem:[%s1373 + $0x4] sm:$0xf]
      %v1376 = vld [vmem:[%s1373 + $0x8] sm:$0xf]
      %v1377 = vld [vmem:[%s1373 + $0xc] sm:$0xf]
      %v1378 = vld [vmem:[%s1373 + $0x10] sm:$0xf]
      %v1379 = vld [vmem:[%s1373 + $0x14] sm:$0xf]
      %v1380 = vld [vmem:[%s1373 + $0x18] sm:$0xf]
      %v1381 = vld [vmem:[%s1373 + $0x1c] sm:$0xf]
      %v1382 = vld [vmem:[%s1373 + $0x20] sm:$0xf]
      %v1383 = vld [vmem:[%s1373 + $0x24] sm:$0xf]
      %v1384 = vld [vmem:[%s1373 + $0x28] sm:$0xf]
      %v1385 = vld [vmem:[%s1373 + $0x2c] sm:$0xf]
      %v1386 = vld [vmem:[%s1373 + $0x30] sm:$0xf]
      %v1387 = vld [vmem:[%s1373 + $0x34] sm:$0xf]
      %v1388 = vld [vmem:[%s1373 + $0x38] sm:$0xf]
      %v1389 = vld [vmem:[%s1373 + $0x3c] sm:$0xf]
      %v1390 = vld [vmem:[%s1373 + $0x40] sm:$0xf]
      %v1391 = vld [vmem:[%s1373 + $0x44] sm:$0xf]
      %v1392 = vld [vmem:[%s1373 + $0x48] sm:$0xf]
      %v1393 = vld [vmem:[%s1373 + $0x4c] sm:$0xf]
      %v1394 = vld [vmem:[%s1373 + $0x50] sm:$0xf]
      %v1395 = vld [vmem:[%s1373 + $0x54] sm:$0xf]
      %v1396 = vld [vmem:[%s1373 + $0x58] sm:$0xf]
      %v1397 = vld [vmem:[%s1373 + $0x5c] sm:$0xf]
      %v1398 = vld [vmem:[%s1373 + $0x60] sm:$0xf]
      %v1399 = vld [vmem:[%s1373 + $0x64] sm:$0xf]
      %v1400 = vld [vmem:[%s1373 + $0x68] sm:$0xf]
      %v1401 = vld [vmem:[%s1373 + $0x6c] sm:$0xf]
      %v1402 = vld [vmem:[%s1373 + $0x70] sm:$0xf]
      %v1403 = vld [vmem:[%s1373 + $0x74] sm:$0xf]
      %v1404 = vld [vmem:[%s1373 + $0x78] sm:$0xf]
      %v1405 = vld [vmem:[%s1373 + $0x7c] sm:$0xf]
      %v1438 = vunpack.c.l.b16 %v1374
      %v1439 = vunpack.c.l.b16 %v1375
      %v1440 = vunpack.c.l.b16 %v1376
      %v1441 = vunpack.c.l.b16 %v1377
      %v1442 = vunpack.c.l.b16 %v1378
      %v1443 = vunpack.c.l.b16 %v1379
      %v1444 = vunpack.c.l.b16 %v1380
      %v1445 = vunpack.c.l.b16 %v1381
      %v1446 = vunpack.c.l.b16 %v1382
      %v1447 = vunpack.c.l.b16 %v1383
      %v1448 = vunpack.c.l.b16 %v1384
      %v1449 = vunpack.c.l.b16 %v1385
      %v1450 = vunpack.c.l.b16 %v1386
      %v1451 = vunpack.c.l.b16 %v1387
      %v1452 = vunpack.c.l.b16 %v1388
      %v1453 = vunpack.c.l.b16 %v1389
      %v1454 = vunpack.c.l.b16 %v1390
      %v1455 = vunpack.c.l.b16 %v1391
      %v1456 = vunpack.c.l.b16 %v1392
      %v1457 = vunpack.c.l.b16 %v1393
      %v1458 = vunpack.c.l.b16 %v1394
      %v1459 = vunpack.c.l.b16 %v1395
      %v1460 = vunpack.c.l.b16 %v1396
      %v1461 = vunpack.c.l.b16 %v1397
      %v1462 = vunpack.c.l.b16 %v1398
      %v1463 = vunpack.c.l.b16 %v1399
      %v1464 = vunpack.c.l.b16 %v1400
      %v1465 = vunpack.c.l.b16 %v1401
      %v1466 = vunpack.c.l.b16 %v1402
      %v1467 = vunpack.c.l.b16 %v1403
      %v1468 = vunpack.c.l.b16 %v1404
      %v1469 = vunpack.c.l.b16 %v1405
      %v1470 = vpack.c.b16 %v1439, %v1438
      %v1471 = vpack.c.b16 %v1441, %v1440
      %v1472 = vpack.c.b16 %v1443, %v1442
      %v1473 = vpack.c.b16 %v1445, %v1444
      %v1474 = vpack.c.b16 %v1447, %v1446
      %v1475 = vpack.c.b16 %v1449, %v1448
      %v1476 = vpack.c.b16 %v1451, %v1450
      %v1477 = vpack.c.b16 %v1453, %v1452
      %v1478 = vpack.c.b16 %v1455, %v1454
      %v1479 = vpack.c.b16 %v1457, %v1456
      %v1480 = vpack.c.b16 %v1459, %v1458
      %v1481 = vpack.c.b16 %v1461, %v1460
      %v1482 = vpack.c.b16 %v1463, %v1462
      %v1483 = vpack.c.b16 %v1465, %v1464
      %v1484 = vpack.c.b16 %v1467, %v1466
      %v1485 = vpack.c.b16 %v1469, %v1468
      %1502 = vmatprep.subr.bf16.mxu0 0
      %1503 = vmatpush1.bf16.msra.mxu0 %v1470
      %1504 = vmatprep.subr.bf16.mxu0 0
      %1505 = vmatpush1.bf16.msra.mxu0 %v1471
      %1506 = vmatprep.subr.bf16.mxu0 0
      %1507 = vmatpush1.bf16.msra.mxu0 %v1472
      %1508 = vmatprep.subr.bf16.mxu0 0
      %1509 = vmatpush1.bf16.msra.mxu0 %v1473
      %1510 = vmatprep.subr.bf16.mxu0 0
      %1511 = vmatpush1.bf16.msra.mxu0 %v1474
      %1512 = vmatprep.subr.bf16.mxu0 0
      %1513 = vmatpush1.bf16.msra.mxu0 %v1475
      %1514 = vmatprep.subr.bf16.mxu0 0
      %1515 = vmatpush1.bf16.msra.mxu0 %v1476
      %1516 = vmatprep.subr.bf16.mxu0 0
      %1517 = vmatpush1.bf16.msra.mxu0 %v1477
      %1518 = vmatprep.subr.bf16.mxu0 0
      %1519 = vmatpush1.bf16.msra.mxu0 %v1478
      %1520 = vmatprep.subr.bf16.mxu0 0
      %1521 = vmatpush1.bf16.msra.mxu0 %v1479
      %1522 = vmatprep.subr.bf16.mxu0 0
      %1523 = vmatpush1.bf16.msra.mxu0 %v1480
      %1524 = vmatprep.subr.bf16.mxu0 0
      %1525 = vmatpush1.bf16.msra.mxu0 %v1481
      %1526 = vmatprep.subr.bf16.mxu0 0
      %1527 = vmatpush1.bf16.msra.mxu0 %v1482
      %1528 = vmatprep.subr.bf16.mxu0 0
      %1529 = vmatpush1.bf16.msra.mxu0 %v1483
      %1530 = vmatprep.subr.bf16.mxu0 0
      %1531 = vmatpush1.bf16.msra.mxu0 %v1484
      %1532 = vmatprep.subr.bf16.mxu0 0
      %1533 = vmatpush1.bf16.msra.mxu0 %v1485
      %1534 = vmatprep.mubr.bf16.mxu0 %v1147
      %1535 = vmatmul.mubr.bf16.gmra.mrb[0].mxu0 %v1144
      %v1536 = vpop.f32.mrb[0].mxu0
      %v1537 = vadd.f32 0.0, %v1536
      %v1538 = vpop.f32.mrb[0].mxu0
      %v1539 = vpop.f32.mrb[0].mxu0
      %v1540 = vadd.f32 0.0, %v1539
      %v1541 = vpop.f32.mrb[0].mxu0
      %1542 = vmatprep.mubr.bf16.mxu0 %v1151
      %1543 = vmatmul.mubr.bf16.gmra.mrb[0].mxu0 %v1149
      %v1544 = vpop.f32.mrb[0].mxu0
      %v1545 = vadd.f32 0.0, %v1544
      %v1546 = vpop.f32.mrb[0].mxu0
      %v1547 = vpop.f32.mrb[0].mxu0
      %v1548 = vadd.f32 0.0, %v1547
      %v1549 = vpop.f32.mrb[0].mxu0
      %1550 = vmatprep.mubr.bf16.mxu0 %v1155
      %1551 = vmatmul.mubr.bf16.gmra.mrb[0].mxu0 %v1153
      %v1552 = vpop.f32.mrb[0].mxu0
      %v1553 = vadd.f32 0.0, %v1552
      %v1554 = vpop.f32.mrb[0].mxu0
      %v1555 = vpop.f32.mrb[0].mxu0
      %v1556 = vadd.f32 0.0, %v1555
      %v1557 = vpop.f32.mrb[0].mxu0
      %1558 = vmatprep.mubr.bf16.mxu0 %v1159
      %1559 = vmatmul.mubr.bf16.gmra.mrb[0].mxu0 %v1157
      %v1560 = vpop.f32.mrb[0].mxu0
      %v1561 = vadd.f32 0.0, %v1560
      %v1562 = vpop.f32.mrb[0].mxu0
      %v1563 = vpop.f32.mrb[0].mxu0
      %v1564 = vadd.f32 0.0, %v1563
      %v1565 = vpop.f32.mrb[0].mxu0
      %1566 = vmatprep.mubr.bf16.mxu0 %v1163
      %1567 = vmatmul.mubr.bf16.gmra.mrb[0].mxu0 %v1161
      %v1568 = vpop.f32.mrb[0].mxu0
      %v1569 = vadd.f32 0.0, %v1568
      %v1570 = vpop.f32.mrb[0].mxu0
      %v1571 = vpop.f32.mrb[0].mxu0
      %v1572 = vadd.f32 0.0, %v1571
      %v1573 = vpop.f32.mrb[0].mxu0
      %1574 = vdwg.mxu0
      %v1575 = vadd.f32 %v1363, %v1537
      %v1576 = vadd.f32 %v1364, %v1540
      %v1577 = vadd.f32 %v1365, %v1545
      %v1578 = vadd.f32 %v1366, %v1548
      %v1579 = vadd.f32 %v1367, %v1553
      %v1580 = vadd.f32 %v1368, %v1556
      %v1581 = vadd.f32 %v1369, %v1561
      %v1582 = vadd.f32 %v1370, %v1564
      %v1583 = vadd.f32 %v1371, %v1569
      %v1584 = vadd.f32 %v1372, %v1572
      %1585 = vst.msk [vmem:[%s586] sm:$0xff] %vm280, %v1575
      %1586 = vst.msk [vmem:[%s586 + $0x8] sm:$0xff] %vm280, %v1576
      %1587 = vst.msk [vmem:[%s586 + $0x10] sm:$0xff] %vm280, %v1577
      %1588 = vst.msk [vmem:[%s586 + $0x18] sm:$0xff] %vm280, %v1578
      %1589 = vst.msk [vmem:[%s586 + $0x20] sm:$0xff] %vm280, %v1579
      %1590 = vst.msk [vmem:[%s586 + $0x28] sm:$0xff] %vm280, %v1580
      %1591 = vst.msk [vmem:[%s586 + $0x30] sm:$0xff] %vm280, %v1581
      %1592 = vst.msk [vmem:[%s586 + $0x38] sm:$0xff] %vm280, %v1582
      %1593 = vst.msk [vmem:[%s586 + $0x40] sm:$0xff] %vm280, %v1583
      %1594 = vst.msk [vmem:[%s586 + $0x48] sm:$0xff] %vm280, %v1584
      %v1595 = vld [vmem:[%s819] sm:$0xff]
      %v1596 = vld [vmem:[%s819 + $0x8] sm:$0xff]
      %v1597 = vld [vmem:[%s819 + $0x10] sm:$0xff]
      %v1598 = vld [vmem:[%s819 + $0x18] sm:$0xff]
      %v1599 = vld [vmem:[%s819 + $0x20] sm:$0xff]
      %v1600 = vld [vmem:[%s819 + $0x28] sm:$0xff]
      %v1601 = vld [vmem:[%s819 + $0x30] sm:$0xff]
      %v1602 = vld [vmem:[%s819 + $0x38] sm:$0xff]
      %v1603 = vld [vmem:[%s819 + $0x40] sm:$0xff]
      %v1604 = vld [vmem:[%s819 + $0x48] sm:$0xff]
      %s1605 = scalar_lea.vmem %s1, 640
      %v1606 = vld [vmem:[%s1605] sm:$0xf]
      %v1607 = vld [vmem:[%s1605 + $0x4] sm:$0xf]
      %v1608 = vld [vmem:[%s1605 + $0x8] sm:$0xf]
      %v1609 = vld [vmem:[%s1605 + $0xc] sm:$0xf]
      %v1610 = vld [vmem:[%s1605 + $0x10] sm:$0xf]
      %v1611 = vld [vmem:[%s1605 + $0x14] sm:$0xf]
      %v1612 = vld [vmem:[%s1605 + $0x18] sm:$0xf]
      %v1613 = vld [vmem:[%s1605 + $0x1c] sm:$0xf]
      %v1614 = vld [vmem:[%s1605 + $0x20] sm:$0xf]
      %v1615 = vld [vmem:[%s1605 + $0x24] sm:$0xf]
      %v1616 = vld [vmem:[%s1605 + $0x28] sm:$0xf]
      %v1617 = vld [vmem:[%s1605 + $0x2c] sm:$0xf]
      %v1618 = vld [vmem:[%s1605 + $0x30] sm:$0xf]
      %v1619 = vld [vmem:[%s1605 + $0x34] sm:$0xf]
      %v1620 = vld [vmem:[%s1605 + $0x38] sm:$0xf]
      %v1621 = vld [vmem:[%s1605 + $0x3c] sm:$0xf]
      %v1622 = vld [vmem:[%s1605 + $0x40] sm:$0xf]
      %v1623 = vld [vmem:[%s1605 + $0x44] sm:$0xf]
      %v1624 = vld [vmem:[%s1605 + $0x48] sm:$0xf]
      %v1625 = vld [vmem:[%s1605 + $0x4c] sm:$0xf]
      %v1626 = vld [vmem:[%s1605 + $0x50] sm:$0xf]
      %v1627 = vld [vmem:[%s1605 + $0x54] sm:$0xf]
      %v1628 = vld [vmem:[%s1605 + $0x58] sm:$0xf]
      %v1629 = vld [vmem:[%s1605 + $0x5c] sm:$0xf]
      %v1630 = vld [vmem:[%s1605 + $0x60] sm:$0xf]
      %v1631 = vld [vmem:[%s1605 + $0x64] sm:$0xf]
      %v1632 = vld [vmem:[%s1605 + $0x68] sm:$0xf]
      %v1633 = vld [vmem:[%s1605 + $0x6c] sm:$0xf]
      %v1634 = vld [vmem:[%s1605 + $0x70] sm:$0xf]
      %v1635 = vld [vmem:[%s1605 + $0x74] sm:$0xf]
      %v1636 = vld [vmem:[%s1605 + $0x78] sm:$0xf]
      %v1637 = vld [vmem:[%s1605 + $0x7c] sm:$0xf]
      %v1670 = vunpack.c.l.b16 %v1606
      %v1671 = vunpack.c.l.b16 %v1607
      %v1672 = vunpack.c.l.b16 %v1608
      %v1673 = vunpack.c.l.b16 %v1609
      %v1674 = vunpack.c.l.b16 %v1610
      %v1675 = vunpack.c.l.b16 %v1611
      %v1676 = vunpack.c.l.b16 %v1612
      %v1677 = vunpack.c.l.b16 %v1613
      %v1678 = vunpack.c.l.b16 %v1614
      %v1679 = vunpack.c.l.b16 %v1615
      %v1680 = vunpack.c.l.b16 %v1616
      %v1681 = vunpack.c.l.b16 %v1617
      %v1682 = vunpack.c.l.b16 %v1618
      %v1683 = vunpack.c.l.b16 %v1619
      %v1684 = vunpack.c.l.b16 %v1620
      %v1685 = vunpack.c.l.b16 %v1621
      %v1686 = vunpack.c.l.b16 %v1622
      %v1687 = vunpack.c.l.b16 %v1623
      %v1688 = vunpack.c.l.b16 %v1624
      %v1689 = vunpack.c.l.b16 %v1625
      %v1690 = vunpack.c.l.b16 %v1626
      %v1691 = vunpack.c.l.b16 %v1627
      %v1692 = vunpack.c.l.b16 %v1628
      %v1693 = vunpack.c.l.b16 %v1629
      %v1694 = vunpack.c.l.b16 %v1630
      %v1695 = vunpack.c.l.b16 %v1631
      %v1696 = vunpack.c.l.b16 %v1632
      %v1697 = vunpack.c.l.b16 %v1633
      %v1698 = vunpack.c.l.b16 %v1634
      %v1699 = vunpack.c.l.b16 %v1635
      %v1700 = vunpack.c.l.b16 %v1636
      %v1701 = vunpack.c.l.b16 %v1637
      %v1702 = vpack.c.b16 %v1671, %v1670
      %v1703 = vpack.c.b16 %v1673, %v1672
      %v1704 = vpack.c.b16 %v1675, %v1674
      %v1705 = vpack.c.b16 %v1677, %v1676
      %v1706 = vpack.c.b16 %v1679, %v1678
      %v1707 = vpack.c.b16 %v1681, %v1680
      %v1708 = vpack.c.b16 %v1683, %v1682
      %v1709 = vpack.c.b16 %v1685, %v1684
      %v1710 = vpack.c.b16 %v1687, %v1686
      %v1711 = vpack.c.b16 %v1689, %v1688
      %v1712 = vpack.c.b16 %v1691, %v1690
      %v1713 = vpack.c.b16 %v1693, %v1692
      %v1714 = vpack.c.b16 %v1695, %v1694
      %v1715 = vpack.c.b16 %v1697, %v1696
      %v1716 = vpack.c.b16 %v1699, %v1698
      %v1717 = vpack.c.b16 %v1701, %v1700
      %1734 = vmatprep.subr.bf16.mxu0 0
      %1735 = vmatpush1.bf16.msra.mxu0 %v1702
      %1736 = vmatprep.subr.bf16.mxu0 0
      %1737 = vmatpush1.bf16.msra.mxu0 %v1703
      %1738 = vmatprep.subr.bf16.mxu0 0
      %1739 = vmatpush1.bf16.msra.mxu0 %v1704
      %1740 = vmatprep.subr.bf16.mxu0 0
      %1741 = vmatpush1.bf16.msra.mxu0 %v1705
      %1742 = vmatprep.subr.bf16.mxu0 0
      %1743 = vmatpush1.bf16.msra.mxu0 %v1706
      %1744 = vmatprep.subr.bf16.mxu0 0
      %1745 = vmatpush1.bf16.msra.mxu0 %v1707
      %1746 = vmatprep.subr.bf16.mxu0 0
      %1747 = vmatpush1.bf16.msra.mxu0 %v1708
      %1748 = vmatprep.subr.bf16.mxu0 0
      %1749 = vmatpush1.bf16.msra.mxu0 %v1709
      %1750 = vmatprep.subr.bf16.mxu0 0
      %1751 = vmatpush1.bf16.msra.mxu0 %v1710
      %1752 = vmatprep.subr.bf16.mxu0 0
      %1753 = vmatpush1.bf16.msra.mxu0 %v1711
      %1754 = vmatprep.subr.bf16.mxu0 0
      %1755 = vmatpush1.bf16.msra.mxu0 %v1712
      %1756 = vmatprep.subr.bf16.mxu0 0
      %1757 = vmatpush1.bf16.msra.mxu0 %v1713
      %1758 = vmatprep.subr.bf16.mxu0 0
      %1759 = vmatpush1.bf16.msra.mxu0 %v1714
      %1760 = vmatprep.subr.bf16.mxu0 0
      %1761 = vmatpush1.bf16.msra.mxu0 %v1715
      %1762 = vmatprep.subr.bf16.mxu0 0
      %1763 = vmatpush1.bf16.msra.mxu0 %v1716
      %1764 = vmatprep.subr.bf16.mxu0 0
      %1765 = vmatpush1.bf16.msra.mxu0 %v1717
      %1766 = vmatprep.mubr.bf16.mxu0 %v1147
      %1767 = vmatmul.mubr.bf16.gmra.mrb[0].mxu0 %v1144
      %v1768 = vpop.f32.mrb[0].mxu0
      %v1769 = vadd.f32 0.0, %v1768
      %v1770 = vpop.f32.mrb[0].mxu0
      %v1771 = vpop.f32.mrb[0].mxu0
      %v1772 = vadd.f32 0.0, %v1771
      %v1773 = vpop.f32.mrb[0].mxu0
      %1774 = vmatprep.mubr.bf16.mxu0 %v1151
      %1775 = vmatmul.mubr.bf16.gmra.mrb[0].mxu0 %v1149
      %v1776 = vpop.f32.mrb[0].mxu0
      %v1777 = vadd.f32 0.0, %v1776
      %v1778 = vpop.f32.mrb[0].mxu0
      %v1779 = vpop.f32.mrb[0].mxu0
      %v1780 = vadd.f32 0.0, %v1779
      %v1781 = vpop.f32.mrb[0].mxu0
      %1782 = vmatprep.mubr.bf16.mxu0 %v1155
      %1783 = vmatmul.mubr.bf16.gmra.mrb[0].mxu0 %v1153
      %v1784 = vpop.f32.mrb[0].mxu0
      %v1785 = vadd.f32 0.0, %v1784
      %v1786 = vpop.f32.mrb[0].mxu0
      %v1787 = vpop.f32.mrb[0].mxu0
      %v1788 = vadd.f32 0.0, %v1787
      %v1789 = vpop.f32.mrb[0].mxu0
      %1790 = vmatprep.mubr.bf16.mxu0 %v1159
      %1791 = vmatmul.mubr.bf16.gmra.mrb[0].mxu0 %v1157
      %v1792 = vpop.f32.mrb[0].mxu0
      %v1793 = vadd.f32 0.0, %v1792
      %v1794 = vpop.f32.mrb[0].mxu0
      %v1795 = vpop.f32.mrb[0].mxu0
      %v1796 = vadd.f32 0.0, %v1795
      %v1797 = vpop.f32.mrb[0].mxu0
      %1798 = vmatprep.mubr.bf16.mxu0 %v1163
      %1799 = vmatmul.mubr.bf16.gmra.mrb[0].mxu0 %v1161
      %v1800 = vpop.f32.mrb[0].mxu0
      %v1801 = vadd.f32 0.0, %v1800
      %v1802 = vpop.f32.mrb[0].mxu0
      %v1803 = vpop.f32.mrb[0].mxu0
      %v1804 = vadd.f32 0.0, %v1803
      %v1805 = vpop.f32.mrb[0].mxu0
      %1806 = vdwg.mxu0
      %v1807 = vadd.f32 %v1595, %v1769
      %v1808 = vadd.f32 %v1596, %v1772
      %v1809 = vadd.f32 %v1597, %v1777
      %v1810 = vadd.f32 %v1598, %v1780
      %v1811 = vadd.f32 %v1599, %v1785
      %v1812 = vadd.f32 %v1600, %v1788
      %v1813 = vadd.f32 %v1601, %v1793
      %v1814 = vadd.f32 %v1602, %v1796
      %v1815 = vadd.f32 %v1603, %v1801
      %v1816 = vadd.f32 %v1604, %v1804
      %1817 = vst.msk [vmem:[%s819] sm:$0xff] %vm280, %v1807
      %1818 = vst.msk [vmem:[%s819 + $0x8] sm:$0xff] %vm280, %v1808
      %1819 = vst.msk [vmem:[%s819 + $0x10] sm:$0xff] %vm280, %v1809
      %1820 = vst.msk [vmem:[%s819 + $0x18] sm:$0xff] %vm280, %v1810
      %1821 = vst.msk [vmem:[%s819 + $0x20] sm:$0xff] %vm280, %v1811
      %1822 = vst.msk [vmem:[%s819 + $0x28] sm:$0xff] %vm280, %v1812
      %1823 = vst.msk [vmem:[%s819 + $0x30] sm:$0xff] %vm280, %v1813
      %1824 = vst.msk [vmem:[%s819 + $0x38] sm:$0xff] %vm280, %v1814
      %1825 = vst.msk [vmem:[%s819 + $0x40] sm:$0xff] %vm280, %v1815
      %1826 = vst.msk [vmem:[%s819 + $0x48] sm:$0xff] %vm280, %v1816
      %v1827 = vld [vmem:[%s273 + $0x20] sm:$0xf0]
      %v1828 = vld [vmem:[%s273 + $0x28] sm:$0xf0]
      %v1829 = vld [vmem:[%s273 + $0x30] sm:$0xff]
      %v1830 = vld [vmem:[%s273 + $0x38] sm:$0xff]
      %v1831 = vld [vmem:[%s273 + $0x40] sm:$0xff]
      %v1832 = vld [vmem:[%s273 + $0x48] sm:$0xff]
      %v1833 = vld [vmem:[%s273 + $0x50] sm:$0xff]
      %v1834 = vld [vmem:[%s273 + $0x58] sm:$0xff]
      %v1835 = vld [vmem:[%s273 + $0x60] sm:$0xff]
      %v1836 = vld [vmem:[%s273 + $0x68] sm:$0xff]
      %v1837 = vld [vmem:[%s273 + $0x70] sm:$0xff]
      %v1838 = vld [vmem:[%s273 + $0x78] sm:$0xff]
      %v1839 = vld [vmem:[%s273 + $0x80] sm:$0xff]
      %v1840 = vld [vmem:[%s273 + $0x88] sm:$0xff]
      %v1841 = vld [vmem:[%s273 + $0x90] sm:$0xff]
      %v1842 = vld [vmem:[%s273 + $0x98] sm:$0xff]
      %v1843 = vld [vmem:[%s273 + $0xa0] sm:$0xff]
      %v1844 = vld [vmem:[%s273 + $0xa8] sm:$0xff]
      %v1845 = vld [vmem:[%s273 + $0xb0] sm:$0xff]
      %v1846 = vld [vmem:[%s273 + $0xb8] sm:$0xff]
      %v1847 = vld [vmem:[%s273 + $0xc0] sm:$0xf]
      %v1848 = vld [vmem:[%s273 + $0xc8] sm:$0xf]
      %v1849 = vpack.c.bf16 %v1829, %v1827
      %v1850 = vpack.c.bf16 %v1830, %v1828
      %v1851 = vpack.c.bf16 %v1833, %v1831
      %v1852 = vpack.c.bf16 %v1834, %v1832
      %v1853 = vpack.c.bf16 %v1837, %v1835
      %v1854 = vpack.c.bf16 %v1838, %v1836
      %v1855 = vpack.c.bf16 %v1841, %v1839
      %v1856 = vpack.c.bf16 %v1842, %v1840
      %v1857 = vpack.c.bf16 %v1845, %v1843
      %v1858 = vpack.c.bf16 %v1846, %v1844
      %v1859 = vpack.c.bf16 %v1847, %v1847
      %v1860 = vpack.c.bf16 %v1848, %v1848
      %v1861 = vld [vmem:[#allocation2] sm:$0xff]
      %v1862 = vld [vmem:[#allocation2 + $0x8] sm:$0xff]
      %v1863 = vld [vmem:[#allocation2 + $0x10] sm:$0xff]
      %v1864 = vld [vmem:[#allocation2 + $0x18] sm:$0xff]
      %v1865 = vld [vmem:[#allocation2 + $0x20] sm:$0xff]
      %v1866 = vld [vmem:[#allocation2 + $0x28] sm:$0xff]
      %v1867 = vld [vmem:[#allocation2 + $0x30] sm:$0xff]
      %v1868 = vld [vmem:[#allocation2 + $0x38] sm:$0xff]
      %v1869 = vld [vmem:[#allocation2 + $0x40] sm:$0xff]
      %v1870 = vld [vmem:[#allocation2 + $0x48] sm:$0xff]
      %s1871 = scalar_lea.vmem %s1, 768
      %v1872 = vld [vmem:[%s1871] sm:$0xf]
      %v1873 = vld [vmem:[%s1871 + $0x4] sm:$0xf]
      %v1874 = vld [vmem:[%s1871 + $0x8] sm:$0xf]
      %v1875 = vld [vmem:[%s1871 + $0xc] sm:$0xf]
      %v1876 = vld [vmem:[%s1871 + $0x10] sm:$0xf]
      %v1877 = vld [vmem:[%s1871 + $0x14] sm:$0xf]
      %v1878 = vld [vmem:[%s1871 + $0x18] sm:$0xf]
      %v1879 = vld [vmem:[%s1871 + $0x1c] sm:$0xf]
      %v1880 = vld [vmem:[%s1871 + $0x20] sm:$0xf]
      %v1881 = vld [vmem:[%s1871 + $0x24] sm:$0xf]
      %v1882 = vld [vmem:[%s1871 + $0x28] sm:$0xf]
      %v1883 = vld [vmem:[%s1871 + $0x2c] sm:$0xf]
      %v1884 = vld [vmem:[%s1871 + $0x30] sm:$0xf]
      %v1885 = vld [vmem:[%s1871 + $0x34] sm:$0xf]
      %v1886 = vld [vmem:[%s1871 + $0x38] sm:$0xf]
      %v1887 = vld [vmem:[%s1871 + $0x3c] sm:$0xf]
      %v1888 = vld [vmem:[%s1871 + $0x40] sm:$0xf]
      %v1889 = vld [vmem:[%s1871 + $0x44] sm:$0xf]
      %v1890 = vld [vmem:[%s1871 + $0x48] sm:$0xf]
      %v1891 = vld [vmem:[%s1871 + $0x4c] sm:$0xf]
      %v1892 = vld [vmem:[%s1871 + $0x50] sm:$0xf]
      %v1893 = vld [vmem:[%s1871 + $0x54] sm:$0xf]
      %v1894 = vld [vmem:[%s1871 + $0x58] sm:$0xf]
      %v1895 = vld [vmem:[%s1871 + $0x5c] sm:$0xf]
      %v1896 = vld [vmem:[%s1871 + $0x60] sm:$0xf]
      %v1897 = vld [vmem:[%s1871 + $0x64] sm:$0xf]
      %v1898 = vld [vmem:[%s1871 + $0x68] sm:$0xf]
      %v1899 = vld [vmem:[%s1871 + $0x6c] sm:$0xf]
      %v1900 = vld [vmem:[%s1871 + $0x70] sm:$0xf]
      %v1901 = vld [vmem:[%s1871 + $0x74] sm:$0xf]
      %v1902 = vld [vmem:[%s1871 + $0x78] sm:$0xf]
      %v1903 = vld [vmem:[%s1871 + $0x7c] sm:$0xf]
      %vm1916 = vcmask 1045504
      %v1917 = vrot.slane %v1849, 2
      %v1918 = vrot.slane %v1851, 2
      %v1919 = vsel %vm1916, %v1917, %v1918
      %v1920 = vrot.slane %v1850, 2
      %v1921 = vrot.slane %v1852, 2
      %v1922 = vsel %vm1916, %v1920, %v1921
      %v1923 = vrot.slane %v1853, 2
      %v1924 = vsel %vm1916, %v1918, %v1923
      %v1925 = vrot.slane %v1854, 2
      %v1926 = vsel %vm1916, %v1921, %v1925
      %v1927 = vrot.slane %v1855, 2
      %v1928 = vsel %vm1916, %v1923, %v1927
      %v1929 = vrot.slane %v1856, 2
      %v1930 = vsel %vm1916, %v1925, %v1929
      %v1931 = vrot.slane %v1857, 2
      %v1932 = vsel %vm1916, %v1927, %v1931
      %v1933 = vrot.slane %v1858, 2
      %v1934 = vsel %vm1916, %v1929, %v1933
      %v1935 = vrot.slane %v1859, 2
      %v1936 = vsel %vm1916, %v1931, %v1935
      %v1937 = vrot.slane %v1860, 2
      %v1938 = vsel %vm1916, %v1933, %v1937
      %v1981 = vunpack.c.l.b16 %v1872
      %v1982 = vunpack.c.l.b16 %v1873
      %v1983 = vunpack.c.l.b16 %v1874
      %v1984 = vunpack.c.l.b16 %v1875
      %v1985 = vunpack.c.l.b16 %v1876
      %v1986 = vunpack.c.l.b16 %v1877
      %v1987 = vunpack.c.l.b16 %v1878
      %v1988 = vunpack.c.l.b16 %v1879
      %v1989 = vunpack.c.l.b16 %v1880
      %v1990 = vunpack.c.l.b16 %v1881
      %v1991 = vunpack.c.l.b16 %v1882
      %v1992 = vunpack.c.l.b16 %v1883
      %v1993 = vunpack.c.l.b16 %v1884
      %v1994 = vunpack.c.l.b16 %v1885
      %v1995 = vunpack.c.l.b16 %v1886
      %v1996 = vunpack.c.l.b16 %v1887
      %v1997 = vunpack.c.l.b16 %v1888
      %v1998 = vunpack.c.l.b16 %v1889
      %v1999 = vunpack.c.l.b16 %v1890
      %v2000 = vunpack.c.l.b16 %v1891
      %v2001 = vunpack.c.l.b16 %v1892
      %v2002 = vunpack.c.l.b16 %v1893
      %v2003 = vunpack.c.l.b16 %v1894
      %v2004 = vunpack.c.l.b16 %v1895
      %v2005 = vunpack.c.l.b16 %v1896
      %v2006 = vunpack.c.l.b16 %v1897
      %v2007 = vunpack.c.l.b16 %v1898
      %v2008 = vunpack.c.l.b16 %v1899
      %v2009 = vunpack.c.l.b16 %v1900
      %v2010 = vunpack.c.l.b16 %v1901
      %v2011 = vunpack.c.l.b16 %v1902
      %v2012 = vunpack.c.l.b16 %v1903
      %v2013 = vpack.c.b16 %v1982, %v1981
      %v2014 = vpack.c.b16 %v1984, %v1983
      %v2015 = vpack.c.b16 %v1986, %v1985
      %v2016 = vpack.c.b16 %v1988, %v1987
      %v2017 = vpack.c.b16 %v1990, %v1989
      %v2018 = vpack.c.b16 %v1992, %v1991
      %v2019 = vpack.c.b16 %v1994, %v1993
      %v2020 = vpack.c.b16 %v1996, %v1995
      %v2021 = vpack.c.b16 %v1998, %v1997
      %v2022 = vpack.c.b16 %v2000, %v1999
      %v2023 = vpack.c.b16 %v2002, %v2001
      %v2024 = vpack.c.b16 %v2004, %v2003
      %v2025 = vpack.c.b16 %v2006, %v2005
      %v2026 = vpack.c.b16 %v2008, %v2007
      %v2027 = vpack.c.b16 %v2010, %v2009
      %v2028 = vpack.c.b16 %v2012, %v2011
      %2045 = vmatprep.subr.bf16.mxu0 0
      %2046 = vmatpush1.bf16.msra.mxu0 %v2013
      %2047 = vmatprep.subr.bf16.mxu0 0
      %2048 = vmatpush1.bf16.msra.mxu0 %v2014
      %2049 = vmatprep.subr.bf16.mxu0 0
      %2050 = vmatpush1.bf16.msra.mxu0 %v2015
      %2051 = vmatprep.subr.bf16.mxu0 0
      %2052 = vmatpush1.bf16.msra.mxu0 %v2016
      %2053 = vmatprep.subr.bf16.mxu0 0
      %2054 = vmatpush1.bf16.msra.mxu0 %v2017
      %2055 = vmatprep.subr.bf16.mxu0 0
      %2056 = vmatpush1.bf16.msra.mxu0 %v2018
      %2057 = vmatprep.subr.bf16.mxu0 0
      %2058 = vmatpush1.bf16.msra.mxu0 %v2019
      %2059 = vmatprep.subr.bf16.mxu0 0
      %2060 = vmatpush1.bf16.msra.mxu0 %v2020
      %2061 = vmatprep.subr.bf16.mxu0 0
      %2062 = vmatpush1.bf16.msra.mxu0 %v2021
      %2063 = vmatprep.subr.bf16.mxu0 0
      %2064 = vmatpush1.bf16.msra.mxu0 %v2022
      %2065 = vmatprep.subr.bf16.mxu0 0
      %2066 = vmatpush1.bf16.msra.mxu0 %v2023
      %2067 = vmatprep.subr.bf16.mxu0 0
      %2068 = vmatpush1.bf16.msra.mxu0 %v2024
      %2069 = vmatprep.subr.bf16.mxu0 0
      %2070 = vmatpush1.bf16.msra.mxu0 %v2025
      %2071 = vmatprep.subr.bf16.mxu0 0
      %2072 = vmatpush1.bf16.msra.mxu0 %v2026
      %2073 = vmatprep.subr.bf16.mxu0 0
      %2074 = vmatpush1.bf16.msra.mxu0 %v2027
      %2075 = vmatprep.subr.bf16.mxu0 0
      %2076 = vmatpush1.bf16.msra.mxu0 %v2028
      %2077 = vmatprep.mubr.bf16.mxu0 %v1922
      %2078 = vmatmul.mubr.bf16.gmra.mrb[0].mxu0 %v1919
      %v2079 = vpop.f32.mrb[0].mxu0
      %v2080 = vadd.f32 0.0, %v2079
      %v2081 = vpop.f32.mrb[0].mxu0
      %v2082 = vpop.f32.mrb[0].mxu0
      %v2083 = vadd.f32 0.0, %v2082
      %v2084 = vpop.f32.mrb[0].mxu0
      %2085 = vmatprep.mubr.bf16.mxu0 %v1926
      %2086 = vmatmul.mubr.bf16.gmra.mrb[0].mxu0 %v1924
      %v2087 = vpop.f32.mrb[0].mxu0
      %v2088 = vadd.f32 0.0, %v2087
      %v2089 = vpop.f32.mrb[0].mxu0
      %v2090 = vpop.f32.mrb[0].mxu0
      %v2091 = vadd.f32 0.0, %v2090
      %v2092 = vpop.f32.mrb[0].mxu0
      %2093 = vmatprep.mubr.bf16.mxu0 %v1930
      %2094 = vmatmul.mubr.bf16.gmra.mrb[0].mxu0 %v1928
      %v2095 = vpop.f32.mrb[0].mxu0
      %v2096 = vadd.f32 0.0, %v2095
      %v2097 = vpop.f32.mrb[0].mxu0
      %v2098 = vpop.f32.mrb[0].mxu0
      %v2099 = vadd.f32 0.0, %v2098
      %v2100 = vpop.f32.mrb[0].mxu0
      %2101 = vmatprep.mubr.bf16.mxu0 %v1934
      %2102 = vmatmul.mubr.bf16.gmra.mrb[0].mxu0 %v1932
      %v2103 = vpop.f32.mrb[0].mxu0
      %v2104 = vadd.f32 0.0, %v2103
      %v2105 = vpop.f32.mrb[0].mxu0
      %v2106 = vpop.f32.mrb[0].mxu0
      %v2107 = vadd.f32 0.0, %v2106
      %v2108 = vpop.f32.mrb[0].mxu0
      %2109 = vmatprep.mubr.bf16.mxu0 %v1938
      %2110 = vmatmul.mubr.bf16.gmra.mrb[0].mxu0 %v1936
      %v2111 = vpop.f32.mrb[0].mxu0
      %v2112 = vadd.f32 0.0, %v2111
      %v2113 = vpop.f32.mrb[0].mxu0
      %v2114 = vpop.f32.mrb[0].mxu0
      %v2115 = vadd.f32 0.0, %v2114
      %v2116 = vpop.f32.mrb[0].mxu0
      %2117 = vdwg.mxu0
      %v2118 = vadd.f32 %v1861, %v2080
      %v2119 = vadd.f32 %v1862, %v2083
      %v2120 = vadd.f32 %v1863, %v2088
      %v2121 = vadd.f32 %v1864, %v2091
      %v2122 = vadd.f32 %v1865, %v2096
      %v2123 = vadd.f32 %v1866, %v2099
      %v2124 = vadd.f32 %v1867, %v2104
      %v2125 = vadd.f32 %v1868, %v2107
      %v2126 = vadd.f32 %v1869, %v2112
      %v2127 = vadd.f32 %v1870, %v2115
      %2128 = vst.msk [vmem:[#allocation2] sm:$0xff] %vm280, %v2118
      %2129 = vst.msk [vmem:[#allocation2 + $0x8] sm:$0xff] %vm280, %v2119
      %2130 = vst.msk [vmem:[#allocation2 + $0x10] sm:$0xff] %vm280, %v2120
      %2131 = vst.msk [vmem:[#allocation2 + $0x18] sm:$0xff] %vm280, %v2121
      %2132 = vst.msk [vmem:[#allocation2 + $0x20] sm:$0xff] %vm280, %v2122
      %2133 = vst.msk [vmem:[#allocation2 + $0x28] sm:$0xff] %vm280, %v2123
      %2134 = vst.msk [vmem:[#allocation2 + $0x30] sm:$0xff] %vm280, %v2124
      %2135 = vst.msk [vmem:[#allocation2 + $0x38] sm:$0xff] %vm280, %v2125
      %2136 = vst.msk [vmem:[#allocation2 + $0x40] sm:$0xff] %vm280, %v2126
      %2137 = vst.msk [vmem:[#allocation2 + $0x48] sm:$0xff] %vm280, %v2127
      %v2138 = vld [vmem:[%s586] sm:$0xff]
      %v2139 = vld [vmem:[%s586 + $0x8] sm:$0xff]
      %v2140 = vld [vmem:[%s586 + $0x10] sm:$0xff]
      %v2141 = vld [vmem:[%s586 + $0x18] sm:$0xff]
      %v2142 = vld [vmem:[%s586 + $0x20] sm:$0xff]
      %v2143 = vld [vmem:[%s586 + $0x28] sm:$0xff]
      %v2144 = vld [vmem:[%s586 + $0x30] sm:$0xff]
      %v2145 = vld [vmem:[%s586 + $0x38] sm:$0xff]
      %v2146 = vld [vmem:[%s586 + $0x40] sm:$0xff]
      %v2147 = vld [vmem:[%s586 + $0x48] sm:$0xff]
      %s2148 = scalar_lea.vmem %s1, 896
      %v2149 = vld [vmem:[%s2148] sm:$0xf]
      %v2150 = vld [vmem:[%s2148 + $0x4] sm:$0xf]
      %v2151 = vld [vmem:[%s2148 + $0x8] sm:$0xf]
      %v2152 = vld [vmem:[%s2148 + $0xc] sm:$0xf]
      %v2153 = vld [vmem:[%s2148 + $0x10] sm:$0xf]
      %v2154 = vld [vmem:[%s2148 + $0x14] sm:$0xf]
      %v2155 = vld [vmem:[%s2148 + $0x18] sm:$0xf]
      %v2156 = vld [vmem:[%s2148 + $0x1c] sm:$0xf]
      %v2157 = vld [vmem:[%s2148 + $0x20] sm:$0xf]
      %v2158 = vld [vmem:[%s2148 + $0x24] sm:$0xf]
      %v2159 = vld [vmem:[%s2148 + $0x28] sm:$0xf]
      %v2160 = vld [vmem:[%s2148 + $0x2c] sm:$0xf]
      %v2161 = vld [vmem:[%s2148 + $0x30] sm:$0xf]
      %v2162 = vld [vmem:[%s2148 + $0x34] sm:$0xf]
      %v2163 = vld [vmem:[%s2148 + $0x38] sm:$0xf]
      %v2164 = vld [vmem:[%s2148 + $0x3c] sm:$0xf]
      %v2165 = vld [vmem:[%s2148 + $0x40] sm:$0xf]
      %v2166 = vld [vmem:[%s2148 + $0x44] sm:$0xf]
      %v2167 = vld [vmem:[%s2148 + $0x48] sm:$0xf]
      %v2168 = vld [vmem:[%s2148 + $0x4c] sm:$0xf]
      %v2169 = vld [vmem:[%s2148 + $0x50] sm:$0xf]
      %v2170 = vld [vmem:[%s2148 + $0x54] sm:$0xf]
      %v2171 = vld [vmem:[%s2148 + $0x58] sm:$0xf]
      %v2172 = vld [vmem:[%s2148 + $0x5c] sm:$0xf]
      %v2173 = vld [vmem:[%s2148 + $0x60] sm:$0xf]
      %v2174 = vld [vmem:[%s2148 + $0x64] sm:$0xf]
      %v2175 = vld [vmem:[%s2148 + $0x68] sm:$0xf]
      %v2176 = vld [vmem:[%s2148 + $0x6c] sm:$0xf]
      %v2177 = vld [vmem:[%s2148 + $0x70] sm:$0xf]
      %v2178 = vld [vmem:[%s2148 + $0x74] sm:$0xf]
      %v2179 = vld [vmem:[%s2148 + $0x78] sm:$0xf]
      %v2180 = vld [vmem:[%s2148 + $0x7c] sm:$0xf]
      %v2213 = vunpack.c.l.b16 %v2149
      %v2214 = vunpack.c.l.b16 %v2150
      %v2215 = vunpack.c.l.b16 %v2151
      %v2216 = vunpack.c.l.b16 %v2152
      %v2217 = vunpack.c.l.b16 %v2153
      %v2218 = vunpack.c.l.b16 %v2154
      %v2219 = vunpack.c.l.b16 %v2155
      %v2220 = vunpack.c.l.b16 %v2156
      %v2221 = vunpack.c.l.b16 %v2157
      %v2222 = vunpack.c.l.b16 %v2158
      %v2223 = vunpack.c.l.b16 %v2159
      %v2224 = vunpack.c.l.b16 %v2160
      %v2225 = vunpack.c.l.b16 %v2161
      %v2226 = vunpack.c.l.b16 %v2162
      %v2227 = vunpack.c.l.b16 %v2163
      %v2228 = vunpack.c.l.b16 %v2164
      %v2229 = vunpack.c.l.b16 %v2165
      %v2230 = vunpack.c.l.b16 %v2166
      %v2231 = vunpack.c.l.b16 %v2167
      %v2232 = vunpack.c.l.b16 %v2168
      %v2233 = vunpack.c.l.b16 %v2169
      %v2234 = vunpack.c.l.b16 %v2170
      %v2235 = vunpack.c.l.b16 %v2171
      %v2236 = vunpack.c.l.b16 %v2172
      %v2237 = vunpack.c.l.b16 %v2173
      %v2238 = vunpack.c.l.b16 %v2174
      %v2239 = vunpack.c.l.b16 %v2175
      %v2240 = vunpack.c.l.b16 %v2176
      %v2241 = vunpack.c.l.b16 %v2177
      %v2242 = vunpack.c.l.b16 %v2178
      %v2243 = vunpack.c.l.b16 %v2179
      %v2244 = vunpack.c.l.b16 %v2180
      %v2245 = vpack.c.b16 %v2214, %v2213
      %v2246 = vpack.c.b16 %v2216, %v2215
      %v2247 = vpack.c.b16 %v2218, %v2217
      %v2248 = vpack.c.b16 %v2220, %v2219
      %v2249 = vpack.c.b16 %v2222, %v2221
      %v2250 = vpack.c.b16 %v2224, %v2223
      %v2251 = vpack.c.b16 %v2226, %v2225
      %v2252 = vpack.c.b16 %v2228, %v2227
      %v2253 = vpack.c.b16 %v2230, %v2229
      %v2254 = vpack.c.b16 %v2232, %v2231
      %v2255 = vpack.c.b16 %v2234, %v2233
      %v2256 = vpack.c.b16 %v2236, %v2235
      %v2257 = vpack.c.b16 %v2238, %v2237
      %v2258 = vpack.c.b16 %v2240, %v2239
      %v2259 = vpack.c.b16 %v2242, %v2241
      %v2260 = vpack.c.b16 %v2244, %v2243
      %2277 = vmatprep.subr.bf16.mxu0 0
      %2278 = vmatpush1.bf16.msra.mxu0 %v2245
      %2279 = vmatprep.subr.bf16.mxu0 0
      %2280 = vmatpush1.bf16.msra.mxu0 %v2246
      %2281 = vmatprep.subr.bf16.mxu0 0
      %2282 = vmatpush1.bf16.msra.mxu0 %v2247
      %2283 = vmatprep.subr.bf16.mxu0 0
      %2284 = vmatpush1.bf16.msra.mxu0 %v2248
      %2285 = vmatprep.subr.bf16.mxu0 0
      %2286 = vmatpush1.bf16.msra.mxu0 %v2249
      %2287 = vmatprep.subr.bf16.mxu0 0
      %2288 = vmatpush1.bf16.msra.mxu0 %v2250
      %2289 = vmatprep.subr.bf16.mxu0 0
      %2290 = vmatpush1.bf16.msra.mxu0 %v2251
      %2291 = vmatprep.subr.bf16.mxu0 0
      %2292 = vmatpush1.bf16.msra.mxu0 %v2252
      %2293 = vmatprep.subr.bf16.mxu0 0
      %2294 = vmatpush1.bf16.msra.mxu0 %v2253
      %2295 = vmatprep.subr.bf16.mxu0 0
      %2296 = vmatpush1.bf16.msra.mxu0 %v2254
      %2297 = vmatprep.subr.bf16.mxu0 0
      %2298 = vmatpush1.bf16.msra.mxu0 %v2255
      %2299 = vmatprep.subr.bf16.mxu0 0
      %2300 = vmatpush1.bf16.msra.mxu0 %v2256
      %2301 = vmatprep.subr.bf16.mxu0 0
      %2302 = vmatpush1.bf16.msra.mxu0 %v2257
      %2303 = vmatprep.subr.bf16.mxu0 0
      %2304 = vmatpush1.bf16.msra.mxu0 %v2258
      %2305 = vmatprep.subr.bf16.mxu0 0
      %2306 = vmatpush1.bf16.msra.mxu0 %v2259
      %2307 = vmatprep.subr.bf16.mxu0 0
      %2308 = vmatpush1.bf16.msra.mxu0 %v2260
      %2309 = vmatprep.mubr.bf16.mxu0 %v1922
      %2310 = vmatmul.mubr.bf16.gmra.mrb[0].mxu0 %v1919
      %v2311 = vpop.f32.mrb[0].mxu0
      %v2312 = vadd.f32 0.0, %v2311
      %v2313 = vpop.f32.mrb[0].mxu0
      %v2314 = vpop.f32.mrb[0].mxu0
      %v2315 = vadd.f32 0.0, %v2314
      %v2316 = vpop.f32.mrb[0].mxu0
      %2317 = vmatprep.mubr.bf16.mxu0 %v1926
      %2318 = vmatmul.mubr.bf16.gmra.mrb[0].mxu0 %v1924
      %v2319 = vpop.f32.mrb[0].mxu0
      %v2320 = vadd.f32 0.0, %v2319
      %v2321 = vpop.f32.mrb[0].mxu0
      %v2322 = vpop.f32.mrb[0].mxu0
      %v2323 = vadd.f32 0.0, %v2322
      %v2324 = vpop.f32.mrb[0].mxu0
      %2325 = vmatprep.mubr.bf16.mxu0 %v1930
      %2326 = vmatmul.mubr.bf16.gmra.mrb[0].mxu0 %v1928
      %v2327 = vpop.f32.mrb[0].mxu0
      %v2328 = vadd.f32 0.0, %v2327
      %v2329 = vpop.f32.mrb[0].mxu0
      %v2330 = vpop.f32.mrb[0].mxu0
      %v2331 = vadd.f32 0.0, %v2330
      %v2332 = vpop.f32.mrb[0].mxu0
      %2333 = vmatprep.mubr.bf16.mxu0 %v1934
      %2334 = vmatmul.mubr.bf16.gmra.mrb[0].mxu0 %v1932
      %v2335 = vpop.f32.mrb[0].mxu0
      %v2336 = vadd.f32 0.0, %v2335
      %v2337 = vpop.f32.mrb[0].mxu0
      %v2338 = vpop.f32.mrb[0].mxu0
      %v2339 = vadd.f32 0.0, %v2338
      %v2340 = vpop.f32.mrb[0].mxu0
      %2341 = vmatprep.mubr.bf16.mxu0 %v1938
      %2342 = vmatmul.mubr.bf16.gmra.mrb[0].mxu0 %v1936
      %v2343 = vpop.f32.mrb[0].mxu0
      %v2344 = vadd.f32 0.0, %v2343
      %v2345 = vpop.f32.mrb[0].mxu0
      %v2346 = vpop.f32.mrb[0].mxu0
      %v2347 = vadd.f32 0.0, %v2346
      %v2348 = vpop.f32.mrb[0].mxu0
      %2349 = vdwg.mxu0
      %v2350 = vadd.f32 %v2138, %v2312
      %v2351 = vadd.f32 %v2139, %v2315
      %v2352 = vadd.f32 %v2140, %v2320
      %v2353 = vadd.f32 %v2141, %v2323
      %v2354 = vadd.f32 %v2142, %v2328
      %v2355 = vadd.f32 %v2143, %v2331
      %v2356 = vadd.f32 %v2144, %v2336
      %v2357 = vadd.f32 %v2145, %v2339
      %v2358 = vadd.f32 %v2146, %v2344
      %v2359 = vadd.f32 %v2147, %v2347
      %2360 = vst.msk [vmem:[%s586] sm:$0xff] %vm280, %v2350
      %2361 = vst.msk [vmem:[%s586 + $0x8] sm:$0xff] %vm280, %v2351
      %2362 = vst.msk [vmem:[%s586 + $0x10] sm:$0xff] %vm280, %v2352
      %2363 = vst.msk [vmem:[%s586 + $0x18] sm:$0xff] %vm280, %v2353
      %2364 = vst.msk [vmem:[%s586 + $0x20] sm:$0xff] %vm280, %v2354
      %2365 = vst.msk [vmem:[%s586 + $0x28] sm:$0xff] %vm280, %v2355
      %2366 = vst.msk [vmem:[%s586 + $0x30] sm:$0xff] %vm280, %v2356
      %2367 = vst.msk [vmem:[%s586 + $0x38] sm:$0xff] %vm280, %v2357
      %2368 = vst.msk [vmem:[%s586 + $0x40] sm:$0xff] %vm280, %v2358
      %2369 = vst.msk [vmem:[%s586 + $0x48] sm:$0xff] %vm280, %v2359
      %v2370 = vld [vmem:[%s819] sm:$0xff]
      %v2371 = vld [vmem:[%s819 + $0x8] sm:$0xff]
      %v2372 = vld [vmem:[%s819 + $0x10] sm:$0xff]
      %v2373 = vld [vmem:[%s819 + $0x18] sm:$0xff]
      %v2374 = vld [vmem:[%s819 + $0x20] sm:$0xff]
      %v2375 = vld [vmem:[%s819 + $0x28] sm:$0xff]
      %v2376 = vld [vmem:[%s819 + $0x30] sm:$0xff]
      %v2377 = vld [vmem:[%s819 + $0x38] sm:$0xff]
      %v2378 = vld [vmem:[%s819 + $0x40] sm:$0xff]
      %v2379 = vld [vmem:[%s819 + $0x48] sm:$0xff]
      %s2380 = scalar_lea.vmem %s1, 1024
      %v2381 = vld [vmem:[%s2380] sm:$0xf]
      %v2382 = vld [vmem:[%s2380 + $0x4] sm:$0xf]
      %v2383 = vld [vmem:[%s2380 + $0x8] sm:$0xf]
      %v2384 = vld [vmem:[%s2380 + $0xc] sm:$0xf]
      %v2385 = vld [vmem:[%s2380 + $0x10] sm:$0xf]
      %v2386 = vld [vmem:[%s2380 + $0x14] sm:$0xf]
      %v2387 = vld [vmem:[%s2380 + $0x18] sm:$0xf]
      %v2388 = vld [vmem:[%s2380 + $0x1c] sm:$0xf]
      %v2389 = vld [vmem:[%s2380 + $0x20] sm:$0xf]
      %v2390 = vld [vmem:[%s2380 + $0x24] sm:$0xf]
      %v2391 = vld [vmem:[%s2380 + $0x28] sm:$0xf]
      %v2392 = vld [vmem:[%s2380 + $0x2c] sm:$0xf]
      %v2393 = vld [vmem:[%s2380 + $0x30] sm:$0xf]
      %v2394 = vld [vmem:[%s2380 + $0x34] sm:$0xf]
      %v2395 = vld [vmem:[%s2380 + $0x38] sm:$0xf]
      %v2396 = vld [vmem:[%s2380 + $0x3c] sm:$0xf]
      %v2397 = vld [vmem:[%s2380 + $0x40] sm:$0xf]
      %v2398 = vld [vmem:[%s2380 + $0x44] sm:$0xf]
      %v2399 = vld [vmem:[%s2380 + $0x48] sm:$0xf]
      %v2400 = vld [vmem:[%s2380 + $0x4c] sm:$0xf]
      %v2401 = vld [vmem:[%s2380 + $0x50] sm:$0xf]
      %v2402 = vld [vmem:[%s2380 + $0x54] sm:$0xf]
      %v2403 = vld [vmem:[%s2380 + $0x58] sm:$0xf]
      %v2404 = vld [vmem:[%s2380 + $0x5c] sm:$0xf]
      %v2405 = vld [vmem:[%s2380 + $0x60] sm:$0xf]
      %v2406 = vld [vmem:[%s2380 + $0x64] sm:$0xf]
      %v2407 = vld [vmem:[%s2380 + $0x68] sm:$0xf]
      %v2408 = vld [vmem:[%s2380 + $0x6c] sm:$0xf]
      %v2409 = vld [vmem:[%s2380 + $0x70] sm:$0xf]
      %v2410 = vld [vmem:[%s2380 + $0x74] sm:$0xf]
      %v2411 = vld [vmem:[%s2380 + $0x78] sm:$0xf]
      %v2412 = vld [vmem:[%s2380 + $0x7c] sm:$0xf]
      %v2445 = vunpack.c.l.b16 %v2381
      %v2446 = vunpack.c.l.b16 %v2382
      %v2447 = vunpack.c.l.b16 %v2383
      %v2448 = vunpack.c.l.b16 %v2384
      %v2449 = vunpack.c.l.b16 %v2385
      %v2450 = vunpack.c.l.b16 %v2386
      %v2451 = vunpack.c.l.b16 %v2387
      %v2452 = vunpack.c.l.b16 %v2388
      %v2453 = vunpack.c.l.b16 %v2389
      %v2454 = vunpack.c.l.b16 %v2390
      %v2455 = vunpack.c.l.b16 %v2391
      %v2456 = vunpack.c.l.b16 %v2392
      %v2457 = vunpack.c.l.b16 %v2393
      %v2458 = vunpack.c.l.b16 %v2394
      %v2459 = vunpack.c.l.b16 %v2395
      %v2460 = vunpack.c.l.b16 %v2396
      %v2461 = vunpack.c.l.b16 %v2397
      %v2462 = vunpack.c.l.b16 %v2398
      %v2463 = vunpack.c.l.b16 %v2399
      %v2464 = vunpack.c.l.b16 %v2400
      %v2465 = vunpack.c.l.b16 %v2401
      %v2466 = vunpack.c.l.b16 %v2402
      %v2467 = vunpack.c.l.b16 %v2403
      %v2468 = vunpack.c.l.b16 %v2404
      %v2469 = vunpack.c.l.b16 %v2405
      %v2470 = vunpack.c.l.b16 %v2406
      %v2471 = vunpack.c.l.b16 %v2407
      %v2472 = vunpack.c.l.b16 %v2408
      %v2473 = vunpack.c.l.b16 %v2409
      %v2474 = vunpack.c.l.b16 %v2410
      %v2475 = vunpack.c.l.b16 %v2411
      %v2476 = vunpack.c.l.b16 %v2412
      %v2477 = vpack.c.b16 %v2446, %v2445
      %v2478 = vpack.c.b16 %v2448, %v2447
      %v2479 = vpack.c.b16 %v2450, %v2449
      %v2480 = vpack.c.b16 %v2452, %v2451
      %v2481 = vpack.c.b16 %v2454, %v2453
      %v2482 = vpack.c.b16 %v2456, %v2455
      %v2483 = vpack.c.b16 %v2458, %v2457
      %v2484 = vpack.c.b16 %v2460, %v2459
      %v2485 = vpack.c.b16 %v2462, %v2461
      %v2486 = vpack.c.b16 %v2464, %v2463
      %v2487 = vpack.c.b16 %v2466, %v2465
      %v2488 = vpack.c.b16 %v2468, %v2467
      %v2489 = vpack.c.b16 %v2470, %v2469
      %v2490 = vpack.c.b16 %v2472, %v2471
      %v2491 = vpack.c.b16 %v2474, %v2473
      %v2492 = vpack.c.b16 %v2476, %v2475
      %2509 = vmatprep.subr.bf16.mxu0 0
      %2510 = vmatpush1.bf16.msra.mxu0 %v2477
      %2511 = vmatprep.subr.bf16.mxu0 0
      %2512 = vmatpush1.bf16.msra.mxu0 %v2478
      %2513 = vmatprep.subr.bf16.mxu0 0
      %2514 = vmatpush1.bf16.msra.mxu0 %v2479
      %2515 = vmatprep.subr.bf16.mxu0 0
      %2516 = vmatpush1.bf16.msra.mxu0 %v2480
      %2517 = vmatprep.subr.bf16.mxu0 0
      %2518 = vmatpush1.bf16.msra.mxu0 %v2481
      %2519 = vmatprep.subr.bf16.mxu0 0
      %2520 = vmatpush1.bf16.msra.mxu0 %v2482
      %2521 = vmatprep.subr.bf16.mxu0 0
      %2522 = vmatpush1.bf16.msra.mxu0 %v2483
      %2523 = vmatprep.subr.bf16.mxu0 0
      %2524 = vmatpush1.bf16.msra.mxu0 %v2484
      %2525 = vmatprep.subr.bf16.mxu0 0
      %2526 = vmatpush1.bf16.msra.mxu0 %v2485
      %2527 = vmatprep.subr.bf16.mxu0 0
      %2528 = vmatpush1.bf16.msra.mxu0 %v2486
      %2529 = vmatprep.subr.bf16.mxu0 0
      %2530 = vmatpush1.bf16.msra.mxu0 %v2487
      %2531 = vmatprep.subr.bf16.mxu0 0
      %2532 = vmatpush1.bf16.msra.mxu0 %v2488
      %2533 = vmatprep.subr.bf16.mxu0 0
      %2534 = vmatpush1.bf16.msra.mxu0 %v2489
      %2535 = vmatprep.subr.bf16.mxu0 0
      %2536 = vmatpush1.bf16.msra.mxu0 %v2490
      %2537 = vmatprep.subr.bf16.mxu0 0
      %2538 = vmatpush1.bf16.msra.mxu0 %v2491
      %2539 = vmatprep.subr.bf16.mxu0 0
      %2540 = vmatpush1.bf16.msra.mxu0 %v2492
      %2541 = vmatprep.mubr.bf16.mxu0 %v1922
      %2542 = vmatmul.mubr.bf16.gmra.mrb[0].mxu0 %v1919
      %v2543 = vpop.f32.mrb[0].mxu0
      %v2544 = vadd.f32 0.0, %v2543
      %v2545 = vpop.f32.mrb[0].mxu0
      %v2546 = vpop.f32.mrb[0].mxu0
      %v2547 = vadd.f32 0.0, %v2546
      %v2548 = vpop.f32.mrb[0].mxu0
      %2549 = vmatprep.mubr.bf16.mxu0 %v1926
      %2550 = vmatmul.mubr.bf16.gmra.mrb[0].mxu0 %v1924
      %v2551 = vpop.f32.mrb[0].mxu0
      %v2552 = vadd.f32 0.0, %v2551
      %v2553 = vpop.f32.mrb[0].mxu0
      %v2554 = vpop.f32.mrb[0].mxu0
      %v2555 = vadd.f32 0.0, %v2554
      %v2556 = vpop.f32.mrb[0].mxu0
      %2557 = vmatprep.mubr.bf16.mxu0 %v1930
      %2558 = vmatmul.mubr.bf16.gmra.mrb[0].mxu0 %v1928
      %v2559 = vpop.f32.mrb[0].mxu0
      %v2560 = vadd.f32 0.0, %v2559
      %v2561 = vpop.f32.mrb[0].mxu0
      %v2562 = vpop.f32.mrb[0].mxu0
      %v2563 = vadd.f32 0.0, %v2562
      %v2564 = vpop.f32.mrb[0].mxu0
      %2565 = vmatprep.mubr.bf16.mxu0 %v1934
      %2566 = vmatmul.mubr.bf16.gmra.mrb[0].mxu0 %v1932
      %v2567 = vpop.f32.mrb[0].mxu0
      %v2568 = vadd.f32 0.0, %v2567
      %v2569 = vpop.f32.mrb[0].mxu0
      %v2570 = vpop.f32.mrb[0].mxu0
      %v2571 = vadd.f32 0.0, %v2570
      %v2572 = vpop.f32.mrb[0].mxu0
      %2573 = vmatprep.mubr.bf16.mxu0 %v1938
      %2574 = vmatmul.mubr.bf16.gmra.mrb[0].mxu0 %v1936
      %v2575 = vpop.f32.mrb[0].mxu0
      %v2576 = vadd.f32 0.0, %v2575
      %v2577 = vpop.f32.mrb[0].mxu0
      %v2578 = vpop.f32.mrb[0].mxu0
      %v2579 = vadd.f32 0.0, %v2578
      %v2580 = vpop.f32.mrb[0].mxu0
      %2581 = vdwg.mxu0
      %v2582 = vadd.f32 %v2370, %v2544
      %v2583 = vadd.f32 %v2371, %v2547
      %v2584 = vadd.f32 %v2372, %v2552
      %v2585 = vadd.f32 %v2373, %v2555
      %v2586 = vadd.f32 %v2374, %v2560
      %v2587 = vadd.f32 %v2375, %v2563
      %v2588 = vadd.f32 %v2376, %v2568
      %v2589 = vadd.f32 %v2377, %v2571
      %v2590 = vadd.f32 %v2378, %v2576
      %v2591 = vadd.f32 %v2379, %v2579
      %2592 = vst.msk [vmem:[%s819] sm:$0xff] %vm280, %v2582
      %2593 = vst.msk [vmem:[%s819 + $0x8] sm:$0xff] %vm280, %v2583
      %2594 = vst.msk [vmem:[%s819 + $0x10] sm:$0xff] %vm280, %v2584
      %2595 = vst.msk [vmem:[%s819 + $0x18] sm:$0xff] %vm280, %v2585
      %2596 = vst.msk [vmem:[%s819 + $0x20] sm:$0xff] %vm280, %v2586
      %2597 = vst.msk [vmem:[%s819 + $0x28] sm:$0xff] %vm280, %v2587
      %2598 = vst.msk [vmem:[%s819 + $0x30] sm:$0xff] %vm280, %v2588
      %2599 = vst.msk [vmem:[%s819 + $0x38] sm:$0xff] %vm280, %v2589
      %2600 = vst.msk [vmem:[%s819 + $0x40] sm:$0xff] %vm280, %v2590
      %2601 = vst.msk [vmem:[%s819 + $0x48] sm:$0xff] %vm280, %v2591
      %v2602 = vld [vmem:[%s2] sm:$0x1]
      %v2603 = vld [vmem:[%s3] sm:$0x1]
      %v2604 = vld [vmem:[#allocation2] sm:$0xff]
      %v2605 = vld [vmem:[%s586 + $0x1] sm:$0xff]
      %v2606 = vadd.f32 %v2604, %v2605
      %v2607 = vld [vmem:[%s819 + $0x2] sm:$0xff]
      %v2608 = vadd.f32 %v2606, %v2607
      %v2610 = vlaneseq
      %v2611 = vshrl.u32 %v2610, 7
      %v2612 = vsub.s32 0, %v2611
      %v2613 = vrot.slane %v2602, %v2612
      %v2615 = vmul.f32 %v2608, %v2613
      %v2617 = vlaneseq
      %v2618 = vshrl.u32 %v2617, 7
      %v2619 = vsub.s32 0, %v2618
      %v2620 = vrot.slane %v2603, %v2619
      %v2622 = vadd.f32 %v2615, %v2620
      %v2623 = vmax.f32 %v2622, 0.0
      %2624 = vst.msk [vmem:[#allocation3 + $0xb] sm:$0xff] %vm280, %v2623
      %v2625 = vld [vmem:[#allocation2 + $0xa] sm:$0xff]
      %v2626 = vld [vmem:[%s586 + $0xb] sm:$0xff]
      %v2627 = vadd.f32 %v2625, %v2626
      %v2628 = vld [vmem:[%s819 + $0xc] sm:$0xff]
      %v2629 = vadd.f32 %v2627, %v2628
      %v2630 = vmul.f32 %v2629, %v2613
      %v2631 = vadd.f32 %v2630, %v2620
      %v2632 = vmax.f32 %v2631, 0.0
      %2633 = vst.msk [vmem:[#allocation3 + $0x15] sm:$0xff] %vm280, %v2632
      %v2634 = vld [vmem:[#allocation2 + $0x14] sm:$0xff]
      %v2635 = vld [vmem:[%s586 + $0x15] sm:$0xff]
      %v2636 = vadd.f32 %v2634, %v2635
      %v2637 = vld [vmem:[%s819 + $0x16] sm:$0xff]
      %v2638 = vadd.f32 %v2636, %v2637
      %v2639 = vmul.f32 %v2638, %v2613
      %v2640 = vadd.f32 %v2639, %v2620
      %v2641 = vmax.f32 %v2640, 0.0
      %2642 = vst.msk [vmem:[#allocation3 + $0x1f] sm:$0xff] %vm280, %v2641
      %v2643 = vld [vmem:[#allocation2 + $0x1e] sm:$0xff]
      %v2644 = vld [vmem:[%s586 + $0x1f] sm:$0xff]
      %v2645 = vadd.f32 %v2643, %v2644
      %v2646 = vld [vmem:[%s819 + $0x20] sm:$0xff]
      %v2647 = vadd.f32 %v2645, %v2646
      %v2648 = vmul.f32 %v2647, %v2613
      %v2649 = vadd.f32 %v2648, %v2620
      %v2650 = vmax.f32 %v2649, 0.0
      %2651 = vst.msk [vmem:[#allocation3 + $0x29] sm:$0xff] %vm280, %v2650
      %v2652 = vld [vmem:[#allocation2 + $0x28] sm:$0xff]
      %v2653 = vld [vmem:[%s586 + $0x29] sm:$0xff]
      %v2654 = vadd.f32 %v2652, %v2653
      %v2655 = vld [vmem:[%s819 + $0x2a] sm:$0xff]
      %v2656 = vadd.f32 %v2654, %v2655
      %v2657 = vmul.f32 %v2656, %v2613
      %v2658 = vadd.f32 %v2657, %v2620
      %v2659 = vmax.f32 %v2658, 0.0
      %2660 = vst.msk [vmem:[#allocation3 + $0x33] sm:$0xff] %vm280, %v2659
      %v2661 = vld [vmem:[#allocation2 + $0x32] sm:$0xff]
      %v2662 = vld [vmem:[%s586 + $0x33] sm:$0xff]
      %v2663 = vadd.f32 %v2661, %v2662
      %v2664 = vld [vmem:[%s819 + $0x34] sm:$0xff]
      %v2665 = vadd.f32 %v2663, %v2664
      %v2666 = vmul.f32 %v2665, %v2613
      %v2667 = vadd.f32 %v2666, %v2620
      %v2668 = vmax.f32 %v2667, 0.0
      %2669 = vst.msk [vmem:[#allocation3 + $0x3d] sm:$0xff] %vm280, %v2668
      %v2670 = vld [vmem:[#allocation2 + $0x3c] sm:$0xff]
      %v2671 = vld [vmem:[%s586 + $0x3d] sm:$0xff]
      %v2672 = vadd.f32 %v2670, %v2671
      %v2673 = vld [vmem:[%s819 + $0x3e] sm:$0xff]
      %v2674 = vadd.f32 %v2672, %v2673
      %v2675 = vmul.f32 %v2674, %v2613
      %v2676 = vadd.f32 %v2675, %v2620
      %v2677 = vmax.f32 %v2676, 0.0
      %2678 = vst.msk [vmem:[#allocation3 + $0x47] sm:$0xff] %vm280, %v2677
      %v2679 = vld [vmem:[#allocation2 + $0x46] sm:$0xff]
      %v2680 = vld [vmem:[%s586 + $0x47] sm:$0xff]
      %v2681 = vadd.f32 %v2679, %v2680
      %v2682 = vld [vmem:[%s819 + $0x48] sm:$0xff]
      %v2683 = vadd.f32 %v2681, %v2682
      %v2684 = vmul.f32 %v2683, %v2613
      %v2685 = vadd.f32 %v2684, %v2620
      %v2686 = vmax.f32 %v2685, 0.0
      %2687 = vst.msk [vmem:[#allocation3 + $0x51] sm:$0xff] %vm280, %v2686
      %2688 = vst.msk [vmem:[#allocation2] sm:$0xff] %vm280, 0.0
      %2689 = vst.msk [vmem:[#allocation2 + $0x8] sm:$0xff] %vm280, 0.0
      %2690 = vst.msk [vmem:[#allocation2 + $0x10] sm:$0xff] %vm280, 0.0
      %2691 = vst.msk [vmem:[#allocation2 + $0x18] sm:$0xff] %vm280, 0.0
      %2692 = vst.msk [vmem:[#allocation2 + $0x20] sm:$0xff] %vm280, 0.0
      %2693 = vst.msk [vmem:[#allocation2 + $0x28] sm:$0xff] %vm280, 0.0
      %2694 = vst.msk [vmem:[#allocation2 + $0x30] sm:$0xff] %vm280, 0.0
      %2695 = vst.msk [vmem:[#allocation2 + $0x38] sm:$0xff] %vm280, 0.0
      %2696 = vst.msk [vmem:[#allocation2 + $0x40] sm:$0xff] %vm280, 0.0
      %2697 = vst.msk [vmem:[#allocation2 + $0x48] sm:$0xff] %vm280, 0.0
      %2698 = vst.msk [vmem:[#allocation2 + $0x50] sm:$0xff] %vm280, 0.0
      %2699 = vst.msk [vmem:[#allocation2 + $0x58] sm:$0xff] %vm280, 0.0
      %2700 = vst.msk [vmem:[#allocation2 + $0x60] sm:$0xff] %vm280, 0.0
      %2701 = vst.msk [vmem:[#allocation2 + $0x68] sm:$0xff] %vm280, 0.0
      %2702 = vst.msk [vmem:[#allocation2 + $0x70] sm:$0xff] %vm280, 0.0
      %2703 = vst.msk [vmem:[#allocation2 + $0x78] sm:$0xff] %vm280, 0.0
      %2704 = vst.msk [vmem:[#allocation2 + $0x80] sm:$0xff] %vm280, 0.0
      %2705 = vst.msk [vmem:[#allocation2 + $0x88] sm:$0xff] %vm280, 0.0
      %2706 = vst.msk [vmem:[#allocation2 + $0x90] sm:$0xff] %vm280, 0.0
      %2707 = vst.msk [vmem:[#allocation2 + $0x98] sm:$0xff] %vm280, 0.0
      %2708 = vst.msk [vmem:[#allocation2 + $0xa0] sm:$0xff] %vm280, 0.0
      %2709 = vst.msk [vmem:[#allocation2 + $0xa8] sm:$0xff] %vm280, 0.0
      %2710 = vst.msk [vmem:[#allocation2 + $0xb0] sm:$0xff] %vm280, 0.0
      %2711 = vst.msk [vmem:[#allocation2 + $0xb8] sm:$0xff] %vm280, 0.0
      %2712 = vst.msk [vmem:[#allocation2 + $0xc0] sm:$0xff] %vm280, 0.0
      %2713 = vst.msk [vmem:[#allocation2 + $0xc8] sm:$0xff] %vm280, 0.0
      %2714 = vst.msk [vmem:[#allocation2 + $0xd0] sm:$0xff] %vm280, 0.0
      %2715 = vst.msk [vmem:[#allocation2 + $0xd8] sm:$0xff] %vm280, 0.0
      %2716 = vst.msk [vmem:[#allocation2 + $0xe0] sm:$0xff] %vm280, 0.0
      %2717 = vst.msk [vmem:[#allocation2 + $0xe8] sm:$0xff] %vm280, 0.0
      %v2718 = vld [vmem:[#allocation3] sm:$0xff]
      %v2719 = vld [vmem:[#allocation3 + $0x8] sm:$0xff]
      %v2720 = vld [vmem:[#allocation3 + $0x10] sm:$0xff]
      %v2721 = vld [vmem:[#allocation3 + $0x18] sm:$0xff]
      %v2722 = vld [vmem:[#allocation3 + $0x20] sm:$0xff]
      %v2723 = vld [vmem:[#allocation3 + $0x28] sm:$0xff]
      %v2724 = vld [vmem:[#allocation3 + $0x30] sm:$0xff]
      %v2725 = vld [vmem:[#allocation3 + $0x38] sm:$0xff]
      %v2726 = vld [vmem:[#allocation3 + $0x40] sm:$0xff]
      %v2727 = vld [vmem:[#allocation3 + $0x48] sm:$0xff]
      %v2728 = vpack.c.bf16 %v2719, %v2718
      %v2729 = vpack.c.bf16 %v2721, %v2720
      %v2730 = vpack.c.bf16 %v2723, %v2722
      %v2731 = vpack.c.bf16 %v2725, %v2724
      %v2732 = vpack.c.bf16 %v2727, %v2726
      %v2733 = vld [vmem:[#allocation2] sm:$0xff]
      %v2734 = vld [vmem:[#allocation2 + $0x8] sm:$0xff]
      %v2735 = vld [vmem:[#allocation2 + $0x10] sm:$0xff]
      %v2736 = vld [vmem:[#allocation2 + $0x18] sm:$0xff]
      %v2737 = vld [vmem:[#allocation2 + $0x20] sm:$0xff]
      %v2738 = vld [vmem:[#allocation2 + $0x28] sm:$0xff]
      %v2739 = vld [vmem:[#allocation2 + $0x30] sm:$0xff]
      %v2740 = vld [vmem:[#allocation2 + $0x38] sm:$0xff]
      %v2741 = vld [vmem:[#allocation2 + $0x40] sm:$0xff]
      %v2742 = vld [vmem:[#allocation2 + $0x48] sm:$0xff]
      %v2743 = vld [vmem:[%s4] sm:$0xf]
      %v2744 = vld [vmem:[%s4 + $0x4] sm:$0xf]
      %v2745 = vld [vmem:[%s4 + $0x8] sm:$0xf]
      %v2746 = vld [vmem:[%s4 + $0xc] sm:$0xf]
      %v2747 = vld [vmem:[%s4 + $0x10] sm:$0xf]
      %v2748 = vld [vmem:[%s4 + $0x14] sm:$0xf]
      %v2749 = vld [vmem:[%s4 + $0x18] sm:$0xf]
      %v2750 = vld [vmem:[%s4 + $0x1c] sm:$0xf]
      %v2759 = vunpack.c.l.b16 %v2743
      %v2760 = vunpack.c.l.b16 %v2744
      %v2761 = vunpack.c.l.b16 %v2745
      %v2762 = vunpack.c.l.b16 %v2746
      %v2763 = vunpack.c.l.b16 %v2747
      %v2764 = vunpack.c.l.b16 %v2748
      %v2765 = vunpack.c.l.b16 %v2749
      %v2766 = vunpack.c.l.b16 %v2750
      %v2767 = vpack.c.b16 %v2760, %v2759
      %v2768 = vpack.c.b16 %v2762, %v2761
      %v2769 = vpack.c.b16 %v2764, %v2763
      %v2770 = vpack.c.b16 %v2766, %v2765
      %v2776 = vsel %vm280, %v2728, 0
      %v2779 = vsel %vm280, %v2729, 0
      %v2782 = vsel %vm280, %v2730, 0
      %v2785 = vsel %vm280, %v2731, 0
      %v2788 = vsel %vm280, %v2732, 0
      %2790 = vmatprep.subr.bf16.mxu0 0
      %2791 = vmatpush1.bf16.msra.mxu0 %v2767
      %2792 = vmatprep.subr.bf16.mxu0 0
      %2793 = vmatpush1.bf16.msra.mxu0 %v2768
      %2794 = vmatprep.subr.bf16.mxu0 0
      %2795 = vmatpush1.bf16.msra.mxu0 %v2769
      %2796 = vmatprep.subr.bf16.mxu0 0
      %2797 = vmatpush1.bf16.msra.mxu0 %v2770
      %2798 = vmatprep.subr.bf16.mxu0 0
      %2799 = vmatpush1.bf16.msra.mxu0 0
      %2800 = vmatprep.subr.bf16.mxu0 0
      %2801 = vmatpush1.bf16.msra.mxu0 0
      %2802 = vmatprep.subr.bf16.mxu0 0
      %2803 = vmatpush1.bf16.msra.mxu0 0
      %2804 = vmatprep.subr.bf16.mxu0 0
      %2805 = vmatpush1.bf16.msra.mxu0 0
      %2806 = vmatprep.subr.bf16.mxu0 0
      %2807 = vmatpush1.bf16.msra.mxu0 0
      %2808 = vmatprep.subr.bf16.mxu0 0
      %2809 = vmatpush1.bf16.msra.mxu0 0
      %2810 = vmatprep.subr.bf16.mxu0 0
      %2811 = vmatpush1.bf16.msra.mxu0 0
      %2812 = vmatprep.subr.bf16.mxu0 0
      %2813 = vmatpush1.bf16.msra.mxu0 0
      %2814 = vmatprep.subr.bf16.mxu0 0
      %2815 = vmatpush1.bf16.msra.mxu0 0
      %2816 = vmatprep.subr.bf16.mxu0 0
      %2817 = vmatpush1.bf16.msra.mxu0 0
      %2818 = vmatprep.subr.bf16.mxu0 0
      %2819 = vmatpush1.bf16.msra.mxu0 0
      %2820 = vmatprep.subr.bf16.mxu0 0
      %2821 = vmatpush1.bf16.msra.mxu0 0
      %2822 = vmatprep.mubr.bf16.mxu0 0
      %2823 = vmatmul.mubr.bf16.gmra.mrb[0].mxu0 %v2776
      %v2824 = vpop.f32.mrb[0].mxu0
      %v2825 = vadd.f32 0.0, %v2824
      %v2826 = vpop.f32.mrb[0].mxu0
      %v2827 = vpop.f32.mrb[0].mxu0
      %v2828 = vadd.f32 0.0, %v2827
      %v2829 = vpop.f32.mrb[0].mxu0
      %2830 = vmatprep.mubr.bf16.mxu0 0
      %2831 = vmatmul.mubr.bf16.gmra.mrb[0].mxu0 %v2779
      %v2832 = vpop.f32.mrb[0].mxu0
      %v2833 = vadd.f32 0.0, %v2832
      %v2834 = vpop.f32.mrb[0].mxu0
      %v2835 = vpop.f32.mrb[0].mxu0
      %v2836 = vadd.f32 0.0, %v2835
      %v2837 = vpop.f32.mrb[0].mxu0
      %2838 = vmatprep.mubr.bf16.mxu0 0
      %2839 = vmatmul.mubr.bf16.gmra.mrb[0].mxu0 %v2782
      %v2840 = vpop.f32.mrb[0].mxu0
      %v2841 = vadd.f32 0.0, %v2840
      %v2842 = vpop.f32.mrb[0].mxu0
      %v2843 = vpop.f32.mrb[0].mxu0
      %v2844 = vadd.f32 0.0, %v2843
      %v2845 = vpop.f32.mrb[0].mxu0
      %2846 = vmatprep.mubr.bf16.mxu0 0
      %2847 = vmatmul.mubr.bf16.gmra.mrb[0].mxu0 %v2785
      %v2848 = vpop.f32.mrb[0].mxu0
      %v2849 = vadd.f32 0.0, %v2848
      %v2850 = vpop.f32.mrb[0].mxu0
      %v2851 = vpop.f32.mrb[0].mxu0
      %v2852 = vadd.f32 0.0, %v2851
      %v2853 = vpop.f32.mrb[0].mxu0
      %2854 = vmatprep.mubr.bf16.mxu0 0
      %2855 = vmatmul.mubr.bf16.gmra.mrb[0].mxu0 %v2788
      %v2856 = vpop.f32.mrb[0].mxu0
      %v2857 = vadd.f32 0.0, %v2856
      %v2858 = vpop.f32.mrb[0].mxu0
      %v2859 = vpop.f32.mrb[0].mxu0
      %v2860 = vadd.f32 0.0, %v2859
      %v2861 = vpop.f32.mrb[0].mxu0
      %2862 = vdwg.mxu0
      %v2863 = vadd.f32 %v2733, %v2825
      %v2864 = vadd.f32 %v2734, %v2828
      %v2865 = vadd.f32 %v2735, %v2833
      %v2866 = vadd.f32 %v2736, %v2836
      %v2867 = vadd.f32 %v2737, %v2841
      %v2868 = vadd.f32 %v2738, %v2844
      %v2869 = vadd.f32 %v2739, %v2849
      %v2870 = vadd.f32 %v2740, %v2852
      %v2871 = vadd.f32 %v2741, %v2857
      %v2872 = vadd.f32 %v2742, %v2860
      %2873 = vst.msk [vmem:[#allocation2] sm:$0xff] %vm280, %v2863
      %2874 = vst.msk [vmem:[#allocation2 + $0x8] sm:$0xff] %vm280, %v2864
      %2875 = vst.msk [vmem:[#allocation2 + $0x10] sm:$0xff] %vm280, %v2865
      %2876 = vst.msk [vmem:[#allocation2 + $0x18] sm:$0xff] %vm280, %v2866
      %2877 = vst.msk [vmem:[#allocation2 + $0x20] sm:$0xff] %vm280, %v2867
      %2878 = vst.msk [vmem:[#allocation2 + $0x28] sm:$0xff] %vm280, %v2868
      %2879 = vst.msk [vmem:[#allocation2 + $0x30] sm:$0xff] %vm280, %v2869
      %2880 = vst.msk [vmem:[#allocation2 + $0x38] sm:$0xff] %vm280, %v2870
      %2881 = vst.msk [vmem:[#allocation2 + $0x40] sm:$0xff] %vm280, %v2871
      %2882 = vst.msk [vmem:[#allocation2 + $0x48] sm:$0xff] %vm280, %v2872
      %v2883 = vld [vmem:[%s586] sm:$0xff]
      %v2884 = vld [vmem:[%s586 + $0x8] sm:$0xff]
      %v2885 = vld [vmem:[%s586 + $0x10] sm:$0xff]
      %v2886 = vld [vmem:[%s586 + $0x18] sm:$0xff]
      %v2887 = vld [vmem:[%s586 + $0x20] sm:$0xff]
      %v2888 = vld [vmem:[%s586 + $0x28] sm:$0xff]
      %v2889 = vld [vmem:[%s586 + $0x30] sm:$0xff]
      %v2890 = vld [vmem:[%s586 + $0x38] sm:$0xff]
      %v2891 = vld [vmem:[%s586 + $0x40] sm:$0xff]
      %v2892 = vld [vmem:[%s586 + $0x48] sm:$0xff]
      %s2893 = scalar_lea.vmem %s4, 32
      %v2894 = vld [vmem:[%s2893] sm:$0xf]
      %v2895 = vld [vmem:[%s2893 + $0x4] sm:$0xf]
      %v2896 = vld [vmem:[%s2893 + $0x8] sm:$0xf]
      %v2897 = vld [vmem:[%s2893 + $0xc] sm:$0xf]
      %v2898 = vld [vmem:[%s2893 + $0x10] sm:$0xf]
      %v2899 = vld [vmem:[%s2893 + $0x14] sm:$0xf]
      %v2900 = vld [vmem:[%s2893 + $0x18] sm:$0xf]
      %v2901 = vld [vmem:[%s2893 + $0x1c] sm:$0xf]
      %v2910 = vunpack.c.l.b16 %v2894
      %v2911 = vunpack.c.l.b16 %v2895
      %v2912 = vunpack.c.l.b16 %v2896
      %v2913 = vunpack.c.l.b16 %v2897
      %v2914 = vunpack.c.l.b16 %v2898
      %v2915 = vunpack.c.l.b16 %v2899
      %v2916 = vunpack.c.l.b16 %v2900
      %v2917 = vunpack.c.l.b16 %v2901
      %v2918 = vpack.c.b16 %v2911, %v2910
      %v2919 = vpack.c.b16 %v2913, %v2912
      %v2920 = vpack.c.b16 %v2915, %v2914
      %v2921 = vpack.c.b16 %v2917, %v2916
      %2926 = vmatprep.subr.bf16.mxu0 0
      %2927 = vmatpush1.bf16.msra.mxu0 %v2918
      %2928 = vmatprep.subr.bf16.mxu0 0
      %2929 = vmatpush1.bf16.msra.mxu0 %v2919
      %2930 = vmatprep.subr.bf16.mxu0 0
      %2931 = vmatpush1.bf16.msra.mxu0 %v2920
      %2932 = vmatprep.subr.bf16.mxu0 0
      %2933 = vmatpush1.bf16.msra.mxu0 %v2921
      %2934 = vmatprep.subr.bf16.mxu0 0
      %2935 = vmatpush1.bf16.msra.mxu0 0
      %2936 = vmatprep.subr.bf16.mxu0 0
      %2937 = vmatpush1.bf16.msra.mxu0 0
      %2938 = vmatprep.subr.bf16.mxu0 0
      %2939 = vmatpush1.bf16.msra.mxu0 0
      %2940 = vmatprep.subr.bf16.mxu0 0
      %2941 = vmatpush1.bf16.msra.mxu0 0
      %2942 = vmatprep.subr.bf16.mxu0 0
      %2943 = vmatpush1.bf16.msra.mxu0 0
      %2944 = vmatprep.subr.bf16.mxu0 0
      %2945 = vmatpush1.bf16.msra.mxu0 0
      %2946 = vmatprep.subr.bf16.mxu0 0
      %2947 = vmatpush1.bf16.msra.mxu0 0
      %2948 = vmatprep.subr.bf16.mxu0 0
      %2949 = vmatpush1.bf16.msra.mxu0 0
      %2950 = vmatprep.subr.bf16.mxu0 0
      %2951 = vmatpush1.bf16.msra.mxu0 0
      %2952 = vmatprep.subr.bf16.mxu0 0
      %2953 = vmatpush1.bf16.msra.mxu0 0
      %2954 = vmatprep.subr.bf16.mxu0 0
      %2955 = vmatpush1.bf16.msra.mxu0 0
      %2956 = vmatprep.subr.bf16.mxu0 0
      %2957 = vmatpush1.bf16.msra.mxu0 0
      %2958 = vmatprep.mubr.bf16.mxu0 0
      %2959 = vmatmul.mubr.bf16.gmra.mrb[0].mxu0 %v2776
      %v2960 = vpop.f32.mrb[0].mxu0
      %v2961 = vadd.f32 0.0, %v2960
      %v2962 = vpop.f32.mrb[0].mxu0
      %v2963 = vpop.f32.mrb[0].mxu0
      %v2964 = vadd.f32 0.0, %v2963
      %v2965 = vpop.f32.mrb[0].mxu0
      %2966 = vmatprep.mubr.bf16.mxu0 0
      %2967 = vmatmul.mubr.bf16.gmra.mrb[0].mxu0 %v2779
      %v2968 = vpop.f32.mrb[0].mxu0
      %v2969 = vadd.f32 0.0, %v2968
      %v2970 = vpop.f32.mrb[0].mxu0
      %v2971 = vpop.f32.mrb[0].mxu0
      %v2972 = vadd.f32 0.0, %v2971
      %v2973 = vpop.f32.mrb[0].mxu0
      %2974 = vmatprep.mubr.bf16.mxu0 0
      %2975 = vmatmul.mubr.bf16.gmra.mrb[0].mxu0 %v2782
      %v2976 = vpop.f32.mrb[0].mxu0
      %v2977 = vadd.f32 0.0, %v2976
      %v2978 = vpop.f32.mrb[0].mxu0
      %v2979 = vpop.f32.mrb[0].mxu0
      %v2980 = vadd.f32 0.0, %v2979
      %v2981 = vpop.f32.mrb[0].mxu0
      %2982 = vmatprep.mubr.bf16.mxu0 0
      %2983 = vmatmul.mubr.bf16.gmra.mrb[0].mxu0 %v2785
      %v2984 = vpop.f32.mrb[0].mxu0
      %v2985 = vadd.f32 0.0, %v2984
      %v2986 = vpop.f32.mrb[0].mxu0
      %v2987 = vpop.f32.mrb[0].mxu0
      %v2988 = vadd.f32 0.0, %v2987
      %v2989 = vpop.f32.mrb[0].mxu0
      %2990 = vmatprep.mubr.bf16.mxu0 0
      %2991 = vmatmul.mubr.bf16.gmra.mrb[0].mxu0 %v2788
      %v2992 = vpop.f32.mrb[0].mxu0
      %v2993 = vadd.f32 0.0, %v2992
      %v2994 = vpop.f32.mrb[0].mxu0
      %v2995 = vpop.f32.mrb[0].mxu0
      %v2996 = vadd.f32 0.0, %v2995
      %v2997 = vpop.f32.mrb[0].mxu0
      %2998 = vdwg.mxu0
      %v2999 = vadd.f32 %v2883, %v2961
      %v3000 = vadd.f32 %v2884, %v2964
      %v3001 = vadd.f32 %v2885, %v2969
      %v3002 = vadd.f32 %v2886, %v2972
      %v3003 = vadd.f32 %v2887, %v2977
      %v3004 = vadd.f32 %v2888, %v2980
      %v3005 = vadd.f32 %v2889, %v2985
      %v3006 = vadd.f32 %v2890, %v2988
      %v3007 = vadd.f32 %v2891, %v2993
      %v3008 = vadd.f32 %v2892, %v2996
      %3009 = vst.msk [vmem:[%s586] sm:$0xff] %vm280, %v2999
      %3010 = vst.msk [vmem:[%s586 + $0x8] sm:$0xff] %vm280, %v3000
      %3011 = vst.msk [vmem:[%s586 + $0x10] sm:$0xff] %vm280, %v3001
      %3012 = vst.msk [vmem:[%s586 + $0x18] sm:$0xff] %vm280, %v3002
      %3013 = vst.msk [vmem:[%s586 + $0x20] sm:$0xff] %vm280, %v3003
      %3014 = vst.msk [vmem:[%s586 + $0x28] sm:$0xff] %vm280, %v3004
      %3015 = vst.msk [vmem:[%s586 + $0x30] sm:$0xff] %vm280, %v3005
      %3016 = vst.msk [vmem:[%s586 + $0x38] sm:$0xff] %vm280, %v3006
      %3017 = vst.msk [vmem:[%s586 + $0x40] sm:$0xff] %vm280, %v3007
      %3018 = vst.msk [vmem:[%s586 + $0x48] sm:$0xff] %vm280, %v3008
      %v3019 = vld [vmem:[%s819] sm:$0xff]
      %v3020 = vld [vmem:[%s819 + $0x8] sm:$0xff]
      %v3021 = vld [vmem:[%s819 + $0x10] sm:$0xff]
      %v3022 = vld [vmem:[%s819 + $0x18] sm:$0xff]
      %v3023 = vld [vmem:[%s819 + $0x20] sm:$0xff]
      %v3024 = vld [vmem:[%s819 + $0x28] sm:$0xff]
      %v3025 = vld [vmem:[%s819 + $0x30] sm:$0xff]
      %v3026 = vld [vmem:[%s819 + $0x38] sm:$0xff]
      %v3027 = vld [vmem:[%s819 + $0x40] sm:$0xff]
      %v3028 = vld [vmem:[%s819 + $0x48] sm:$0xff]
      %s3029 = scalar_lea.vmem %s4, 64
      %v3030 = vld [vmem:[%s3029] sm:$0xf]
      %v3031 = vld [vmem:[%s3029 + $0x4] sm:$0xf]
      %v3032 = vld [vmem:[%s3029 + $0x8] sm:$0xf]
      %v3033 = vld [vmem:[%s3029 + $0xc] sm:$0xf]
      %v3034 = vld [vmem:[%s3029 + $0x10] sm:$0xf]
      %v3035 = vld [vmem:[%s3029 + $0x14] sm:$0xf]
      %v3036 = vld [vmem:[%s3029 + $0x18] sm:$0xf]
      %v3037 = vld [vmem:[%s3029 + $0x1c] sm:$0xf]
      %v3046 = vunpack.c.l.b16 %v3030
      %v3047 = vunpack.c.l.b16 %v3031
      %v3048 = vunpack.c.l.b16 %v3032
      %v3049 = vunpack.c.l.b16 %v3033
      %v3050 = vunpack.c.l.b16 %v3034
      %v3051 = vunpack.c.l.b16 %v3035
      %v3052 = vunpack.c.l.b16 %v3036
      %v3053 = vunpack.c.l.b16 %v3037
      %v3054 = vpack.c.b16 %v3047, %v3046
      %v3055 = vpack.c.b16 %v3049, %v3048
      %v3056 = vpack.c.b16 %v3051, %v3050
      %v3057 = vpack.c.b16 %v3053, %v3052
      %3062 = vmatprep.subr.bf16.mxu0 0
      %3063 = vmatpush1.bf16.msra.mxu0 %v3054
      %3064 = vmatprep.subr.bf16.mxu0 0
      %3065 = vmatpush1.bf16.msra.mxu0 %v3055
      %3066 = vmatprep.subr.bf16.mxu0 0
      %3067 = vmatpush1.bf16.msra.mxu0 %v3056
      %3068 = vmatprep.subr.bf16.mxu0 0
      %3069 = vmatpush1.bf16.msra.mxu0 %v3057
      %3070 = vmatprep.subr.bf16.mxu0 0
      %3071 = vmatpush1.bf16.msra.mxu0 0
      %3072 = vmatprep.subr.bf16.mxu0 0
      %3073 = vmatpush1.bf16.msra.mxu0 0
      %3074 = vmatprep.subr.bf16.mxu0 0
      %3075 = vmatpush1.bf16.msra.mxu0 0
      %3076 = vmatprep.subr.bf16.mxu0 0
      %3077 = vmatpush1.bf16.msra.mxu0 0
      %3078 = vmatprep.subr.bf16.mxu0 0
      %3079 = vmatpush1.bf16.msra.mxu0 0
      %3080 = vmatprep.subr.bf16.mxu0 0
      %3081 = vmatpush1.bf16.msra.mxu0 0
      %3082 = vmatprep.subr.bf16.mxu0 0
      %3083 = vmatpush1.bf16.msra.mxu0 0
      %3084 = vmatprep.subr.bf16.mxu0 0
      %3085 = vmatpush1.bf16.msra.mxu0 0
      %3086 = vmatprep.subr.bf16.mxu0 0
      %3087 = vmatpush1.bf16.msra.mxu0 0
      %3088 = vmatprep.subr.bf16.mxu0 0
      %3089 = vmatpush1.bf16.msra.mxu0 0
      %3090 = vmatprep.subr.bf16.mxu0 0
      %3091 = vmatpush1.bf16.msra.mxu0 0
      %3092 = vmatprep.subr.bf16.mxu0 0
      %3093 = vmatpush1.bf16.msra.mxu0 0
      %3094 = vmatprep.mubr.bf16.mxu0 0
      %3095 = vmatmul.mubr.bf16.gmra.mrb[0].mxu0 %v2776
      %v3096 = vpop.f32.mrb[0].mxu0
      %v3097 = vadd.f32 0.0, %v3096
      %v3098 = vpop.f32.mrb[0].mxu0
      %v3099 = vpop.f32.mrb[0].mxu0
      %v3100 = vadd.f32 0.0, %v3099
      %v3101 = vpop.f32.mrb[0].mxu0
      %3102 = vmatprep.mubr.bf16.mxu0 0
      %3103 = vmatmul.mubr.bf16.gmra.mrb[0].mxu0 %v2779
      %v3104 = vpop.f32.mrb[0].mxu0
      %v3105 = vadd.f32 0.0, %v3104
      %v3106 = vpop.f32.mrb[0].mxu0
      %v3107 = vpop.f32.mrb[0].mxu0
      %v3108 = vadd.f32 0.0, %v3107
      %v3109 = vpop.f32.mrb[0].mxu0
      %3110 = vmatprep.mubr.bf16.mxu0 0
      %3111 = vmatmul.mubr.bf16.gmra.mrb[0].mxu0 %v2782
      %v3112 = vpop.f32.mrb[0].mxu0
      %v3113 = vadd.f32 0.0, %v3112
      %v3114 = vpop.f32.mrb[0].mxu0
      %v3115 = vpop.f32.mrb[0].mxu0
      %v3116 = vadd.f32 0.0, %v3115
      %v3117 = vpop.f32.mrb[0].mxu0
      %3118 = vmatprep.mubr.bf16.mxu0 0
      %3119 = vmatmul.mubr.bf16.gmra.mrb[0].mxu0 %v2785
      %v3120 = vpop.f32.mrb[0].mxu0
      %v3121 = vadd.f32 0.0, %v3120
      %v3122 = vpop.f32.mrb[0].mxu0
      %v3123 = vpop.f32.mrb[0].mxu0
      %v3124 = vadd.f32 0.0, %v3123
      %v3125 = vpop.f32.mrb[0].mxu0
      %3126 = vmatprep.mubr.bf16.mxu0 0
      %3127 = vmatmul.mubr.bf16.gmra.mrb[0].mxu0 %v2788
      %v3128 = vpop.f32.mrb[0].mxu0
      %v3129 = vadd.f32 0.0, %v3128
      %v3130 = vpop.f32.mrb[0].mxu0
      %v3131 = vpop.f32.mrb[0].mxu0
      %v3132 = vadd.f32 0.0, %v3131
      %v3133 = vpop.f32.mrb[0].mxu0
      %3134 = vdwg.mxu0
      %v3135 = vadd.f32 %v3019, %v3097
      %v3136 = vadd.f32 %v3020, %v3100
      %v3137 = vadd.f32 %v3021, %v3105
      %v3138 = vadd.f32 %v3022, %v3108
      %v3139 = vadd.f32 %v3023, %v3113
      %v3140 = vadd.f32 %v3024, %v3116
      %v3141 = vadd.f32 %v3025, %v3121
      %v3142 = vadd.f32 %v3026, %v3124
      %v3143 = vadd.f32 %v3027, %v3129
      %v3144 = vadd.f32 %v3028, %v3132
      %3145 = vst.msk [vmem:[%s819] sm:$0xff] %vm280, %v3135
      %3146 = vst.msk [vmem:[%s819 + $0x8] sm:$0xff] %vm280, %v3136
      %3147 = vst.msk [vmem:[%s819 + $0x10] sm:$0xff] %vm280, %v3137
      %3148 = vst.msk [vmem:[%s819 + $0x18] sm:$0xff] %vm280, %v3138
      %3149 = vst.msk [vmem:[%s819 + $0x20] sm:$0xff] %vm280, %v3139
      %3150 = vst.msk [vmem:[%s819 + $0x28] sm:$0xff] %vm280, %v3140
      %3151 = vst.msk [vmem:[%s819 + $0x30] sm:$0xff] %vm280, %v3141
      %3152 = vst.msk [vmem:[%s819 + $0x38] sm:$0xff] %vm280, %v3142
      %3153 = vst.msk [vmem:[%s819 + $0x40] sm:$0xff] %vm280, %v3143
      %3154 = vst.msk [vmem:[%s819 + $0x48] sm:$0xff] %vm280, %v3144
      %v3155 = vld [vmem:[#allocation3 + $0xa] sm:$0xff]
      %v3156 = vld [vmem:[#allocation3 + $0x12] sm:$0xff]
      %v3157 = vld [vmem:[#allocation3 + $0x1a] sm:$0xff]
      %v3158 = vld [vmem:[#allocation3 + $0x22] sm:$0xff]
      %v3159 = vld [vmem:[#allocation3 + $0x2a] sm:$0xff]
      %v3160 = vld [vmem:[#allocation3 + $0x32] sm:$0xff]
      %v3161 = vld [vmem:[#allocation3 + $0x3a] sm:$0xff]
      %v3162 = vld [vmem:[#allocation3 + $0x42] sm:$0xff]
      %v3163 = vld [vmem:[#allocation3 + $0x4a] sm:$0xff]
      %v3164 = vld [vmem:[#allocation3 + $0x52] sm:$0xff]
      %v3165 = vpack.c.bf16 %v3156, %v3155
      %v3166 = vpack.c.bf16 %v3158, %v3157
      %v3167 = vpack.c.bf16 %v3160, %v3159
      %v3168 = vpack.c.bf16 %v3162, %v3161
      %v3169 = vpack.c.bf16 %v3164, %v3163
      %v3170 = vld [vmem:[#allocation2] sm:$0xff]
      %v3171 = vld [vmem:[#allocation2 + $0x8] sm:$0xff]
      %v3172 = vld [vmem:[#allocation2 + $0x10] sm:$0xff]
      %v3173 = vld [vmem:[#allocation2 + $0x18] sm:$0xff]
      %v3174 = vld [vmem:[#allocation2 + $0x20] sm:$0xff]
      %v3175 = vld [vmem:[#allocation2 + $0x28] sm:$0xff]
      %v3176 = vld [vmem:[#allocation2 + $0x30] sm:$0xff]
      %v3177 = vld [vmem:[#allocation2 + $0x38] sm:$0xff]
      %v3178 = vld [vmem:[#allocation2 + $0x40] sm:$0xff]
      %v3179 = vld [vmem:[#allocation2 + $0x48] sm:$0xff]
      %s3180 = scalar_lea.vmem %s4, 96
      %v3181 = vld [vmem:[%s3180] sm:$0xf]
      %v3182 = vld [vmem:[%s3180 + $0x4] sm:$0xf]
      %v3183 = vld [vmem:[%s3180 + $0x8] sm:$0xf]
      %v3184 = vld [vmem:[%s3180 + $0xc] sm:$0xf]
      %v3185 = vld [vmem:[%s3180 + $0x10] sm:$0xf]
      %v3186 = vld [vmem:[%s3180 + $0x14] sm:$0xf]
      %v3187 = vld [vmem:[%s3180 + $0x18] sm:$0xf]
      %v3188 = vld [vmem:[%s3180 + $0x1c] sm:$0xf]
      %v3197 = vunpack.c.l.b16 %v3181
      %v3198 = vunpack.c.l.b16 %v3182
      %v3199 = vunpack.c.l.b16 %v3183
      %v3200 = vunpack.c.l.b16 %v3184
      %v3201 = vunpack.c.l.b16 %v3185
      %v3202 = vunpack.c.l.b16 %v3186
      %v3203 = vunpack.c.l.b16 %v3187
      %v3204 = vunpack.c.l.b16 %v3188
      %v3205 = vpack.c.b16 %v3198, %v3197
      %v3206 = vpack.c.b16 %v3200, %v3199
      %v3207 = vpack.c.b16 %v3202, %v3201
      %v3208 = vpack.c.b16 %v3204, %v3203
      %v3214 = vsel %vm280, %v3165, 0
      %v3217 = vsel %vm280, %v3166, 0
      %v3220 = vsel %vm280, %v3167, 0
      %v3223 = vsel %vm280, %v3168, 0
      %v3226 = vsel %vm280, %v3169, 0
      %3228 = vmatprep.subr.bf16.mxu0 0
      %3229 = vmatpush1.bf16.msra.mxu0 %v3205
      %3230 = vmatprep.subr.bf16.mxu0 0
      %3231 = vmatpush1.bf16.msra.mxu0 %v3206
      %3232 = vmatprep.subr.bf16.mxu0 0
      %3233 = vmatpush1.bf16.msra.mxu0 %v3207
      %3234 = vmatprep.subr.bf16.mxu0 0
      %3235 = vmatpush1.bf16.msra.mxu0 %v3208
      %3236 = vmatprep.subr.bf16.mxu0 0
      %3237 = vmatpush1.bf16.msra.mxu0 0
      %3238 = vmatprep.subr.bf16.mxu0 0
      %3239 = vmatpush1.bf16.msra.mxu0 0
      %3240 = vmatprep.subr.bf16.mxu0 0
      %3241 = vmatpush1.bf16.msra.mxu0 0
      %3242 = vmatprep.subr.bf16.mxu0 0
      %3243 = vmatpush1.bf16.msra.mxu0 0
      %3244 = vmatprep.subr.bf16.mxu0 0
      %3245 = vmatpush1.bf16.msra.mxu0 0
      %3246 = vmatprep.subr.bf16.mxu0 0
      %3247 = vmatpush1.bf16.msra.mxu0 0
      %3248 = vmatprep.subr.bf16.mxu0 0
      %3249 = vmatpush1.bf16.msra.mxu0 0
      %3250 = vmatprep.subr.bf16.mxu0 0
      %3251 = vmatpush1.bf16.msra.mxu0 0
      %3252 = vmatprep.subr.bf16.mxu0 0
      %3253 = vmatpush1.bf16.msra.mxu0 0
      %3254 = vmatprep.subr.bf16.mxu0 0
      %3255 = vmatpush1.bf16.msra.mxu0 0
      %3256 = vmatprep.subr.bf16.mxu0 0
      %3257 = vmatpush1.bf16.msra.mxu0 0
      %3258 = vmatprep.subr.bf16.mxu0 0
      %3259 = vmatpush1.bf16.msra.mxu0 0
      %3260 = vmatprep.mubr.bf16.mxu0 0
      %3261 = vmatmul.mubr.bf16.gmra.mrb[0].mxu0 %v3214
      %v3262 = vpop.f32.mrb[0].mxu0
      %v3263 = vadd.f32 0.0, %v3262
      %v3264 = vpop.f32.mrb[0].mxu0
      %v3265 = vpop.f32.mrb[0].mxu0
      %v3266 = vadd.f32 0.0, %v3265
      %v3267 = vpop.f32.mrb[0].mxu0
      %3268 = vmatprep.mubr.bf16.mxu0 0
      %3269 = vmatmul.mubr.bf16.gmra.mrb[0].mxu0 %v3217
      %v3270 = vpop.f32.mrb[0].mxu0
      %v3271 = vadd.f32 0.0, %v3270
      %v3272 = vpop.f32.mrb[0].mxu0
      %v3273 = vpop.f32.mrb[0].mxu0
      %v3274 = vadd.f32 0.0, %v3273
      %v3275 = vpop.f32.mrb[0].mxu0
      %3276 = vmatprep.mubr.bf16.mxu0 0
      %3277 = vmatmul.mubr.bf16.gmra.mrb[0].mxu0 %v3220
      %v3278 = vpop.f32.mrb[0].mxu0
      %v3279 = vadd.f32 0.0, %v3278
      %v3280 = vpop.f32.mrb[0].mxu0
      %v3281 = vpop.f32.mrb[0].mxu0
      %v3282 = vadd.f32 0.0, %v3281
      %v3283 = vpop.f32.mrb[0].mxu0
      %3284 = vmatprep.mubr.bf16.mxu0 0
      %3285 = vmatmul.mubr.bf16.gmra.mrb[0].mxu0 %v3223
      %v3286 = vpop.f32.mrb[0].mxu0
      %v3287 = vadd.f32 0.0, %v3286
      %v3288 = vpop.f32.mrb[0].mxu0
      %v3289 = vpop.f32.mrb[0].mxu0
      %v3290 = vadd.f32 0.0, %v3289
      %v3291 = vpop.f32.mrb[0].mxu0
      %3292 = vmatprep.mubr.bf16.mxu0 0
      %3293 = vmatmul.mubr.bf16.gmra.mrb[0].mxu0 %v3226
      %v3294 = vpop.f32.mrb[0].mxu0
      %v3295 = vadd.f32 0.0, %v3294
      %v3296 = vpop.f32.mrb[0].mxu0
      %v3297 = vpop.f32.mrb[0].mxu0
      %v3298 = vadd.f32 0.0, %v3297
      %v3299 = vpop.f32.mrb[0].mxu0
      %3300 = vdwg.mxu0
      %v3301 = vadd.f32 %v3170, %v3263
      %v3302 = vadd.f32 %v3171, %v3266
      %v3303 = vadd.f32 %v3172, %v3271
      %v3304 = vadd.f32 %v3173, %v3274
      %v3305 = vadd.f32 %v3174, %v3279
      %v3306 = vadd.f32 %v3175, %v3282
      %v3307 = vadd.f32 %v3176, %v3287
      %v3308 = vadd.f32 %v3177, %v3290
      %v3309 = vadd.f32 %v3178, %v3295
      %v3310 = vadd.f32 %v3179, %v3298
      %3311 = vst.msk [vmem:[#allocation2] sm:$0xff] %vm280, %v3301
      %3312 = vst.msk [vmem:[#allocation2 + $0x8] sm:$0xff] %vm280, %v3302
      %3313 = vst.msk [vmem:[#allocation2 + $0x10] sm:$0xff] %vm280, %v3303
      %3314 = vst.msk [vmem:[#allocation2 + $0x18] sm:$0xff] %vm280, %v3304
      %3315 = vst.msk [vmem:[#allocation2 + $0x20] sm:$0xff] %vm280, %v3305
      %3316 = vst.msk [vmem:[#allocation2 + $0x28] sm:$0xff] %vm280, %v3306
      %3317 = vst.msk [vmem:[#allocation2 + $0x30] sm:$0xff] %vm280, %v3307
      %3318 = vst.msk [vmem:[#allocation2 + $0x38] sm:$0xff] %vm280, %v3308
      %3319 = vst.msk [vmem:[#allocation2 + $0x40] sm:$0xff] %vm280, %v3309
      %3320 = vst.msk [vmem:[#allocation2 + $0x48] sm:$0xff] %vm280, %v3310
      %v3321 = vld [vmem:[%s586] sm:$0xff]
      %v3322 = vld [vmem:[%s586 + $0x8] sm:$0xff]
      %v3323 = vld [vmem:[%s586 + $0x10] sm:$0xff]
      %v3324 = vld [vmem:[%s586 + $0x18] sm:$0xff]
      %v3325 = vld [vmem:[%s586 + $0x20] sm:$0xff]
      %v3326 = vld [vmem:[%s586 + $0x28] sm:$0xff]
      %v3327 = vld [vmem:[%s586 + $0x30] sm:$0xff]
      %v3328 = vld [vmem:[%s586 + $0x38] sm:$0xff]
      %v3329 = vld [vmem:[%s586 + $0x40] sm:$0xff]
      %v3330 = vld [vmem:[%s586 + $0x48] sm:$0xff]
      %s3331 = scalar_lea.vmem %s4, 128
      %v3332 = vld [vmem:[%s3331] sm:$0xf]
      %v3333 = vld [vmem:[%s3331 + $0x4] sm:$0xf]
      %v3334 = vld [vmem:[%s3331 + $0x8] sm:$0xf]
      %v3335 = vld [vmem:[%s3331 + $0xc] sm:$0xf]
      %v3336 = vld [vmem:[%s3331 + $0x10] sm:$0xf]
      %v3337 = vld [vmem:[%s3331 + $0x14] sm:$0xf]
      %v3338 = vld [vmem:[%s3331 + $0x18] sm:$0xf]
      %v3339 = vld [vmem:[%s3331 + $0x1c] sm:$0xf]
      %v3348 = vunpack.c.l.b16 %v3332
      %v3349 = vunpack.c.l.b16 %v3333
      %v3350 = vunpack.c.l.b16 %v3334
      %v3351 = vunpack.c.l.b16 %v3335
      %v3352 = vunpack.c.l.b16 %v3336
      %v3353 = vunpack.c.l.b16 %v3337
      %v3354 = vunpack.c.l.b16 %v3338
      %v3355 = vunpack.c.l.b16 %v3339
      %v3356 = vpack.c.b16 %v3349, %v3348
      %v3357 = vpack.c.b16 %v3351, %v3350
      %v3358 = vpack.c.b16 %v3353, %v3352
      %v3359 = vpack.c.b16 %v3355, %v3354
      %3364 = vmatprep.subr.bf16.mxu0 0
      %3365 = vmatpush1.bf16.msra.mxu0 %v3356
      %3366 = vmatprep.subr.bf16.mxu0 0
      %3367 = vmatpush1.bf16.msra.mxu0 %v3357
      %3368 = vmatprep.subr.bf16.mxu0 0
      %3369 = vmatpush1.bf16.msra.mxu0 %v3358
      %3370 = vmatprep.subr.bf16.mxu0 0
      %3371 = vmatpush1.bf16.msra.mxu0 %v3359
      %3372 = vmatprep.subr.bf16.mxu0 0
      %3373 = vmatpush1.bf16.msra.mxu0 0
      %3374 = vmatprep.subr.bf16.mxu0 0
      %3375 = vmatpush1.bf16.msra.mxu0 0
      %3376 = vmatprep.subr.bf16.mxu0 0
      %3377 = vmatpush1.bf16.msra.mxu0 0
      %3378 = vmatprep.subr.bf16.mxu0 0
      %3379 = vmatpush1.bf16.msra.mxu0 0
      %3380 = vmatprep.subr.bf16.mxu0 0
      %3381 = vmatpush1.bf16.msra.mxu0 0
      %3382 = vmatprep.subr.bf16.mxu0 0
      %3383 = vmatpush1.bf16.msra.mxu0 0
      %3384 = vmatprep.subr.bf16.mxu0 0
      %3385 = vmatpush1.bf16.msra.mxu0 0
      %3386 = vmatprep.subr.bf16.mxu0 0
      %3387 = vmatpush1.bf16.msra.mxu0 0
      %3388 = vmatprep.subr.bf16.mxu0 0
      %3389 = vmatpush1.bf16.msra.mxu0 0
      %3390 = vmatprep.subr.bf16.mxu0 0
      %3391 = vmatpush1.bf16.msra.mxu0 0
      %3392 = vmatprep.subr.bf16.mxu0 0
      %3393 = vmatpush1.bf16.msra.mxu0 0
      %3394 = vmatprep.subr.bf16.mxu0 0
      %3395 = vmatpush1.bf16.msra.mxu0 0
      %3396 = vmatprep.mubr.bf16.mxu0 0
      %3397 = vmatmul.mubr.bf16.gmra.mrb[0].mxu0 %v3214
      %v3398 = vpop.f32.mrb[0].mxu0
      %v3399 = vadd.f32 0.0, %v3398
      %v3400 = vpop.f32.mrb[0].mxu0
      %v3401 = vpop.f32.mrb[0].mxu0
      %v3402 = vadd.f32 0.0, %v3401
      %v3403 = vpop.f32.mrb[0].mxu0
      %3404 = vmatprep.mubr.bf16.mxu0 0
      %3405 = vmatmul.mubr.bf16.gmra.mrb[0].mxu0 %v3217
      %v3406 = vpop.f32.mrb[0].mxu0
      %v3407 = vadd.f32 0.0, %v3406
      %v3408 = vpop.f32.mrb[0].mxu0
      %v3409 = vpop.f32.mrb[0].mxu0
      %v3410 = vadd.f32 0.0, %v3409
      %v3411 = vpop.f32.mrb[0].mxu0
      %3412 = vmatprep.mubr.bf16.mxu0 0
      %3413 = vmatmul.mubr.bf16.gmra.mrb[0].mxu0 %v3220
      %v3414 = vpop.f32.mrb[0].mxu0
      %v3415 = vadd.f32 0.0, %v3414
      %v3416 = vpop.f32.mrb[0].mxu0
      %v3417 = vpop.f32.mrb[0].mxu0
      %v3418 = vadd.f32 0.0, %v3417
      %v3419 = vpop.f32.mrb[0].mxu0
      %3420 = vmatprep.mubr.bf16.mxu0 0
      %3421 = vmatmul.mubr.bf16.gmra.mrb[0].mxu0 %v3223
      %v3422 = vpop.f32.mrb[0].mxu0
      %v3423 = vadd.f32 0.0, %v3422
      %v3424 = vpop.f32.mrb[0].mxu0
      %v3425 = vpop.f32.mrb[0].mxu0
      %v3426 = vadd.f32 0.0, %v3425
      %v3427 = vpop.f32.mrb[0].mxu0
      %3428 = vmatprep.mubr.bf16.mxu0 0
      %3429 = vmatmul.mubr.bf16.gmra.mrb[0].mxu0 %v3226
      %v3430 = vpop.f32.mrb[0].mxu0
      %v3431 = vadd.f32 0.0, %v3430
      %v3432 = vpop.f32.mrb[0].mxu0
      %v3433 = vpop.f32.mrb[0].mxu0
      %v3434 = vadd.f32 0.0, %v3433
      %v3435 = vpop.f32.mrb[0].mxu0
      %3436 = vdwg.mxu0
      %v3437 = vadd.f32 %v3321, %v3399
      %v3438 = vadd.f32 %v3322, %v3402
      %v3439 = vadd.f32 %v3323, %v3407
      %v3440 = vadd.f32 %v3324, %v3410
      %v3441 = vadd.f32 %v3325, %v3415
      %v3442 = vadd.f32 %v3326, %v3418
      %v3443 = vadd.f32 %v3327, %v3423
      %v3444 = vadd.f32 %v3328, %v3426
      %v3445 = vadd.f32 %v3329, %v3431
      %v3446 = vadd.f32 %v3330, %v3434
      %3447 = vst.msk [vmem:[%s586] sm:$0xff] %vm280, %v3437
      %3448 = vst.msk [vmem:[%s586 + $0x8] sm:$0xff] %vm280, %v3438
      %3449 = vst.msk [vmem:[%s586 + $0x10] sm:$0xff] %vm280, %v3439
      %3450 = vst.msk [vmem:[%s586 + $0x18] sm:$0xff] %vm280, %v3440
      %3451 = vst.msk [vmem:[%s586 + $0x20] sm:$0xff] %vm280, %v3441
      %3452 = vst.msk [vmem:[%s586 + $0x28] sm:$0xff] %vm280, %v3442
      %3453 = vst.msk [vmem:[%s586 + $0x30] sm:$0xff] %vm280, %v3443
      %3454 = vst.msk [vmem:[%s586 + $0x38] sm:$0xff] %vm280, %v3444
      %3455 = vst.msk [vmem:[%s586 + $0x40] sm:$0xff] %vm280, %v3445
      %3456 = vst.msk [vmem:[%s586 + $0x48] sm:$0xff] %vm280, %v3446
      %v3457 = vld [vmem:[%s819] sm:$0xff]
      %v3458 = vld [vmem:[%s819 + $0x8] sm:$0xff]
      %v3459 = vld [vmem:[%s819 + $0x10] sm:$0xff]
      %v3460 = vld [vmem:[%s819 + $0x18] sm:$0xff]
      %v3461 = vld [vmem:[%s819 + $0x20] sm:$0xff]
      %v3462 = vld [vmem:[%s819 + $0x28] sm:$0xff]
      %v3463 = vld [vmem:[%s819 + $0x30] sm:$0xff]
      %v3464 = vld [vmem:[%s819 + $0x38] sm:$0xff]
      %v3465 = vld [vmem:[%s819 + $0x40] sm:$0xff]
      %v3466 = vld [vmem:[%s819 + $0x48] sm:$0xff]
      %s3467 = scalar_lea.vmem %s4, 160
      %v3468 = vld [vmem:[%s3467] sm:$0xf]
      %v3469 = vld [vmem:[%s3467 + $0x4] sm:$0xf]
      %v3470 = vld [vmem:[%s3467 + $0x8] sm:$0xf]
      %v3471 = vld [vmem:[%s3467 + $0xc] sm:$0xf]
      %v3472 = vld [vmem:[%s3467 + $0x10] sm:$0xf]
      %v3473 = vld [vmem:[%s3467 + $0x14] sm:$0xf]
      %v3474 = vld [vmem:[%s3467 + $0x18] sm:$0xf]
      %v3475 = vld [vmem:[%s3467 + $0x1c] sm:$0xf]
      %v3484 = vunpack.c.l.b16 %v3468
      %v3485 = vunpack.c.l.b16 %v3469
      %v3486 = vunpack.c.l.b16 %v3470
      %v3487 = vunpack.c.l.b16 %v3471
      %v3488 = vunpack.c.l.b16 %v3472
      %v3489 = vunpack.c.l.b16 %v3473
      %v3490 = vunpack.c.l.b16 %v3474
      %v3491 = vunpack.c.l.b16 %v3475
      %v3492 = vpack.c.b16 %v3485, %v3484
      %v3493 = vpack.c.b16 %v3487, %v3486
      %v3494 = vpack.c.b16 %v3489, %v3488
      %v3495 = vpack.c.b16 %v3491, %v3490
      %3500 = vmatprep.subr.bf16.mxu0 0
      %3501 = vmatpush1.bf16.msra.mxu0 %v3492
      %3502 = vmatprep.subr.bf16.mxu0 0
      %3503 = vmatpush1.bf16.msra.mxu0 %v3493
      %3504 = vmatprep.subr.bf16.mxu0 0
      %3505 = vmatpush1.bf16.msra.mxu0 %v3494
      %3506 = vmatprep.subr.bf16.mxu0 0
      %3507 = vmatpush1.bf16.msra.mxu0 %v3495
      %3508 = vmatprep.subr.bf16.mxu0 0
      %3509 = vmatpush1.bf16.msra.mxu0 0
      %3510 = vmatprep.subr.bf16.mxu0 0
      %3511 = vmatpush1.bf16.msra.mxu0 0
      %3512 = vmatprep.subr.bf16.mxu0 0
      %3513 = vmatpush1.bf16.msra.mxu0 0
      %3514 = vmatprep.subr.bf16.mxu0 0
      %3515 = vmatpush1.bf16.msra.mxu0 0
      %3516 = vmatprep.subr.bf16.mxu0 0
      %3517 = vmatpush1.bf16.msra.mxu0 0
      %3518 = vmatprep.subr.bf16.mxu0 0
      %3519 = vmatpush1.bf16.msra.mxu0 0
      %3520 = vmatprep.subr.bf16.mxu0 0
      %3521 = vmatpush1.bf16.msra.mxu0 0
      %3522 = vmatprep.subr.bf16.mxu0 0
      %3523 = vmatpush1.bf16.msra.mxu0 0
      %3524 = vmatprep.subr.bf16.mxu0 0
      %3525 = vmatpush1.bf16.msra.mxu0 0
      %3526 = vmatprep.subr.bf16.mxu0 0
      %3527 = vmatpush1.bf16.msra.mxu0 0
      %3528 = vmatprep.subr.bf16.mxu0 0
      %3529 = vmatpush1.bf16.msra.mxu0 0
      %3530 = vmatprep.subr.bf16.mxu0 0
      %3531 = vmatpush1.bf16.msra.mxu0 0
      %3532 = vmatprep.mubr.bf16.mxu0 0
      %3533 = vmatmul.mubr.bf16.gmra.mrb[0].mxu0 %v3214
      %v3534 = vpop.f32.mrb[0].mxu0
      %v3535 = vadd.f32 0.0, %v3534
      %v3536 = vpop.f32.mrb[0].mxu0
      %v3537 = vpop.f32.mrb[0].mxu0
      %v3538 = vadd.f32 0.0, %v3537
      %v3539 = vpop.f32.mrb[0].mxu0
      %3540 = vmatprep.mubr.bf16.mxu0 0
      %3541 = vmatmul.mubr.bf16.gmra.mrb[0].mxu0 %v3217
      %v3542 = vpop.f32.mrb[0].mxu0
      %v3543 = vadd.f32 0.0, %v3542
      %v3544 = vpop.f32.mrb[0].mxu0
      %v3545 = vpop.f32.mrb[0].mxu0
      %v3546 = vadd.f32 0.0, %v3545
      %v3547 = vpop.f32.mrb[0].mxu0
      %3548 = vmatprep.mubr.bf16.mxu0 0
      %3549 = vmatmul.mubr.bf16.gmra.mrb[0].mxu0 %v3220
      %v3550 = vpop.f32.mrb[0].mxu0
      %v3551 = vadd.f32 0.0, %v3550
      %v3552 = vpop.f32.mrb[0].mxu0
      %v3553 = vpop.f32.mrb[0].mxu0
      %v3554 = vadd.f32 0.0, %v3553
      %v3555 = vpop.f32.mrb[0].mxu0
      %3556 = vmatprep.mubr.bf16.mxu0 0
      %3557 = vmatmul.mubr.bf16.gmra.mrb[0].mxu0 %v3223
      %v3558 = vpop.f32.mrb[0].mxu0
      %v3559 = vadd.f32 0.0, %v3558
      %v3560 = vpop.f32.mrb[0].mxu0
      %v3561 = vpop.f32.mrb[0].mxu0
      %v3562 = vadd.f32 0.0, %v3561
      %v3563 = vpop.f32.mrb[0].mxu0
      %3564 = vmatprep.mubr.bf16.mxu0 0
      %3565 = vmatmul.mubr.bf16.gmra.mrb[0].mxu0 %v3226
      %v3566 = vpop.f32.mrb[0].mxu0
      %v3567 = vadd.f32 0.0, %v3566
      %v3568 = vpop.f32.mrb[0].mxu0
      %v3569 = vpop.f32.mrb[0].mxu0
      %v3570 = vadd.f32 0.0, %v3569
      %v3571 = vpop.f32.mrb[0].mxu0
      %3572 = vdwg.mxu0
      %v3573 = vadd.f32 %v3457, %v3535
      %v3574 = vadd.f32 %v3458, %v3538
      %v3575 = vadd.f32 %v3459, %v3543
      %v3576 = vadd.f32 %v3460, %v3546
      %v3577 = vadd.f32 %v3461, %v3551
      %v3578 = vadd.f32 %v3462, %v3554
      %v3579 = vadd.f32 %v3463, %v3559
      %v3580 = vadd.f32 %v3464, %v3562
      %v3581 = vadd.f32 %v3465, %v3567
      %v3582 = vadd.f32 %v3466, %v3570
      %3583 = vst.msk [vmem:[%s819] sm:$0xff] %vm280, %v3573
      %3584 = vst.msk [vmem:[%s819 + $0x8] sm:$0xff] %vm280, %v3574
      %3585 = vst.msk [vmem:[%s819 + $0x10] sm:$0xff] %vm280, %v3575
      %3586 = vst.msk [vmem:[%s819 + $0x18] sm:$0xff] %vm280, %v3576
      %3587 = vst.msk [vmem:[%s819 + $0x20] sm:$0xff] %vm280, %v3577
      %3588 = vst.msk [vmem:[%s819 + $0x28] sm:$0xff] %vm280, %v3578
      %3589 = vst.msk [vmem:[%s819 + $0x30] sm:$0xff] %vm280, %v3579
      %3590 = vst.msk [vmem:[%s819 + $0x38] sm:$0xff] %vm280, %v3580
      %3591 = vst.msk [vmem:[%s819 + $0x40] sm:$0xff] %vm280, %v3581
      %3592 = vst.msk [vmem:[%s819 + $0x48] sm:$0xff] %vm280, %v3582
      %v3593 = vld [vmem:[#allocation3 + $0x14] sm:$0xff]
      %v3594 = vld [vmem:[#allocation3 + $0x1c] sm:$0xff]
      %v3595 = vld [vmem:[#allocation3 + $0x24] sm:$0xff]
      %v3596 = vld [vmem:[#allocation3 + $0x2c] sm:$0xff]
      %v3597 = vld [vmem:[#allocation3 + $0x34] sm:$0xff]
      %v3598 = vld [vmem:[#allocation3 + $0x3c] sm:$0xff]
      %v3599 = vld [vmem:[#allocation3 + $0x44] sm:$0xff]
      %v3600 = vld [vmem:[#allocation3 + $0x4c] sm:$0xff]
      %v3601 = vld [vmem:[#allocation3 + $0x54] sm:$0xff]
      %v3602 = vld [vmem:[#allocation3 + $0x5c] sm:$0xff]
      %v3603 = vpack.c.bf16 %v3594, %v3593
      %v3604 = vpack.c.bf16 %v3596, %v3595
      %v3605 = vpack.c.bf16 %v3598, %v3597
      %v3606 = vpack.c.bf16 %v3600, %v3599
      %v3607 = vpack.c.bf16 %v3602, %v3601
      %v3608 = vld [vmem:[#allocation2] sm:$0xff]
      %v3609 = vld [vmem:[#allocation2 + $0x8] sm:$0xff]
      %v3610 = vld [vmem:[#allocation2 + $0x10] sm:$0xff]
      %v3611 = vld [vmem:[#allocation2 + $0x18] sm:$0xff]
      %v3612 = vld [vmem:[#allocation2 + $0x20] sm:$0xff]
      %v3613 = vld [vmem:[#allocation2 + $0x28] sm:$0xff]
      %v3614 = vld [vmem:[#allocation2 + $0x30] sm:$0xff]
      %v3615 = vld [vmem:[#allocation2 + $0x38] sm:$0xff]
      %v3616 = vld [vmem:[#allocation2 + $0x40] sm:$0xff]
      %v3617 = vld [vmem:[#allocation2 + $0x48] sm:$0xff]
      %s3618 = scalar_lea.vmem %s4, 192
      %v3619 = vld [vmem:[%s3618] sm:$0xf]
      %v3620 = vld [vmem:[%s3618 + $0x4] sm:$0xf]
      %v3621 = vld [vmem:[%s3618 + $0x8] sm:$0xf]
      %v3622 = vld [vmem:[%s3618 + $0xc] sm:$0xf]
      %v3623 = vld [vmem:[%s3618 + $0x10] sm:$0xf]
      %v3624 = vld [vmem:[%s3618 + $0x14] sm:$0xf]
      %v3625 = vld [vmem:[%s3618 + $0x18] sm:$0xf]
      %v3626 = vld [vmem:[%s3618 + $0x1c] sm:$0xf]
      %v3635 = vunpack.c.l.b16 %v3619
      %v3636 = vunpack.c.l.b16 %v3620
      %v3637 = vunpack.c.l.b16 %v3621
      %v3638 = vunpack.c.l.b16 %v3622
      %v3639 = vunpack.c.l.b16 %v3623
      %v3640 = vunpack.c.l.b16 %v3624
      %v3641 = vunpack.c.l.b16 %v3625
      %v3642 = vunpack.c.l.b16 %v3626
      %v3643 = vpack.c.b16 %v3636, %v3635
      %v3644 = vpack.c.b16 %v3638, %v3637
      %v3645 = vpack.c.b16 %v3640, %v3639
      %v3646 = vpack.c.b16 %v3642, %v3641
      %v3652 = vsel %vm280, %v3603, 0
      %v3655 = vsel %vm280, %v3604, 0
      %v3658 = vsel %vm280, %v3605, 0
      %v3661 = vsel %vm280, %v3606, 0
      %v3664 = vsel %vm280, %v3607, 0
      %3666 = vmatprep.subr.bf16.mxu0 0
      %3667 = vmatpush1.bf16.msra.mxu0 %v3643
      %3668 = vmatprep.subr.bf16.mxu0 0
      %3669 = vmatpush1.bf16.msra.mxu0 %v3644
      %3670 = vmatprep.subr.bf16.mxu0 0
      %3671 = vmatpush1.bf16.msra.mxu0 %v3645
      %3672 = vmatprep.subr.bf16.mxu0 0
      %3673 = vmatpush1.bf16.msra.mxu0 %v3646
      %3674 = vmatprep.subr.bf16.mxu0 0
      %3675 = vmatpush1.bf16.msra.mxu0 0
      %3676 = vmatprep.subr.bf16.mxu0 0
      %3677 = vmatpush1.bf16.msra.mxu0 0
      %3678 = vmatprep.subr.bf16.mxu0 0
      %3679 = vmatpush1.bf16.msra.mxu0 0
      %3680 = vmatprep.subr.bf16.mxu0 0
      %3681 = vmatpush1.bf16.msra.mxu0 0
      %3682 = vmatprep.subr.bf16.mxu0 0
      %3683 = vmatpush1.bf16.msra.mxu0 0
      %3684 = vmatprep.subr.bf16.mxu0 0
      %3685 = vmatpush1.bf16.msra.mxu0 0
      %3686 = vmatprep.subr.bf16.mxu0 0
      %3687 = vmatpush1.bf16.msra.mxu0 0
      %3688 = vmatprep.subr.bf16.mxu0 0
      %3689 = vmatpush1.bf16.msra.mxu0 0
      %3690 = vmatprep.subr.bf16.mxu0 0
      %3691 = vmatpush1.bf16.msra.mxu0 0
      %3692 = vmatprep.subr.bf16.mxu0 0
      %3693 = vmatpush1.bf16.msra.mxu0 0
      %3694 = vmatprep.subr.bf16.mxu0 0
      %3695 = vmatpush1.bf16.msra.mxu0 0
      %3696 = vmatprep.subr.bf16.mxu0 0
      %3697 = vmatpush1.bf16.msra.mxu0 0
      %3698 = vmatprep.mubr.bf16.mxu0 0
      %3699 = vmatmul.mubr.bf16.gmra.mrb[0].mxu0 %v3652
      %v3700 = vpop.f32.mrb[0].mxu0
      %v3701 = vadd.f32 0.0, %v3700
      %v3702 = vpop.f32.mrb[0].mxu0
      %v3703 = vpop.f32.mrb[0].mxu0
      %v3704 = vadd.f32 0.0, %v3703
      %v3705 = vpop.f32.mrb[0].mxu0
      %3706 = vmatprep.mubr.bf16.mxu0 0
      %3707 = vmatmul.mubr.bf16.gmra.mrb[0].mxu0 %v3655
      %v3708 = vpop.f32.mrb[0].mxu0
      %v3709 = vadd.f32 0.0, %v3708
      %v3710 = vpop.f32.mrb[0].mxu0
      %v3711 = vpop.f32.mrb[0].mxu0
      %v3712 = vadd.f32 0.0, %v3711
      %v3713 = vpop.f32.mrb[0].mxu0
      %3714 = vmatprep.mubr.bf16.mxu0 0
      %3715 = vmatmul.mubr.bf16.gmra.mrb[0].mxu0 %v3658
      %v3716 = vpop.f32.mrb[0].mxu0
      %v3717 = vadd.f32 0.0, %v3716
      %v3718 = vpop.f32.mrb[0].mxu0
      %v3719 = vpop.f32.mrb[0].mxu0
      %v3720 = vadd.f32 0.0, %v3719
      %v3721 = vpop.f32.mrb[0].mxu0
      %3722 = vmatprep.mubr.bf16.mxu0 0
      %3723 = vmatmul.mubr.bf16.gmra.mrb[0].mxu0 %v3661
      %v3724 = vpop.f32.mrb[0].mxu0
      %v3725 = vadd.f32 0.0, %v3724
      %v3726 = vpop.f32.mrb[0].mxu0
      %v3727 = vpop.f32.mrb[0].mxu0
      %v3728 = vadd.f32 0.0, %v3727
      %v3729 = vpop.f32.mrb[0].mxu0
      %3730 = vmatprep.mubr.bf16.mxu0 0
      %3731 = vmatmul.mubr.bf16.gmra.mrb[0].mxu0 %v3664
      %v3732 = vpop.f32.mrb[0].mxu0
      %v3733 = vadd.f32 0.0, %v3732
      %v3734 = vpop.f32.mrb[0].mxu0
      %v3735 = vpop.f32.mrb[0].mxu0
      %v3736 = vadd.f32 0.0, %v3735
      %v3737 = vpop.f32.mrb[0].mxu0
      %3738 = vdwg.mxu0
      %v3739 = vadd.f32 %v3608, %v3701
      %v3740 = vadd.f32 %v3609, %v3704
      %v3741 = vadd.f32 %v3610, %v3709
      %v3742 = vadd.f32 %v3611, %v3712
      %v3743 = vadd.f32 %v3612, %v3717
      %v3744 = vadd.f32 %v3613, %v3720
      %v3745 = vadd.f32 %v3614, %v3725
      %v3746 = vadd.f32 %v3615, %v3728
      %v3747 = vadd.f32 %v3616, %v3733
      %v3748 = vadd.f32 %v3617, %v3736
      %3749 = vst.msk [vmem:[#allocation2] sm:$0xff] %vm280, %v3739
      %3750 = vst.msk [vmem:[#allocation2 + $0x8] sm:$0xff] %vm280, %v3740
      %3751 = vst.msk [vmem:[#allocation2 + $0x10] sm:$0xff] %vm280, %v3741
      %3752 = vst.msk [vmem:[#allocation2 + $0x18] sm:$0xff] %vm280, %v3742
      %3753 = vst.msk [vmem:[#allocation2 + $0x20] sm:$0xff] %vm280, %v3743
      %3754 = vst.msk [vmem:[#allocation2 + $0x28] sm:$0xff] %vm280, %v3744
      %3755 = vst.msk [vmem:[#allocation2 + $0x30] sm:$0xff] %vm280, %v3745
      %3756 = vst.msk [vmem:[#allocation2 + $0x38] sm:$0xff] %vm280, %v3746
      %3757 = vst.msk [vmem:[#allocation2 + $0x40] sm:$0xff] %vm280, %v3747
      %3758 = vst.msk [vmem:[#allocation2 + $0x48] sm:$0xff] %vm280, %v3748
      %v3759 = vld [vmem:[%s586] sm:$0xff]
      %v3760 = vld [vmem:[%s586 + $0x8] sm:$0xff]
      %v3761 = vld [vmem:[%s586 + $0x10] sm:$0xff]
      %v3762 = vld [vmem:[%s586 + $0x18] sm:$0xff]
      %v3763 = vld [vmem:[%s586 + $0x20] sm:$0xff]
      %v3764 = vld [vmem:[%s586 + $0x28] sm:$0xff]
      %v3765 = vld [vmem:[%s586 + $0x30] sm:$0xff]
      %v3766 = vld [vmem:[%s586 + $0x38] sm:$0xff]
      %v3767 = vld [vmem:[%s586 + $0x40] sm:$0xff]
      %v3768 = vld [vmem:[%s586 + $0x48] sm:$0xff]
      %s3769 = scalar_lea.vmem %s4, 224
      %v3770 = vld [vmem:[%s3769] sm:$0xf]
      %v3771 = vld [vmem:[%s3769 + $0x4] sm:$0xf]
      %v3772 = vld [vmem:[%s3769 + $0x8] sm:$0xf]
      %v3773 = vld [vmem:[%s3769 + $0xc] sm:$0xf]
      %v3774 = vld [vmem:[%s3769 + $0x10] sm:$0xf]
      %v3775 = vld [vmem:[%s3769 + $0x14] sm:$0xf]
      %v3776 = vld [vmem:[%s3769 + $0x18] sm:$0xf]
      %v3777 = vld [vmem:[%s3769 + $0x1c] sm:$0xf]
      %v3786 = vunpack.c.l.b16 %v3770
      %v3787 = vunpack.c.l.b16 %v3771
      %v3788 = vunpack.c.l.b16 %v3772
      %v3789 = vunpack.c.l.b16 %v3773
      %v3790 = vunpack.c.l.b16 %v3774
      %v3791 = vunpack.c.l.b16 %v3775
      %v3792 = vunpack.c.l.b16 %v3776
      %v3793 = vunpack.c.l.b16 %v3777
      %v3794 = vpack.c.b16 %v3787, %v3786
      %v3795 = vpack.c.b16 %v3789, %v3788
      %v3796 = vpack.c.b16 %v3791, %v3790
      %v3797 = vpack.c.b16 %v3793, %v3792
      %3802 = vmatprep.subr.bf16.mxu0 0
      %3803 = vmatpush1.bf16.msra.mxu0 %v3794
      %3804 = vmatprep.subr.bf16.mxu0 0
      %3805 = vmatpush1.bf16.msra.mxu0 %v3795
      %3806 = vmatprep.subr.bf16.mxu0 0
      %3807 = vmatpush1.bf16.msra.mxu0 %v3796
      %3808 = vmatprep.subr.bf16.mxu0 0
      %3809 = vmatpush1.bf16.msra.mxu0 %v3797
      %3810 = vmatprep.subr.bf16.mxu0 0
      %3811 = vmatpush1.bf16.msra.mxu0 0
      %3812 = vmatprep.subr.bf16.mxu0 0
      %3813 = vmatpush1.bf16.msra.mxu0 0
      %3814 = vmatprep.subr.bf16.mxu0 0
      %3815 = vmatpush1.bf16.msra.mxu0 0
      %3816 = vmatprep.subr.bf16.mxu0 0
      %3817 = vmatpush1.bf16.msra.mxu0 0
      %3818 = vmatprep.subr.bf16.mxu0 0
      %3819 = vmatpush1.bf16.msra.mxu0 0
      %3820 = vmatprep.subr.bf16.mxu0 0
      %3821 = vmatpush1.bf16.msra.mxu0 0
      %3822 = vmatprep.subr.bf16.mxu0 0
      %3823 = vmatpush1.bf16.msra.mxu0 0
      %3824 = vmatprep.subr.bf16.mxu0 0
      %3825 = vmatpush1.bf16.msra.mxu0 0
      %3826 = vmatprep.subr.bf16.mxu0 0
      %3827 = vmatpush1.bf16.msra.mxu0 0
      %3828 = vmatprep.subr.bf16.mxu0 0
      %3829 = vmatpush1.bf16.msra.mxu0 0
      %3830 = vmatprep.subr.bf16.mxu0 0
      %3831 = vmatpush1.bf16.msra.mxu0 0
      %3832 = vmatprep.subr.bf16.mxu0 0
      %3833 = vmatpush1.bf16.msra.mxu0 0
      %3834 = vmatprep.mubr.bf16.mxu0 0
      %3835 = vmatmul.mubr.bf16.gmra.mrb[0].mxu0 %v3652
      %v3836 = vpop.f32.mrb[0].mxu0
      %v3837 = vadd.f32 0.0, %v3836
      %v3838 = vpop.f32.mrb[0].mxu0
      %v3839 = vpop.f32.mrb[0].mxu0
      %v3840 = vadd.f32 0.0, %v3839
      %v3841 = vpop.f32.mrb[0].mxu0
      %3842 = vmatprep.mubr.bf16.mxu0 0
      %3843 = vmatmul.mubr.bf16.gmra.mrb[0].mxu0 %v3655
      %v3844 = vpop.f32.mrb[0].mxu0
      %v3845 = vadd.f32 0.0, %v3844
      %v3846 = vpop.f32.mrb[0].mxu0
      %v3847 = vpop.f32.mrb[0].mxu0
      %v3848 = vadd.f32 0.0, %v3847
      %v3849 = vpop.f32.mrb[0].mxu0
      %3850 = vmatprep.mubr.bf16.mxu0 0
      %3851 = vmatmul.mubr.bf16.gmra.mrb[0].mxu0 %v3658
      %v3852 = vpop.f32.mrb[0].mxu0
      %v3853 = vadd.f32 0.0, %v3852
      %v3854 = vpop.f32.mrb[0].mxu0
      %v3855 = vpop.f32.mrb[0].mxu0
      %v3856 = vadd.f32 0.0, %v3855
      %v3857 = vpop.f32.mrb[0].mxu0
      %3858 = vmatprep.mubr.bf16.mxu0 0
      %3859 = vmatmul.mubr.bf16.gmra.mrb[0].mxu0 %v3661
      %v3860 = vpop.f32.mrb[0].mxu0
      %v3861 = vadd.f32 0.0, %v3860
      %v3862 = vpop.f32.mrb[0].mxu0
      %v3863 = vpop.f32.mrb[0].mxu0
      %v3864 = vadd.f32 0.0, %v3863
      %v3865 = vpop.f32.mrb[0].mxu0
      %3866 = vmatprep.mubr.bf16.mxu0 0
      %3867 = vmatmul.mubr.bf16.gmra.mrb[0].mxu0 %v3664
      %v3868 = vpop.f32.mrb[0].mxu0
      %v3869 = vadd.f32 0.0, %v3868
      %v3870 = vpop.f32.mrb[0].mxu0
      %v3871 = vpop.f32.mrb[0].mxu0
      %v3872 = vadd.f32 0.0, %v3871
      %v3873 = vpop.f32.mrb[0].mxu0
      %3874 = vdwg.mxu0
      %v3875 = vadd.f32 %v3759, %v3837
      %v3876 = vadd.f32 %v3760, %v3840
      %v3877 = vadd.f32 %v3761, %v3845
      %v3878 = vadd.f32 %v3762, %v3848
      %v3879 = vadd.f32 %v3763, %v3853
      %v3880 = vadd.f32 %v3764, %v3856
      %v3881 = vadd.f32 %v3765, %v3861
      %v3882 = vadd.f32 %v3766, %v3864
      %v3883 = vadd.f32 %v3767, %v3869
      %v3884 = vadd.f32 %v3768, %v3872
      %3885 = vst.msk [vmem:[%s586] sm:$0xff] %vm280, %v3875
      %3886 = vst.msk [vmem:[%s586 + $0x8] sm:$0xff] %vm280, %v3876
      %3887 = vst.msk [vmem:[%s586 + $0x10] sm:$0xff] %vm280, %v3877
      %3888 = vst.msk [vmem:[%s586 + $0x18] sm:$0xff] %vm280, %v3878
      %3889 = vst.msk [vmem:[%s586 + $0x20] sm:$0xff] %vm280, %v3879
      %3890 = vst.msk [vmem:[%s586 + $0x28] sm:$0xff] %vm280, %v3880
      %3891 = vst.msk [vmem:[%s586 + $0x30] sm:$0xff] %vm280, %v3881
      %3892 = vst.msk [vmem:[%s586 + $0x38] sm:$0xff] %vm280, %v3882
      %3893 = vst.msk [vmem:[%s586 + $0x40] sm:$0xff] %vm280, %v3883
      %3894 = vst.msk [vmem:[%s586 + $0x48] sm:$0xff] %vm280, %v3884
      %v3895 = vld [vmem:[%s819] sm:$0xff]
      %v3896 = vld [vmem:[%s819 + $0x8] sm:$0xff]
      %v3897 = vld [vmem:[%s819 + $0x10] sm:$0xff]
      %v3898 = vld [vmem:[%s819 + $0x18] sm:$0xff]
      %v3899 = vld [vmem:[%s819 + $0x20] sm:$0xff]
      %v3900 = vld [vmem:[%s819 + $0x28] sm:$0xff]
      %v3901 = vld [vmem:[%s819 + $0x30] sm:$0xff]
      %v3902 = vld [vmem:[%s819 + $0x38] sm:$0xff]
      %v3903 = vld [vmem:[%s819 + $0x40] sm:$0xff]
      %v3904 = vld [vmem:[%s819 + $0x48] sm:$0xff]
      %s3905 = scalar_lea.vmem %s4, 256
      %v3906 = vld [vmem:[%s3905] sm:$0xf]
      %v3907 = vld [vmem:[%s3905 + $0x4] sm:$0xf]
      %v3908 = vld [vmem:[%s3905 + $0x8] sm:$0xf]
      %v3909 = vld [vmem:[%s3905 + $0xc] sm:$0xf]
      %v3910 = vld [vmem:[%s3905 + $0x10] sm:$0xf]
      %v3911 = vld [vmem:[%s3905 + $0x14] sm:$0xf]
      %v3912 = vld [vmem:[%s3905 + $0x18] sm:$0xf]
      %v3913 = vld [vmem:[%s3905 + $0x1c] sm:$0xf]
      %v3922 = vunpack.c.l.b16 %v3906
      %v3923 = vunpack.c.l.b16 %v3907
      %v3924 = vunpack.c.l.b16 %v3908
      %v3925 = vunpack.c.l.b16 %v3909
      %v3926 = vunpack.c.l.b16 %v3910
      %v3927 = vunpack.c.l.b16 %v3911
      %v3928 = vunpack.c.l.b16 %v3912
      %v3929 = vunpack.c.l.b16 %v3913
      %v3930 = vpack.c.b16 %v3923, %v3922
      %v3931 = vpack.c.b16 %v3925, %v3924
      %v3932 = vpack.c.b16 %v3927, %v3926
      %v3933 = vpack.c.b16 %v3929, %v3928
      %3938 = vmatprep.subr.bf16.mxu0 0
      %3939 = vmatpush1.bf16.msra.mxu0 %v3930
      %3940 = vmatprep.subr.bf16.mxu0 0
      %3941 = vmatpush1.bf16.msra.mxu0 %v3931
      %3942 = vmatprep.subr.bf16.mxu0 0
      %3943 = vmatpush1.bf16.msra.mxu0 %v3932
      %3944 = vmatprep.subr.bf16.mxu0 0
      %3945 = vmatpush1.bf16.msra.mxu0 %v3933
      %3946 = vmatprep.subr.bf16.mxu0 0
      %3947 = vmatpush1.bf16.msra.mxu0 0
      %3948 = vmatprep.subr.bf16.mxu0 0
      %3949 = vmatpush1.bf16.msra.mxu0 0
      %3950 = vmatprep.subr.bf16.mxu0 0
      %3951 = vmatpush1.bf16.msra.mxu0 0
      %3952 = vmatprep.subr.bf16.mxu0 0
      %3953 = vmatpush1.bf16.msra.mxu0 0
      %3954 = vmatprep.subr.bf16.mxu0 0
      %3955 = vmatpush1.bf16.msra.mxu0 0
      %3956 = vmatprep.subr.bf16.mxu0 0
      %3957 = vmatpush1.bf16.msra.mxu0 0
      %3958 = vmatprep.subr.bf16.mxu0 0
      %3959 = vmatpush1.bf16.msra.mxu0 0
      %3960 = vmatprep.subr.bf16.mxu0 0
      %3961 = vmatpush1.bf16.msra.mxu0 0
      %3962 = vmatprep.subr.bf16.mxu0 0
      %3963 = vmatpush1.bf16.msra.mxu0 0
      %3964 = vmatprep.subr.bf16.mxu0 0
      %3965 = vmatpush1.bf16.msra.mxu0 0
      %3966 = vmatprep.subr.bf16.mxu0 0
      %3967 = vmatpush1.bf16.msra.mxu0 0
      %3968 = vmatprep.subr.bf16.mxu0 0
      %3969 = vmatpush1.bf16.msra.mxu0 0
      %3970 = vmatprep.mubr.bf16.mxu0 0
      %3971 = vmatmul.mubr.bf16.gmra.mrb[0].mxu0 %v3652
      %v3972 = vpop.f32.mrb[0].mxu0
      %v3973 = vadd.f32 0.0, %v3972
      %v3974 = vpop.f32.mrb[0].mxu0
      %v3975 = vpop.f32.mrb[0].mxu0
      %v3976 = vadd.f32 0.0, %v3975
      %v3977 = vpop.f32.mrb[0].mxu0
      %3978 = vmatprep.mubr.bf16.mxu0 0
      %3979 = vmatmul.mubr.bf16.gmra.mrb[0].mxu0 %v3655
      %v3980 = vpop.f32.mrb[0].mxu0
      %v3981 = vadd.f32 0.0, %v3980
      %v3982 = vpop.f32.mrb[0].mxu0
      %v3983 = vpop.f32.mrb[0].mxu0
      %v3984 = vadd.f32 0.0, %v3983
      %v3985 = vpop.f32.mrb[0].mxu0
      %3986 = vmatprep.mubr.bf16.mxu0 0
      %3987 = vmatmul.mubr.bf16.gmra.mrb[0].mxu0 %v3658
      %v3988 = vpop.f32.mrb[0].mxu0
      %v3989 = vadd.f32 0.0, %v3988
      %v3990 = vpop.f32.mrb[0].mxu0
      %v3991 = vpop.f32.mrb[0].mxu0
      %v3992 = vadd.f32 0.0, %v3991
      %v3993 = vpop.f32.mrb[0].mxu0
      %3994 = vmatprep.mubr.bf16.mxu0 0
      %3995 = vmatmul.mubr.bf16.gmra.mrb[0].mxu0 %v3661
      %v3996 = vpop.f32.mrb[0].mxu0
      %v3997 = vadd.f32 0.0, %v3996
      %v3998 = vpop.f32.mrb[0].mxu0
      %v3999 = vpop.f32.mrb[0].mxu0
      %v4000 = vadd.f32 0.0, %v3999
      %v4001 = vpop.f32.mrb[0].mxu0
      %4002 = vmatprep.mubr.bf16.mxu0 0
      %4003 = vmatmul.mubr.bf16.gmra.mrb[0].mxu0 %v3664
      %v4004 = vpop.f32.mrb[0].mxu0
      %v4005 = vadd.f32 0.0, %v4004
      %v4006 = vpop.f32.mrb[0].mxu0
      %v4007 = vpop.f32.mrb[0].mxu0
      %v4008 = vadd.f32 0.0, %v4007
      %v4009 = vpop.f32.mrb[0].mxu0
      %4010 = vdwg.mxu0
      %v4011 = vadd.f32 %v3895, %v3973
      %v4012 = vadd.f32 %v3896, %v3976
      %v4013 = vadd.f32 %v3897, %v3981
      %v4014 = vadd.f32 %v3898, %v3984
      %v4015 = vadd.f32 %v3899, %v3989
      %v4016 = vadd.f32 %v3900, %v3992
      %v4017 = vadd.f32 %v3901, %v3997
      %v4018 = vadd.f32 %v3902, %v4000
      %v4019 = vadd.f32 %v3903, %v4005
      %v4020 = vadd.f32 %v3904, %v4008
      %4021 = vst.msk [vmem:[%s819] sm:$0xff] %vm280, %v4011
      %4022 = vst.msk [vmem:[%s819 + $0x8] sm:$0xff] %vm280, %v4012
      %4023 = vst.msk [vmem:[%s819 + $0x10] sm:$0xff] %vm280, %v4013
      %4024 = vst.msk [vmem:[%s819 + $0x18] sm:$0xff] %vm280, %v4014
      %4025 = vst.msk [vmem:[%s819 + $0x20] sm:$0xff] %vm280, %v4015
      %4026 = vst.msk [vmem:[%s819 + $0x28] sm:$0xff] %vm280, %v4016
      %4027 = vst.msk [vmem:[%s819 + $0x30] sm:$0xff] %vm280, %v4017
      %4028 = vst.msk [vmem:[%s819 + $0x38] sm:$0xff] %vm280, %v4018
      %4029 = vst.msk [vmem:[%s819 + $0x40] sm:$0xff] %vm280, %v4019
      %4030 = vst.msk [vmem:[%s819 + $0x48] sm:$0xff] %vm280, %v4020
      %v4031 = vld [vmem:[%s5] sm:$0x1]
      %v4032 = vld [vmem:[%s6] sm:$0x1]
      %v4033 = vld [vmem:[#allocation2] sm:$0xff]
      %v4034 = vld [vmem:[%s586 + $0x1] sm:$0xff]
      %v4035 = vadd.f32 %v4033, %v4034
      %v4036 = vld [vmem:[%s819 + $0x2] sm:$0xff]
      %v4037 = vadd.f32 %v4035, %v4036
      %v4039 = vlaneseq
      %v4040 = vshrl.u32 %v4039, 7
      %v4041 = vsub.s32 0, %v4040
      %v4042 = vrot.slane %v4031, %v4041
      %v4044 = vmul.f32 %v4037, %v4042
      %v4046 = vlaneseq
      %v4047 = vshrl.u32 %v4046, 7
      %v4048 = vsub.s32 0, %v4047
      %v4049 = vrot.slane %v4032, %v4048
      %v4051 = vadd.f32 %v4044, %v4049
      %v4052 = vmax.f32 %v4051, 0.0
      %4053 = vst.msk [vmem:[%s278] sm:$0xff] %vm280, %v4052
      %v4054 = vld [vmem:[#allocation2 + $0xa] sm:$0xff]
      %v4055 = vld [vmem:[%s586 + $0xb] sm:$0xff]
      %v4056 = vadd.f32 %v4054, %v4055
      %v4057 = vld [vmem:[%s819 + $0xc] sm:$0xff]
      %v4058 = vadd.f32 %v4056, %v4057
      %v4059 = vmul.f32 %v4058, %v4042
      %v4060 = vadd.f32 %v4059, %v4049
      %v4061 = vmax.f32 %v4060, 0.0
      %4062 = vst.msk [vmem:[%s278 + $0x8] sm:$0xff] %vm280, %v4061
      %v4063 = vld [vmem:[#allocation2 + $0x14] sm:$0xff]
      %v4064 = vld [vmem:[%s586 + $0x15] sm:$0xff]
      %v4065 = vadd.f32 %v4063, %v4064
      %v4066 = vld [vmem:[%s819 + $0x16] sm:$0xff]
      %v4067 = vadd.f32 %v4065, %v4066
      %v4068 = vmul.f32 %v4067, %v4042
      %v4069 = vadd.f32 %v4068, %v4049
      %v4070 = vmax.f32 %v4069, 0.0
      %4071 = vst.msk [vmem:[%s278 + $0x10] sm:$0xff] %vm280, %v4070
      %v4072 = vld [vmem:[#allocation2 + $0x1e] sm:$0xff]
      %v4073 = vld [vmem:[%s586 + $0x1f] sm:$0xff]
      %v4074 = vadd.f32 %v4072, %v4073
      %v4075 = vld [vmem:[%s819 + $0x20] sm:$0xff]
      %v4076 = vadd.f32 %v4074, %v4075
      %v4077 = vmul.f32 %v4076, %v4042
      %v4078 = vadd.f32 %v4077, %v4049
      %v4079 = vmax.f32 %v4078, 0.0
      %4080 = vst.msk [vmem:[%s278 + $0x18] sm:$0xff] %vm280, %v4079
      %v4081 = vld [vmem:[#allocation2 + $0x28] sm:$0xff]
      %v4082 = vld [vmem:[%s586 + $0x29] sm:$0xff]
      %v4083 = vadd.f32 %v4081, %v4082
      %v4084 = vld [vmem:[%s819 + $0x2a] sm:$0xff]
      %v4085 = vadd.f32 %v4083, %v4084
      %v4086 = vmul.f32 %v4085, %v4042
      %v4087 = vadd.f32 %v4086, %v4049
      %v4088 = vmax.f32 %v4087, 0.0
      %4089 = vst.msk [vmem:[%s278 + $0x20] sm:$0xff] %vm280, %v4088
      %v4090 = vld [vmem:[#allocation2 + $0x32] sm:$0xff]
      %v4091 = vld [vmem:[%s586 + $0x33] sm:$0xff]
      %v4092 = vadd.f32 %v4090, %v4091
      %v4093 = vld [vmem:[%s819 + $0x34] sm:$0xff]
      %v4094 = vadd.f32 %v4092, %v4093
      %v4095 = vmul.f32 %v4094, %v4042
      %v4096 = vadd.f32 %v4095, %v4049
      %v4097 = vmax.f32 %v4096, 0.0
      %4098 = vst.msk [vmem:[%s278 + $0x28] sm:$0xff] %vm280, %v4097
      %v4099 = vld [vmem:[#allocation2 + $0x3c] sm:$0xff]
      %v4100 = vld [vmem:[%s586 + $0x3d] sm:$0xff]
      %v4101 = vadd.f32 %v4099, %v4100
      %v4102 = vld [vmem:[%s819 + $0x3e] sm:$0xff]
      %v4103 = vadd.f32 %v4101, %v4102
      %v4104 = vmul.f32 %v4103, %v4042
      %v4105 = vadd.f32 %v4104, %v4049
      %v4106 = vmax.f32 %v4105, 0.0
      %4107 = vst.msk [vmem:[%s278 + $0x30] sm:$0xff] %vm280, %v4106
      %v4108 = vld [vmem:[#allocation2 + $0x46] sm:$0xff]
      %v4109 = vld [vmem:[%s586 + $0x47] sm:$0xff]
      %v4110 = vadd.f32 %v4108, %v4109
      %v4111 = vld [vmem:[%s819 + $0x48] sm:$0xff]
      %v4112 = vadd.f32 %v4110, %v4111
      %v4113 = vmul.f32 %v4112, %v4042
      %v4114 = vadd.f32 %v4113, %v4049
      %v4115 = vmax.f32 %v4114, 0.0
      %4116 = vst.msk [vmem:[%s278 + $0x38] sm:$0xff] %vm280, %v4115
      %p4117 = scmp.lt.s32.totalorder %s18, 1
      %s4118 = scalar_select %p4117, %s18, 1
      %s4119 = smul.addr %s4118, 8
      %s4120 = smul.addr %s4119, 8
      %s4121 = scalar_lea.vmem %s7, %s4120
      // Predicated region
      $region49: #{downsample_block_fuse.7} parent=47 // pred_check
        %p4122 = pneg %p188
      $region50: #{downsample_block_fuse.7} parent=47 // pred_check_branch
        %4124 = sbr.rel (%p4122) target = $region52
      $region51: #{downsample_block_fuse.7} parent=47 // pred_region
        _
      $region52: #{downsample_block_fuse.7} parent=47 // pred_fallthru
        _
    $region48: #{downsample_block_fuse.7} parent=5 // pred_fallthru
      _
    %p4125 = scmp.le.s32.totalorder 2, %s13
    // Predicated region
    $region53: #{downsample_block_fuse.7} parent=5 // pred_check
      %p4126 = pneg %p4125
    $region54: #{downsample_block_fuse.7} parent=5 // pred_check_branch
      %4128 = sbr.rel (%p4126) target = $region56
    $region55: #{downsample_block_fuse.7} parent=5 // pred_region
      %s4129 = ssub.s32 %s13, 2
      // Predicated region
      $region57: #{downsample_block_fuse.7} parent=55 // pred_check
        %p4130 = pneg %p194
      $region58: #{downsample_block_fuse.7} parent=55 // pred_check_branch
        %4132 = sbr.rel (%p4130) target = $region60
      $region59: #{downsample_block_fuse.7} parent=55 // pred_region
        %p4133 = scmp.lt.s32.totalorder %s19, 1
        %s4134 = scalar_select %p4133, %s19, 1
        %s4135 = smul.addr %s4134, 8
        %s4136 = smul.addr %s4135, 8
        %s4137 = scalar_lea.vmem %s7, %s4136
      $region60: #{downsample_block_fuse.7} parent=55 // pred_fallthru
        _
    $region56: #{downsample_block_fuse.7} parent=5 // pred_fallthru
      _
  $region6: #{downsample_block_fuse.7} parent=0 // loop_footer
    %s17 = sadd.s32 1, %s13
  $region7: #{downsample_block_fuse.7} parent=0 // loop_footer_branch
    %12 = sbr.rel target = $region3
  $region8: #{downsample_block_fuse.7} parent=0 // loop_exit
    _

</llo_original>
